<compile_context>
chip_gen: v5e
topology: v5e:2x2
jax: 0.10.0
libtpu: 0.0.40
codegen_flags: <defaults>
</compile_context>

<pallas_src>
import functools

import jax
import jax.numpy as jnp
from jax.experimental import pallas as pl
from jax.experimental.pallas import tpu as pltpu

CPAD = 128          # lane-padded channel width used throughout
BN_EPS = 1e-5


# --------------------------- kernels ---------------------------

def _conv_tile(xp_ref, w_ref, lhs_ref, H, W):
    """3x3 conv of one image block as a single MXU matmul.

    xp_ref : (1, H+2, W+2, CPAD) bf16, replicate-padded input block
    w_ref  : (9*CPAD, CPAD)      bf16, tap-major weight matrix
    lhs_ref: (H*W, 9*CPAD)       bf16, VMEM scratch for the im2col lhs
    returns (H*W, CPAD) f32 conv output for this image.
    """
    x = xp_ref[0]                                          # (H+2, W+2, CPAD)
    t = 0
    for dy in range(3):
        for dx in range(3):
            tap = x[dy:dy + H, dx:dx + W, :].reshape(H * W, CPAD)
            lhs_ref[:, t * CPAD:(t + 1) * CPAD] = tap      # lane-aligned slice store
            t += 1
    return jnp.dot(lhs_ref[...], w_ref[...], preferred_element_type=jnp.float32)


def _stats_kernel(xp_ref, w_ref, stats_ref, lhs_ref, *, H, W):
    """Pass 1: accumulate per-channel sum / sum-of-squares of the conv output."""
    acc = _conv_tile(xp_ref, w_ref, lhs_ref, H, W)         # (H*W, CPAD) f32
    s = jnp.sum(acc, axis=0, keepdims=True)                # (1, CPAD)
    ss = jnp.sum(acc * acc, axis=0, keepdims=True)         # (1, CPAD)
    part = jnp.concatenate([s, ss], axis=0)                # (2, CPAD)

    @pl.when(pl.program_id(0) == 0)
    def _():
        stats_ref[...] = jnp.zeros_like(stats_ref)

    stats_ref[...] += part


def _apply_kernel(xp_ref, w_ref, stats_ref, g_ref, b_ref, o_ref, lhs_ref,
                  *, H, W, m_total):
    """Pass 2: recompute conv, apply BN (global batch stats) + ReLU, lane-dense store."""
    acc = _conv_tile(xp_ref, w_ref, lhs_ref, H, W)         # (H*W, CPAD) f32
    inv_m = 1.0 / float(m_total)
    st = stats_ref[...]                                    # (2, CPAD)
    mean = st[0:1, :] * inv_m
    var = jnp.maximum(st[1:2, :] * inv_m - mean * mean, 0.0)
    scale = jax.lax.rsqrt(var + BN_EPS) * g_ref[...]       # (1, CPAD); padded lanes: g=0
    y = (acc - mean) * scale + b_ref[...]
    o_ref[0] = jnp.maximum(y, 0.0)


# --------------------------- wrappers ---------------------------

def _pad_input(x_nhwc):
    """Replicate-pad H/W by 1, zero-pad channels to CPAD, cast to bf16."""
    n, h, w, c = x_nhwc.shape
    xp = jnp.pad(x_nhwc, ((0, 0), (1, 1), (1, 1), (0, 0)), mode="edge")
    if c < CPAD:
        xp = jnp.pad(xp, ((0, 0), (0, 0), (0, 0), (0, CPAD - c)))
    return xp.astype(jnp.bfloat16)


def _pack_weight(w9):
    """(9, Cin, Cout) f32 -> (9*CPAD, CPAD) bf16, zero-padded in both channel dims."""
    _, cin, cout = w9.shape
    wp = jnp.zeros((9, CPAD, CPAD), jnp.float32).at[:, :cin, :cout].set(w9)
    return wp.reshape(9 * CPAD, CPAD).astype(jnp.bfloat16)


def _pad_vec(v):
    # zero padding is essential: padded BN lanes get gamma=0 / beta=0 -> output stays 0.
    return jnp.zeros((1, CPAD), jnp.float32).at[0, :v.shape[0]].set(v)


def conv_bn_relu(x_nhwc, w9, gamma, beta):
    """One (conv3x3 replicate-pad -> BN(train) -> ReLU) stage.

    x_nhwc may already carry zero-padded channels up to CPAD; output is
    (N, H, W, CPAD) f32 with channels >= Cout exactly zero.
    Conv bias is intentionally omitted: training-mode BN cancels it exactly.
    """
    n, h, w_sp, _ = x_nhwc.shape
    m_total = n * h * w_sp

    xp = _pad_input(x_nhwc)                   # (N, H+2, W+2, CPAD) bf16
    wp = _pack_weight(w9)                     # (9*CPAD, CPAD) bf16
    g = _pad_vec(gamma)                       # (1, CPAD) f32
    b = _pad_vec(beta)                        # (1, CPAD) f32

    in_block = pl.BlockSpec((1, h + 2, w_sp + 2, CPAD), lambda i: (i, 0, 0, 0))
    w_block = pl.BlockSpec((9 * CPAD, CPAD), lambda i: (0, 0))
    lhs_scratch = pltpu.VMEM((h * w_sp, 9 * CPAD), jnp.bfloat16)

    conv_flops = 2 * m_total * (9 * CPAD) * CPAD
    in_bytes = xp.size * 2 + wp.size * 2

    # ---- Pass 1: global per-channel sum / sum-of-squares of the conv output ----
    stats = pl.pallas_call(
        functools.partial(_stats_kernel, H=h, W=w_sp),
        out_shape=jax.ShapeDtypeStruct((2, CPAD), jnp.float32),
        grid_spec=pltpu.PrefetchScalarGridSpec(
            num_scalar_prefetch=0,
            grid=(n,),
            in_specs=[in_block, w_block],
            out_specs=pl.BlockSpec((2, CPAD), lambda i: (0, 0)),
            scratch_shapes=[lhs_scratch],
        ),
        compiler_params=pltpu.CompilerParams(
            dimension_semantics=("arbitrary",),
            vmem_limit_bytes=32 * 1024 * 1024,
        ),
        cost_estimate=pl.CostEstimate(
            flops=conv_flops, transcendentals=0,
            bytes_accessed=in_bytes + 2 * CPAD * 4),
    )(xp, wp)

    # ---- Pass 2: conv + BN(batch stats) + ReLU, lane-dense (N, H*W, CPAD) output ----
    y = pl.pallas_call(
        functools.partial(_apply_kernel, H=h, W=w_sp, m_total=m_total),
        out_shape=jax.ShapeDtypeStruct((n, h * w_sp, CPAD), jnp.float32),
        grid_spec=pltpu.PrefetchScalarGridSpec(
            num_scalar_prefetch=0,
            grid=(n,),
            in_specs=[in_block, w_block,
                      pl.BlockSpec((2, CPAD), lambda i: (0, 0)),
                      pl.BlockSpec((1, CPAD), lambda i: (0, 0)),
                      pl.BlockSpec((1, CPAD), lambda i: (0, 0))],
            out_specs=pl.BlockSpec((1, h * w_sp, CPAD), lambda i: (i, 0, 0)),
            scratch_shapes=[lhs_scratch],
        ),
        compiler_params=pltpu.CompilerParams(
            dimension_semantics=("parallel",),
            vmem_limit_bytes=32 * 1024 * 1024,
        ),
        cost_estimate=pl.CostEstimate(
            flops=conv_flops, transcendentals=CPAD,
            bytes_accessed=in_bytes + m_total * CPAD * 4),
    )(xp, wp, stats, g, b)

    return y.reshape(n, h, w_sp, CPAD)


@jax.jit
def double_conv(x_nchw, params):
    x = jnp.transpose(x_nchw, (0, 2, 3, 1))                          # NCHW -> NHWC
    # Conv biases (params["b1"], params["b2"]) are deliberately not used:
    # training-mode BatchNorm subtracts the per-channel mean, which cancels them exactly.
    h1 = conv_bn_relu(x, params["w1"], params["g1"], params["bt1"])  # (N,H,W,CPAD)
    h2 = conv_bn_relu(h1, params["w2"], params["g2"], params["bt2"])
    cout = params["w2"].shape[-1]
    return jnp.transpose(h2[..., :cout], (0, 3, 1, 2))               # NHWC -> NCHW


# ---------- pure-JAX reference (f32, includes the conv bias) ----------

def _ref_conv_bn_relu(x_nhwc, w9, b, g, beta):
    n, h, w_sp, cin = x_nhwc.shape
    cout = w9.shape[-1]
    xp = jnp.pad(x_nhwc, ((0, 0), (1, 1), (1, 1), (0, 0)), mode="edge")
    wh = w9.reshape(3, 3, cin, cout)
    y = jax.lax.conv_general_dilated(
        xp, wh, window_strides=(1, 1), padding="VALID",
        dimension_numbers=("NHWC", "HWIO", "NHWC"),
        precision=jax.lax.Precision.HIGHEST) + b
    mean = jnp.mean(y, axis=(0, 1, 2), keepdims=True)
    var = jnp.mean(jnp.square(y - mean), axis=(0, 1, 2), keepdims=True)
    y = (y - mean) * jax.lax.rsqrt(var + BN_EPS) * g + beta
    return jnp.maximum(y, 0.0)


def _ref_double_conv(x_nchw, params):
    x = jnp.transpose(x_nchw, (0, 2, 3, 1))
    y = _ref_conv_bn_relu(x, params["w1"], params["b1"], params["g1"], params["bt1"])
    y = _ref_conv_bn_relu(y, params["w2"], params["b2"], params["g2"], params["bt2"])
    return jnp.transpose(y, (0, 3, 1, 2))


if __name__ == "__main__":
    N, Cin, H, W = 2, 4, 16, 16
    Cmid = Cout = 8   # DoubleConv(in_chan=4, out_chan=8) -> mid_chan = out_chan = 8

    key = jax.random.PRNGKey(0)
    k1, k2, k3, k4, kx = jax.random.split(key, 5)

    params = {
        "w1": jax.random.normal(k1, (9, Cin, Cmid), jnp.float32) / jnp.sqrt(9.0 * Cin),
        "b1": jax.random.normal(k2, (Cmid,), jnp.float32) * 0.1,
        "g1": jnp.ones((Cmid,), jnp.float32),    # BatchNorm gamma (PyTorch init)
        "bt1": jnp.zeros((Cmid,), jnp.float32),  # BatchNorm beta  (PyTorch init)
        "w2": jax.random.normal(k3, (9, Cmid, Cout), jnp.float32) / jnp.sqrt(9.0 * Cmid),
        "b2": jax.random.normal(k4, (Cout,), jnp.float32) * 0.1,
        "g2": jnp.ones((Cout,), jnp.float32),
        "bt2": jnp.zeros((Cout,), jnp.float32),
    }

    x = jax.random.normal(kx, (N, Cin, H, W), jnp.float32)

    out = jax.block_until_ready(double_conv(x, params))
    assert out.shape == (N, Cout, H, W), out.shape

    ref = jax.block_until_ready(_ref_double_conv(x, params))
    max_err = float(jnp.max(jnp.abs(out - ref)))
    # bf16 MXU inputs with f32 accumulation vs. the all-f32 reference: ~1e-2 abs error.
    assert jnp.allclose(out, ref, atol=3e-2, rtol=3e-2), max_err

    print("KERNEL_OK")
</pallas_src>

<mosaic_0001>
module attributes {stable_mosaic.version = 11 : i64} {
  func.func @_stats_kernel(%arg0: i32, %arg1: memref<1x18x18x128xbf16, #tpu.memory_space<vmem>>, %arg2: memref<1152x128xbf16, #tpu.memory_space<vmem>>, %arg3: memref<2x128xf32, #tpu.memory_space<vmem>>, %arg4: memref<256x1152xbf16, #tpu.memory_space<vmem>>) attributes {dimension_semantics = [#tpu.dimension_semantics<arbitrary>], iteration_bounds = array<i64: 2>, scalar_prefetch = 0 : i64, scratch_operands = 1 : i64, tpu.core_type = #tpu.core_type<tc>, window_params = [{transform_indices = @transform_0, window_bounds = array<i64: 1, 18, 18, 128>}, {pipeline_mode = #tpu.pipeline_mode<synchronous>, transform_indices = @transform_1, window_bounds = array<i64: 1152, 128>}, {pipeline_mode = #tpu.pipeline_mode<synchronous>, transform_indices = @transform_2, window_bounds = array<i64: 2, 128>}]} {
    %c0 = arith.constant 0 : index
    %c0_0 = arith.constant 0 : index
    %c0_1 = arith.constant 0 : index
    %c0_2 = arith.constant 0 : index
    %0 = vector.load %arg1[%c0, %c0_0, %c0_1, %c0_2] : memref<1x18x18x128xbf16, #tpu.memory_space<vmem>>, vector<1x18x18x128xbf16>
    %1 = vector.shape_cast %0 : vector<1x18x18x128xbf16> to vector<18x18x128xbf16>
    %2 = vector.extract_strided_slice %1 {offsets = [0, 0, 0], sizes = [16, 16, 128], strides = [1, 1, 1]} : vector<18x18x128xbf16> to vector<16x16x128xbf16>
    %3 = vector.shape_cast %2 : vector<16x16x128xbf16> to vector<256x128xbf16>
    %c0_3 = arith.constant 0 : index
    %c0_4 = arith.constant 0 : index
    %4 = vector.load %arg4[%c0_3, %c0_4] : memref<256x1152xbf16, #tpu.memory_space<vmem>>, vector<256x128xbf16>
    tpu.vector_store %arg4[%c0_3, %c0_4], %3 {strides = array<i32>} : memref<256x1152xbf16, #tpu.memory_space<vmem>>, vector<256x128xbf16>,
    %5 = vector.extract_strided_slice %1 {offsets = [0, 1, 0], sizes = [16, 16, 128], strides = [1, 1, 1]} : vector<18x18x128xbf16> to vector<16x16x128xbf16>
    %6 = vector.shape_cast %5 : vector<16x16x128xbf16> to vector<256x128xbf16>
    %c0_5 = arith.constant 0 : index
    %c128 = arith.constant 128 : index
    %7 = vector.load %arg4[%c0_5, %c128] : memref<256x1152xbf16, #tpu.memory_space<vmem>>, vector<256x128xbf16>
    tpu.vector_store %arg4[%c0_5, %c128], %6 {strides = array<i32>} : memref<256x1152xbf16, #tpu.memory_space<vmem>>, vector<256x128xbf16>,
    %8 = vector.extract_strided_slice %1 {offsets = [0, 2, 0], sizes = [16, 16, 128], strides = [1, 1, 1]} : vector<18x18x128xbf16> to vector<16x16x128xbf16>
    %9 = vector.shape_cast %8 : vector<16x16x128xbf16> to vector<256x128xbf16>
    %c0_6 = arith.constant 0 : index
    %c256 = arith.constant 256 : index
    %10 = vector.load %arg4[%c0_6, %c256] : memref<256x1152xbf16, #tpu.memory_space<vmem>>, vector<256x128xbf16>
    tpu.vector_store %arg4[%c0_6, %c256], %9 {strides = array<i32>} : memref<256x1152xbf16, #tpu.memory_space<vmem>>, vector<256x128xbf16>,
    %11 = vector.extract_strided_slice %1 {offsets = [1, 0, 0], sizes = [16, 16, 128], strides = [1, 1, 1]} : vector<18x18x128xbf16> to vector<16x16x128xbf16>
    %12 = vector.shape_cast %11 : vector<16x16x128xbf16> to vector<256x128xbf16>
    %c0_7 = arith.constant 0 : index
    %c384 = arith.constant 384 : index
    %13 = vector.load %arg4[%c0_7, %c384] : memref<256x1152xbf16, #tpu.memory_space<vmem>>, vector<256x128xbf16>
    tpu.vector_store %arg4[%c0_7, %c384], %12 {strides = array<i32>} : memref<256x1152xbf16, #tpu.memory_space<vmem>>, vector<256x128xbf16>,
    %14 = vector.extract_strided_slice %1 {offsets = [1, 1, 0], sizes = [16, 16, 128], strides = [1, 1, 1]} : vector<18x18x128xbf16> to vector<16x16x128xbf16>
    %15 = vector.shape_cast %14 : vector<16x16x128xbf16> to vector<256x128xbf16>
    %c0_8 = arith.constant 0 : index
    %c512 = arith.constant 512 : index
    %16 = vector.load %arg4[%c0_8, %c512] : memref<256x1152xbf16, #tpu.memory_space<vmem>>, vector<256x128xbf16>
    tpu.vector_store %arg4[%c0_8, %c512], %15 {strides = array<i32>} : memref<256x1152xbf16, #tpu.memory_space<vmem>>, vector<256x128xbf16>,
    %17 = vector.extract_strided_slice %1 {offsets = [1, 2, 0], sizes = [16, 16, 128], strides = [1, 1, 1]} : vector<18x18x128xbf16> to vector<16x16x128xbf16>
    %18 = vector.shape_cast %17 : vector<16x16x128xbf16> to vector<256x128xbf16>
    %c0_9 = arith.constant 0 : index
    %c640 = arith.constant 640 : index
    %19 = vector.load %arg4[%c0_9, %c640] : memref<256x1152xbf16, #tpu.memory_space<vmem>>, vector<256x128xbf16>
    tpu.vector_store %arg4[%c0_9, %c640], %18 {strides = array<i32>} : memref<256x1152xbf16, #tpu.memory_space<vmem>>, vector<256x128xbf16>,
    %20 = vector.extract_strided_slice %1 {offsets = [2, 0, 0], sizes = [16, 16, 128], strides = [1, 1, 1]} : vector<18x18x128xbf16> to vector<16x16x128xbf16>
    %21 = vector.shape_cast %20 : vector<16x16x128xbf16> to vector<256x128xbf16>
    %c0_10 = arith.constant 0 : index
    %c768 = arith.constant 768 : index
    %22 = vector.load %arg4[%c0_10, %c768] : memref<256x1152xbf16, #tpu.memory_space<vmem>>, vector<256x128xbf16>
    tpu.vector_store %arg4[%c0_10, %c768], %21 {strides = array<i32>} : memref<256x1152xbf16, #tpu.memory_space<vmem>>, vector<256x128xbf16>,
    %23 = vector.extract_strided_slice %1 {offsets = [2, 1, 0], sizes = [16, 16, 128], strides = [1, 1, 1]} : vector<18x18x128xbf16> to vector<16x16x128xbf16>
    %24 = vector.shape_cast %23 : vector<16x16x128xbf16> to vector<256x128xbf16>
    %c0_11 = arith.constant 0 : index
    %c896 = arith.constant 896 : index
    %25 = vector.load %arg4[%c0_11, %c896] : memref<256x1152xbf16, #tpu.memory_space<vmem>>, vector<256x128xbf16>
    tpu.vector_store %arg4[%c0_11, %c896], %24 {strides = array<i32>} : memref<256x1152xbf16, #tpu.memory_space<vmem>>, vector<256x128xbf16>,
    %26 = vector.extract_strided_slice %1 {offsets = [2, 2, 0], sizes = [16, 16, 128], strides = [1, 1, 1]} : vector<18x18x128xbf16> to vector<16x16x128xbf16>
    %27 = vector.shape_cast %26 : vector<16x16x128xbf16> to vector<256x128xbf16>
    %c0_12 = arith.constant 0 : index
    %c1024 = arith.constant 1024 : index
    %28 = vector.load %arg4[%c0_12, %c1024] : memref<256x1152xbf16, #tpu.memory_space<vmem>>, vector<256x128xbf16>
    tpu.vector_store %arg4[%c0_12, %c1024], %27 {strides = array<i32>} : memref<256x1152xbf16, #tpu.memory_space<vmem>>, vector<256x128xbf16>,
    %c0_13 = arith.constant 0 : index
    %c0_14 = arith.constant 0 : index
    %29 = vector.load %arg4[%c0_13, %c0_14] : memref<256x1152xbf16, #tpu.memory_space<vmem>>, vector<256x1152xbf16>
    %c0_15 = arith.constant 0 : index
    %c0_16 = arith.constant 0 : index
    %30 = vector.load %arg2[%c0_15, %c0_16] : memref<1152x128xbf16, #tpu.memory_space<vmem>>, vector<1152x128xbf16>
    %cst = arith.constant dense<0.000000e+00> : vector<256x128xf32>
    %31 = tpu.matmul %29, %30, %cst {dimension_numbers = #tpu.dot_dimension_numbers<[1], [0], [0], [1], [0, 0, 1, 1], [], []>} : vector<256x1152xbf16>, vector<1152x128xbf16>, vector<256x128xf32> -> vector<256x128xf32>
    %cst_17 = arith.constant dense<0.000000e+00> : vector<128xf32>
    %32 = vector.multi_reduction <add>, %31, %cst_17 [0] : vector<256x128xf32> to vector<128xf32>
    %33 = vector.shape_cast %32 : vector<128xf32> to vector<1x128xf32>
    %34 = arith.mulf %31, %31 : vector<256x128xf32>
    %cst_18 = arith.constant dense<0.000000e+00> : vector<128xf32>
    %35 = vector.multi_reduction <add>, %34, %cst_18 [0] : vector<256x128xf32> to vector<128xf32>
    %36 = vector.shape_cast %35 : vector<128xf32> to vector<1x128xf32>
    %37 = tpu.concatenate %33, %36 in 0 : vector<1x128xf32>, vector<1x128xf32> -> vector<2x128xf32>
    %c0_i32 = arith.constant 0 : i32
    %38 = arith.cmpi eq, %arg0, %c0_i32 : i32
    %39 = arith.extui %38 : i1 to i32
    %c0_i32_19 = arith.constant 0 : i32
    %40 = arith.cmpi ne, %39, %c0_i32_19 : i32
    scf.if %40 {
      %cst_24 = arith.constant 0.000000e+00 : f32
      %44 = vector.broadcast %cst_24 : f32 to vector<2x128xf32>
      %c0_25 = arith.constant 0 : index
      %c0_26 = arith.constant 0 : index
      %45 = vector.load %arg3[%c0_25, %c0_26] : memref<2x128xf32, #tpu.memory_space<vmem>>, vector<2x128xf32>
      tpu.vector_store %arg3[%c0_25, %c0_26], %44 {strides = array<i32>} : memref<2x128xf32, #tpu.memory_space<vmem>>, vector<2x128xf32>,
    } else {
    }
    %c0_20 = arith.constant 0 : index
    %c0_21 = arith.constant 0 : index
    %41 = vector.load %arg3[%c0_20, %c0_21] : memref<2x128xf32, #tpu.memory_space<vmem>>, vector<2x128xf32>
    %42 = arith.addf %41, %37 : vector<2x128xf32>
    %c0_22 = arith.constant 0 : index
    %c0_23 = arith.constant 0 : index
    %43 = vector.load %arg3[%c0_22, %c0_23] : memref<2x128xf32, #tpu.memory_space<vmem>>, vector<2x128xf32>
    tpu.vector_store %arg3[%c0_22, %c0_23], %42 {strides = array<i32>} : memref<2x128xf32, #tpu.memory_space<vmem>>, vector<2x128xf32>,
    return
  }
  func.func @transform_0(%arg0: i32) -> (i32, i32, i32, i32) {
    %c0_i32 = arith.constant 0 : i32
    %c0_i32_0 = arith.constant 0 : i32
    %c0_i32_1 = arith.constant 0 : i32
    %c0_i32_2 = arith.constant 0 : i32
    return %arg0, %c0_i32, %c0_i32_0, %c0_i32_1 : i32, i32, i32, i32
  }
  func.func @transform_1(%arg0: i32) -> (i32, i32) {
    %c0_i32 = arith.constant 0 : i32
    %c0_i32_0 = arith.constant 0 : i32
    %c0_i32_1 = arith.constant 0 : i32
    return %c0_i32, %c0_i32_0 : i32, i32
  }
  func.func @transform_2(%arg0: i32) -> (i32, i32) {
    %c0_i32 = arith.constant 0 : i32
    %c0_i32_0 = arith.constant 0 : i32
    %c0_i32_1 = arith.constant 0 : i32
    return %c0_i32, %c0_i32_0 : i32, i32
  }
}

module attributes {stable_mosaic.version = 11 : i64} {
  func.func @_apply_kernel(%arg0: i32, %arg1: memref<1x18x18x128xbf16, #tpu.memory_space<vmem>>, %arg2: memref<1152x128xbf16, #tpu.memory_space<vmem>>, %arg3: memref<2x128xf32, #tpu.memory_space<vmem>>, %arg4: memref<1x128xf32, #tpu.memory_space<vmem>>, %arg5: memref<1x128xf32, #tpu.memory_space<vmem>>, %arg6: memref<1x256x128xf32, #tpu.memory_space<vmem>>, %arg7: memref<256x1152xbf16, #tpu.memory_space<vmem>>) attributes {dimension_semantics = [#tpu.dimension_semantics<parallel>], iteration_bounds = array<i64: 2>, scalar_prefetch = 0 : i64, scratch_operands = 1 : i64, tpu.core_type = #tpu.core_type<tc>, window_params = [{transform_indices = @transform_0, window_bounds = array<i64: 1, 18, 18, 128>}, {pipeline_mode = #tpu.pipeline_mode<synchronous>, transform_indices = @transform_1, window_bounds = array<i64: 1152, 128>}, {pipeline_mode = #tpu.pipeline_mode<synchronous>, transform_indices = @transform_2, window_bounds = array<i64: 2, 128>}, {pipeline_mode = #tpu.pipeline_mode<synchronous>, transform_indices = @transform_3, window_bounds = array<i64: 1, 128>}, {pipeline_mode = #tpu.pipeline_mode<synchronous>, transform_indices = @transform_4, window_bounds = array<i64: 1, 128>}, {transform_indices = @transform_5, window_bounds = array<i64: 1, 256, 128>}]} {
    %c0 = arith.constant 0 : index
    %c0_0 = arith.constant 0 : index
    %c0_1 = arith.constant 0 : index
    %c0_2 = arith.constant 0 : index
    %0 = vector.load %arg1[%c0, %c0_0, %c0_1, %c0_2] : memref<1x18x18x128xbf16, #tpu.memory_space<vmem>>, vector<1x18x18x128xbf16>
    %1 = vector.shape_cast %0 : vector<1x18x18x128xbf16> to vector<18x18x128xbf16>
    %2 = vector.extract_strided_slice %1 {offsets = [0, 0, 0], sizes = [16, 16, 128], strides = [1, 1, 1]} : vector<18x18x128xbf16> to vector<16x16x128xbf16>
    %3 = vector.shape_cast %2 : vector<16x16x128xbf16> to vector<256x128xbf16>
    %c0_3 = arith.constant 0 : index
    %c0_4 = arith.constant 0 : index
    %4 = vector.load %arg7[%c0_3, %c0_4] : memref<256x1152xbf16, #tpu.memory_space<vmem>>, vector<256x128xbf16>
    tpu.vector_store %arg7[%c0_3, %c0_4], %3 {strides = array<i32>} : memref<256x1152xbf16, #tpu.memory_space<vmem>>, vector<256x128xbf16>,
    %5 = vector.extract_strided_slice %1 {offsets = [0, 1, 0], sizes = [16, 16, 128], strides = [1, 1, 1]} : vector<18x18x128xbf16> to vector<16x16x128xbf16>
    %6 = vector.shape_cast %5 : vector<16x16x128xbf16> to vector<256x128xbf16>
    %c0_5 = arith.constant 0 : index
    %c128 = arith.constant 128 : index
    %7 = vector.load %arg7[%c0_5, %c128] : memref<256x1152xbf16, #tpu.memory_space<vmem>>, vector<256x128xbf16>
    tpu.vector_store %arg7[%c0_5, %c128], %6 {strides = array<i32>} : memref<256x1152xbf16, #tpu.memory_space<vmem>>, vector<256x128xbf16>,
    %8 = vector.extract_strided_slice %1 {offsets = [0, 2, 0], sizes = [16, 16, 128], strides = [1, 1, 1]} : vector<18x18x128xbf16> to vector<16x16x128xbf16>
    %9 = vector.shape_cast %8 : vector<16x16x128xbf16> to vector<256x128xbf16>
    %c0_6 = arith.constant 0 : index
    %c256 = arith.constant 256 : index
    %10 = vector.load %arg7[%c0_6, %c256] : memref<256x1152xbf16, #tpu.memory_space<vmem>>, vector<256x128xbf16>
    tpu.vector_store %arg7[%c0_6, %c256], %9 {strides = array<i32>} : memref<256x1152xbf16, #tpu.memory_space<vmem>>, vector<256x128xbf16>,
    %11 = vector.extract_strided_slice %1 {offsets = [1, 0, 0], sizes = [16, 16, 128], strides = [1, 1, 1]} : vector<18x18x128xbf16> to vector<16x16x128xbf16>
    %12 = vector.shape_cast %11 : vector<16x16x128xbf16> to vector<256x128xbf16>
    %c0_7 = arith.constant 0 : index
    %c384 = arith.constant 384 : index
    %13 = vector.load %arg7[%c0_7, %c384] : memref<256x1152xbf16, #tpu.memory_space<vmem>>, vector<256x128xbf16>
    tpu.vector_store %arg7[%c0_7, %c384], %12 {strides = array<i32>} : memref<256x1152xbf16, #tpu.memory_space<vmem>>, vector<256x128xbf16>,
    %14 = vector.extract_strided_slice %1 {offsets = [1, 1, 0], sizes = [16, 16, 128], strides = [1, 1, 1]} : vector<18x18x128xbf16> to vector<16x16x128xbf16>
    %15 = vector.shape_cast %14 : vector<16x16x128xbf16> to vector<256x128xbf16>
    %c0_8 = arith.constant 0 : index
    %c512 = arith.constant 512 : index
    %16 = vector.load %arg7[%c0_8, %c512] : memref<256x1152xbf16, #tpu.memory_space<vmem>>, vector<256x128xbf16>
    tpu.vector_store %arg7[%c0_8, %c512], %15 {strides = array<i32>} : memref<256x1152xbf16, #tpu.memory_space<vmem>>, vector<256x128xbf16>,
    %17 = vector.extract_strided_slice %1 {offsets = [1, 2, 0], sizes = [16, 16, 128], strides = [1, 1, 1]} : vector<18x18x128xbf16> to vector<16x16x128xbf16>
    %18 = vector.shape_cast %17 : vector<16x16x128xbf16> to vector<256x128xbf16>
    %c0_9 = arith.constant 0 : index
    %c640 = arith.constant 640 : index
    %19 = vector.load %arg7[%c0_9, %c640] : memref<256x1152xbf16, #tpu.memory_space<vmem>>, vector<256x128xbf16>
    tpu.vector_store %arg7[%c0_9, %c640], %18 {strides = array<i32>} : memref<256x1152xbf16, #tpu.memory_space<vmem>>, vector<256x128xbf16>,
    %20 = vector.extract_strided_slice %1 {offsets = [2, 0, 0], sizes = [16, 16, 128], strides = [1, 1, 1]} : vector<18x18x128xbf16> to vector<16x16x128xbf16>
    %21 = vector.shape_cast %20 : vector<16x16x128xbf16> to vector<256x128xbf16>
    %c0_10 = arith.constant 0 : index
    %c768 = arith.constant 768 : index
    %22 = vector.load %arg7[%c0_10, %c768] : memref<256x1152xbf16, #tpu.memory_space<vmem>>, vector<256x128xbf16>
    tpu.vector_store %arg7[%c0_10, %c768], %21 {strides = array<i32>} : memref<256x1152xbf16, #tpu.memory_space<vmem>>, vector<256x128xbf16>,
    %23 = vector.extract_strided_slice %1 {offsets = [2, 1, 0], sizes = [16, 16, 128], strides = [1, 1, 1]} : vector<18x18x128xbf16> to vector<16x16x128xbf16>
    %24 = vector.shape_cast %23 : vector<16x16x128xbf16> to vector<256x128xbf16>
    %c0_11 = arith.constant 0 : index
    %c896 = arith.constant 896 : index
    %25 = vector.load %arg7[%c0_11, %c896] : memref<256x1152xbf16, #tpu.memory_space<vmem>>, vector<256x128xbf16>
    tpu.vector_store %arg7[%c0_11, %c896], %24 {strides = array<i32>} : memref<256x1152xbf16, #tpu.memory_space<vmem>>, vector<256x128xbf16>,
    %26 = vector.extract_strided_slice %1 {offsets = [2, 2, 0], sizes = [16, 16, 128], strides = [1, 1, 1]} : vector<18x18x128xbf16> to vector<16x16x128xbf16>
    %27 = vector.shape_cast %26 : vector<16x16x128xbf16> to vector<256x128xbf16>
    %c0_12 = arith.constant 0 : index
    %c1024 = arith.constant 1024 : index
    %28 = vector.load %arg7[%c0_12, %c1024] : memref<256x1152xbf16, #tpu.memory_space<vmem>>, vector<256x128xbf16>
    tpu.vector_store %arg7[%c0_12, %c1024], %27 {strides = array<i32>} : memref<256x1152xbf16, #tpu.memory_space<vmem>>, vector<256x128xbf16>,
    %c0_13 = arith.constant 0 : index
    %c0_14 = arith.constant 0 : index
    %29 = vector.load %arg7[%c0_13, %c0_14] : memref<256x1152xbf16, #tpu.memory_space<vmem>>, vector<256x1152xbf16>
    %c0_15 = arith.constant 0 : index
    %c0_16 = arith.constant 0 : index
    %30 = vector.load %arg2[%c0_15, %c0_16] : memref<1152x128xbf16, #tpu.memory_space<vmem>>, vector<1152x128xbf16>
    %cst = arith.constant dense<0.000000e+00> : vector<256x128xf32>
    %31 = tpu.matmul %29, %30, %cst {dimension_numbers = #tpu.dot_dimension_numbers<[1], [0], [0], [1], [0, 0, 1, 1], [], []>} : vector<256x1152xbf16>, vector<1152x128xbf16>, vector<256x128xf32> -> vector<256x128xf32>
    %c0_17 = arith.constant 0 : index
    %c0_18 = arith.constant 0 : index
    %32 = vector.load %arg3[%c0_17, %c0_18] : memref<2x128xf32, #tpu.memory_space<vmem>>, vector<2x128xf32>
    %33 = vector.extract_strided_slice %32 {offsets = [0, 0], sizes = [1, 128], strides = [1, 1]} : vector<2x128xf32> to vector<1x128xf32>
    %cst_19 = arith.constant 0.001953125 : f32
    %34 = vector.broadcast %cst_19 : f32 to vector<1x128xf32>
    %35 = arith.mulf %33, %34 : vector<1x128xf32>
    %36 = vector.extract_strided_slice %32 {offsets = [1, 0], sizes = [1, 128], strides = [1, 1]} : vector<2x128xf32> to vector<1x128xf32>
    %cst_20 = arith.constant 0.001953125 : f32
    %37 = vector.broadcast %cst_20 : f32 to vector<1x128xf32>
    %38 = arith.mulf %36, %37 : vector<1x128xf32>
    %39 = arith.mulf %35, %35 : vector<1x128xf32>
    %40 = arith.subf %38, %39 : vector<1x128xf32>
    %cst_21 = arith.constant 0.000000e+00 : f32
    %41 = vector.broadcast %cst_21 : f32 to vector<1x128xf32>
    %42 = arith.maximumf %40, %41 : vector<1x128xf32>
    %cst_22 = arith.constant 9.99999974E-6 : f32
    %43 = vector.broadcast %cst_22 : f32 to vector<1x128xf32>
    %44 = arith.addf %42, %43 : vector<1x128xf32>
    %45 = math.rsqrt %44 : vector<1x128xf32>
    %c0_23 = arith.constant 0 : index
    %c0_24 = arith.constant 0 : index
    %46 = vector.load %arg4[%c0_23, %c0_24] : memref<1x128xf32, #tpu.memory_space<vmem>>, vector<1x128xf32>
    %47 = arith.mulf %45, %46 : vector<1x128xf32>
    %48 = vector.broadcast %35 : vector<1x128xf32> to vector<256x128xf32>
    %49 = arith.subf %31, %48 : vector<256x128xf32>
    %50 = vector.broadcast %47 : vector<1x128xf32> to vector<256x128xf32>
    %51 = arith.mulf %49, %50 : vector<256x128xf32>
    %c0_25 = arith.constant 0 : index
    %c0_26 = arith.constant 0 : index
    %52 = vector.load %arg5[%c0_25, %c0_26] : memref<1x128xf32, #tpu.memory_space<vmem>>, vector<1x128xf32>
    %53 = vector.broadcast %52 : vector<1x128xf32> to vector<256x128xf32>
    %54 = arith.addf %51, %53 : vector<256x128xf32>
    %cst_27 = arith.constant 0.000000e+00 : f32
    %55 = vector.broadcast %cst_27 : f32 to vector<256x128xf32>
    %56 = arith.maximumf %54, %55 : vector<256x128xf32>
    %c0_28 = arith.constant 0 : index
    %c0_29 = arith.constant 0 : index
    %c0_30 = arith.constant 0 : index
    %57 = vector.load %arg6[%c0_28, %c0_29, %c0_30] : memref<1x256x128xf32, #tpu.memory_space<vmem>>, vector<1x256x128xf32>
    %58 = vector.shape_cast %57 : vector<1x256x128xf32> to vector<256x128xf32>
    %59 = vector.shape_cast %56 : vector<256x128xf32> to vector<1x256x128xf32>
    tpu.vector_store %arg6[%c0_28, %c0_29, %c0_30], %59 {strides = array<i32>} : memref<1x256x128xf32, #tpu.memory_space<vmem>>, vector<1x256x128xf32>,
    return
  }
  func.func @transform_0(%arg0: i32) -> (i32, i32, i32, i32) {
    %c0_i32 = arith.constant 0 : i32
    %c0_i32_0 = arith.constant 0 : i32
    %c0_i32_1 = arith.constant 0 : i32
    %c0_i32_2 = arith.constant 0 : i32
    return %arg0, %c0_i32, %c0_i32_0, %c0_i32_1 : i32, i32, i32, i32
  }
  func.func @transform_1(%arg0: i32) -> (i32, i32) {
    %c0_i32 = arith.constant 0 : i32
    %c0_i32_0 = arith.constant 0 : i32
    %c0_i32_1 = arith.constant 0 : i32
    return %c0_i32, %c0_i32_0 : i32, i32
  }
  func.func @transform_2(%arg0: i32) -> (i32, i32) {
    %c0_i32 = arith.constant 0 : i32
    %c0_i32_0 = arith.constant 0 : i32
    %c0_i32_1 = arith.constant 0 : i32
    return %c0_i32, %c0_i32_0 : i32, i32
  }
  func.func @transform_3(%arg0: i32) -> (i32, i32) {
    %c0_i32 = arith.constant 0 : i32
    %c0_i32_0 = arith.constant 0 : i32
    %c0_i32_1 = arith.constant 0 : i32
    return %c0_i32, %c0_i32_0 : i32, i32
  }
  func.func @transform_4(%arg0: i32) -> (i32, i32) {
    %c0_i32 = arith.constant 0 : i32
    %c0_i32_0 = arith.constant 0 : i32
    %c0_i32_1 = arith.constant 0 : i32
    return %c0_i32, %c0_i32_0 : i32, i32
  }
  func.func @transform_5(%arg0: i32) -> (i32, i32, i32) {
    %c0_i32 = arith.constant 0 : i32
    %c0_i32_0 = arith.constant 0 : i32
    %c0_i32_1 = arith.constant 0 : i32
    return %arg0, %c0_i32, %c0_i32_0 : i32, i32, i32
  }
}

</mosaic_0001>

<llo_original>
// kernel: double_conv.5
$region0: #{double_conv.5}
  #allocation0 [shape = 'u32[]', space=smem, size = 0x4, offset = 0x4, fixed_abs, tag = 'smem constant byte address 0x4 - core index']
  #allocation1 [shape = 'u32[72,128]{1,0:T(1,128)}', space=vmem, size = 0x9000, scoped, tag = 'internal scratch']
  #allocation2 [shape = 'bf16[256,1152]{1,0:T(8,128)(2,1)}', space=vmem, size = 0x90000, scoped, tag = 'scratch operand']
  %s0 = inlined_call_operand.vmem [shape: bf16[2,18,18,128], index: 0, kind: input, shape index: {}]
  %s1 = inlined_call_operand.vmem [shape: bf16[1152,128], index: 1, kind: input, shape index: {}]
  %s2 = inlined_call_operand.vmem [shape: f32[2,128], index: 2, kind: input, shape index: {}]
  %s3 = inlined_call_operand.vmem [shape: f32[1,128], index: 3, kind: input, shape index: {}]
  %s4 = inlined_call_operand.vmem [shape: f32[1,128], index: 4, kind: input, shape index: {}]
  %s5 = inlined_call_operand.vmem [shape: f32[2,256,128], index: 5, kind: output, shape index: {}]
  %s6 = sld [smem:[#allocation0]]
  $region53: #{double_conv.5} parent=0
    _
  %s8 = ssub.s32 1, %s6
  %s9 = scalar_select 0, %s8, %s6
  loop: start=0, step=1, limit=4
  $region2: #{double_conv.5} parent=0 // loop_pre_header
    _
  $region3: #{double_conv.5} parent=0 // loop_header
    %s11 = sphi 0, %s15
    %p12 = scmp.ge.s32.totalorder %s11, 4
    %s21 = sphi 0, %s23
    %s24 = sphi 0, %s21
    %s25 = sphi 0, %s24
    %s41 = sphi 0, %s25
    %s45 = sphi 0, %s45
    %s47 = sphi 0, %s45
    %s48 = sphi 0, %s47
    %s62 = sphi 0, %s48
    %s66 = sphi 0, %s66
    %s68 = sphi 0, %s66
    %s69 = sphi 0, %s68
    %s83 = sphi 0, %s69
    %s87 = sphi 0, %s87
    %s89 = sphi 0, %s87
    %s90 = sphi 0, %s89
    %s104 = sphi 0, %s90
    %s108 = sphi 0, %s108
    %s110 = sphi 0, %s108
    %s111 = sphi 0, %s110
    %s125 = sphi 0, %s111
    %s131 = sphi 0, %s133
    %s134 = sphi 0, %s131
    %s135 = sphi 0, %s134
    %s151 = sphi 0, %s135
  $region4: #{double_conv.5} parent=0 // loop_header_branch
    %14 = sbr.rel (%p12) target = $region8
  $region5: #{double_conv.5} parent=0 // loop_body
    %s16 = ssub.s32 %s11, 1
    %s17 = ssub.s32 %s11, 2
    %s18 = sadd.s32 %s11, 1
    %s19 = ssub.s32 %s11, %s18
    %p20 = scmp.eq.s32.totalorder %s19, 0
    %s22 = sadd.s32 %s21, 1
    %s23 = scalar_select %p20, %s21, %s22
    %p26 = pneg %p20
    %p27 = scmp.eq.s32.totalorder %s11, 1
    %p28 = por %p26, %p27
    %p29 = scmp.ne.s32.totalorder %s21, %s24
    %p30 = scmp.eq.s32.totalorder %s11, 0
    %p31 = por %p29, %p30
    %p32 = scmp.ne.s32.totalorder %s21, %s24
    %p33 = scmp.eq.s32.totalorder %s16, 1
    %p34 = por %p32, %p33
    %p35 = scmp.ne.s32.totalorder %s24, %s25
    %p36 = scmp.eq.s32.totalorder %s16, 0
    %p37 = por %p35, %p36
    %p38 = scmp.ne.s32.totalorder %s24, %s25
    %p39 = scmp.eq.s32.totalorder %s17, 1
    %p40 = por %p38, %p39
    %p42 = scmp.ne.s32.totalorder %s25, %s41
    %p43 = scmp.eq.s32.totalorder %s17, 0
    %p44 = por %p42, %p43
    %s46 = sadd.s32 %s45, 1
    %p49 = scmp.eq.s32.totalorder %s11, 1
    %p50 = scmp.ne.s32.totalorder %s45, %s47
    %p51 = scmp.eq.s32.totalorder %s11, 0
    %p52 = por %p50, %p51
    %p53 = scmp.ne.s32.totalorder %s45, %s47
    %p54 = scmp.eq.s32.totalorder %s16, 1
    %p55 = por %p53, %p54
    %p56 = scmp.ne.s32.totalorder %s47, %s48
    %p57 = scmp.eq.s32.totalorder %s16, 0
    %p58 = por %p56, %p57
    %p59 = scmp.ne.s32.totalorder %s47, %s48
    %p60 = scmp.eq.s32.totalorder %s17, 1
    %p61 = por %p59, %p60
    %p63 = scmp.ne.s32.totalorder %s48, %s62
    %p64 = scmp.eq.s32.totalorder %s17, 0
    %p65 = por %p63, %p64
    %s67 = sadd.s32 %s66, 1
    %p70 = scmp.eq.s32.totalorder %s11, 1
    %p71 = scmp.ne.s32.totalorder %s66, %s68
    %p72 = scmp.eq.s32.totalorder %s11, 0
    %p73 = por %p71, %p72
    %p74 = scmp.ne.s32.totalorder %s66, %s68
    %p75 = scmp.eq.s32.totalorder %s16, 1
    %p76 = por %p74, %p75
    %p77 = scmp.ne.s32.totalorder %s68, %s69
    %p78 = scmp.eq.s32.totalorder %s16, 0
    %p79 = por %p77, %p78
    %p80 = scmp.ne.s32.totalorder %s68, %s69
    %p81 = scmp.eq.s32.totalorder %s17, 1
    %p82 = por %p80, %p81
    %p84 = scmp.ne.s32.totalorder %s69, %s83
    %p85 = scmp.eq.s32.totalorder %s17, 0
    %p86 = por %p84, %p85
    %s88 = sadd.s32 %s87, 1
    %p91 = scmp.eq.s32.totalorder %s11, 1
    %p92 = scmp.ne.s32.totalorder %s87, %s89
    %p93 = scmp.eq.s32.totalorder %s11, 0
    %p94 = por %p92, %p93
    %p95 = scmp.ne.s32.totalorder %s87, %s89
    %p96 = scmp.eq.s32.totalorder %s16, 1
    %p97 = por %p95, %p96
    %p98 = scmp.ne.s32.totalorder %s89, %s90
    %p99 = scmp.eq.s32.totalorder %s16, 0
    %p100 = por %p98, %p99
    %p101 = scmp.ne.s32.totalorder %s89, %s90
    %p102 = scmp.eq.s32.totalorder %s17, 1
    %p103 = por %p101, %p102
    %p105 = scmp.ne.s32.totalorder %s90, %s104
    %p106 = scmp.eq.s32.totalorder %s17, 0
    %p107 = por %p105, %p106
    %s109 = sadd.s32 %s108, 1
    %p112 = scmp.eq.s32.totalorder %s11, 1
    %p113 = scmp.ne.s32.totalorder %s108, %s110
    %p114 = scmp.eq.s32.totalorder %s11, 0
    %p115 = por %p113, %p114
    %p116 = scmp.ne.s32.totalorder %s108, %s110
    %p117 = scmp.eq.s32.totalorder %s16, 1
    %p118 = por %p116, %p117
    %p119 = scmp.ne.s32.totalorder %s110, %s111
    %p120 = scmp.eq.s32.totalorder %s16, 0
    %p121 = por %p119, %p120
    %p122 = scmp.ne.s32.totalorder %s110, %s111
    %p123 = scmp.eq.s32.totalorder %s17, 1
    %p124 = por %p122, %p123
    %p126 = scmp.ne.s32.totalorder %s111, %s125
    %p127 = scmp.eq.s32.totalorder %s17, 0
    %p128 = por %p126, %p127
    %s129 = ssub.s32 %s11, %s18
    %p130 = scmp.eq.s32.totalorder %s129, 0
    %s132 = sadd.s32 %s131, 1
    %s133 = scalar_select %p130, %s131, %s132
    %p136 = pneg %p130
    %p137 = scmp.eq.s32.totalorder %s11, 1
    %p138 = por %p136, %p137
    %p139 = scmp.ne.s32.totalorder %s131, %s134
    %p140 = scmp.eq.s32.totalorder %s11, 0
    %p141 = por %p139, %p140
    %p142 = scmp.ne.s32.totalorder %s131, %s134
    %p143 = scmp.eq.s32.totalorder %s16, 1
    %p144 = por %p142, %p143
    %p145 = scmp.ne.s32.totalorder %s134, %s135
    %p146 = scmp.eq.s32.totalorder %s16, 0
    %p147 = por %p145, %p146
    %p148 = scmp.ne.s32.totalorder %s134, %s135
    %p149 = scmp.eq.s32.totalorder %s17, 1
    %p150 = por %p148, %p149
    %p152 = scmp.ne.s32.totalorder %s135, %s151
    %p153 = scmp.eq.s32.totalorder %s17, 0
    %p154 = por %p152, %p153
    %p155 = scmp.le.s32.totalorder 1, %s11
    %p156 = scmp.lt.s32.totalorder %s11, 3
    %p157 = pnand %p155, %p156
    %p158 = pneg %p157
    // Predicated region
    $region9: #{double_conv.5} parent=5 // pred_check
      _
    $region10: #{double_conv.5} parent=5 // pred_check_branch
      %160 = sbr.rel (%p157) target = $region12
    $region11: #{double_conv.5} parent=5 // pred_region
      %s161 = ssub.s32 %s11, 1
      // Predicated region
      $region13: #{double_conv.5} parent=11 // pred_check
        %p162 = pneg %p58
      $region14: #{double_conv.5} parent=11 // pred_check_branch
        %164 = sbr.rel (%p162) target = $region16
      $region15: #{double_conv.5} parent=11 // pred_region
        _
      $region16: #{double_conv.5} parent=11 // pred_fallthru
        _
      // Predicated region
      $region17: #{double_conv.5} parent=11 // pred_check
        %p165 = pneg %p79
      $region18: #{double_conv.5} parent=11 // pred_check_branch
        %167 = sbr.rel (%p165) target = $region20
      $region19: #{double_conv.5} parent=11 // pred_region
        _
      $region20: #{double_conv.5} parent=11 // pred_fallthru
        _
      // Predicated region
      $region21: #{double_conv.5} parent=11 // pred_check
        %p168 = pneg %p100
      $region22: #{double_conv.5} parent=11 // pred_check_branch
        %170 = sbr.rel (%p168) target = $region24
      $region23: #{double_conv.5} parent=11 // pred_region
        _
      $region24: #{double_conv.5} parent=11 // pred_fallthru
        _
      // Predicated region
      $region25: #{double_conv.5} parent=11 // pred_check
        %p171 = pneg %p121
      $region26: #{double_conv.5} parent=11 // pred_check_branch
        %173 = sbr.rel (%p171) target = $region28
      $region27: #{double_conv.5} parent=11 // pred_region
        _
      $region28: #{double_conv.5} parent=11 // pred_fallthru
        _
    $region12: #{double_conv.5} parent=5 // pred_fallthru
      _
    %p174 = scmp.lt.s32.totalorder %s11, 2
    // Predicated region
    $region29: #{double_conv.5} parent=5 // pred_check
      %p175 = pneg %p174
    $region30: #{double_conv.5} parent=5 // pred_check_branch
      %177 = sbr.rel (%p175) target = $region32
    $region31: #{double_conv.5} parent=5 // pred_region
      // Predicated region
      $region33: #{double_conv.5} parent=31 // pred_check
        %p178 = pneg %p31
      $region34: #{double_conv.5} parent=31 // pred_check_branch
        %180 = sbr.rel (%p178) target = $region36
      $region35: #{double_conv.5} parent=31 // pred_region
        %p181 = scmp.lt.s32.totalorder %s11, 1
        %s182 = scalar_select %p181, %s11, 1
        %s183 = smul.addr %s182, 54
        %s184 = smul.addr %s183, 4
        %s185 = scalar_lea.vmem %s0, %s184
      $region36: #{double_conv.5} parent=31 // pred_fallthru
        _
    $region32: #{double_conv.5} parent=5 // pred_fallthru
      _
    %p186 = scmp.le.s32.totalorder 1, %s11
    %p187 = scmp.lt.s32.totalorder %s11, 3
    %p188 = pnand %p186, %p187
    %p189 = pneg %p188
    // Predicated region
    $region37: #{double_conv.5} parent=5 // pred_check
      _
    $region38: #{double_conv.5} parent=5 // pred_check_branch
      %191 = sbr.rel (%p188) target = $region40
    $region39: #{double_conv.5} parent=5 // pred_region
      %s192 = ssub.s32 %s11, 1
      %p193 = scmp.lt.s32.totalorder %s16, 1
      %s194 = scalar_select %p193, %s16, 1
      %s195 = smul.addr %s194, 54
      %s196 = smul.addr %s195, 4
      %s197 = scalar_lea.vmem %s0, %s196
      %p198 = pneg %p37
      %p199 = pneg %p34
      %p200 = pneg %p58
      %p201 = pneg %p55
      %p202 = pneg %p79
      %p203 = pneg %p76
      %p204 = pneg %p100
      %p205 = pneg %p97
      %p206 = pneg %p121
      %p207 = pneg %p118
      %p208 = pneg %p147
      %p209 = pneg %p144
      %p210 = scmp.lt.s32.totalorder %s16, 1
      %s211 = scalar_select %p210, %s16, 1
      %s212 = smul.addr %s211, 32
      %s213 = smul.addr %s212, 8
      %s214 = scalar_lea.vmem %s5, %s213
      %p215 = scmp.lt.s32.totalorder %s16, 1
      %s216 = scalar_select %p215, %s16, 1
      %s217 = smul.addr %s216, 54
      %s218 = smul.addr %s217, 4
      %s219 = scalar_lea.vmem %s0, %s218
      %p220 = scmp.lt.s32.totalorder %s16, 1
      %s221 = scalar_select %p220, %s16, 1
      %s222 = smul.addr %s221, 32
      %s223 = smul.addr %s222, 8
      %s224 = scalar_lea.vmem %s5, %s223
      %v225 = vld [vmem:[%s219] sm:$0xf]
      %v226 = vld [vmem:[%s219 + $0x4] sm:$0xf]
      %v227 = vld [vmem:[%s219 + $0x8] sm:$0x1]
      %v228 = vld [vmem:[%s219 + $0xc] sm:$0xf]
      %v229 = vld [vmem:[%s219 + $0x10] sm:$0xf]
      %v230 = vld [vmem:[%s219 + $0x14] sm:$0x1]
      %v231 = vld [vmem:[%s219 + $0x18] sm:$0xf]
      %v232 = vld [vmem:[%s219 + $0x1c] sm:$0xf]
      %v233 = vld [vmem:[%s219 + $0x20] sm:$0x1]
      %v234 = vld [vmem:[%s219 + $0x24] sm:$0xf]
      %v235 = vld [vmem:[%s219 + $0x28] sm:$0xf]
      %v236 = vld [vmem:[%s219 + $0x2c] sm:$0x1]
      %v237 = vld [vmem:[%s219 + $0x30] sm:$0xf]
      %v238 = vld [vmem:[%s219 + $0x34] sm:$0xf]
      %v239 = vld [vmem:[%s219 + $0x38] sm:$0x1]
      %v240 = vld [vmem:[%s219 + $0x3c] sm:$0xf]
      %v241 = vld [vmem:[%s219 + $0x40] sm:$0xf]
      %v242 = vld [vmem:[%s219 + $0x44] sm:$0x1]
      %v243 = vld [vmem:[%s219 + $0x48] sm:$0xf]
      %v244 = vld [vmem:[%s219 + $0x4c] sm:$0xf]
      %v245 = vld [vmem:[%s219 + $0x50] sm:$0x1]
      %v246 = vld [vmem:[%s219 + $0x54] sm:$0xf]
      %v247 = vld [vmem:[%s219 + $0x58] sm:$0xf]
      %v248 = vld [vmem:[%s219 + $0x5c] sm:$0x1]
      %v249 = vld [vmem:[%s219 + $0x60] sm:$0xf]
      %v250 = vld [vmem:[%s219 + $0x64] sm:$0xf]
      %v251 = vld [vmem:[%s219 + $0x68] sm:$0x1]
      %v252 = vld [vmem:[%s219 + $0x6c] sm:$0xf]
      %v253 = vld [vmem:[%s219 + $0x70] sm:$0xf]
      %v254 = vld [vmem:[%s219 + $0x74] sm:$0x1]
      %v255 = vld [vmem:[%s219 + $0x78] sm:$0xf]
      %v256 = vld [vmem:[%s219 + $0x7c] sm:$0xf]
      %v257 = vld [vmem:[%s219 + $0x80] sm:$0x1]
      %v258 = vld [vmem:[%s219 + $0x84] sm:$0xf]
      %v259 = vld [vmem:[%s219 + $0x88] sm:$0xf]
      %v260 = vld [vmem:[%s219 + $0x8c] sm:$0x1]
      %v261 = vld [vmem:[%s219 + $0x90] sm:$0xf]
      %v262 = vld [vmem:[%s219 + $0x94] sm:$0xf]
      %v263 = vld [vmem:[%s219 + $0x98] sm:$0x1]
      %v264 = vld [vmem:[%s219 + $0x9c] sm:$0xf]
      %v265 = vld [vmem:[%s219 + $0xa0] sm:$0xf]
      %v266 = vld [vmem:[%s219 + $0xa4] sm:$0x1]
      %v267 = vld [vmem:[%s219 + $0xa8] sm:$0xf]
      %v268 = vld [vmem:[%s219 + $0xac] sm:$0xf]
      %v269 = vld [vmem:[%s219 + $0xb0] sm:$0x1]
      %v270 = vld [vmem:[%s219 + $0xb4] sm:$0xf]
      %v271 = vld [vmem:[%s219 + $0xb8] sm:$0xf]
      %v272 = vld [vmem:[%s219 + $0xbc] sm:$0x1]
      %v273 = vld [vmem:[%s219 + $0xc0] sm:$0xf]
      %v274 = vld [vmem:[%s219 + $0xc4] sm:$0xf]
      %v275 = vld [vmem:[%s219 + $0xc8] sm:$0x1]
      %v276 = vld [vmem:[%s219 + $0xcc] sm:$0xf]
      %v277 = vld [vmem:[%s219 + $0xd0] sm:$0xf]
      %v278 = vld [vmem:[%s219 + $0xd4] sm:$0x1]
      %279 = vst [vmem:[#allocation2] sm:$0xf] %v225
      %280 = vst [vmem:[#allocation2 + $0x24] sm:$0xf] %v226
      %281 = vst [vmem:[#allocation2 + $0x48] sm:$0xf] %v228
      %282 = vst [vmem:[#allocation2 + $0x6c] sm:$0xf] %v229
      %283 = vst [vmem:[#allocation2 + $0x90] sm:$0xf] %v231
      %284 = vst [vmem:[#allocation2 + $0xb4] sm:$0xf] %v232
      %285 = vst [vmem:[#allocation2 + $0xd8] sm:$0xf] %v234
      %286 = vst [vmem:[#allocation2 + $0xfc] sm:$0xf] %v235
      %287 = vst [vmem:[#allocation2 + $0x120] sm:$0xf] %v237
      %288 = vst [vmem:[#allocation2 + $0x144] sm:$0xf] %v238
      %289 = vst [vmem:[#allocation2 + $0x168] sm:$0xf] %v240
      %290 = vst [vmem:[#allocation2 + $0x18c] sm:$0xf] %v241
      %291 = vst [vmem:[#allocation2 + $0x1b0] sm:$0xf] %v243
      %292 = vst [vmem:[#allocation2 + $0x1d4] sm:$0xf] %v244
      %293 = vst [vmem:[#allocation2 + $0x1f8] sm:$0xf] %v246
      %294 = vst [vmem:[#allocation2 + $0x21c] sm:$0xf] %v247
      %295 = vst [vmem:[#allocation2 + $0x240] sm:$0xf] %v249
      %296 = vst [vmem:[#allocation2 + $0x264] sm:$0xf] %v250
      %297 = vst [vmem:[#allocation2 + $0x288] sm:$0xf] %v252
      %298 = vst [vmem:[#allocation2 + $0x2ac] sm:$0xf] %v253
      %299 = vst [vmem:[#allocation2 + $0x2d0] sm:$0xf] %v255
      %300 = vst [vmem:[#allocation2 + $0x2f4] sm:$0xf] %v256
      %301 = vst [vmem:[#allocation2 + $0x318] sm:$0xf] %v258
      %302 = vst [vmem:[#allocation2 + $0x33c] sm:$0xf] %v259
      %303 = vst [vmem:[#allocation2 + $0x360] sm:$0xf] %v261
      %304 = vst [vmem:[#allocation2 + $0x384] sm:$0xf] %v262
      %305 = vst [vmem:[#allocation2 + $0x3a8] sm:$0xf] %v264
      %306 = vst [vmem:[#allocation2 + $0x3cc] sm:$0xf] %v265
      %307 = vst [vmem:[#allocation2 + $0x3f0] sm:$0xf] %v267
      %308 = vst [vmem:[#allocation2 + $0x414] sm:$0xf] %v268
      %309 = vst [vmem:[#allocation2 + $0x438] sm:$0xf] %v270
      %310 = vst [vmem:[#allocation2 + $0x45c] sm:$0xf] %v271
      %vm311 = vsmask.f32 3328
      %vm312 = vsmask.f32 7440
      %vm313 = vmor %vm311, %vm312
      %v315 = vshrl.u32 %v225, 16
      %v317 = vrot.slane %v315, 4
      %v318 = vshll.u32 %v225, 16
      %v320 = vrot.slane %v318, 5
      %v321 = vor.u32 %v317, %v320
      %v322 = vrot.slane %v321, 4
      %v324 = vshll.u32 %v226, 16
      %v326 = vrot.slane %v324, 5
      %v327 = vsel %vm313, %v322, %v326
      %v328 = vshrl.u32 %v226, 16
      %v330 = vrot.slane %v328, 4
      %v331 = vor.u32 %v330, %v326
      %v332 = vrot.slane %v331, 4
      %v334 = vshll.u32 %v227, 16
      %v336 = vrot.slane %v334, 5
      %v337 = vsel %vm313, %v332, %v336
      %v339 = vshrl.u32 %v228, 16
      %v341 = vrot.slane %v339, 4
      %v342 = vshll.u32 %v228, 16
      %v344 = vrot.slane %v342, 5
      %v345 = vor.u32 %v341, %v344
      %v346 = vrot.slane %v345, 4
      %v348 = vshll.u32 %v229, 16
      %v350 = vrot.slane %v348, 5
      %v351 = vsel %vm313, %v346, %v350
      %v352 = vshrl.u32 %v229, 16
      %v354 = vrot.slane %v352, 4
      %v355 = vor.u32 %v354, %v350
      %v356 = vrot.slane %v355, 4
      %v358 = vshll.u32 %v230, 16
      %v360 = vrot.slane %v358, 5
      %v361 = vsel %vm313, %v356, %v360
      %v363 = vshrl.u32 %v231, 16
      %v365 = vrot.slane %v363, 4
      %v366 = vshll.u32 %v231, 16
      %v368 = vrot.slane %v366, 5
      %v369 = vor.u32 %v365, %v368
      %v370 = vrot.slane %v369, 4
      %v372 = vshll.u32 %v232, 16
      %v374 = vrot.slane %v372, 5
      %v375 = vsel %vm313, %v370, %v374
      %v376 = vshrl.u32 %v232, 16
      %v378 = vrot.slane %v376, 4
      %v379 = vor.u32 %v378, %v374
      %v380 = vrot.slane %v379, 4
      %v382 = vshll.u32 %v233, 16
      %v384 = vrot.slane %v382, 5
      %v385 = vsel %vm313, %v380, %v384
      %v387 = vshrl.u32 %v234, 16
      %v389 = vrot.slane %v387, 4
      %v390 = vshll.u32 %v234, 16
      %v392 = vrot.slane %v390, 5
      %v393 = vor.u32 %v389, %v392
      %v394 = vrot.slane %v393, 4
      %v396 = vshll.u32 %v235, 16
      %v398 = vrot.slane %v396, 5
      %v399 = vsel %vm313, %v394, %v398
      %v400 = vshrl.u32 %v235, 16
      %v402 = vrot.slane %v400, 4
      %v403 = vor.u32 %v402, %v398
      %v404 = vrot.slane %v403, 4
      %v406 = vshll.u32 %v236, 16
      %v408 = vrot.slane %v406, 5
      %v409 = vsel %vm313, %v404, %v408
      %v411 = vshrl.u32 %v237, 16
      %v413 = vrot.slane %v411, 4
      %v414 = vshll.u32 %v237, 16
      %v416 = vrot.slane %v414, 5
      %v417 = vor.u32 %v413, %v416
      %v418 = vrot.slane %v417, 4
      %v420 = vshll.u32 %v238, 16
      %v422 = vrot.slane %v420, 5
      %v423 = vsel %vm313, %v418, %v422
      %v424 = vshrl.u32 %v238, 16
      %v426 = vrot.slane %v424, 4
      %v427 = vor.u32 %v426, %v422
      %v428 = vrot.slane %v427, 4
      %v430 = vshll.u32 %v239, 16
      %v432 = vrot.slane %v430, 5
      %v433 = vsel %vm313, %v428, %v432
      %v435 = vshrl.u32 %v240, 16
      %v437 = vrot.slane %v435, 4
      %v438 = vshll.u32 %v240, 16
      %v440 = vrot.slane %v438, 5
      %v441 = vor.u32 %v437, %v440
      %v442 = vrot.slane %v441, 4
      %v444 = vshll.u32 %v241, 16
      %v446 = vrot.slane %v444, 5
      %v447 = vsel %vm313, %v442, %v446
      %v448 = vshrl.u32 %v241, 16
      %v450 = vrot.slane %v448, 4
      %v451 = vor.u32 %v450, %v446
      %v452 = vrot.slane %v451, 4
      %v454 = vshll.u32 %v242, 16
      %v456 = vrot.slane %v454, 5
      %v457 = vsel %vm313, %v452, %v456
      %v459 = vshrl.u32 %v243, 16
      %v461 = vrot.slane %v459, 4
      %v462 = vshll.u32 %v243, 16
      %v464 = vrot.slane %v462, 5
      %v465 = vor.u32 %v461, %v464
      %v466 = vrot.slane %v465, 4
      %v468 = vshll.u32 %v244, 16
      %v470 = vrot.slane %v468, 5
      %v471 = vsel %vm313, %v466, %v470
      %v472 = vshrl.u32 %v244, 16
      %v474 = vrot.slane %v472, 4
      %v475 = vor.u32 %v474, %v470
      %v476 = vrot.slane %v475, 4
      %v478 = vshll.u32 %v245, 16
      %v480 = vrot.slane %v478, 5
      %v481 = vsel %vm313, %v476, %v480
      %v483 = vshrl.u32 %v246, 16
      %v485 = vrot.slane %v483, 4
      %v486 = vshll.u32 %v246, 16
      %v488 = vrot.slane %v486, 5
      %v489 = vor.u32 %v485, %v488
      %v490 = vrot.slane %v489, 4
      %v492 = vshll.u32 %v247, 16
      %v494 = vrot.slane %v492, 5
      %v495 = vsel %vm313, %v490, %v494
      %v496 = vshrl.u32 %v247, 16
      %v498 = vrot.slane %v496, 4
      %v499 = vor.u32 %v498, %v494
      %v500 = vrot.slane %v499, 4
      %v502 = vshll.u32 %v248, 16
      %v504 = vrot.slane %v502, 5
      %v505 = vsel %vm313, %v500, %v504
      %v507 = vshrl.u32 %v249, 16
      %v509 = vrot.slane %v507, 4
      %v510 = vshll.u32 %v249, 16
      %v512 = vrot.slane %v510, 5
      %v513 = vor.u32 %v509, %v512
      %v514 = vrot.slane %v513, 4
      %v516 = vshll.u32 %v250, 16
      %v518 = vrot.slane %v516, 5
      %v519 = vsel %vm313, %v514, %v518
      %v520 = vshrl.u32 %v250, 16
      %v522 = vrot.slane %v520, 4
      %v523 = vor.u32 %v522, %v518
      %v524 = vrot.slane %v523, 4
      %v526 = vshll.u32 %v251, 16
      %v528 = vrot.slane %v526, 5
      %v529 = vsel %vm313, %v524, %v528
      %v531 = vshrl.u32 %v252, 16
      %v533 = vrot.slane %v531, 4
      %v534 = vshll.u32 %v252, 16
      %v536 = vrot.slane %v534, 5
      %v537 = vor.u32 %v533, %v536
      %v538 = vrot.slane %v537, 4
      %v540 = vshll.u32 %v253, 16
      %v542 = vrot.slane %v540, 5
      %v543 = vsel %vm313, %v538, %v542
      %v544 = vshrl.u32 %v253, 16
      %v546 = vrot.slane %v544, 4
      %v547 = vor.u32 %v546, %v542
      %v548 = vrot.slane %v547, 4
      %v550 = vshll.u32 %v254, 16
      %v552 = vrot.slane %v550, 5
      %v553 = vsel %vm313, %v548, %v552
      %v555 = vshrl.u32 %v255, 16
      %v557 = vrot.slane %v555, 4
      %v558 = vshll.u32 %v255, 16
      %v560 = vrot.slane %v558, 5
      %v561 = vor.u32 %v557, %v560
      %v562 = vrot.slane %v561, 4
      %v564 = vshll.u32 %v256, 16
      %v566 = vrot.slane %v564, 5
      %v567 = vsel %vm313, %v562, %v566
      %v568 = vshrl.u32 %v256, 16
      %v570 = vrot.slane %v568, 4
      %v571 = vor.u32 %v570, %v566
      %v572 = vrot.slane %v571, 4
      %v574 = vshll.u32 %v257, 16
      %v576 = vrot.slane %v574, 5
      %v577 = vsel %vm313, %v572, %v576
      %v579 = vshrl.u32 %v258, 16
      %v581 = vrot.slane %v579, 4
      %v582 = vshll.u32 %v258, 16
      %v584 = vrot.slane %v582, 5
      %v585 = vor.u32 %v581, %v584
      %v586 = vrot.slane %v585, 4
      %v588 = vshll.u32 %v259, 16
      %v590 = vrot.slane %v588, 5
      %v591 = vsel %vm313, %v586, %v590
      %v592 = vshrl.u32 %v259, 16
      %v594 = vrot.slane %v592, 4
      %v595 = vor.u32 %v594, %v590
      %v596 = vrot.slane %v595, 4
      %v598 = vshll.u32 %v260, 16
      %v600 = vrot.slane %v598, 5
      %v601 = vsel %vm313, %v596, %v600
      %v603 = vshrl.u32 %v261, 16
      %v605 = vrot.slane %v603, 4
      %v606 = vshll.u32 %v261, 16
      %v608 = vrot.slane %v606, 5
      %v609 = vor.u32 %v605, %v608
      %v610 = vrot.slane %v609, 4
      %v612 = vshll.u32 %v262, 16
      %v614 = vrot.slane %v612, 5
      %v615 = vsel %vm313, %v610, %v614
      %v616 = vshrl.u32 %v262, 16
      %v618 = vrot.slane %v616, 4
      %v619 = vor.u32 %v618, %v614
      %v620 = vrot.slane %v619, 4
      %v622 = vshll.u32 %v263, 16
      %v624 = vrot.slane %v622, 5
      %v625 = vsel %vm313, %v620, %v624
      %v627 = vshrl.u32 %v264, 16
      %v629 = vrot.slane %v627, 4
      %v630 = vshll.u32 %v264, 16
      %v632 = vrot.slane %v630, 5
      %v633 = vor.u32 %v629, %v632
      %v634 = vrot.slane %v633, 4
      %v636 = vshll.u32 %v265, 16
      %v638 = vrot.slane %v636, 5
      %v639 = vsel %vm313, %v634, %v638
      %v640 = vshrl.u32 %v265, 16
      %v642 = vrot.slane %v640, 4
      %v643 = vor.u32 %v642, %v638
      %v644 = vrot.slane %v643, 4
      %v646 = vshll.u32 %v266, 16
      %v648 = vrot.slane %v646, 5
      %v649 = vsel %vm313, %v644, %v648
      %v651 = vshrl.u32 %v267, 16
      %v653 = vrot.slane %v651, 4
      %v654 = vshll.u32 %v267, 16
      %v656 = vrot.slane %v654, 5
      %v657 = vor.u32 %v653, %v656
      %v658 = vrot.slane %v657, 4
      %v660 = vshll.u32 %v268, 16
      %v662 = vrot.slane %v660, 5
      %v663 = vsel %vm313, %v658, %v662
      %v664 = vshrl.u32 %v268, 16
      %v666 = vrot.slane %v664, 4
      %v667 = vor.u32 %v666, %v662
      %v668 = vrot.slane %v667, 4
      %v670 = vshll.u32 %v269, 16
      %v672 = vrot.slane %v670, 5
      %v673 = vsel %vm313, %v668, %v672
      %v675 = vshrl.u32 %v270, 16
      %v677 = vrot.slane %v675, 4
      %v678 = vshll.u32 %v270, 16
      %v680 = vrot.slane %v678, 5
      %v681 = vor.u32 %v677, %v680
      %v682 = vrot.slane %v681, 4
      %v684 = vshll.u32 %v271, 16
      %v686 = vrot.slane %v684, 5
      %v687 = vsel %vm313, %v682, %v686
      %v688 = vshrl.u32 %v271, 16
      %v690 = vrot.slane %v688, 4
      %v691 = vor.u32 %v690, %v686
      %v692 = vrot.slane %v691, 4
      %v694 = vshll.u32 %v272, 16
      %v696 = vrot.slane %v694, 5
      %v697 = vsel %vm313, %v692, %v696
      %730 = vst [vmem:[#allocation2 + $0x4] sm:$0xf] %v327
      %731 = vst [vmem:[#allocation2 + $0x28] sm:$0xf] %v337
      %732 = vst [vmem:[#allocation2 + $0x4c] sm:$0xf] %v351
      %733 = vst [vmem:[#allocation2 + $0x70] sm:$0xf] %v361
      %734 = vst [vmem:[#allocation2 + $0x94] sm:$0xf] %v375
      %735 = vst [vmem:[#allocation2 + $0xb8] sm:$0xf] %v385
      %736 = vst [vmem:[#allocation2 + $0xdc] sm:$0xf] %v399
      %737 = vst [vmem:[#allocation2 + $0x100] sm:$0xf] %v409
      %738 = vst [vmem:[#allocation2 + $0x124] sm:$0xf] %v423
      %739 = vst [vmem:[#allocation2 + $0x148] sm:$0xf] %v433
      %740 = vst [vmem:[#allocation2 + $0x16c] sm:$0xf] %v447
      %741 = vst [vmem:[#allocation2 + $0x190] sm:$0xf] %v457
      %742 = vst [vmem:[#allocation2 + $0x1b4] sm:$0xf] %v471
      %743 = vst [vmem:[#allocation2 + $0x1d8] sm:$0xf] %v481
      %744 = vst [vmem:[#allocation2 + $0x1fc] sm:$0xf] %v495
      %745 = vst [vmem:[#allocation2 + $0x220] sm:$0xf] %v505
      %746 = vst [vmem:[#allocation2 + $0x244] sm:$0xf] %v519
      %747 = vst [vmem:[#allocation2 + $0x268] sm:$0xf] %v529
      %748 = vst [vmem:[#allocation2 + $0x28c] sm:$0xf] %v543
      %749 = vst [vmem:[#allocation2 + $0x2b0] sm:$0xf] %v553
      %750 = vst [vmem:[#allocation2 + $0x2d4] sm:$0xf] %v567
      %751 = vst [vmem:[#allocation2 + $0x2f8] sm:$0xf] %v577
      %752 = vst [vmem:[#allocation2 + $0x31c] sm:$0xf] %v591
      %753 = vst [vmem:[#allocation2 + $0x340] sm:$0xf] %v601
      %754 = vst [vmem:[#allocation2 + $0x364] sm:$0xf] %v615
      %755 = vst [vmem:[#allocation2 + $0x388] sm:$0xf] %v625
      %756 = vst [vmem:[#allocation2 + $0x3ac] sm:$0xf] %v639
      %757 = vst [vmem:[#allocation2 + $0x3d0] sm:$0xf] %v649
      %758 = vst [vmem:[#allocation2 + $0x3f4] sm:$0xf] %v663
      %759 = vst [vmem:[#allocation2 + $0x418] sm:$0xf] %v673
      %760 = vst [vmem:[#allocation2 + $0x43c] sm:$0xf] %v687
      %761 = vst [vmem:[#allocation2 + $0x460] sm:$0xf] %v697
      %vm810 = vcmask 1042432
      %vm811 = vcmask 1046532
      %vm812 = vmor %vm810, %vm811
      %v813 = vrot.slane %v225, 5
      %v814 = vrot.slane %v813, 4
      %v815 = vrot.slane %v226, 5
      %v816 = vsel %vm812, %v814, %v815
      %v817 = vrot.slane %v815, 4
      %v818 = vrot.slane %v227, 5
      %v819 = vsel %vm812, %v817, %v818
      %v820 = vrot.slane %v228, 5
      %v821 = vrot.slane %v820, 4
      %v822 = vrot.slane %v229, 5
      %v823 = vsel %vm812, %v821, %v822
      %v824 = vrot.slane %v822, 4
      %v825 = vrot.slane %v230, 5
      %v826 = vsel %vm812, %v824, %v825
      %v827 = vrot.slane %v231, 5
      %v828 = vrot.slane %v827, 4
      %v829 = vrot.slane %v232, 5
      %v830 = vsel %vm812, %v828, %v829
      %v831 = vrot.slane %v829, 4
      %v832 = vrot.slane %v233, 5
      %v833 = vsel %vm812, %v831, %v832
      %v834 = vrot.slane %v234, 5
      %v835 = vrot.slane %v834, 4
      %v836 = vrot.slane %v235, 5
      %v837 = vsel %vm812, %v835, %v836
      %v838 = vrot.slane %v836, 4
      %v839 = vrot.slane %v236, 5
      %v840 = vsel %vm812, %v838, %v839
      %v841 = vrot.slane %v237, 5
      %v842 = vrot.slane %v841, 4
      %v843 = vrot.slane %v238, 5
      %v844 = vsel %vm812, %v842, %v843
      %v845 = vrot.slane %v843, 4
      %v846 = vrot.slane %v239, 5
      %v847 = vsel %vm812, %v845, %v846
      %v848 = vrot.slane %v240, 5
      %v849 = vrot.slane %v848, 4
      %v850 = vrot.slane %v241, 5
      %v851 = vsel %vm812, %v849, %v850
      %v852 = vrot.slane %v850, 4
      %v853 = vrot.slane %v242, 5
      %v854 = vsel %vm812, %v852, %v853
      %v855 = vrot.slane %v243, 5
      %v856 = vrot.slane %v855, 4
      %v857 = vrot.slane %v244, 5
      %v858 = vsel %vm812, %v856, %v857
      %v859 = vrot.slane %v857, 4
      %v860 = vrot.slane %v245, 5
      %v861 = vsel %vm812, %v859, %v860
      %v862 = vrot.slane %v246, 5
      %v863 = vrot.slane %v862, 4
      %v864 = vrot.slane %v247, 5
      %v865 = vsel %vm812, %v863, %v864
      %v866 = vrot.slane %v864, 4
      %v867 = vrot.slane %v248, 5
      %v868 = vsel %vm812, %v866, %v867
      %v869 = vrot.slane %v249, 5
      %v870 = vrot.slane %v869, 4
      %v871 = vrot.slane %v250, 5
      %v872 = vsel %vm812, %v870, %v871
      %v873 = vrot.slane %v871, 4
      %v874 = vrot.slane %v251, 5
      %v875 = vsel %vm812, %v873, %v874
      %v876 = vrot.slane %v252, 5
      %v877 = vrot.slane %v876, 4
      %v878 = vrot.slane %v253, 5
      %v879 = vsel %vm812, %v877, %v878
      %v880 = vrot.slane %v878, 4
      %v881 = vrot.slane %v254, 5
      %v882 = vsel %vm812, %v880, %v881
      %v883 = vrot.slane %v255, 5
      %v884 = vrot.slane %v883, 4
      %v885 = vrot.slane %v256, 5
      %v886 = vsel %vm812, %v884, %v885
      %v887 = vrot.slane %v885, 4
      %v888 = vrot.slane %v257, 5
      %v889 = vsel %vm812, %v887, %v888
      %v890 = vrot.slane %v258, 5
      %v891 = vrot.slane %v890, 4
      %v892 = vrot.slane %v259, 5
      %v893 = vsel %vm812, %v891, %v892
      %v894 = vrot.slane %v892, 4
      %v895 = vrot.slane %v260, 5
      %v896 = vsel %vm812, %v894, %v895
      %v897 = vrot.slane %v261, 5
      %v898 = vrot.slane %v897, 4
      %v899 = vrot.slane %v262, 5
      %v900 = vsel %vm812, %v898, %v899
      %v901 = vrot.slane %v899, 4
      %v902 = vrot.slane %v263, 5
      %v903 = vsel %vm812, %v901, %v902
      %v904 = vrot.slane %v264, 5
      %v905 = vrot.slane %v904, 4
      %v906 = vrot.slane %v265, 5
      %v907 = vsel %vm812, %v905, %v906
      %v908 = vrot.slane %v906, 4
      %v909 = vrot.slane %v266, 5
      %v910 = vsel %vm812, %v908, %v909
      %v911 = vrot.slane %v267, 5
      %v912 = vrot.slane %v911, 4
      %v913 = vrot.slane %v268, 5
      %v914 = vsel %vm812, %v912, %v913
      %v915 = vrot.slane %v913, 4
      %v916 = vrot.slane %v269, 5
      %v917 = vsel %vm812, %v915, %v916
      %v918 = vrot.slane %v270, 5
      %v919 = vrot.slane %v918, 4
      %v920 = vrot.slane %v271, 5
      %v921 = vsel %vm812, %v919, %v920
      %v922 = vrot.slane %v920, 4
      %v923 = vrot.slane %v272, 5
      %v924 = vsel %vm812, %v922, %v923
      %957 = vst [vmem:[#allocation2 + $0x8] sm:$0xf] %v816
      %958 = vst [vmem:[#allocation2 + $0x2c] sm:$0xf] %v819
      %959 = vst [vmem:[#allocation2 + $0x50] sm:$0xf] %v823
      %960 = vst [vmem:[#allocation2 + $0x74] sm:$0xf] %v826
      %961 = vst [vmem:[#allocation2 + $0x98] sm:$0xf] %v830
      %962 = vst [vmem:[#allocation2 + $0xbc] sm:$0xf] %v833
      %963 = vst [vmem:[#allocation2 + $0xe0] sm:$0xf] %v837
      %964 = vst [vmem:[#allocation2 + $0x104] sm:$0xf] %v840
      %965 = vst [vmem:[#allocation2 + $0x128] sm:$0xf] %v844
      %966 = vst [vmem:[#allocation2 + $0x14c] sm:$0xf] %v847
      %967 = vst [vmem:[#allocation2 + $0x170] sm:$0xf] %v851
      %968 = vst [vmem:[#allocation2 + $0x194] sm:$0xf] %v854
      %969 = vst [vmem:[#allocation2 + $0x1b8] sm:$0xf] %v858
      %970 = vst [vmem:[#allocation2 + $0x1dc] sm:$0xf] %v861
      %971 = vst [vmem:[#allocation2 + $0x200] sm:$0xf] %v865
      %972 = vst [vmem:[#allocation2 + $0x224] sm:$0xf] %v868
      %973 = vst [vmem:[#allocation2 + $0x248] sm:$0xf] %v872
      %974 = vst [vmem:[#allocation2 + $0x26c] sm:$0xf] %v875
      %975 = vst [vmem:[#allocation2 + $0x290] sm:$0xf] %v879
      %976 = vst [vmem:[#allocation2 + $0x2b4] sm:$0xf] %v882
      %977 = vst [vmem:[#allocation2 + $0x2d8] sm:$0xf] %v886
      %978 = vst [vmem:[#allocation2 + $0x2fc] sm:$0xf] %v889
      %979 = vst [vmem:[#allocation2 + $0x320] sm:$0xf] %v893
      %980 = vst [vmem:[#allocation2 + $0x344] sm:$0xf] %v896
      %981 = vst [vmem:[#allocation2 + $0x368] sm:$0xf] %v900
      %982 = vst [vmem:[#allocation2 + $0x38c] sm:$0xf] %v903
      %983 = vst [vmem:[#allocation2 + $0x3b0] sm:$0xf] %v907
      %984 = vst [vmem:[#allocation2 + $0x3d4] sm:$0xf] %v910
      %985 = vst [vmem:[#allocation2 + $0x3f8] sm:$0xf] %v914
      %986 = vst [vmem:[#allocation2 + $0x41c] sm:$0xf] %v917
      %987 = vst [vmem:[#allocation2 + $0x440] sm:$0xf] %v921
      %988 = vst [vmem:[#allocation2 + $0x464] sm:$0xf] %v924
      %989 = vst [vmem:[#allocation2 + $0xc] sm:$0xf] %v228
      %990 = vst [vmem:[#allocation2 + $0x30] sm:$0xf] %v229
      %991 = vst [vmem:[#allocation2 + $0x54] sm:$0xf] %v231
      %992 = vst [vmem:[#allocation2 + $0x78] sm:$0xf] %v232
      %993 = vst [vmem:[#allocation2 + $0x9c] sm:$0xf] %v234
      %994 = vst [vmem:[#allocation2 + $0xc0] sm:$0xf] %v235
      %995 = vst [vmem:[#allocation2 + $0xe4] sm:$0xf] %v237
      %996 = vst [vmem:[#allocation2 + $0x108] sm:$0xf] %v238
      %997 = vst [vmem:[#allocation2 + $0x12c] sm:$0xf] %v240
      %998 = vst [vmem:[#allocation2 + $0x150] sm:$0xf] %v241
      %999 = vst [vmem:[#allocation2 + $0x174] sm:$0xf] %v243
      %1000 = vst [vmem:[#allocation2 + $0x198] sm:$0xf] %v244
      %1001 = vst [vmem:[#allocation2 + $0x1bc] sm:$0xf] %v246
      %1002 = vst [vmem:[#allocation2 + $0x1e0] sm:$0xf] %v247
      %1003 = vst [vmem:[#allocation2 + $0x204] sm:$0xf] %v249
      %1004 = vst [vmem:[#allocation2 + $0x228] sm:$0xf] %v250
      %1005 = vst [vmem:[#allocation2 + $0x24c] sm:$0xf] %v252
      %1006 = vst [vmem:[#allocation2 + $0x270] sm:$0xf] %v253
      %1007 = vst [vmem:[#allocation2 + $0x294] sm:$0xf] %v255
      %1008 = vst [vmem:[#allocation2 + $0x2b8] sm:$0xf] %v256
      %1009 = vst [vmem:[#allocation2 + $0x2dc] sm:$0xf] %v258
      %1010 = vst [vmem:[#allocation2 + $0x300] sm:$0xf] %v259
      %1011 = vst [vmem:[#allocation2 + $0x324] sm:$0xf] %v261
      %1012 = vst [vmem:[#allocation2 + $0x348] sm:$0xf] %v262
      %1013 = vst [vmem:[#allocation2 + $0x36c] sm:$0xf] %v264
      %1014 = vst [vmem:[#allocation2 + $0x390] sm:$0xf] %v265
      %1015 = vst [vmem:[#allocation2 + $0x3b4] sm:$0xf] %v267
      %1016 = vst [vmem:[#allocation2 + $0x3d8] sm:$0xf] %v268
      %1017 = vst [vmem:[#allocation2 + $0x3fc] sm:$0xf] %v270
      %1018 = vst [vmem:[#allocation2 + $0x420] sm:$0xf] %v271
      %1019 = vst [vmem:[#allocation2 + $0x444] sm:$0xf] %v273
      %1020 = vst [vmem:[#allocation2 + $0x468] sm:$0xf] %v274
      %v1022 = vshrl.u32 %v273, 16
      %v1024 = vrot.slane %v1022, 4
      %v1025 = vshll.u32 %v273, 16
      %v1027 = vrot.slane %v1025, 5
      %v1028 = vor.u32 %v1024, %v1027
      %v1029 = vrot.slane %v1028, 4
      %v1031 = vshll.u32 %v274, 16
      %v1033 = vrot.slane %v1031, 5
      %v1034 = vsel %vm313, %v1029, %v1033
      %v1035 = vshrl.u32 %v274, 16
      %v1037 = vrot.slane %v1035, 4
      %v1038 = vor.u32 %v1037, %v1033
      %v1039 = vrot.slane %v1038, 4
      %v1041 = vshll.u32 %v275, 16
      %v1043 = vrot.slane %v1041, 5
      %v1044 = vsel %vm313, %v1039, %v1043
      %1047 = vst [vmem:[#allocation2 + $0x10] sm:$0xf] %v351
      %1048 = vst [vmem:[#allocation2 + $0x34] sm:$0xf] %v361
      %1049 = vst [vmem:[#allocation2 + $0x58] sm:$0xf] %v375
      %1050 = vst [vmem:[#allocation2 + $0x7c] sm:$0xf] %v385
      %1051 = vst [vmem:[#allocation2 + $0xa0] sm:$0xf] %v399
      %1052 = vst [vmem:[#allocation2 + $0xc4] sm:$0xf] %v409
      %1053 = vst [vmem:[#allocation2 + $0xe8] sm:$0xf] %v423
      %1054 = vst [vmem:[#allocation2 + $0x10c] sm:$0xf] %v433
      %1055 = vst [vmem:[#allocation2 + $0x130] sm:$0xf] %v447
      %1056 = vst [vmem:[#allocation2 + $0x154] sm:$0xf] %v457
      %1057 = vst [vmem:[#allocation2 + $0x178] sm:$0xf] %v471
      %1058 = vst [vmem:[#allocation2 + $0x19c] sm:$0xf] %v481
      %1059 = vst [vmem:[#allocation2 + $0x1c0] sm:$0xf] %v495
      %1060 = vst [vmem:[#allocation2 + $0x1e4] sm:$0xf] %v505
      %1061 = vst [vmem:[#allocation2 + $0x208] sm:$0xf] %v519
      %1062 = vst [vmem:[#allocation2 + $0x22c] sm:$0xf] %v529
      %1063 = vst [vmem:[#allocation2 + $0x250] sm:$0xf] %v543
      %1064 = vst [vmem:[#allocation2 + $0x274] sm:$0xf] %v553
      %1065 = vst [vmem:[#allocation2 + $0x298] sm:$0xf] %v567
      %1066 = vst [vmem:[#allocation2 + $0x2bc] sm:$0xf] %v577
      %1067 = vst [vmem:[#allocation2 + $0x2e0] sm:$0xf] %v591
      %1068 = vst [vmem:[#allocation2 + $0x304] sm:$0xf] %v601
      %1069 = vst [vmem:[#allocation2 + $0x328] sm:$0xf] %v615
      %1070 = vst [vmem:[#allocation2 + $0x34c] sm:$0xf] %v625
      %1071 = vst [vmem:[#allocation2 + $0x370] sm:$0xf] %v639
      %1072 = vst [vmem:[#allocation2 + $0x394] sm:$0xf] %v649
      %1073 = vst [vmem:[#allocation2 + $0x3b8] sm:$0xf] %v663
      %1074 = vst [vmem:[#allocation2 + $0x3dc] sm:$0xf] %v673
      %1075 = vst [vmem:[#allocation2 + $0x400] sm:$0xf] %v687
      %1076 = vst [vmem:[#allocation2 + $0x424] sm:$0xf] %v697
      %1077 = vst [vmem:[#allocation2 + $0x448] sm:$0xf] %v1034
      %1078 = vst [vmem:[#allocation2 + $0x46c] sm:$0xf] %v1044
      %v1082 = vrot.slane %v273, 5
      %v1083 = vrot.slane %v1082, 4
      %v1084 = vrot.slane %v274, 5
      %v1085 = vsel %vm812, %v1083, %v1084
      %v1086 = vrot.slane %v1084, 4
      %v1087 = vrot.slane %v275, 5
      %v1088 = vsel %vm812, %v1086, %v1087
      %1091 = vst [vmem:[#allocation2 + $0x14] sm:$0xf] %v823
      %1092 = vst [vmem:[#allocation2 + $0x38] sm:$0xf] %v826
      %1093 = vst [vmem:[#allocation2 + $0x5c] sm:$0xf] %v830
      %1094 = vst [vmem:[#allocation2 + $0x80] sm:$0xf] %v833
      %1095 = vst [vmem:[#allocation2 + $0xa4] sm:$0xf] %v837
      %1096 = vst [vmem:[#allocation2 + $0xc8] sm:$0xf] %v840
      %1097 = vst [vmem:[#allocation2 + $0xec] sm:$0xf] %v844
      %1098 = vst [vmem:[#allocation2 + $0x110] sm:$0xf] %v847
      %1099 = vst [vmem:[#allocation2 + $0x134] sm:$0xf] %v851
      %1100 = vst [vmem:[#allocation2 + $0x158] sm:$0xf] %v854
      %1101 = vst [vmem:[#allocation2 + $0x17c] sm:$0xf] %v858
      %1102 = vst [vmem:[#allocation2 + $0x1a0] sm:$0xf] %v861
      %1103 = vst [vmem:[#allocation2 + $0x1c4] sm:$0xf] %v865
      %1104 = vst [vmem:[#allocation2 + $0x1e8] sm:$0xf] %v868
      %1105 = vst [vmem:[#allocation2 + $0x20c] sm:$0xf] %v872
      %1106 = vst [vmem:[#allocation2 + $0x230] sm:$0xf] %v875
      %1107 = vst [vmem:[#allocation2 + $0x254] sm:$0xf] %v879
      %1108 = vst [vmem:[#allocation2 + $0x278] sm:$0xf] %v882
      %1109 = vst [vmem:[#allocation2 + $0x29c] sm:$0xf] %v886
      %1110 = vst [vmem:[#allocation2 + $0x2c0] sm:$0xf] %v889
      %1111 = vst [vmem:[#allocation2 + $0x2e4] sm:$0xf] %v893
      %1112 = vst [vmem:[#allocation2 + $0x308] sm:$0xf] %v896
      %1113 = vst [vmem:[#allocation2 + $0x32c] sm:$0xf] %v900
      %1114 = vst [vmem:[#allocation2 + $0x350] sm:$0xf] %v903
      %1115 = vst [vmem:[#allocation2 + $0x374] sm:$0xf] %v907
      %1116 = vst [vmem:[#allocation2 + $0x398] sm:$0xf] %v910
      %1117 = vst [vmem:[#allocation2 + $0x3bc] sm:$0xf] %v914
      %1118 = vst [vmem:[#allocation2 + $0x3e0] sm:$0xf] %v917
      %1119 = vst [vmem:[#allocation2 + $0x404] sm:$0xf] %v921
      %1120 = vst [vmem:[#allocation2 + $0x428] sm:$0xf] %v924
      %1121 = vst [vmem:[#allocation2 + $0x44c] sm:$0xf] %v1085
      %1122 = vst [vmem:[#allocation2 + $0x470] sm:$0xf] %v1088
      %1123 = vst [vmem:[#allocation2 + $0x18] sm:$0xf] %v231
      %1124 = vst [vmem:[#allocation2 + $0x3c] sm:$0xf] %v232
      %1125 = vst [vmem:[#allocation2 + $0x60] sm:$0xf] %v234
      %1126 = vst [vmem:[#allocation2 + $0x84] sm:$0xf] %v235
      %1127 = vst [vmem:[#allocation2 + $0xa8] sm:$0xf] %v237
      %1128 = vst [vmem:[#allocation2 + $0xcc] sm:$0xf] %v238
      %1129 = vst [vmem:[#allocation2 + $0xf0] sm:$0xf] %v240
      %1130 = vst [vmem:[#allocation2 + $0x114] sm:$0xf] %v241
      %1131 = vst [vmem:[#allocation2 + $0x138] sm:$0xf] %v243
      %1132 = vst [vmem:[#allocation2 + $0x15c] sm:$0xf] %v244
      %1133 = vst [vmem:[#allocation2 + $0x180] sm:$0xf] %v246
      %1134 = vst [vmem:[#allocation2 + $0x1a4] sm:$0xf] %v247
      %1135 = vst [vmem:[#allocation2 + $0x1c8] sm:$0xf] %v249
      %1136 = vst [vmem:[#allocation2 + $0x1ec] sm:$0xf] %v250
      %1137 = vst [vmem:[#allocation2 + $0x210] sm:$0xf] %v252
      %1138 = vst [vmem:[#allocation2 + $0x234] sm:$0xf] %v253
      %1139 = vst [vmem:[#allocation2 + $0x258] sm:$0xf] %v255
      %1140 = vst [vmem:[#allocation2 + $0x27c] sm:$0xf] %v256
      %1141 = vst [vmem:[#allocation2 + $0x2a0] sm:$0xf] %v258
      %1142 = vst [vmem:[#allocation2 + $0x2c4] sm:$0xf] %v259
      %1143 = vst [vmem:[#allocation2 + $0x2e8] sm:$0xf] %v261
      %1144 = vst [vmem:[#allocation2 + $0x30c] sm:$0xf] %v262
      %1145 = vst [vmem:[#allocation2 + $0x330] sm:$0xf] %v264
      %1146 = vst [vmem:[#allocation2 + $0x354] sm:$0xf] %v265
      %1147 = vst [vmem:[#allocation2 + $0x378] sm:$0xf] %v267
      %1148 = vst [vmem:[#allocation2 + $0x39c] sm:$0xf] %v268
      %1149 = vst [vmem:[#allocation2 + $0x3c0] sm:$0xf] %v270
      %1150 = vst [vmem:[#allocation2 + $0x3e4] sm:$0xf] %v271
      %1151 = vst [vmem:[#allocation2 + $0x408] sm:$0xf] %v273
      %1152 = vst [vmem:[#allocation2 + $0x42c] sm:$0xf] %v274
      %1153 = vst [vmem:[#allocation2 + $0x450] sm:$0xf] %v276
      %1154 = vst [vmem:[#allocation2 + $0x474] sm:$0xf] %v277
      %v1156 = vshrl.u32 %v276, 16
      %v1158 = vrot.slane %v1156, 4
      %v1159 = vshll.u32 %v276, 16
      %v1161 = vrot.slane %v1159, 5
      %v1162 = vor.u32 %v1158, %v1161
      %v1163 = vrot.slane %v1162, 4
      %v1165 = vshll.u32 %v277, 16
      %v1167 = vrot.slane %v1165, 5
      %v1168 = vsel %vm313, %v1163, %v1167
      %v1169 = vshrl.u32 %v277, 16
      %v1171 = vrot.slane %v1169, 4
      %v1172 = vor.u32 %v1171, %v1167
      %v1173 = vrot.slane %v1172, 4
      %v1175 = vshll.u32 %v278, 16
      %v1177 = vrot.slane %v1175, 5
      %v1178 = vsel %vm313, %v1173, %v1177
      %1181 = vst [vmem:[#allocation2 + $0x1c] sm:$0xf] %v375
      %1182 = vst [vmem:[#allocation2 + $0x40] sm:$0xf] %v385
      %1183 = vst [vmem:[#allocation2 + $0x64] sm:$0xf] %v399
      %1184 = vst [vmem:[#allocation2 + $0x88] sm:$0xf] %v409
      %1185 = vst [vmem:[#allocation2 + $0xac] sm:$0xf] %v423
      %1186 = vst [vmem:[#allocation2 + $0xd0] sm:$0xf] %v433
      %1187 = vst [vmem:[#allocation2 + $0xf4] sm:$0xf] %v447
      %1188 = vst [vmem:[#allocation2 + $0x118] sm:$0xf] %v457
      %1189 = vst [vmem:[#allocation2 + $0x13c] sm:$0xf] %v471
      %1190 = vst [vmem:[#allocation2 + $0x160] sm:$0xf] %v481
      %1191 = vst [vmem:[#allocation2 + $0x184] sm:$0xf] %v495
      %1192 = vst [vmem:[#allocation2 + $0x1a8] sm:$0xf] %v505
      %1193 = vst [vmem:[#allocation2 + $0x1cc] sm:$0xf] %v519
      %1194 = vst [vmem:[#allocation2 + $0x1f0] sm:$0xf] %v529
      %1195 = vst [vmem:[#allocation2 + $0x214] sm:$0xf] %v543
      %1196 = vst [vmem:[#allocation2 + $0x238] sm:$0xf] %v553
      %1197 = vst [vmem:[#allocation2 + $0x25c] sm:$0xf] %v567
      %1198 = vst [vmem:[#allocation2 + $0x280] sm:$0xf] %v577
      %1199 = vst [vmem:[#allocation2 + $0x2a4] sm:$0xf] %v591
      %1200 = vst [vmem:[#allocation2 + $0x2c8] sm:$0xf] %v601
      %1201 = vst [vmem:[#allocation2 + $0x2ec] sm:$0xf] %v615
      %1202 = vst [vmem:[#allocation2 + $0x310] sm:$0xf] %v625
      %1203 = vst [vmem:[#allocation2 + $0x334] sm:$0xf] %v639
      %1204 = vst [vmem:[#allocation2 + $0x358] sm:$0xf] %v649
      %1205 = vst [vmem:[#allocation2 + $0x37c] sm:$0xf] %v663
      %1206 = vst [vmem:[#allocation2 + $0x3a0] sm:$0xf] %v673
      %1207 = vst [vmem:[#allocation2 + $0x3c4] sm:$0xf] %v687
      %1208 = vst [vmem:[#allocation2 + $0x3e8] sm:$0xf] %v697
      %1209 = vst [vmem:[#allocation2 + $0x40c] sm:$0xf] %v1034
      %1210 = vst [vmem:[#allocation2 + $0x430] sm:$0xf] %v1044
      %1211 = vst [vmem:[#allocation2 + $0x454] sm:$0xf] %v1168
      %1212 = vst [vmem:[#allocation2 + $0x478] sm:$0xf] %v1178
      %v1216 = vrot.slane %v276, 5
      %v1217 = vrot.slane %v1216, 4
      %v1218 = vrot.slane %v277, 5
      %v1219 = vsel %vm812, %v1217, %v1218
      %v1220 = vrot.slane %v1218, 4
      %v1221 = vrot.slane %v278, 5
      %v1222 = vsel %vm812, %v1220, %v1221
      %1225 = vst [vmem:[#allocation2 + $0x20] sm:$0xf] %v830
      %1226 = vst [vmem:[#allocation2 + $0x44] sm:$0xf] %v833
      %1227 = vst [vmem:[#allocation2 + $0x68] sm:$0xf] %v837
      %1228 = vst [vmem:[#allocation2 + $0x8c] sm:$0xf] %v840
      %1229 = vst [vmem:[#allocation2 + $0xb0] sm:$0xf] %v844
      %1230 = vst [vmem:[#allocation2 + $0xd4] sm:$0xf] %v847
      %1231 = vst [vmem:[#allocation2 + $0xf8] sm:$0xf] %v851
      %1232 = vst [vmem:[#allocation2 + $0x11c] sm:$0xf] %v854
      %1233 = vst [vmem:[#allocation2 + $0x140] sm:$0xf] %v858
      %1234 = vst [vmem:[#allocation2 + $0x164] sm:$0xf] %v861
      %1235 = vst [vmem:[#allocation2 + $0x188] sm:$0xf] %v865
      %1236 = vst [vmem:[#allocation2 + $0x1ac] sm:$0xf] %v868
      %1237 = vst [vmem:[#allocation2 + $0x1d0] sm:$0xf] %v872
      %1238 = vst [vmem:[#allocation2 + $0x1f4] sm:$0xf] %v875
      %1239 = vst [vmem:[#allocation2 + $0x218] sm:$0xf] %v879
      %1240 = vst [vmem:[#allocation2 + $0x23c] sm:$0xf] %v882
      %1241 = vst [vmem:[#allocation2 + $0x260] sm:$0xf] %v886
      %1242 = vst [vmem:[#allocation2 + $0x284] sm:$0xf] %v889
      %1243 = vst [vmem:[#allocation2 + $0x2a8] sm:$0xf] %v893
      %1244 = vst [vmem:[#allocation2 + $0x2cc] sm:$0xf] %v896
      %1245 = vst [vmem:[#allocation2 + $0x2f0] sm:$0xf] %v900
      %1246 = vst [vmem:[#allocation2 + $0x314] sm:$0xf] %v903
      %1247 = vst [vmem:[#allocation2 + $0x338] sm:$0xf] %v907
      %1248 = vst [vmem:[#allocation2 + $0x35c] sm:$0xf] %v910
      %1249 = vst [vmem:[#allocation2 + $0x380] sm:$0xf] %v914
      %1250 = vst [vmem:[#allocation2 + $0x3a4] sm:$0xf] %v917
      %1251 = vst [vmem:[#allocation2 + $0x3c8] sm:$0xf] %v921
      %1252 = vst [vmem:[#allocation2 + $0x3ec] sm:$0xf] %v924
      %1253 = vst [vmem:[#allocation2 + $0x410] sm:$0xf] %v1085
      %1254 = vst [vmem:[#allocation2 + $0x434] sm:$0xf] %v1088
      %1255 = vst [vmem:[#allocation2 + $0x458] sm:$0xf] %v1219
      %1256 = vst [vmem:[#allocation2 + $0x47c] sm:$0xf] %v1222
      %v1257 = vld [vmem:[#allocation2] sm:$0xff]
      %v1258 = vld [vmem:[#allocation2 + $0x8] sm:$0xff]
      %v1259 = vld [vmem:[#allocation2 + $0x10] sm:$0xff]
      %v1260 = vld [vmem:[#allocation2 + $0x18] sm:$0xff]
      %v1261 = vld [vmem:[#allocation2 + $0x20] sm:$0xf]
      %v1262 = vld [vmem:[#allocation2 + $0x24] sm:$0xff]
      %v1263 = vld [vmem:[#allocation2 + $0x2c] sm:$0xff]
      %v1264 = vld [vmem:[#allocation2 + $0x34] sm:$0xff]
      %v1265 = vld [vmem:[#allocation2 + $0x3c] sm:$0xff]
      %v1266 = vld [vmem:[#allocation2 + $0x44] sm:$0xf]
      %v1267 = vld [vmem:[#allocation2 + $0x48] sm:$0xff]
      %v1268 = vld [vmem:[#allocation2 + $0x50] sm:$0xff]
      %v1269 = vld [vmem:[#allocation2 + $0x58] sm:$0xff]
      %v1270 = vld [vmem:[#allocation2 + $0x60] sm:$0xff]
      %v1271 = vld [vmem:[#allocation2 + $0x68] sm:$0xf]
      %v1272 = vld [vmem:[#allocation2 + $0x6c] sm:$0xff]
      %v1273 = vld [vmem:[#allocation2 + $0x74] sm:$0xff]
      %v1274 = vld [vmem:[#allocation2 + $0x7c] sm:$0xff]
      %v1275 = vld [vmem:[#allocation2 + $0x84] sm:$0xff]
      %v1276 = vld [vmem:[#allocation2 + $0x8c] sm:$0xf]
      %v1277 = vld [vmem:[#allocation2 + $0x90] sm:$0xff]
      %v1278 = vld [vmem:[#allocation2 + $0x98] sm:$0xff]
      %v1279 = vld [vmem:[#allocation2 + $0xa0] sm:$0xff]
      %v1280 = vld [vmem:[#allocation2 + $0xa8] sm:$0xff]
      %v1281 = vld [vmem:[#allocation2 + $0xb0] sm:$0xf]
      %v1282 = vld [vmem:[#allocation2 + $0xb4] sm:$0xff]
      %v1283 = vld [vmem:[#allocation2 + $0xbc] sm:$0xff]
      %v1284 = vld [vmem:[#allocation2 + $0xc4] sm:$0xff]
      %v1285 = vld [vmem:[#allocation2 + $0xcc] sm:$0xff]
      %v1286 = vld [vmem:[#allocation2 + $0xd4] sm:$0xf]
      %v1287 = vld [vmem:[#allocation2 + $0xd8] sm:$0xff]
      %v1288 = vld [vmem:[#allocation2 + $0xe0] sm:$0xff]
      %v1289 = vld [vmem:[#allocation2 + $0xe8] sm:$0xff]
      %v1290 = vld [vmem:[#allocation2 + $0xf0] sm:$0xff]
      %v1291 = vld [vmem:[#allocation2 + $0xf8] sm:$0xf]
      %v1292 = vld [vmem:[#allocation2 + $0xfc] sm:$0xff]
      %v1293 = vld [vmem:[#allocation2 + $0x104] sm:$0xff]
      %v1294 = vld [vmem:[#allocation2 + $0x10c] sm:$0xff]
      %v1295 = vld [vmem:[#allocation2 + $0x114] sm:$0xff]
      %v1296 = vld [vmem:[#allocation2 + $0x11c] sm:$0xf]
      %v1297 = vld [vmem:[#allocation2 + $0x120] sm:$0xff]
      %v1298 = vld [vmem:[#allocation2 + $0x128] sm:$0xff]
      %v1299 = vld [vmem:[#allocation2 + $0x130] sm:$0xff]
      %v1300 = vld [vmem:[#allocation2 + $0x138] sm:$0xff]
      %v1301 = vld [vmem:[#allocation2 + $0x140] sm:$0xf]
      %v1302 = vld [vmem:[#allocation2 + $0x144] sm:$0xff]
      %v1303 = vld [vmem:[#allocation2 + $0x14c] sm:$0xff]
      %v1304 = vld [vmem:[#allocation2 + $0x154] sm:$0xff]
      %v1305 = vld [vmem:[#allocation2 + $0x15c] sm:$0xff]
      %v1306 = vld [vmem:[#allocation2 + $0x164] sm:$0xf]
      %v1307 = vld [vmem:[#allocation2 + $0x168] sm:$0xff]
      %v1308 = vld [vmem:[#allocation2 + $0x170] sm:$0xff]
      %v1309 = vld [vmem:[#allocation2 + $0x178] sm:$0xff]
      %v1310 = vld [vmem:[#allocation2 + $0x180] sm:$0xff]
      %v1311 = vld [vmem:[#allocation2 + $0x188] sm:$0xf]
      %v1312 = vld [vmem:[#allocation2 + $0x18c] sm:$0xff]
      %v1313 = vld [vmem:[#allocation2 + $0x194] sm:$0xff]
      %v1314 = vld [vmem:[#allocation2 + $0x19c] sm:$0xff]
      %v1315 = vld [vmem:[#allocation2 + $0x1a4] sm:$0xff]
      %v1316 = vld [vmem:[#allocation2 + $0x1ac] sm:$0xf]
      %v1317 = vld [vmem:[#allocation2 + $0x1b0] sm:$0xff]
      %v1318 = vld [vmem:[#allocation2 + $0x1b8] sm:$0xff]
      %v1319 = vld [vmem:[#allocation2 + $0x1c0] sm:$0xff]
      %v1320 = vld [vmem:[#allocation2 + $0x1c8] sm:$0xff]
      %v1321 = vld [vmem:[#allocation2 + $0x1d0] sm:$0xf]
      %v1322 = vld [vmem:[#allocation2 + $0x1d4] sm:$0xff]
      %v1323 = vld [vmem:[#allocation2 + $0x1dc] sm:$0xff]
      %v1324 = vld [vmem:[#allocation2 + $0x1e4] sm:$0xff]
      %v1325 = vld [vmem:[#allocation2 + $0x1ec] sm:$0xff]
      %v1326 = vld [vmem:[#allocation2 + $0x1f4] sm:$0xf]
      %v1327 = vld [vmem:[#allocation2 + $0x1f8] sm:$0xff]
      %v1328 = vld [vmem:[#allocation2 + $0x200] sm:$0xff]
      %v1329 = vld [vmem:[#allocation2 + $0x208] sm:$0xff]
      %v1330 = vld [vmem:[#allocation2 + $0x210] sm:$0xff]
      %v1331 = vld [vmem:[#allocation2 + $0x218] sm:$0xf]
      %v1332 = vld [vmem:[#allocation2 + $0x21c] sm:$0xff]
      %v1333 = vld [vmem:[#allocation2 + $0x224] sm:$0xff]
      %v1334 = vld [vmem:[#allocation2 + $0x22c] sm:$0xff]
      %v1335 = vld [vmem:[#allocation2 + $0x234] sm:$0xff]
      %v1336 = vld [vmem:[#allocation2 + $0x23c] sm:$0xf]
      %v1337 = vld [vmem:[#allocation2 + $0x240] sm:$0xff]
      %v1338 = vld [vmem:[#allocation2 + $0x248] sm:$0xff]
      %v1339 = vld [vmem:[#allocation2 + $0x250] sm:$0xff]
      %v1340 = vld [vmem:[#allocation2 + $0x258] sm:$0xff]
      %v1341 = vld [vmem:[#allocation2 + $0x260] sm:$0xf]
      %v1342 = vld [vmem:[#allocation2 + $0x264] sm:$0xff]
      %v1343 = vld [vmem:[#allocation2 + $0x26c] sm:$0xff]
      %v1344 = vld [vmem:[#allocation2 + $0x274] sm:$0xff]
      %v1345 = vld [vmem:[#allocation2 + $0x27c] sm:$0xff]
      %v1346 = vld [vmem:[#allocation2 + $0x284] sm:$0xf]
      %v1347 = vld [vmem:[#allocation2 + $0x288] sm:$0xff]
      %v1348 = vld [vmem:[#allocation2 + $0x290] sm:$0xff]
      %v1349 = vld [vmem:[#allocation2 + $0x298] sm:$0xff]
      %v1350 = vld [vmem:[#allocation2 + $0x2a0] sm:$0xff]
      %v1351 = vld [vmem:[#allocation2 + $0x2a8] sm:$0xf]
      %v1352 = vld [vmem:[#allocation2 + $0x2ac] sm:$0xff]
      %v1353 = vld [vmem:[#allocation2 + $0x2b4] sm:$0xff]
      %v1354 = vld [vmem:[#allocation2 + $0x2bc] sm:$0xff]
      %v1355 = vld [vmem:[#allocation2 + $0x2c4] sm:$0xff]
      %v1356 = vld [vmem:[#allocation2 + $0x2cc] sm:$0xf]
      %v1357 = vld [vmem:[#allocation2 + $0x2d0] sm:$0xff]
      %v1358 = vld [vmem:[#allocation2 + $0x2d8] sm:$0xff]
      %v1359 = vld [vmem:[#allocation2 + $0x2e0] sm:$0xff]
      %v1360 = vld [vmem:[#allocation2 + $0x2e8] sm:$0xff]
      %v1361 = vld [vmem:[#allocation2 + $0x2f0] sm:$0xf]
      %v1362 = vld [vmem:[#allocation2 + $0x2f4] sm:$0xff]
      %v1363 = vld [vmem:[#allocation2 + $0x2fc] sm:$0xff]
      %v1364 = vld [vmem:[#allocation2 + $0x304] sm:$0xff]
      %v1365 = vld [vmem:[#allocation2 + $0x30c] sm:$0xff]
      %v1366 = vld [vmem:[#allocation2 + $0x314] sm:$0xf]
      %v1367 = vld [vmem:[#allocation2 + $0x318] sm:$0xff]
      %v1368 = vld [vmem:[#allocation2 + $0x320] sm:$0xff]
      %v1369 = vld [vmem:[#allocation2 + $0x328] sm:$0xff]
      %v1370 = vld [vmem:[#allocation2 + $0x330] sm:$0xff]
      %v1371 = vld [vmem:[#allocation2 + $0x338] sm:$0xf]
      %v1372 = vld [vmem:[#allocation2 + $0x33c] sm:$0xff]
      %v1373 = vld [vmem:[#allocation2 + $0x344] sm:$0xff]
      %v1374 = vld [vmem:[#allocation2 + $0x34c] sm:$0xff]
      %v1375 = vld [vmem:[#allocation2 + $0x354] sm:$0xff]
      %v1376 = vld [vmem:[#allocation2 + $0x35c] sm:$0xf]
      %v1377 = vld [vmem:[#allocation2 + $0x360] sm:$0xff]
      %v1378 = vld [vmem:[#allocation2 + $0x368] sm:$0xff]
      %v1379 = vld [vmem:[#allocation2 + $0x370] sm:$0xff]
      %v1380 = vld [vmem:[#allocation2 + $0x378] sm:$0xff]
      %v1381 = vld [vmem:[#allocation2 + $0x380] sm:$0xf]
      %v1382 = vld [vmem:[#allocation2 + $0x384] sm:$0xff]
      %v1383 = vld [vmem:[#allocation2 + $0x38c] sm:$0xff]
      %v1384 = vld [vmem:[#allocation2 + $0x394] sm:$0xff]
      %v1385 = vld [vmem:[#allocation2 + $0x39c] sm:$0xff]
      %v1386 = vld [vmem:[#allocation2 + $0x3a4] sm:$0xf]
      %v1387 = vld [vmem:[#allocation2 + $0x3a8] sm:$0xff]
      %v1388 = vld [vmem:[#allocation2 + $0x3b0] sm:$0xff]
      %v1389 = vld [vmem:[#allocation2 + $0x3b8] sm:$0xff]
      %v1390 = vld [vmem:[#allocation2 + $0x3c0] sm:$0xff]
      %v1391 = vld [vmem:[#allocation2 + $0x3c8] sm:$0xf]
      %v1392 = vld [vmem:[#allocation2 + $0x3cc] sm:$0xff]
      %v1393 = vld [vmem:[#allocation2 + $0x3d4] sm:$0xff]
      %v1394 = vld [vmem:[#allocation2 + $0x3dc] sm:$0xff]
      %v1395 = vld [vmem:[#allocation2 + $0x3e4] sm:$0xff]
      %v1396 = vld [vmem:[#allocation2 + $0x3ec] sm:$0xf]
      %v1397 = vld [vmem:[#allocation2 + $0x3f0] sm:$0xff]
      %v1398 = vld [vmem:[#allocation2 + $0x3f8] sm:$0xff]
      %v1399 = vld [vmem:[#allocation2 + $0x400] sm:$0xff]
      %v1400 = vld [vmem:[#allocation2 + $0x408] sm:$0xff]
      %v1401 = vld [vmem:[#allocation2 + $0x410] sm:$0xf]
      %v1402 = vld [vmem:[#allocation2 + $0x414] sm:$0xff]
      %v1403 = vld [vmem:[#allocation2 + $0x41c] sm:$0xff]
      %v1404 = vld [vmem:[#allocation2 + $0x424] sm:$0xff]
      %v1405 = vld [vmem:[#allocation2 + $0x42c] sm:$0xff]
      %v1406 = vld [vmem:[#allocation2 + $0x434] sm:$0xf]
      %v1407 = vld [vmem:[#allocation2 + $0x438] sm:$0xff]
      %v1408 = vld [vmem:[#allocation2 + $0x440] sm:$0xff]
      %v1409 = vld [vmem:[#allocation2 + $0x448] sm:$0xff]
      %v1410 = vld [vmem:[#allocation2 + $0x450] sm:$0xff]
      %v1411 = vld [vmem:[#allocation2 + $0x458] sm:$0xf]
      %v1412 = vld [vmem:[#allocation2 + $0x45c] sm:$0xff]
      %v1413 = vld [vmem:[#allocation2 + $0x464] sm:$0xff]
      %v1414 = vld [vmem:[#allocation2 + $0x46c] sm:$0xff]
      %v1415 = vld [vmem:[#allocation2 + $0x474] sm:$0xff]
      %v1416 = vld [vmem:[#allocation2 + $0x47c] sm:$0xf]
      %v1417 = vld [vmem:[%s1] sm:$0xf]
      %v1418 = vld [vmem:[%s1 + $0x4] sm:$0xf]
      %v1419 = vld [vmem:[%s1 + $0x8] sm:$0xf]
      %v1420 = vld [vmem:[%s1 + $0xc] sm:$0xf]
      %v1421 = vld [vmem:[%s1 + $0x10] sm:$0xf]
      %v1422 = vld [vmem:[%s1 + $0x14] sm:$0xf]
      %v1423 = vld [vmem:[%s1 + $0x18] sm:$0xf]
      %v1424 = vld [vmem:[%s1 + $0x1c] sm:$0xf]
      %v1425 = vld [vmem:[%s1 + $0x20] sm:$0xf]
      %v1426 = vld [vmem:[%s1 + $0x24] sm:$0xf]
      %v1427 = vld [vmem:[%s1 + $0x28] sm:$0xf]
      %v1428 = vld [vmem:[%s1 + $0x2c] sm:$0xf]
      %v1429 = vld [vmem:[%s1 + $0x30] sm:$0xf]
      %v1430 = vld [vmem:[%s1 + $0x34] sm:$0xf]
      %v1431 = vld [vmem:[%s1 + $0x38] sm:$0xf]
      %v1432 = vld [vmem:[%s1 + $0x3c] sm:$0xf]
      %v1433 = vld [vmem:[%s1 + $0x40] sm:$0xf]
      %v1434 = vld [vmem:[%s1 + $0x44] sm:$0xf]
      %v1435 = vld [vmem:[%s1 + $0x48] sm:$0xf]
      %v1436 = vld [vmem:[%s1 + $0x4c] sm:$0xf]
      %v1437 = vld [vmem:[%s1 + $0x50] sm:$0xf]
      %v1438 = vld [vmem:[%s1 + $0x54] sm:$0xf]
      %v1439 = vld [vmem:[%s1 + $0x58] sm:$0xf]
      %v1440 = vld [vmem:[%s1 + $0x5c] sm:$0xf]
      %v1441 = vld [vmem:[%s1 + $0x60] sm:$0xf]
      %v1442 = vld [vmem:[%s1 + $0x64] sm:$0xf]
      %v1443 = vld [vmem:[%s1 + $0x68] sm:$0xf]
      %v1444 = vld [vmem:[%s1 + $0x6c] sm:$0xf]
      %v1445 = vld [vmem:[%s1 + $0x70] sm:$0xf]
      %v1446 = vld [vmem:[%s1 + $0x74] sm:$0xf]
      %v1447 = vld [vmem:[%s1 + $0x78] sm:$0xf]
      %v1448 = vld [vmem:[%s1 + $0x7c] sm:$0xf]
      %v1449 = vld [vmem:[%s1 + $0x80] sm:$0xf]
      %v1450 = vld [vmem:[%s1 + $0x84] sm:$0xf]
      %v1451 = vld [vmem:[%s1 + $0x88] sm:$0xf]
      %v1452 = vld [vmem:[%s1 + $0x8c] sm:$0xf]
      %v1453 = vld [vmem:[%s1 + $0x90] sm:$0xf]
      %v1454 = vld [vmem:[%s1 + $0x94] sm:$0xf]
      %v1455 = vld [vmem:[%s1 + $0x98] sm:$0xf]
      %v1456 = vld [vmem:[%s1 + $0x9c] sm:$0xf]
      %v1457 = vld [vmem:[%s1 + $0xa0] sm:$0xf]
      %v1458 = vld [vmem:[%s1 + $0xa4] sm:$0xf]
      %v1459 = vld [vmem:[%s1 + $0xa8] sm:$0xf]
      %v1460 = vld [vmem:[%s1 + $0xac] sm:$0xf]
      %v1461 = vld [vmem:[%s1 + $0xb0] sm:$0xf]
      %v1462 = vld [vmem:[%s1 + $0xb4] sm:$0xf]
      %v1463 = vld [vmem:[%s1 + $0xb8] sm:$0xf]
      %v1464 = vld [vmem:[%s1 + $0xbc] sm:$0xf]
      %v1465 = vld [vmem:[%s1 + $0xc0] sm:$0xf]
      %v1466 = vld [vmem:[%s1 + $0xc4] sm:$0xf]
      %v1467 = vld [vmem:[%s1 + $0xc8] sm:$0xf]
      %v1468 = vld [vmem:[%s1 + $0xcc] sm:$0xf]
      %v1469 = vld [vmem:[%s1 + $0xd0] sm:$0xf]
      %v1470 = vld [vmem:[%s1 + $0xd4] sm:$0xf]
      %v1471 = vld [vmem:[%s1 + $0xd8] sm:$0xf]
      %v1472 = vld [vmem:[%s1 + $0xdc] sm:$0xf]
      %v1473 = vld [vmem:[%s1 + $0xe0] sm:$0xf]
      %v1474 = vld [vmem:[%s1 + $0xe4] sm:$0xf]
      %v1475 = vld [vmem:[%s1 + $0xe8] sm:$0xf]
      %v1476 = vld [vmem:[%s1 + $0xec] sm:$0xf]
      %v1477 = vld [vmem:[%s1 + $0xf0] sm:$0xf]
      %v1478 = vld [vmem:[%s1 + $0xf4] sm:$0xf]
      %v1479 = vld [vmem:[%s1 + $0xf8] sm:$0xf]
      %v1480 = vld [vmem:[%s1 + $0xfc] sm:$0xf]
      %v1481 = vld [vmem:[%s1 + $0x100] sm:$0xf]
      %v1482 = vld [vmem:[%s1 + $0x104] sm:$0xf]
      %v1483 = vld [vmem:[%s1 + $0x108] sm:$0xf]
      %v1484 = vld [vmem:[%s1 + $0x10c] sm:$0xf]
      %v1485 = vld [vmem:[%s1 + $0x110] sm:$0xf]
      %v1486 = vld [vmem:[%s1 + $0x114] sm:$0xf]
      %v1487 = vld [vmem:[%s1 + $0x118] sm:$0xf]
      %v1488 = vld [vmem:[%s1 + $0x11c] sm:$0xf]
      %v1489 = vld [vmem:[%s1 + $0x120] sm:$0xf]
      %v1490 = vld [vmem:[%s1 + $0x124] sm:$0xf]
      %v1491 = vld [vmem:[%s1 + $0x128] sm:$0xf]
      %v1492 = vld [vmem:[%s1 + $0x12c] sm:$0xf]
      %v1493 = vld [vmem:[%s1 + $0x130] sm:$0xf]
      %v1494 = vld [vmem:[%s1 + $0x134] sm:$0xf]
      %v1495 = vld [vmem:[%s1 + $0x138] sm:$0xf]
      %v1496 = vld [vmem:[%s1 + $0x13c] sm:$0xf]
      %v1497 = vld [vmem:[%s1 + $0x140] sm:$0xf]
      %v1498 = vld [vmem:[%s1 + $0x144] sm:$0xf]
      %v1499 = vld [vmem:[%s1 + $0x148] sm:$0xf]
      %v1500 = vld [vmem:[%s1 + $0x14c] sm:$0xf]
      %v1501 = vld [vmem:[%s1 + $0x150] sm:$0xf]
      %v1502 = vld [vmem:[%s1 + $0x154] sm:$0xf]
      %v1503 = vld [vmem:[%s1 + $0x158] sm:$0xf]
      %v1504 = vld [vmem:[%s1 + $0x15c] sm:$0xf]
      %v1505 = vld [vmem:[%s1 + $0x160] sm:$0xf]
      %v1506 = vld [vmem:[%s1 + $0x164] sm:$0xf]
      %v1507 = vld [vmem:[%s1 + $0x168] sm:$0xf]
      %v1508 = vld [vmem:[%s1 + $0x16c] sm:$0xf]
      %v1509 = vld [vmem:[%s1 + $0x170] sm:$0xf]
      %v1510 = vld [vmem:[%s1 + $0x174] sm:$0xf]
      %v1511 = vld [vmem:[%s1 + $0x178] sm:$0xf]
      %v1512 = vld [vmem:[%s1 + $0x17c] sm:$0xf]
      %v1513 = vld [vmem:[%s1 + $0x180] sm:$0xf]
      %v1514 = vld [vmem:[%s1 + $0x184] sm:$0xf]
      %v1515 = vld [vmem:[%s1 + $0x188] sm:$0xf]
      %v1516 = vld [vmem:[%s1 + $0x18c] sm:$0xf]
      %v1517 = vld [vmem:[%s1 + $0x190] sm:$0xf]
      %v1518 = vld [vmem:[%s1 + $0x194] sm:$0xf]
      %v1519 = vld [vmem:[%s1 + $0x198] sm:$0xf]
      %v1520 = vld [vmem:[%s1 + $0x19c] sm:$0xf]
      %v1521 = vld [vmem:[%s1 + $0x1a0] sm:$0xf]
      %v1522 = vld [vmem:[%s1 + $0x1a4] sm:$0xf]
      %v1523 = vld [vmem:[%s1 + $0x1a8] sm:$0xf]
      %v1524 = vld [vmem:[%s1 + $0x1ac] sm:$0xf]
      %v1525 = vld [vmem:[%s1 + $0x1b0] sm:$0xf]
      %v1526 = vld [vmem:[%s1 + $0x1b4] sm:$0xf]
      %v1527 = vld [vmem:[%s1 + $0x1b8] sm:$0xf]
      %v1528 = vld [vmem:[%s1 + $0x1bc] sm:$0xf]
      %v1529 = vld [vmem:[%s1 + $0x1c0] sm:$0xf]
      %v1530 = vld [vmem:[%s1 + $0x1c4] sm:$0xf]
      %v1531 = vld [vmem:[%s1 + $0x1c8] sm:$0xf]
      %v1532 = vld [vmem:[%s1 + $0x1cc] sm:$0xf]
      %v1533 = vld [vmem:[%s1 + $0x1d0] sm:$0xf]
      %v1534 = vld [vmem:[%s1 + $0x1d4] sm:$0xf]
      %v1535 = vld [vmem:[%s1 + $0x1d8] sm:$0xf]
      %v1536 = vld [vmem:[%s1 + $0x1dc] sm:$0xf]
      %v1537 = vld [vmem:[%s1 + $0x1e0] sm:$0xf]
      %v1538 = vld [vmem:[%s1 + $0x1e4] sm:$0xf]
      %v1539 = vld [vmem:[%s1 + $0x1e8] sm:$0xf]
      %v1540 = vld [vmem:[%s1 + $0x1ec] sm:$0xf]
      %v1541 = vld [vmem:[%s1 + $0x1f0] sm:$0xf]
      %v1542 = vld [vmem:[%s1 + $0x1f4] sm:$0xf]
      %v1543 = vld [vmem:[%s1 + $0x1f8] sm:$0xf]
      %v1544 = vld [vmem:[%s1 + $0x1fc] sm:$0xf]
      %v1545 = vld [vmem:[%s1 + $0x200] sm:$0xf]
      %v1546 = vld [vmem:[%s1 + $0x204] sm:$0xf]
      %v1547 = vld [vmem:[%s1 + $0x208] sm:$0xf]
      %v1548 = vld [vmem:[%s1 + $0x20c] sm:$0xf]
      %v1549 = vld [vmem:[%s1 + $0x210] sm:$0xf]
      %v1550 = vld [vmem:[%s1 + $0x214] sm:$0xf]
      %v1551 = vld [vmem:[%s1 + $0x218] sm:$0xf]
      %v1552 = vld [vmem:[%s1 + $0x21c] sm:$0xf]
      %v1553 = vld [vmem:[%s1 + $0x220] sm:$0xf]
      %v1554 = vld [vmem:[%s1 + $0x224] sm:$0xf]
      %v1555 = vld [vmem:[%s1 + $0x228] sm:$0xf]
      %v1556 = vld [vmem:[%s1 + $0x22c] sm:$0xf]
      %v1557 = vld [vmem:[%s1 + $0x230] sm:$0xf]
      %v1558 = vld [vmem:[%s1 + $0x234] sm:$0xf]
      %v1559 = vld [vmem:[%s1 + $0x238] sm:$0xf]
      %v1560 = vld [vmem:[%s1 + $0x23c] sm:$0xf]
      %v1721 = vunpack.c.l.b16 %v1257
      %v1722 = vunpack.c.h.b16 %v1257
      %v1723 = vunpack.c.l.b16 %v1258
      %v1724 = vunpack.c.h.b16 %v1258
      %v1725 = vunpack.c.l.b16 %v1259
      %v1726 = vunpack.c.h.b16 %v1259
      %v1727 = vunpack.c.l.b16 %v1260
      %v1728 = vunpack.c.h.b16 %v1260
      %v1729 = vunpack.c.l.b16 %v1261
      %v1730 = vunpack.c.l.b16 %v1262
      %v1731 = vunpack.c.h.b16 %v1262
      %v1732 = vunpack.c.l.b16 %v1263
      %v1733 = vunpack.c.h.b16 %v1263
      %v1734 = vunpack.c.l.b16 %v1264
      %v1735 = vunpack.c.h.b16 %v1264
      %v1736 = vunpack.c.l.b16 %v1265
      %v1737 = vunpack.c.h.b16 %v1265
      %v1738 = vunpack.c.l.b16 %v1266
      %v1739 = vunpack.c.l.b16 %v1267
      %v1740 = vunpack.c.h.b16 %v1267
      %v1741 = vunpack.c.l.b16 %v1268
      %v1742 = vunpack.c.h.b16 %v1268
      %v1743 = vunpack.c.l.b16 %v1269
      %v1744 = vunpack.c.h.b16 %v1269
      %v1745 = vunpack.c.l.b16 %v1270
      %v1746 = vunpack.c.h.b16 %v1270
      %v1747 = vunpack.c.l.b16 %v1271
      %v1748 = vunpack.c.l.b16 %v1272
      %v1749 = vunpack.c.h.b16 %v1272
      %v1750 = vunpack.c.l.b16 %v1273
      %v1751 = vunpack.c.h.b16 %v1273
      %v1752 = vunpack.c.l.b16 %v1274
      %v1753 = vunpack.c.h.b16 %v1274
      %v1754 = vunpack.c.l.b16 %v1275
      %v1755 = vunpack.c.h.b16 %v1275
      %v1756 = vunpack.c.l.b16 %v1276
      %v1757 = vunpack.c.l.b16 %v1277
      %v1758 = vunpack.c.h.b16 %v1277
      %v1759 = vunpack.c.l.b16 %v1278
      %v1760 = vunpack.c.h.b16 %v1278
      %v1761 = vunpack.c.l.b16 %v1279
      %v1762 = vunpack.c.h.b16 %v1279
      %v1763 = vunpack.c.l.b16 %v1280
      %v1764 = vunpack.c.h.b16 %v1280
      %v1765 = vunpack.c.l.b16 %v1281
      %v1766 = vunpack.c.l.b16 %v1282
      %v1767 = vunpack.c.h.b16 %v1282
      %v1768 = vunpack.c.l.b16 %v1283
      %v1769 = vunpack.c.h.b16 %v1283
      %v1770 = vunpack.c.l.b16 %v1284
      %v1771 = vunpack.c.h.b16 %v1284
      %v1772 = vunpack.c.l.b16 %v1285
      %v1773 = vunpack.c.h.b16 %v1285
      %v1774 = vunpack.c.l.b16 %v1286
      %v1775 = vunpack.c.l.b16 %v1287
      %v1776 = vunpack.c.h.b16 %v1287
      %v1777 = vunpack.c.l.b16 %v1288
      %v1778 = vunpack.c.h.b16 %v1288
      %v1779 = vunpack.c.l.b16 %v1289
      %v1780 = vunpack.c.h.b16 %v1289
      %v1781 = vunpack.c.l.b16 %v1290
      %v1782 = vunpack.c.h.b16 %v1290
      %v1783 = vunpack.c.l.b16 %v1291
      %v1784 = vunpack.c.l.b16 %v1292
      %v1785 = vunpack.c.h.b16 %v1292
      %v1786 = vunpack.c.l.b16 %v1293
      %v1787 = vunpack.c.h.b16 %v1293
      %v1788 = vunpack.c.l.b16 %v1294
      %v1789 = vunpack.c.h.b16 %v1294
      %v1790 = vunpack.c.l.b16 %v1295
      %v1791 = vunpack.c.h.b16 %v1295
      %v1792 = vunpack.c.l.b16 %v1296
      %v1793 = vunpack.c.l.b16 %v1297
      %v1794 = vunpack.c.h.b16 %v1297
      %v1795 = vunpack.c.l.b16 %v1298
      %v1796 = vunpack.c.h.b16 %v1298
      %v1797 = vunpack.c.l.b16 %v1299
      %v1798 = vunpack.c.h.b16 %v1299
      %v1799 = vunpack.c.l.b16 %v1300
      %v1800 = vunpack.c.h.b16 %v1300
      %v1801 = vunpack.c.l.b16 %v1301
      %v1802 = vunpack.c.l.b16 %v1302
      %v1803 = vunpack.c.h.b16 %v1302
      %v1804 = vunpack.c.l.b16 %v1303
      %v1805 = vunpack.c.h.b16 %v1303
      %v1806 = vunpack.c.l.b16 %v1304
      %v1807 = vunpack.c.h.b16 %v1304
      %v1808 = vunpack.c.l.b16 %v1305
      %v1809 = vunpack.c.h.b16 %v1305
      %v1810 = vunpack.c.l.b16 %v1306
      %v1811 = vunpack.c.l.b16 %v1307
      %v1812 = vunpack.c.h.b16 %v1307
      %v1813 = vunpack.c.l.b16 %v1308
      %v1814 = vunpack.c.h.b16 %v1308
      %v1815 = vunpack.c.l.b16 %v1309
      %v1816 = vunpack.c.h.b16 %v1309
      %v1817 = vunpack.c.l.b16 %v1310
      %v1818 = vunpack.c.h.b16 %v1310
      %v1819 = vunpack.c.l.b16 %v1311
      %v1820 = vunpack.c.l.b16 %v1312
      %v1821 = vunpack.c.h.b16 %v1312
      %v1822 = vunpack.c.l.b16 %v1313
      %v1823 = vunpack.c.h.b16 %v1313
      %v1824 = vunpack.c.l.b16 %v1314
      %v1825 = vunpack.c.h.b16 %v1314
      %v1826 = vunpack.c.l.b16 %v1315
      %v1827 = vunpack.c.h.b16 %v1315
      %v1828 = vunpack.c.l.b16 %v1316
      %v1829 = vunpack.c.l.b16 %v1317
      %v1830 = vunpack.c.h.b16 %v1317
      %v1831 = vunpack.c.l.b16 %v1318
      %v1832 = vunpack.c.h.b16 %v1318
      %v1833 = vunpack.c.l.b16 %v1319
      %v1834 = vunpack.c.h.b16 %v1319
      %v1835 = vunpack.c.l.b16 %v1320
      %v1836 = vunpack.c.h.b16 %v1320
      %v1837 = vunpack.c.l.b16 %v1321
      %v1838 = vunpack.c.l.b16 %v1322
      %v1839 = vunpack.c.h.b16 %v1322
      %v1840 = vunpack.c.l.b16 %v1323
      %v1841 = vunpack.c.h.b16 %v1323
      %v1842 = vunpack.c.l.b16 %v1324
      %v1843 = vunpack.c.h.b16 %v1324
      %v1844 = vunpack.c.l.b16 %v1325
      %v1845 = vunpack.c.h.b16 %v1325
      %v1846 = vunpack.c.l.b16 %v1326
      %v1847 = vunpack.c.l.b16 %v1327
      %v1848 = vunpack.c.h.b16 %v1327
      %v1849 = vunpack.c.l.b16 %v1328
      %v1850 = vunpack.c.h.b16 %v1328
      %v1851 = vunpack.c.l.b16 %v1329
      %v1852 = vunpack.c.h.b16 %v1329
      %v1853 = vunpack.c.l.b16 %v1330
      %v1854 = vunpack.c.h.b16 %v1330
      %v1855 = vunpack.c.l.b16 %v1331
      %v1856 = vunpack.c.l.b16 %v1332
      %v1857 = vunpack.c.h.b16 %v1332
      %v1858 = vunpack.c.l.b16 %v1333
      %v1859 = vunpack.c.h.b16 %v1333
      %v1860 = vunpack.c.l.b16 %v1334
      %v1861 = vunpack.c.h.b16 %v1334
      %v1862 = vunpack.c.l.b16 %v1335
      %v1863 = vunpack.c.h.b16 %v1335
      %v1864 = vunpack.c.l.b16 %v1336
      %v1865 = vunpack.c.l.b16 %v1337
      %v1866 = vunpack.c.h.b16 %v1337
      %v1867 = vunpack.c.l.b16 %v1338
      %v1868 = vunpack.c.h.b16 %v1338
      %v1869 = vunpack.c.l.b16 %v1339
      %v1870 = vunpack.c.h.b16 %v1339
      %v1871 = vunpack.c.l.b16 %v1340
      %v1872 = vunpack.c.h.b16 %v1340
      %v1873 = vunpack.c.l.b16 %v1341
      %v1874 = vunpack.c.l.b16 %v1342
      %v1875 = vunpack.c.h.b16 %v1342
      %v1876 = vunpack.c.l.b16 %v1343
      %v1877 = vunpack.c.h.b16 %v1343
      %v1878 = vunpack.c.l.b16 %v1344
      %v1879 = vunpack.c.h.b16 %v1344
      %v1880 = vunpack.c.l.b16 %v1345
      %v1881 = vunpack.c.h.b16 %v1345
      %v1882 = vunpack.c.l.b16 %v1346
      %v1883 = vunpack.c.l.b16 %v1347
      %v1884 = vunpack.c.h.b16 %v1347
      %v1885 = vunpack.c.l.b16 %v1348
      %v1886 = vunpack.c.h.b16 %v1348
      %v1887 = vunpack.c.l.b16 %v1349
      %v1888 = vunpack.c.h.b16 %v1349
      %v1889 = vunpack.c.l.b16 %v1350
      %v1890 = vunpack.c.h.b16 %v1350
      %v1891 = vunpack.c.l.b16 %v1351
      %v1892 = vunpack.c.l.b16 %v1352
      %v1893 = vunpack.c.h.b16 %v1352
      %v1894 = vunpack.c.l.b16 %v1353
      %v1895 = vunpack.c.h.b16 %v1353
      %v1896 = vunpack.c.l.b16 %v1354
      %v1897 = vunpack.c.h.b16 %v1354
      %v1898 = vunpack.c.l.b16 %v1355
      %v1899 = vunpack.c.h.b16 %v1355
      %v1900 = vunpack.c.l.b16 %v1356
      %v1901 = vunpack.c.l.b16 %v1357
      %v1902 = vunpack.c.h.b16 %v1357
      %v1903 = vunpack.c.l.b16 %v1358
      %v1904 = vunpack.c.h.b16 %v1358
      %v1905 = vunpack.c.l.b16 %v1359
      %v1906 = vunpack.c.h.b16 %v1359
      %v1907 = vunpack.c.l.b16 %v1360
      %v1908 = vunpack.c.h.b16 %v1360
      %v1909 = vunpack.c.l.b16 %v1361
      %v1910 = vunpack.c.l.b16 %v1362
      %v1911 = vunpack.c.h.b16 %v1362
      %v1912 = vunpack.c.l.b16 %v1363
      %v1913 = vunpack.c.h.b16 %v1363
      %v1914 = vunpack.c.l.b16 %v1364
      %v1915 = vunpack.c.h.b16 %v1364
      %v1916 = vunpack.c.l.b16 %v1365
      %v1917 = vunpack.c.h.b16 %v1365
      %v1918 = vunpack.c.l.b16 %v1366
      %v1919 = vunpack.c.l.b16 %v1367
      %v1920 = vunpack.c.h.b16 %v1367
      %v1921 = vunpack.c.l.b16 %v1368
      %v1922 = vunpack.c.h.b16 %v1368
      %v1923 = vunpack.c.l.b16 %v1369
      %v1924 = vunpack.c.h.b16 %v1369
      %v1925 = vunpack.c.l.b16 %v1370
      %v1926 = vunpack.c.h.b16 %v1370
      %v1927 = vunpack.c.l.b16 %v1371
      %v1928 = vunpack.c.l.b16 %v1372
      %v1929 = vunpack.c.h.b16 %v1372
      %v1930 = vunpack.c.l.b16 %v1373
      %v1931 = vunpack.c.h.b16 %v1373
      %v1932 = vunpack.c.l.b16 %v1374
      %v1933 = vunpack.c.h.b16 %v1374
      %v1934 = vunpack.c.l.b16 %v1375
      %v1935 = vunpack.c.h.b16 %v1375
      %v1936 = vunpack.c.l.b16 %v1376
      %v1937 = vunpack.c.l.b16 %v1377
      %v1938 = vunpack.c.h.b16 %v1377
      %v1939 = vunpack.c.l.b16 %v1378
      %v1940 = vunpack.c.h.b16 %v1378
      %v1941 = vunpack.c.l.b16 %v1379
      %v1942 = vunpack.c.h.b16 %v1379
      %v1943 = vunpack.c.l.b16 %v1380
      %v1944 = vunpack.c.h.b16 %v1380
      %v1945 = vunpack.c.l.b16 %v1381
      %v1946 = vunpack.c.l.b16 %v1382
      %v1947 = vunpack.c.h.b16 %v1382
      %v1948 = vunpack.c.l.b16 %v1383
      %v1949 = vunpack.c.h.b16 %v1383
      %v1950 = vunpack.c.l.b16 %v1384
      %v1951 = vunpack.c.h.b16 %v1384
      %v1952 = vunpack.c.l.b16 %v1385
      %v1953 = vunpack.c.h.b16 %v1385
      %v1954 = vunpack.c.l.b16 %v1386
      %v1955 = vunpack.c.l.b16 %v1387
      %v1956 = vunpack.c.h.b16 %v1387
      %v1957 = vunpack.c.l.b16 %v1388
      %v1958 = vunpack.c.h.b16 %v1388
      %v1959 = vunpack.c.l.b16 %v1389
      %v1960 = vunpack.c.h.b16 %v1389
      %v1961 = vunpack.c.l.b16 %v1390
      %v1962 = vunpack.c.h.b16 %v1390
      %v1963 = vunpack.c.l.b16 %v1391
      %v1964 = vunpack.c.l.b16 %v1392
      %v1965 = vunpack.c.h.b16 %v1392
      %v1966 = vunpack.c.l.b16 %v1393
      %v1967 = vunpack.c.h.b16 %v1393
      %v1968 = vunpack.c.l.b16 %v1394
      %v1969 = vunpack.c.h.b16 %v1394
      %v1970 = vunpack.c.l.b16 %v1395
      %v1971 = vunpack.c.h.b16 %v1395
      %v1972 = vunpack.c.l.b16 %v1396
      %v1973 = vunpack.c.l.b16 %v1397
      %v1974 = vunpack.c.h.b16 %v1397
      %v1975 = vunpack.c.l.b16 %v1398
      %v1976 = vunpack.c.h.b16 %v1398
      %v1977 = vunpack.c.l.b16 %v1399
      %v1978 = vunpack.c.h.b16 %v1399
      %v1979 = vunpack.c.l.b16 %v1400
      %v1980 = vunpack.c.h.b16 %v1400
      %v1981 = vunpack.c.l.b16 %v1401
      %v1982 = vunpack.c.l.b16 %v1402
      %v1983 = vunpack.c.h.b16 %v1402
      %v1984 = vunpack.c.l.b16 %v1403
      %v1985 = vunpack.c.h.b16 %v1403
      %v1986 = vunpack.c.l.b16 %v1404
      %v1987 = vunpack.c.h.b16 %v1404
      %v1988 = vunpack.c.l.b16 %v1405
      %v1989 = vunpack.c.h.b16 %v1405
      %v1990 = vunpack.c.l.b16 %v1406
      %v1991 = vunpack.c.l.b16 %v1407
      %v1992 = vunpack.c.h.b16 %v1407
      %v1993 = vunpack.c.l.b16 %v1408
      %v1994 = vunpack.c.h.b16 %v1408
      %v1995 = vunpack.c.l.b16 %v1409
      %v1996 = vunpack.c.h.b16 %v1409
      %v1997 = vunpack.c.l.b16 %v1410
      %v1998 = vunpack.c.h.b16 %v1410
      %v1999 = vunpack.c.l.b16 %v1411
      %v2000 = vunpack.c.l.b16 %v1412
      %v2001 = vunpack.c.h.b16 %v1412
      %v2002 = vunpack.c.l.b16 %v1413
      %v2003 = vunpack.c.h.b16 %v1413
      %v2004 = vunpack.c.l.b16 %v1414
      %v2005 = vunpack.c.h.b16 %v1414
      %v2006 = vunpack.c.l.b16 %v1415
      %v2007 = vunpack.c.h.b16 %v1415
      %v2008 = vunpack.c.l.b16 %v1416
      %v2009 = vpack.c.b16 %v1730, %v1721
      %v2010 = vpack.c.b16 %v1731, %v1722
      %v2011 = vpack.c.b16 %v1732, %v1723
      %v2012 = vpack.c.b16 %v1733, %v1724
      %v2013 = vpack.c.b16 %v1734, %v1725
      %v2014 = vpack.c.b16 %v1735, %v1726
      %v2015 = vpack.c.b16 %v1736, %v1727
      %v2016 = vpack.c.b16 %v1737, %v1728
      %v2017 = vpack.c.b16 %v1738, %v1729
      %v2018 = vpack.c.b16 %v1748, %v1739
      %v2019 = vpack.c.b16 %v1749, %v1740
      %v2020 = vpack.c.b16 %v1750, %v1741
      %v2021 = vpack.c.b16 %v1751, %v1742
      %v2022 = vpack.c.b16 %v1752, %v1743
      %v2023 = vpack.c.b16 %v1753, %v1744
      %v2024 = vpack.c.b16 %v1754, %v1745
      %v2025 = vpack.c.b16 %v1755, %v1746
      %v2026 = vpack.c.b16 %v1756, %v1747
      %v2027 = vpack.c.b16 %v1766, %v1757
      %v2028 = vpack.c.b16 %v1767, %v1758
      %v2029 = vpack.c.b16 %v1768, %v1759
      %v2030 = vpack.c.b16 %v1769, %v1760
      %v2031 = vpack.c.b16 %v1770, %v1761
      %v2032 = vpack.c.b16 %v1771, %v1762
      %v2033 = vpack.c.b16 %v1772, %v1763
      %v2034 = vpack.c.b16 %v1773, %v1764
      %v2035 = vpack.c.b16 %v1774, %v1765
      %v2036 = vpack.c.b16 %v1784, %v1775
      %v2037 = vpack.c.b16 %v1785, %v1776
      %v2038 = vpack.c.b16 %v1786, %v1777
      %v2039 = vpack.c.b16 %v1787, %v1778
      %v2040 = vpack.c.b16 %v1788, %v1779
      %v2041 = vpack.c.b16 %v1789, %v1780
      %v2042 = vpack.c.b16 %v1790, %v1781
      %v2043 = vpack.c.b16 %v1791, %v1782
      %v2044 = vpack.c.b16 %v1792, %v1783
      %v2045 = vpack.c.b16 %v1802, %v1793
      %v2046 = vpack.c.b16 %v1803, %v1794
      %v2047 = vpack.c.b16 %v1804, %v1795
      %v2048 = vpack.c.b16 %v1805, %v1796
      %v2049 = vpack.c.b16 %v1806, %v1797
      %v2050 = vpack.c.b16 %v1807, %v1798
      %v2051 = vpack.c.b16 %v1808, %v1799
      %v2052 = vpack.c.b16 %v1809, %v1800
      %v2053 = vpack.c.b16 %v1810, %v1801
      %v2054 = vpack.c.b16 %v1820, %v1811
      %v2055 = vpack.c.b16 %v1821, %v1812
      %v2056 = vpack.c.b16 %v1822, %v1813
      %v2057 = vpack.c.b16 %v1823, %v1814
      %v2058 = vpack.c.b16 %v1824, %v1815
      %v2059 = vpack.c.b16 %v1825, %v1816
      %v2060 = vpack.c.b16 %v1826, %v1817
      %v2061 = vpack.c.b16 %v1827, %v1818
      %v2062 = vpack.c.b16 %v1828, %v1819
      %v2063 = vpack.c.b16 %v1838, %v1829
      %v2064 = vpack.c.b16 %v1839, %v1830
      %v2065 = vpack.c.b16 %v1840, %v1831
      %v2066 = vpack.c.b16 %v1841, %v1832
      %v2067 = vpack.c.b16 %v1842, %v1833
      %v2068 = vpack.c.b16 %v1843, %v1834
      %v2069 = vpack.c.b16 %v1844, %v1835
      %v2070 = vpack.c.b16 %v1845, %v1836
      %v2071 = vpack.c.b16 %v1846, %v1837
      %v2072 = vpack.c.b16 %v1856, %v1847
      %v2073 = vpack.c.b16 %v1857, %v1848
      %v2074 = vpack.c.b16 %v1858, %v1849
      %v2075 = vpack.c.b16 %v1859, %v1850
      %v2076 = vpack.c.b16 %v1860, %v1851
      %v2077 = vpack.c.b16 %v1861, %v1852
      %v2078 = vpack.c.b16 %v1862, %v1853
      %v2079 = vpack.c.b16 %v1863, %v1854
      %v2080 = vpack.c.b16 %v1864, %v1855
      %v2081 = vpack.c.b16 %v1874, %v1865
      %v2082 = vpack.c.b16 %v1875, %v1866
      %v2083 = vpack.c.b16 %v1876, %v1867
      %v2084 = vpack.c.b16 %v1877, %v1868
      %v2085 = vpack.c.b16 %v1878, %v1869
      %v2086 = vpack.c.b16 %v1879, %v1870
      %v2087 = vpack.c.b16 %v1880, %v1871
      %v2088 = vpack.c.b16 %v1881, %v1872
      %v2089 = vpack.c.b16 %v1882, %v1873
      %v2090 = vpack.c.b16 %v1892, %v1883
      %v2091 = vpack.c.b16 %v1893, %v1884
      %v2092 = vpack.c.b16 %v1894, %v1885
      %v2093 = vpack.c.b16 %v1895, %v1886
      %v2094 = vpack.c.b16 %v1896, %v1887
      %v2095 = vpack.c.b16 %v1897, %v1888
      %v2096 = vpack.c.b16 %v1898, %v1889
      %v2097 = vpack.c.b16 %v1899, %v1890
      %v2098 = vpack.c.b16 %v1900, %v1891
      %v2099 = vpack.c.b16 %v1910, %v1901
      %v2100 = vpack.c.b16 %v1911, %v1902
      %v2101 = vpack.c.b16 %v1912, %v1903
      %v2102 = vpack.c.b16 %v1913, %v1904
      %v2103 = vpack.c.b16 %v1914, %v1905
      %v2104 = vpack.c.b16 %v1915, %v1906
      %v2105 = vpack.c.b16 %v1916, %v1907
      %v2106 = vpack.c.b16 %v1917, %v1908
      %v2107 = vpack.c.b16 %v1918, %v1909
      %v2108 = vpack.c.b16 %v1928, %v1919
      %v2109 = vpack.c.b16 %v1929, %v1920
      %v2110 = vpack.c.b16 %v1930, %v1921
      %v2111 = vpack.c.b16 %v1931, %v1922
      %v2112 = vpack.c.b16 %v1932, %v1923
      %v2113 = vpack.c.b16 %v1933, %v1924
      %v2114 = vpack.c.b16 %v1934, %v1925
      %v2115 = vpack.c.b16 %v1935, %v1926
      %v2116 = vpack.c.b16 %v1936, %v1927
      %v2117 = vpack.c.b16 %v1946, %v1937
      %v2118 = vpack.c.b16 %v1947, %v1938
      %v2119 = vpack.c.b16 %v1948, %v1939
      %v2120 = vpack.c.b16 %v1949, %v1940
      %v2121 = vpack.c.b16 %v1950, %v1941
      %v2122 = vpack.c.b16 %v1951, %v1942
      %v2123 = vpack.c.b16 %v1952, %v1943
      %v2124 = vpack.c.b16 %v1953, %v1944
      %v2125 = vpack.c.b16 %v1954, %v1945
      %v2126 = vpack.c.b16 %v1964, %v1955
      %v2127 = vpack.c.b16 %v1965, %v1956
      %v2128 = vpack.c.b16 %v1966, %v1957
      %v2129 = vpack.c.b16 %v1967, %v1958
      %v2130 = vpack.c.b16 %v1968, %v1959
      %v2131 = vpack.c.b16 %v1969, %v1960
      %v2132 = vpack.c.b16 %v1970, %v1961
      %v2133 = vpack.c.b16 %v1971, %v1962
      %v2134 = vpack.c.b16 %v1972, %v1963
      %v2135 = vpack.c.b16 %v1982, %v1973
      %v2136 = vpack.c.b16 %v1983, %v1974
      %v2137 = vpack.c.b16 %v1984, %v1975
      %v2138 = vpack.c.b16 %v1985, %v1976
      %v2139 = vpack.c.b16 %v1986, %v1977
      %v2140 = vpack.c.b16 %v1987, %v1978
      %v2141 = vpack.c.b16 %v1988, %v1979
      %v2142 = vpack.c.b16 %v1989, %v1980
      %v2143 = vpack.c.b16 %v1990, %v1981
      %v2144 = vpack.c.b16 %v2000, %v1991
      %v2145 = vpack.c.b16 %v2001, %v1992
      %v2146 = vpack.c.b16 %v2002, %v1993
      %v2147 = vpack.c.b16 %v2003, %v1994
      %v2148 = vpack.c.b16 %v2004, %v1995
      %v2149 = vpack.c.b16 %v2005, %v1996
      %v2150 = vpack.c.b16 %v2006, %v1997
      %v2151 = vpack.c.b16 %v2007, %v1998
      %v2152 = vpack.c.b16 %v2008, %v1999
      %v2441 = vunpack.c.l.b16 %v1417
      %v2442 = vunpack.c.l.b16 %v1418
      %v2443 = vunpack.c.l.b16 %v1419
      %v2444 = vunpack.c.l.b16 %v1420
      %v2445 = vunpack.c.l.b16 %v1421
      %v2446 = vunpack.c.l.b16 %v1422
      %v2447 = vunpack.c.l.b16 %v1423
      %v2448 = vunpack.c.l.b16 %v1424
      %v2449 = vunpack.c.l.b16 %v1425
      %v2450 = vunpack.c.l.b16 %v1426
      %v2451 = vunpack.c.l.b16 %v1427
      %v2452 = vunpack.c.l.b16 %v1428
      %v2453 = vunpack.c.l.b16 %v1429
      %v2454 = vunpack.c.l.b16 %v1430
      %v2455 = vunpack.c.l.b16 %v1431
      %v2456 = vunpack.c.l.b16 %v1432
      %v2457 = vunpack.c.l.b16 %v1433
      %v2458 = vunpack.c.l.b16 %v1434
      %v2459 = vunpack.c.l.b16 %v1435
      %v2460 = vunpack.c.l.b16 %v1436
      %v2461 = vunpack.c.l.b16 %v1437
      %v2462 = vunpack.c.l.b16 %v1438
      %v2463 = vunpack.c.l.b16 %v1439
      %v2464 = vunpack.c.l.b16 %v1440
      %v2465 = vunpack.c.l.b16 %v1441
      %v2466 = vunpack.c.l.b16 %v1442
      %v2467 = vunpack.c.l.b16 %v1443
      %v2468 = vunpack.c.l.b16 %v1444
      %v2469 = vunpack.c.l.b16 %v1445
      %v2470 = vunpack.c.l.b16 %v1446
      %v2471 = vunpack.c.l.b16 %v1447
      %v2472 = vunpack.c.l.b16 %v1448
      %v2473 = vunpack.c.l.b16 %v1449
      %v2474 = vunpack.c.l.b16 %v1450
      %v2475 = vunpack.c.l.b16 %v1451
      %v2476 = vunpack.c.l.b16 %v1452
      %v2477 = vunpack.c.l.b16 %v1453
      %v2478 = vunpack.c.l.b16 %v1454
      %v2479 = vunpack.c.l.b16 %v1455
      %v2480 = vunpack.c.l.b16 %v1456
      %v2481 = vunpack.c.l.b16 %v1457
      %v2482 = vunpack.c.l.b16 %v1458
      %v2483 = vunpack.c.l.b16 %v1459
      %v2484 = vunpack.c.l.b16 %v1460
      %v2485 = vunpack.c.l.b16 %v1461
      %v2486 = vunpack.c.l.b16 %v1462
      %v2487 = vunpack.c.l.b16 %v1463
      %v2488 = vunpack.c.l.b16 %v1464
      %v2489 = vunpack.c.l.b16 %v1465
      %v2490 = vunpack.c.l.b16 %v1466
      %v2491 = vunpack.c.l.b16 %v1467
      %v2492 = vunpack.c.l.b16 %v1468
      %v2493 = vunpack.c.l.b16 %v1469
      %v2494 = vunpack.c.l.b16 %v1470
      %v2495 = vunpack.c.l.b16 %v1471
      %v2496 = vunpack.c.l.b16 %v1472
      %v2497 = vunpack.c.l.b16 %v1473
      %v2498 = vunpack.c.l.b16 %v1474
      %v2499 = vunpack.c.l.b16 %v1475
      %v2500 = vunpack.c.l.b16 %v1476
      %v2501 = vunpack.c.l.b16 %v1477
      %v2502 = vunpack.c.l.b16 %v1478
      %v2503 = vunpack.c.l.b16 %v1479
      %v2504 = vunpack.c.l.b16 %v1480
      %v2505 = vunpack.c.l.b16 %v1481
      %v2506 = vunpack.c.l.b16 %v1482
      %v2507 = vunpack.c.l.b16 %v1483
      %v2508 = vunpack.c.l.b16 %v1484
      %v2509 = vunpack.c.l.b16 %v1485
      %v2510 = vunpack.c.l.b16 %v1486
      %v2511 = vunpack.c.l.b16 %v1487
      %v2512 = vunpack.c.l.b16 %v1488
      %v2513 = vunpack.c.l.b16 %v1489
      %v2514 = vunpack.c.l.b16 %v1490
      %v2515 = vunpack.c.l.b16 %v1491
      %v2516 = vunpack.c.l.b16 %v1492
      %v2517 = vunpack.c.l.b16 %v1493
      %v2518 = vunpack.c.l.b16 %v1494
      %v2519 = vunpack.c.l.b16 %v1495
      %v2520 = vunpack.c.l.b16 %v1496
      %v2521 = vunpack.c.l.b16 %v1497
      %v2522 = vunpack.c.l.b16 %v1498
      %v2523 = vunpack.c.l.b16 %v1499
      %v2524 = vunpack.c.l.b16 %v1500
      %v2525 = vunpack.c.l.b16 %v1501
      %v2526 = vunpack.c.l.b16 %v1502
      %v2527 = vunpack.c.l.b16 %v1503
      %v2528 = vunpack.c.l.b16 %v1504
      %v2529 = vunpack.c.l.b16 %v1505
      %v2530 = vunpack.c.l.b16 %v1506
      %v2531 = vunpack.c.l.b16 %v1507
      %v2532 = vunpack.c.l.b16 %v1508
      %v2533 = vunpack.c.l.b16 %v1509
      %v2534 = vunpack.c.l.b16 %v1510
      %v2535 = vunpack.c.l.b16 %v1511
      %v2536 = vunpack.c.l.b16 %v1512
      %v2537 = vunpack.c.l.b16 %v1513
      %v2538 = vunpack.c.l.b16 %v1514
      %v2539 = vunpack.c.l.b16 %v1515
      %v2540 = vunpack.c.l.b16 %v1516
      %v2541 = vunpack.c.l.b16 %v1517
      %v2542 = vunpack.c.l.b16 %v1518
      %v2543 = vunpack.c.l.b16 %v1519
      %v2544 = vunpack.c.l.b16 %v1520
      %v2545 = vunpack.c.l.b16 %v1521
      %v2546 = vunpack.c.l.b16 %v1522
      %v2547 = vunpack.c.l.b16 %v1523
      %v2548 = vunpack.c.l.b16 %v1524
      %v2549 = vunpack.c.l.b16 %v1525
      %v2550 = vunpack.c.l.b16 %v1526
      %v2551 = vunpack.c.l.b16 %v1527
      %v2552 = vunpack.c.l.b16 %v1528
      %v2553 = vunpack.c.l.b16 %v1529
      %v2554 = vunpack.c.l.b16 %v1530
      %v2555 = vunpack.c.l.b16 %v1531
      %v2556 = vunpack.c.l.b16 %v1532
      %v2557 = vunpack.c.l.b16 %v1533
      %v2558 = vunpack.c.l.b16 %v1534
      %v2559 = vunpack.c.l.b16 %v1535
      %v2560 = vunpack.c.l.b16 %v1536
      %v2561 = vunpack.c.l.b16 %v1537
      %v2562 = vunpack.c.l.b16 %v1538
      %v2563 = vunpack.c.l.b16 %v1539
      %v2564 = vunpack.c.l.b16 %v1540
      %v2565 = vunpack.c.l.b16 %v1541
      %v2566 = vunpack.c.l.b16 %v1542
      %v2567 = vunpack.c.l.b16 %v1543
      %v2568 = vunpack.c.l.b16 %v1544
      %v2569 = vunpack.c.l.b16 %v1545
      %v2570 = vunpack.c.l.b16 %v1546
      %v2571 = vunpack.c.l.b16 %v1547
      %v2572 = vunpack.c.l.b16 %v1548
      %v2573 = vunpack.c.l.b16 %v1549
      %v2574 = vunpack.c.l.b16 %v1550
      %v2575 = vunpack.c.l.b16 %v1551
      %v2576 = vunpack.c.l.b16 %v1552
      %v2577 = vunpack.c.l.b16 %v1553
      %v2578 = vunpack.c.l.b16 %v1554
      %v2579 = vunpack.c.l.b16 %v1555
      %v2580 = vunpack.c.l.b16 %v1556
      %v2581 = vunpack.c.l.b16 %v1557
      %v2582 = vunpack.c.l.b16 %v1558
      %v2583 = vunpack.c.l.b16 %v1559
      %v2584 = vunpack.c.l.b16 %v1560
      %v2585 = vpack.c.b16 %v2442, %v2441
      %v2586 = vpack.c.b16 %v2444, %v2443
      %v2587 = vpack.c.b16 %v2446, %v2445
      %v2588 = vpack.c.b16 %v2448, %v2447
      %v2589 = vpack.c.b16 %v2450, %v2449
      %v2590 = vpack.c.b16 %v2452, %v2451
      %v2591 = vpack.c.b16 %v2454, %v2453
      %v2592 = vpack.c.b16 %v2456, %v2455
      %v2593 = vpack.c.b16 %v2458, %v2457
      %v2594 = vpack.c.b16 %v2460, %v2459
      %v2595 = vpack.c.b16 %v2462, %v2461
      %v2596 = vpack.c.b16 %v2464, %v2463
      %v2597 = vpack.c.b16 %v2466, %v2465
      %v2598 = vpack.c.b16 %v2468, %v2467
      %v2599 = vpack.c.b16 %v2470, %v2469
      %v2600 = vpack.c.b16 %v2472, %v2471
      %v2601 = vpack.c.b16 %v2474, %v2473
      %v2602 = vpack.c.b16 %v2476, %v2475
      %v2603 = vpack.c.b16 %v2478, %v2477
      %v2604 = vpack.c.b16 %v2480, %v2479
      %v2605 = vpack.c.b16 %v2482, %v2481
      %v2606 = vpack.c.b16 %v2484, %v2483
      %v2607 = vpack.c.b16 %v2486, %v2485
      %v2608 = vpack.c.b16 %v2488, %v2487
      %v2609 = vpack.c.b16 %v2490, %v2489
      %v2610 = vpack.c.b16 %v2492, %v2491
      %v2611 = vpack.c.b16 %v2494, %v2493
      %v2612 = vpack.c.b16 %v2496, %v2495
      %v2613 = vpack.c.b16 %v2498, %v2497
      %v2614 = vpack.c.b16 %v2500, %v2499
      %v2615 = vpack.c.b16 %v2502, %v2501
      %v2616 = vpack.c.b16 %v2504, %v2503
      %v2617 = vpack.c.b16 %v2506, %v2505
      %v2618 = vpack.c.b16 %v2508, %v2507
      %v2619 = vpack.c.b16 %v2510, %v2509
      %v2620 = vpack.c.b16 %v2512, %v2511
      %v2621 = vpack.c.b16 %v2514, %v2513
      %v2622 = vpack.c.b16 %v2516, %v2515
      %v2623 = vpack.c.b16 %v2518, %v2517
      %v2624 = vpack.c.b16 %v2520, %v2519
      %v2625 = vpack.c.b16 %v2522, %v2521
      %v2626 = vpack.c.b16 %v2524, %v2523
      %v2627 = vpack.c.b16 %v2526, %v2525
      %v2628 = vpack.c.b16 %v2528, %v2527
      %v2629 = vpack.c.b16 %v2530, %v2529
      %v2630 = vpack.c.b16 %v2532, %v2531
      %v2631 = vpack.c.b16 %v2534, %v2533
      %v2632 = vpack.c.b16 %v2536, %v2535
      %v2633 = vpack.c.b16 %v2538, %v2537
      %v2634 = vpack.c.b16 %v2540, %v2539
      %v2635 = vpack.c.b16 %v2542, %v2541
      %v2636 = vpack.c.b16 %v2544, %v2543
      %v2637 = vpack.c.b16 %v2546, %v2545
      %v2638 = vpack.c.b16 %v2548, %v2547
      %v2639 = vpack.c.b16 %v2550, %v2549
      %v2640 = vpack.c.b16 %v2552, %v2551
      %v2641 = vpack.c.b16 %v2554, %v2553
      %v2642 = vpack.c.b16 %v2556, %v2555
      %v2643 = vpack.c.b16 %v2558, %v2557
      %v2644 = vpack.c.b16 %v2560, %v2559
      %v2645 = vpack.c.b16 %v2562, %v2561
      %v2646 = vpack.c.b16 %v2564, %v2563
      %v2647 = vpack.c.b16 %v2566, %v2565
      %v2648 = vpack.c.b16 %v2568, %v2567
      %v2649 = vpack.c.b16 %v2570, %v2569
      %v2650 = vpack.c.b16 %v2572, %v2571
      %v2651 = vpack.c.b16 %v2574, %v2573
      %v2652 = vpack.c.b16 %v2576, %v2575
      %v2653 = vpack.c.b16 %v2578, %v2577
      %v2654 = vpack.c.b16 %v2580, %v2579
      %v2655 = vpack.c.b16 %v2582, %v2581
      %v2656 = vpack.c.b16 %v2584, %v2583
      %2729 = vmatpush.bf16.msra.mxu0 %v2592
      %2730 = vmatpush.bf16.msra.mxu0 %v2591
      %2731 = vmatpush.bf16.msra.mxu0 %v2590
      %2732 = vmatpush.bf16.msra.mxu0 %v2589
      %2733 = vmatpush.bf16.msra.mxu0 %v2588
      %2734 = vmatpush.bf16.msra.mxu0 %v2587
      %2735 = vmatpush.bf16.msra.mxu0 %v2586
      %2736 = vmatpush.bf16.msra.mxu0 %v2585
      %2737 = vmatmul.bf16.gmra.mxu0 %v2009
      %v2738 = vpop.f32.mrf.mxu0
      %v2739 = vadd.f32 0.0, %v2738
      %v2740 = vpop.f32.mrf.mxu0
      %v2741 = vadd.f32 0.0, %v2740
      %2742 = vmatmul.bf16.gmra.mxu0 %v2018
      %v2743 = vpop.f32.mrf.mxu0
      %v2744 = vadd.f32 0.0, %v2743
      %v2745 = vpop.f32.mrf.mxu0
      %v2746 = vadd.f32 0.0, %v2745
      %2747 = vmatmul.bf16.gmra.mxu0 %v2027
      %v2748 = vpop.f32.mrf.mxu0
      %v2749 = vadd.f32 0.0, %v2748
      %v2750 = vpop.f32.mrf.mxu0
      %v2751 = vadd.f32 0.0, %v2750
      %2752 = vmatmul.bf16.gmra.mxu0 %v2036
      %v2753 = vpop.f32.mrf.mxu0
      %v2754 = vadd.f32 0.0, %v2753
      %v2755 = vpop.f32.mrf.mxu0
      %v2756 = vadd.f32 0.0, %v2755
      %2757 = vmatmul.bf16.gmra.mxu0 %v2045
      %v2758 = vpop.f32.mrf.mxu0
      %v2759 = vadd.f32 0.0, %v2758
      %v2760 = vpop.f32.mrf.mxu0
      %v2761 = vadd.f32 0.0, %v2760
      %2762 = vmatmul.bf16.gmra.mxu0 %v2054
      %v2763 = vpop.f32.mrf.mxu0
      %v2764 = vadd.f32 0.0, %v2763
      %v2765 = vpop.f32.mrf.mxu0
      %v2766 = vadd.f32 0.0, %v2765
      %2767 = vmatmul.bf16.gmra.mxu0 %v2063
      %v2768 = vpop.f32.mrf.mxu0
      %v2769 = vadd.f32 0.0, %v2768
      %v2770 = vpop.f32.mrf.mxu0
      %v2771 = vadd.f32 0.0, %v2770
      %2772 = vmatmul.bf16.gmra.mxu0 %v2072
      %v2773 = vpop.f32.mrf.mxu0
      %v2774 = vadd.f32 0.0, %v2773
      %v2775 = vpop.f32.mrf.mxu0
      %v2776 = vadd.f32 0.0, %v2775
      %2777 = vmatmul.bf16.gmra.mxu0 %v2081
      %v2778 = vpop.f32.mrf.mxu0
      %v2779 = vadd.f32 0.0, %v2778
      %v2780 = vpop.f32.mrf.mxu0
      %v2781 = vadd.f32 0.0, %v2780
      %2782 = vmatmul.bf16.gmra.mxu0 %v2090
      %v2783 = vpop.f32.mrf.mxu0
      %v2784 = vadd.f32 0.0, %v2783
      %v2785 = vpop.f32.mrf.mxu0
      %v2786 = vadd.f32 0.0, %v2785
      %2787 = vmatmul.bf16.gmra.mxu0 %v2099
      %v2788 = vpop.f32.mrf.mxu0
      %v2789 = vadd.f32 0.0, %v2788
      %v2790 = vpop.f32.mrf.mxu0
      %v2791 = vadd.f32 0.0, %v2790
      %2792 = vmatmul.bf16.gmra.mxu0 %v2108
      %v2793 = vpop.f32.mrf.mxu0
      %v2794 = vadd.f32 0.0, %v2793
      %v2795 = vpop.f32.mrf.mxu0
      %v2796 = vadd.f32 0.0, %v2795
      %2797 = vmatmul.bf16.gmra.mxu0 %v2117
      %v2798 = vpop.f32.mrf.mxu0
      %v2799 = vadd.f32 0.0, %v2798
      %v2800 = vpop.f32.mrf.mxu0
      %v2801 = vadd.f32 0.0, %v2800
      %2802 = vmatmul.bf16.gmra.mxu0 %v2126
      %v2803 = vpop.f32.mrf.mxu0
      %v2804 = vadd.f32 0.0, %v2803
      %v2805 = vpop.f32.mrf.mxu0
      %v2806 = vadd.f32 0.0, %v2805
      %2807 = vmatmul.bf16.gmra.mxu0 %v2135
      %v2808 = vpop.f32.mrf.mxu0
      %v2809 = vadd.f32 0.0, %v2808
      %v2810 = vpop.f32.mrf.mxu0
      %v2811 = vadd.f32 0.0, %v2810
      %2812 = vmatmul.bf16.gmra.mxu0 %v2144
      %v2813 = vpop.f32.mrf.mxu0
      %v2814 = vadd.f32 0.0, %v2813
      %v2815 = vpop.f32.mrf.mxu0
      %v2816 = vadd.f32 0.0, %v2815
      %2817 = vdwg.mxu0
      %2818 = vmatpush.bf16.msra.mxu0 %v2600
      %2819 = vmatpush.bf16.msra.mxu0 %v2599
      %2820 = vmatpush.bf16.msra.mxu0 %v2598
      %2821 = vmatpush.bf16.msra.mxu0 %v2597
      %2822 = vmatpush.bf16.msra.mxu0 %v2596
      %2823 = vmatpush.bf16.msra.mxu0 %v2595
      %2824 = vmatpush.bf16.msra.mxu0 %v2594
      %2825 = vmatpush.bf16.msra.mxu0 %v2593
      %2826 = vmatmul.bf16.gmra.mxu0 %v2010
      %v2827 = vpop.f32.mrf.mxu0
      %v2828 = vadd.f32 %v2739, %v2827
      %v2829 = vpop.f32.mrf.mxu0
      %v2830 = vadd.f32 %v2741, %v2829
      %2831 = vmatmul.bf16.gmra.mxu0 %v2019
      %v2832 = vpop.f32.mrf.mxu0
      %v2833 = vadd.f32 %v2744, %v2832
      %v2834 = vpop.f32.mrf.mxu0
      %v2835 = vadd.f32 %v2746, %v2834
      %2836 = vmatmul.bf16.gmra.mxu0 %v2028
      %v2837 = vpop.f32.mrf.mxu0
      %v2838 = vadd.f32 %v2749, %v2837
      %v2839 = vpop.f32.mrf.mxu0
      %v2840 = vadd.f32 %v2751, %v2839
      %2841 = vmatmul.bf16.gmra.mxu0 %v2037
      %v2842 = vpop.f32.mrf.mxu0
      %v2843 = vadd.f32 %v2754, %v2842
      %v2844 = vpop.f32.mrf.mxu0
      %v2845 = vadd.f32 %v2756, %v2844
      %2846 = vmatmul.bf16.gmra.mxu0 %v2046
      %v2847 = vpop.f32.mrf.mxu0
      %v2848 = vadd.f32 %v2759, %v2847
      %v2849 = vpop.f32.mrf.mxu0
      %v2850 = vadd.f32 %v2761, %v2849
      %2851 = vmatmul.bf16.gmra.mxu0 %v2055
      %v2852 = vpop.f32.mrf.mxu0
      %v2853 = vadd.f32 %v2764, %v2852
      %v2854 = vpop.f32.mrf.mxu0
      %v2855 = vadd.f32 %v2766, %v2854
      %2856 = vmatmul.bf16.gmra.mxu0 %v2064
      %v2857 = vpop.f32.mrf.mxu0
      %v2858 = vadd.f32 %v2769, %v2857
      %v2859 = vpop.f32.mrf.mxu0
      %v2860 = vadd.f32 %v2771, %v2859
      %2861 = vmatmul.bf16.gmra.mxu0 %v2073
      %v2862 = vpop.f32.mrf.mxu0
      %v2863 = vadd.f32 %v2774, %v2862
      %v2864 = vpop.f32.mrf.mxu0
      %v2865 = vadd.f32 %v2776, %v2864
      %2866 = vmatmul.bf16.gmra.mxu0 %v2082
      %v2867 = vpop.f32.mrf.mxu0
      %v2868 = vadd.f32 %v2779, %v2867
      %v2869 = vpop.f32.mrf.mxu0
      %v2870 = vadd.f32 %v2781, %v2869
      %2871 = vmatmul.bf16.gmra.mxu0 %v2091
      %v2872 = vpop.f32.mrf.mxu0
      %v2873 = vadd.f32 %v2784, %v2872
      %v2874 = vpop.f32.mrf.mxu0
      %v2875 = vadd.f32 %v2786, %v2874
      %2876 = vmatmul.bf16.gmra.mxu0 %v2100
      %v2877 = vpop.f32.mrf.mxu0
      %v2878 = vadd.f32 %v2789, %v2877
      %v2879 = vpop.f32.mrf.mxu0
      %v2880 = vadd.f32 %v2791, %v2879
      %2881 = vmatmul.bf16.gmra.mxu0 %v2109
      %v2882 = vpop.f32.mrf.mxu0
      %v2883 = vadd.f32 %v2794, %v2882
      %v2884 = vpop.f32.mrf.mxu0
      %v2885 = vadd.f32 %v2796, %v2884
      %2886 = vmatmul.bf16.gmra.mxu0 %v2118
      %v2887 = vpop.f32.mrf.mxu0
      %v2888 = vadd.f32 %v2799, %v2887
      %v2889 = vpop.f32.mrf.mxu0
      %v2890 = vadd.f32 %v2801, %v2889
      %2891 = vmatmul.bf16.gmra.mxu0 %v2127
      %v2892 = vpop.f32.mrf.mxu0
      %v2893 = vadd.f32 %v2804, %v2892
      %v2894 = vpop.f32.mrf.mxu0
      %v2895 = vadd.f32 %v2806, %v2894
      %2896 = vmatmul.bf16.gmra.mxu0 %v2136
      %v2897 = vpop.f32.mrf.mxu0
      %v2898 = vadd.f32 %v2809, %v2897
      %v2899 = vpop.f32.mrf.mxu0
      %v2900 = vadd.f32 %v2811, %v2899
      %2901 = vmatmul.bf16.gmra.mxu0 %v2145
      %v2902 = vpop.f32.mrf.mxu0
      %v2903 = vadd.f32 %v2814, %v2902
      %v2904 = vpop.f32.mrf.mxu0
      %v2905 = vadd.f32 %v2816, %v2904
      %2906 = vdwg.mxu0
      %2907 = vmatpush.bf16.msra.mxu0 %v2608
      %2908 = vmatpush.bf16.msra.mxu0 %v2607
      %2909 = vmatpush.bf16.msra.mxu0 %v2606
      %2910 = vmatpush.bf16.msra.mxu0 %v2605
      %2911 = vmatpush.bf16.msra.mxu0 %v2604
      %2912 = vmatpush.bf16.msra.mxu0 %v2603
      %2913 = vmatpush.bf16.msra.mxu0 %v2602
      %2914 = vmatpush.bf16.msra.mxu0 %v2601
      %2915 = vmatmul.bf16.gmra.mxu0 %v2011
      %v2916 = vpop.f32.mrf.mxu0
      %v2917 = vadd.f32 %v2828, %v2916
      %v2918 = vpop.f32.mrf.mxu0
      %v2919 = vadd.f32 %v2830, %v2918
      %2920 = vmatmul.bf16.gmra.mxu0 %v2020
      %v2921 = vpop.f32.mrf.mxu0
      %v2922 = vadd.f32 %v2833, %v2921
      %v2923 = vpop.f32.mrf.mxu0
      %v2924 = vadd.f32 %v2835, %v2923
      %2925 = vmatmul.bf16.gmra.mxu0 %v2029
      %v2926 = vpop.f32.mrf.mxu0
      %v2927 = vadd.f32 %v2838, %v2926
      %v2928 = vpop.f32.mrf.mxu0
      %v2929 = vadd.f32 %v2840, %v2928
      %2930 = vmatmul.bf16.gmra.mxu0 %v2038
      %v2931 = vpop.f32.mrf.mxu0
      %v2932 = vadd.f32 %v2843, %v2931
      %v2933 = vpop.f32.mrf.mxu0
      %v2934 = vadd.f32 %v2845, %v2933
      %2935 = vmatmul.bf16.gmra.mxu0 %v2047
      %v2936 = vpop.f32.mrf.mxu0
      %v2937 = vadd.f32 %v2848, %v2936
      %v2938 = vpop.f32.mrf.mxu0
      %v2939 = vadd.f32 %v2850, %v2938
      %2940 = vmatmul.bf16.gmra.mxu0 %v2056
      %v2941 = vpop.f32.mrf.mxu0
      %v2942 = vadd.f32 %v2853, %v2941
      %v2943 = vpop.f32.mrf.mxu0
      %v2944 = vadd.f32 %v2855, %v2943
      %2945 = vmatmul.bf16.gmra.mxu0 %v2065
      %v2946 = vpop.f32.mrf.mxu0
      %v2947 = vadd.f32 %v2858, %v2946
      %v2948 = vpop.f32.mrf.mxu0
      %v2949 = vadd.f32 %v2860, %v2948
      %2950 = vmatmul.bf16.gmra.mxu0 %v2074
      %v2951 = vpop.f32.mrf.mxu0
      %v2952 = vadd.f32 %v2863, %v2951
      %v2953 = vpop.f32.mrf.mxu0
      %v2954 = vadd.f32 %v2865, %v2953
      %2955 = vmatmul.bf16.gmra.mxu0 %v2083
      %v2956 = vpop.f32.mrf.mxu0
      %v2957 = vadd.f32 %v2868, %v2956
      %v2958 = vpop.f32.mrf.mxu0
      %v2959 = vadd.f32 %v2870, %v2958
      %2960 = vmatmul.bf16.gmra.mxu0 %v2092
      %v2961 = vpop.f32.mrf.mxu0
      %v2962 = vadd.f32 %v2873, %v2961
      %v2963 = vpop.f32.mrf.mxu0
      %v2964 = vadd.f32 %v2875, %v2963
      %2965 = vmatmul.bf16.gmra.mxu0 %v2101
      %v2966 = vpop.f32.mrf.mxu0
      %v2967 = vadd.f32 %v2878, %v2966
      %v2968 = vpop.f32.mrf.mxu0
      %v2969 = vadd.f32 %v2880, %v2968
      %2970 = vmatmul.bf16.gmra.mxu0 %v2110
      %v2971 = vpop.f32.mrf.mxu0
      %v2972 = vadd.f32 %v2883, %v2971
      %v2973 = vpop.f32.mrf.mxu0
      %v2974 = vadd.f32 %v2885, %v2973
      %2975 = vmatmul.bf16.gmra.mxu0 %v2119
      %v2976 = vpop.f32.mrf.mxu0
      %v2977 = vadd.f32 %v2888, %v2976
      %v2978 = vpop.f32.mrf.mxu0
      %v2979 = vadd.f32 %v2890, %v2978
      %2980 = vmatmul.bf16.gmra.mxu0 %v2128
      %v2981 = vpop.f32.mrf.mxu0
      %v2982 = vadd.f32 %v2893, %v2981
      %v2983 = vpop.f32.mrf.mxu0
      %v2984 = vadd.f32 %v2895, %v2983
      %2985 = vmatmul.bf16.gmra.mxu0 %v2137
      %v2986 = vpop.f32.mrf.mxu0
      %v2987 = vadd.f32 %v2898, %v2986
      %v2988 = vpop.f32.mrf.mxu0
      %v2989 = vadd.f32 %v2900, %v2988
      %2990 = vmatmul.bf16.gmra.mxu0 %v2146
      %v2991 = vpop.f32.mrf.mxu0
      %v2992 = vadd.f32 %v2903, %v2991
      %v2993 = vpop.f32.mrf.mxu0
      %v2994 = vadd.f32 %v2905, %v2993
      %2995 = vdwg.mxu0
      %2996 = vmatpush.bf16.msra.mxu0 %v2616
      %2997 = vmatpush.bf16.msra.mxu0 %v2615
      %2998 = vmatpush.bf16.msra.mxu0 %v2614
      %2999 = vmatpush.bf16.msra.mxu0 %v2613
      %3000 = vmatpush.bf16.msra.mxu0 %v2612
      %3001 = vmatpush.bf16.msra.mxu0 %v2611
      %3002 = vmatpush.bf16.msra.mxu0 %v2610
      %3003 = vmatpush.bf16.msra.mxu0 %v2609
      %3004 = vmatmul.bf16.gmra.mxu0 %v2012
      %v3005 = vpop.f32.mrf.mxu0
      %v3006 = vadd.f32 %v2917, %v3005
      %v3007 = vpop.f32.mrf.mxu0
      %v3008 = vadd.f32 %v2919, %v3007
      %3009 = vmatmul.bf16.gmra.mxu0 %v2021
      %v3010 = vpop.f32.mrf.mxu0
      %v3011 = vadd.f32 %v2922, %v3010
      %v3012 = vpop.f32.mrf.mxu0
      %v3013 = vadd.f32 %v2924, %v3012
      %3014 = vmatmul.bf16.gmra.mxu0 %v2030
      %v3015 = vpop.f32.mrf.mxu0
      %v3016 = vadd.f32 %v2927, %v3015
      %v3017 = vpop.f32.mrf.mxu0
      %v3018 = vadd.f32 %v2929, %v3017
      %3019 = vmatmul.bf16.gmra.mxu0 %v2039
      %v3020 = vpop.f32.mrf.mxu0
      %v3021 = vadd.f32 %v2932, %v3020
      %v3022 = vpop.f32.mrf.mxu0
      %v3023 = vadd.f32 %v2934, %v3022
      %3024 = vmatmul.bf16.gmra.mxu0 %v2048
      %v3025 = vpop.f32.mrf.mxu0
      %v3026 = vadd.f32 %v2937, %v3025
      %v3027 = vpop.f32.mrf.mxu0
      %v3028 = vadd.f32 %v2939, %v3027
      %3029 = vmatmul.bf16.gmra.mxu0 %v2057
      %v3030 = vpop.f32.mrf.mxu0
      %v3031 = vadd.f32 %v2942, %v3030
      %v3032 = vpop.f32.mrf.mxu0
      %v3033 = vadd.f32 %v2944, %v3032
      %3034 = vmatmul.bf16.gmra.mxu0 %v2066
      %v3035 = vpop.f32.mrf.mxu0
      %v3036 = vadd.f32 %v2947, %v3035
      %v3037 = vpop.f32.mrf.mxu0
      %v3038 = vadd.f32 %v2949, %v3037
      %3039 = vmatmul.bf16.gmra.mxu0 %v2075
      %v3040 = vpop.f32.mrf.mxu0
      %v3041 = vadd.f32 %v2952, %v3040
      %v3042 = vpop.f32.mrf.mxu0
      %v3043 = vadd.f32 %v2954, %v3042
      %3044 = vmatmul.bf16.gmra.mxu0 %v2084
      %v3045 = vpop.f32.mrf.mxu0
      %v3046 = vadd.f32 %v2957, %v3045
      %v3047 = vpop.f32.mrf.mxu0
      %v3048 = vadd.f32 %v2959, %v3047
      %3049 = vmatmul.bf16.gmra.mxu0 %v2093
      %v3050 = vpop.f32.mrf.mxu0
      %v3051 = vadd.f32 %v2962, %v3050
      %v3052 = vpop.f32.mrf.mxu0
      %v3053 = vadd.f32 %v2964, %v3052
      %3054 = vmatmul.bf16.gmra.mxu0 %v2102
      %v3055 = vpop.f32.mrf.mxu0
      %v3056 = vadd.f32 %v2967, %v3055
      %v3057 = vpop.f32.mrf.mxu0
      %v3058 = vadd.f32 %v2969, %v3057
      %3059 = vmatmul.bf16.gmra.mxu0 %v2111
      %v3060 = vpop.f32.mrf.mxu0
      %v3061 = vadd.f32 %v2972, %v3060
      %v3062 = vpop.f32.mrf.mxu0
      %v3063 = vadd.f32 %v2974, %v3062
      %3064 = vmatmul.bf16.gmra.mxu0 %v2120
      %v3065 = vpop.f32.mrf.mxu0
      %v3066 = vadd.f32 %v2977, %v3065
      %v3067 = vpop.f32.mrf.mxu0
      %v3068 = vadd.f32 %v2979, %v3067
      %3069 = vmatmul.bf16.gmra.mxu0 %v2129
      %v3070 = vpop.f32.mrf.mxu0
      %v3071 = vadd.f32 %v2982, %v3070
      %v3072 = vpop.f32.mrf.mxu0
      %v3073 = vadd.f32 %v2984, %v3072
      %3074 = vmatmul.bf16.gmra.mxu0 %v2138
      %v3075 = vpop.f32.mrf.mxu0
      %v3076 = vadd.f32 %v2987, %v3075
      %v3077 = vpop.f32.mrf.mxu0
      %v3078 = vadd.f32 %v2989, %v3077
      %3079 = vmatmul.bf16.gmra.mxu0 %v2147
      %v3080 = vpop.f32.mrf.mxu0
      %v3081 = vadd.f32 %v2992, %v3080
      %v3082 = vpop.f32.mrf.mxu0
      %v3083 = vadd.f32 %v2994, %v3082
      %3084 = vdwg.mxu0
      %3085 = vmatpush.bf16.msra.mxu0 %v2624
      %3086 = vmatpush.bf16.msra.mxu0 %v2623
      %3087 = vmatpush.bf16.msra.mxu0 %v2622
      %3088 = vmatpush.bf16.msra.mxu0 %v2621
      %3089 = vmatpush.bf16.msra.mxu0 %v2620
      %3090 = vmatpush.bf16.msra.mxu0 %v2619
      %3091 = vmatpush.bf16.msra.mxu0 %v2618
      %3092 = vmatpush.bf16.msra.mxu0 %v2617
      %3093 = vmatmul.bf16.gmra.mxu0 %v2013
      %v3094 = vpop.f32.mrf.mxu0
      %v3095 = vadd.f32 %v3006, %v3094
      %v3096 = vpop.f32.mrf.mxu0
      %v3097 = vadd.f32 %v3008, %v3096
      %3098 = vmatmul.bf16.gmra.mxu0 %v2022
      %v3099 = vpop.f32.mrf.mxu0
      %v3100 = vadd.f32 %v3011, %v3099
      %v3101 = vpop.f32.mrf.mxu0
      %v3102 = vadd.f32 %v3013, %v3101
      %3103 = vmatmul.bf16.gmra.mxu0 %v2031
      %v3104 = vpop.f32.mrf.mxu0
      %v3105 = vadd.f32 %v3016, %v3104
      %v3106 = vpop.f32.mrf.mxu0
      %v3107 = vadd.f32 %v3018, %v3106
      %3108 = vmatmul.bf16.gmra.mxu0 %v2040
      %v3109 = vpop.f32.mrf.mxu0
      %v3110 = vadd.f32 %v3021, %v3109
      %v3111 = vpop.f32.mrf.mxu0
      %v3112 = vadd.f32 %v3023, %v3111
      %3113 = vmatmul.bf16.gmra.mxu0 %v2049
      %v3114 = vpop.f32.mrf.mxu0
      %v3115 = vadd.f32 %v3026, %v3114
      %v3116 = vpop.f32.mrf.mxu0
      %v3117 = vadd.f32 %v3028, %v3116
      %3118 = vmatmul.bf16.gmra.mxu0 %v2058
      %v3119 = vpop.f32.mrf.mxu0
      %v3120 = vadd.f32 %v3031, %v3119
      %v3121 = vpop.f32.mrf.mxu0
      %v3122 = vadd.f32 %v3033, %v3121
      %3123 = vmatmul.bf16.gmra.mxu0 %v2067
      %v3124 = vpop.f32.mrf.mxu0
      %v3125 = vadd.f32 %v3036, %v3124
      %v3126 = vpop.f32.mrf.mxu0
      %v3127 = vadd.f32 %v3038, %v3126
      %3128 = vmatmul.bf16.gmra.mxu0 %v2076
      %v3129 = vpop.f32.mrf.mxu0
      %v3130 = vadd.f32 %v3041, %v3129
      %v3131 = vpop.f32.mrf.mxu0
      %v3132 = vadd.f32 %v3043, %v3131
      %3133 = vmatmul.bf16.gmra.mxu0 %v2085
      %v3134 = vpop.f32.mrf.mxu0
      %v3135 = vadd.f32 %v3046, %v3134
      %v3136 = vpop.f32.mrf.mxu0
      %v3137 = vadd.f32 %v3048, %v3136
      %3138 = vmatmul.bf16.gmra.mxu0 %v2094
      %v3139 = vpop.f32.mrf.mxu0
      %v3140 = vadd.f32 %v3051, %v3139
      %v3141 = vpop.f32.mrf.mxu0
      %v3142 = vadd.f32 %v3053, %v3141
      %3143 = vmatmul.bf16.gmra.mxu0 %v2103
      %v3144 = vpop.f32.mrf.mxu0
      %v3145 = vadd.f32 %v3056, %v3144
      %v3146 = vpop.f32.mrf.mxu0
      %v3147 = vadd.f32 %v3058, %v3146
      %3148 = vmatmul.bf16.gmra.mxu0 %v2112
      %v3149 = vpop.f32.mrf.mxu0
      %v3150 = vadd.f32 %v3061, %v3149
      %v3151 = vpop.f32.mrf.mxu0
      %v3152 = vadd.f32 %v3063, %v3151
      %3153 = vmatmul.bf16.gmra.mxu0 %v2121
      %v3154 = vpop.f32.mrf.mxu0
      %v3155 = vadd.f32 %v3066, %v3154
      %v3156 = vpop.f32.mrf.mxu0
      %v3157 = vadd.f32 %v3068, %v3156
      %3158 = vmatmul.bf16.gmra.mxu0 %v2130
      %v3159 = vpop.f32.mrf.mxu0
      %v3160 = vadd.f32 %v3071, %v3159
      %v3161 = vpop.f32.mrf.mxu0
      %v3162 = vadd.f32 %v3073, %v3161
      %3163 = vmatmul.bf16.gmra.mxu0 %v2139
      %v3164 = vpop.f32.mrf.mxu0
      %v3165 = vadd.f32 %v3076, %v3164
      %v3166 = vpop.f32.mrf.mxu0
      %v3167 = vadd.f32 %v3078, %v3166
      %3168 = vmatmul.bf16.gmra.mxu0 %v2148
      %v3169 = vpop.f32.mrf.mxu0
      %v3170 = vadd.f32 %v3081, %v3169
      %v3171 = vpop.f32.mrf.mxu0
      %v3172 = vadd.f32 %v3083, %v3171
      %3173 = vdwg.mxu0
      %3174 = vmatpush.bf16.msra.mxu0 %v2632
      %3175 = vmatpush.bf16.msra.mxu0 %v2631
      %3176 = vmatpush.bf16.msra.mxu0 %v2630
      %3177 = vmatpush.bf16.msra.mxu0 %v2629
      %3178 = vmatpush.bf16.msra.mxu0 %v2628
      %3179 = vmatpush.bf16.msra.mxu0 %v2627
      %3180 = vmatpush.bf16.msra.mxu0 %v2626
      %3181 = vmatpush.bf16.msra.mxu0 %v2625
      %3182 = vmatmul.bf16.gmra.mxu0 %v2014
      %v3183 = vpop.f32.mrf.mxu0
      %v3184 = vadd.f32 %v3095, %v3183
      %v3185 = vpop.f32.mrf.mxu0
      %v3186 = vadd.f32 %v3097, %v3185
      %3187 = vmatmul.bf16.gmra.mxu0 %v2023
      %v3188 = vpop.f32.mrf.mxu0
      %v3189 = vadd.f32 %v3100, %v3188
      %v3190 = vpop.f32.mrf.mxu0
      %v3191 = vadd.f32 %v3102, %v3190
      %3192 = vmatmul.bf16.gmra.mxu0 %v2032
      %v3193 = vpop.f32.mrf.mxu0
      %v3194 = vadd.f32 %v3105, %v3193
      %v3195 = vpop.f32.mrf.mxu0
      %v3196 = vadd.f32 %v3107, %v3195
      %3197 = vmatmul.bf16.gmra.mxu0 %v2041
      %v3198 = vpop.f32.mrf.mxu0
      %v3199 = vadd.f32 %v3110, %v3198
      %v3200 = vpop.f32.mrf.mxu0
      %v3201 = vadd.f32 %v3112, %v3200
      %3202 = vmatmul.bf16.gmra.mxu0 %v2050
      %v3203 = vpop.f32.mrf.mxu0
      %v3204 = vadd.f32 %v3115, %v3203
      %v3205 = vpop.f32.mrf.mxu0
      %v3206 = vadd.f32 %v3117, %v3205
      %3207 = vmatmul.bf16.gmra.mxu0 %v2059
      %v3208 = vpop.f32.mrf.mxu0
      %v3209 = vadd.f32 %v3120, %v3208
      %v3210 = vpop.f32.mrf.mxu0
      %v3211 = vadd.f32 %v3122, %v3210
      %3212 = vmatmul.bf16.gmra.mxu0 %v2068
      %v3213 = vpop.f32.mrf.mxu0
      %v3214 = vadd.f32 %v3125, %v3213
      %v3215 = vpop.f32.mrf.mxu0
      %v3216 = vadd.f32 %v3127, %v3215
      %3217 = vmatmul.bf16.gmra.mxu0 %v2077
      %v3218 = vpop.f32.mrf.mxu0
      %v3219 = vadd.f32 %v3130, %v3218
      %v3220 = vpop.f32.mrf.mxu0
      %v3221 = vadd.f32 %v3132, %v3220
      %3222 = vmatmul.bf16.gmra.mxu0 %v2086
      %v3223 = vpop.f32.mrf.mxu0
      %v3224 = vadd.f32 %v3135, %v3223
      %v3225 = vpop.f32.mrf.mxu0
      %v3226 = vadd.f32 %v3137, %v3225
      %3227 = vmatmul.bf16.gmra.mxu0 %v2095
      %v3228 = vpop.f32.mrf.mxu0
      %v3229 = vadd.f32 %v3140, %v3228
      %v3230 = vpop.f32.mrf.mxu0
      %v3231 = vadd.f32 %v3142, %v3230
      %3232 = vmatmul.bf16.gmra.mxu0 %v2104
      %v3233 = vpop.f32.mrf.mxu0
      %v3234 = vadd.f32 %v3145, %v3233
      %v3235 = vpop.f32.mrf.mxu0
      %v3236 = vadd.f32 %v3147, %v3235
      %3237 = vmatmul.bf16.gmra.mxu0 %v2113
      %v3238 = vpop.f32.mrf.mxu0
      %v3239 = vadd.f32 %v3150, %v3238
      %v3240 = vpop.f32.mrf.mxu0
      %v3241 = vadd.f32 %v3152, %v3240
      %3242 = vmatmul.bf16.gmra.mxu0 %v2122
      %v3243 = vpop.f32.mrf.mxu0
      %v3244 = vadd.f32 %v3155, %v3243
      %v3245 = vpop.f32.mrf.mxu0
      %v3246 = vadd.f32 %v3157, %v3245
      %3247 = vmatmul.bf16.gmra.mxu0 %v2131
      %v3248 = vpop.f32.mrf.mxu0
      %v3249 = vadd.f32 %v3160, %v3248
      %v3250 = vpop.f32.mrf.mxu0
      %v3251 = vadd.f32 %v3162, %v3250
      %3252 = vmatmul.bf16.gmra.mxu0 %v2140
      %v3253 = vpop.f32.mrf.mxu0
      %v3254 = vadd.f32 %v3165, %v3253
      %v3255 = vpop.f32.mrf.mxu0
      %v3256 = vadd.f32 %v3167, %v3255
      %3257 = vmatmul.bf16.gmra.mxu0 %v2149
      %v3258 = vpop.f32.mrf.mxu0
      %v3259 = vadd.f32 %v3170, %v3258
      %v3260 = vpop.f32.mrf.mxu0
      %v3261 = vadd.f32 %v3172, %v3260
      %3262 = vdwg.mxu0
      %3263 = vmatpush.bf16.msra.mxu0 %v2640
      %3264 = vmatpush.bf16.msra.mxu0 %v2639
      %3265 = vmatpush.bf16.msra.mxu0 %v2638
      %3266 = vmatpush.bf16.msra.mxu0 %v2637
      %3267 = vmatpush.bf16.msra.mxu0 %v2636
      %3268 = vmatpush.bf16.msra.mxu0 %v2635
      %3269 = vmatpush.bf16.msra.mxu0 %v2634
      %3270 = vmatpush.bf16.msra.mxu0 %v2633
      %3271 = vmatmul.bf16.gmra.mxu0 %v2015
      %v3272 = vpop.f32.mrf.mxu0
      %v3273 = vadd.f32 %v3184, %v3272
      %v3274 = vpop.f32.mrf.mxu0
      %v3275 = vadd.f32 %v3186, %v3274
      %3276 = vmatmul.bf16.gmra.mxu0 %v2024
      %v3277 = vpop.f32.mrf.mxu0
      %v3278 = vadd.f32 %v3189, %v3277
      %v3279 = vpop.f32.mrf.mxu0
      %v3280 = vadd.f32 %v3191, %v3279
      %3281 = vmatmul.bf16.gmra.mxu0 %v2033
      %v3282 = vpop.f32.mrf.mxu0
      %v3283 = vadd.f32 %v3194, %v3282
      %v3284 = vpop.f32.mrf.mxu0
      %v3285 = vadd.f32 %v3196, %v3284
      %3286 = vmatmul.bf16.gmra.mxu0 %v2042
      %v3287 = vpop.f32.mrf.mxu0
      %v3288 = vadd.f32 %v3199, %v3287
      %v3289 = vpop.f32.mrf.mxu0
      %v3290 = vadd.f32 %v3201, %v3289
      %3291 = vmatmul.bf16.gmra.mxu0 %v2051
      %v3292 = vpop.f32.mrf.mxu0
      %v3293 = vadd.f32 %v3204, %v3292
      %v3294 = vpop.f32.mrf.mxu0
      %v3295 = vadd.f32 %v3206, %v3294
      %3296 = vmatmul.bf16.gmra.mxu0 %v2060
      %v3297 = vpop.f32.mrf.mxu0
      %v3298 = vadd.f32 %v3209, %v3297
      %v3299 = vpop.f32.mrf.mxu0
      %v3300 = vadd.f32 %v3211, %v3299
      %3301 = vmatmul.bf16.gmra.mxu0 %v2069
      %v3302 = vpop.f32.mrf.mxu0
      %v3303 = vadd.f32 %v3214, %v3302
      %v3304 = vpop.f32.mrf.mxu0
      %v3305 = vadd.f32 %v3216, %v3304
      %3306 = vmatmul.bf16.gmra.mxu0 %v2078
      %v3307 = vpop.f32.mrf.mxu0
      %v3308 = vadd.f32 %v3219, %v3307
      %v3309 = vpop.f32.mrf.mxu0
      %v3310 = vadd.f32 %v3221, %v3309
      %3311 = vmatmul.bf16.gmra.mxu0 %v2087
      %v3312 = vpop.f32.mrf.mxu0
      %v3313 = vadd.f32 %v3224, %v3312
      %v3314 = vpop.f32.mrf.mxu0
      %v3315 = vadd.f32 %v3226, %v3314
      %3316 = vmatmul.bf16.gmra.mxu0 %v2096
      %v3317 = vpop.f32.mrf.mxu0
      %v3318 = vadd.f32 %v3229, %v3317
      %v3319 = vpop.f32.mrf.mxu0
      %v3320 = vadd.f32 %v3231, %v3319
      %3321 = vmatmul.bf16.gmra.mxu0 %v2105
      %v3322 = vpop.f32.mrf.mxu0
      %v3323 = vadd.f32 %v3234, %v3322
      %v3324 = vpop.f32.mrf.mxu0
      %v3325 = vadd.f32 %v3236, %v3324
      %3326 = vmatmul.bf16.gmra.mxu0 %v2114
      %v3327 = vpop.f32.mrf.mxu0
      %v3328 = vadd.f32 %v3239, %v3327
      %v3329 = vpop.f32.mrf.mxu0
      %v3330 = vadd.f32 %v3241, %v3329
      %3331 = vmatmul.bf16.gmra.mxu0 %v2123
      %v3332 = vpop.f32.mrf.mxu0
      %v3333 = vadd.f32 %v3244, %v3332
      %v3334 = vpop.f32.mrf.mxu0
      %v3335 = vadd.f32 %v3246, %v3334
      %3336 = vmatmul.bf16.gmra.mxu0 %v2132
      %v3337 = vpop.f32.mrf.mxu0
      %v3338 = vadd.f32 %v3249, %v3337
      %v3339 = vpop.f32.mrf.mxu0
      %v3340 = vadd.f32 %v3251, %v3339
      %3341 = vmatmul.bf16.gmra.mxu0 %v2141
      %v3342 = vpop.f32.mrf.mxu0
      %v3343 = vadd.f32 %v3254, %v3342
      %v3344 = vpop.f32.mrf.mxu0
      %v3345 = vadd.f32 %v3256, %v3344
      %3346 = vmatmul.bf16.gmra.mxu0 %v2150
      %v3347 = vpop.f32.mrf.mxu0
      %v3348 = vadd.f32 %v3259, %v3347
      %v3349 = vpop.f32.mrf.mxu0
      %v3350 = vadd.f32 %v3261, %v3349
      %3351 = vdwg.mxu0
      %3352 = vmatpush.bf16.msra.mxu0 %v2648
      %3353 = vmatpush.bf16.msra.mxu0 %v2647
      %3354 = vmatpush.bf16.msra.mxu0 %v2646
      %3355 = vmatpush.bf16.msra.mxu0 %v2645
      %3356 = vmatpush.bf16.msra.mxu0 %v2644
      %3357 = vmatpush.bf16.msra.mxu0 %v2643
      %3358 = vmatpush.bf16.msra.mxu0 %v2642
      %3359 = vmatpush.bf16.msra.mxu0 %v2641
      %3360 = vmatmul.bf16.gmra.mxu0 %v2016
      %v3361 = vpop.f32.mrf.mxu0
      %v3362 = vadd.f32 %v3273, %v3361
      %v3363 = vpop.f32.mrf.mxu0
      %v3364 = vadd.f32 %v3275, %v3363
      %3365 = vmatmul.bf16.gmra.mxu0 %v2025
      %v3366 = vpop.f32.mrf.mxu0
      %v3367 = vadd.f32 %v3278, %v3366
      %v3368 = vpop.f32.mrf.mxu0
      %v3369 = vadd.f32 %v3280, %v3368
      %3370 = vmatmul.bf16.gmra.mxu0 %v2034
      %v3371 = vpop.f32.mrf.mxu0
      %v3372 = vadd.f32 %v3283, %v3371
      %v3373 = vpop.f32.mrf.mxu0
      %v3374 = vadd.f32 %v3285, %v3373
      %3375 = vmatmul.bf16.gmra.mxu0 %v2043
      %v3376 = vpop.f32.mrf.mxu0
      %v3377 = vadd.f32 %v3288, %v3376
      %v3378 = vpop.f32.mrf.mxu0
      %v3379 = vadd.f32 %v3290, %v3378
      %3380 = vmatmul.bf16.gmra.mxu0 %v2052
      %v3381 = vpop.f32.mrf.mxu0
      %v3382 = vadd.f32 %v3293, %v3381
      %v3383 = vpop.f32.mrf.mxu0
      %v3384 = vadd.f32 %v3295, %v3383
      %3385 = vmatmul.bf16.gmra.mxu0 %v2061
      %v3386 = vpop.f32.mrf.mxu0
      %v3387 = vadd.f32 %v3298, %v3386
      %v3388 = vpop.f32.mrf.mxu0
      %v3389 = vadd.f32 %v3300, %v3388
      %3390 = vmatmul.bf16.gmra.mxu0 %v2070
      %v3391 = vpop.f32.mrf.mxu0
      %v3392 = vadd.f32 %v3303, %v3391
      %v3393 = vpop.f32.mrf.mxu0
      %v3394 = vadd.f32 %v3305, %v3393
      %3395 = vmatmul.bf16.gmra.mxu0 %v2079
      %v3396 = vpop.f32.mrf.mxu0
      %v3397 = vadd.f32 %v3308, %v3396
      %v3398 = vpop.f32.mrf.mxu0
      %v3399 = vadd.f32 %v3310, %v3398
      %3400 = vmatmul.bf16.gmra.mxu0 %v2088
      %v3401 = vpop.f32.mrf.mxu0
      %v3402 = vadd.f32 %v3313, %v3401
      %v3403 = vpop.f32.mrf.mxu0
      %v3404 = vadd.f32 %v3315, %v3403
      %3405 = vmatmul.bf16.gmra.mxu0 %v2097
      %v3406 = vpop.f32.mrf.mxu0
      %v3407 = vadd.f32 %v3318, %v3406
      %v3408 = vpop.f32.mrf.mxu0
      %v3409 = vadd.f32 %v3320, %v3408
      %3410 = vmatmul.bf16.gmra.mxu0 %v2106
      %v3411 = vpop.f32.mrf.mxu0
      %v3412 = vadd.f32 %v3323, %v3411
      %v3413 = vpop.f32.mrf.mxu0
      %v3414 = vadd.f32 %v3325, %v3413
      %3415 = vmatmul.bf16.gmra.mxu0 %v2115
      %v3416 = vpop.f32.mrf.mxu0
      %v3417 = vadd.f32 %v3328, %v3416
      %v3418 = vpop.f32.mrf.mxu0
      %v3419 = vadd.f32 %v3330, %v3418
      %3420 = vmatmul.bf16.gmra.mxu0 %v2124
      %v3421 = vpop.f32.mrf.mxu0
      %v3422 = vadd.f32 %v3333, %v3421
      %v3423 = vpop.f32.mrf.mxu0
      %v3424 = vadd.f32 %v3335, %v3423
      %3425 = vmatmul.bf16.gmra.mxu0 %v2133
      %v3426 = vpop.f32.mrf.mxu0
      %v3427 = vadd.f32 %v3338, %v3426
      %v3428 = vpop.f32.mrf.mxu0
      %v3429 = vadd.f32 %v3340, %v3428
      %3430 = vmatmul.bf16.gmra.mxu0 %v2142
      %v3431 = vpop.f32.mrf.mxu0
      %v3432 = vadd.f32 %v3343, %v3431
      %v3433 = vpop.f32.mrf.mxu0
      %v3434 = vadd.f32 %v3345, %v3433
      %3435 = vmatmul.bf16.gmra.mxu0 %v2151
      %v3436 = vpop.f32.mrf.mxu0
      %v3437 = vadd.f32 %v3348, %v3436
      %v3438 = vpop.f32.mrf.mxu0
      %v3439 = vadd.f32 %v3350, %v3438
      %3440 = vdwg.mxu0
      %3441 = vmatpush.bf16.msra.mxu0 %v2656
      %3442 = vmatpush.bf16.msra.mxu0 %v2655
      %3443 = vmatpush.bf16.msra.mxu0 %v2654
      %3444 = vmatpush.bf16.msra.mxu0 %v2653
      %3445 = vmatpush.bf16.msra.mxu0 %v2652
      %3446 = vmatpush.bf16.msra.mxu0 %v2651
      %3447 = vmatpush.bf16.msra.mxu0 %v2650
      %3448 = vmatpush.bf16.msra.mxu0 %v2649
      %3449 = vmatmul.bf16.gmra.mxu0 %v2017
      %v3450 = vpop.f32.mrf.mxu0
      %v3451 = vadd.f32 %v3362, %v3450
      %v3452 = vpop.f32.mrf.mxu0
      %v3453 = vadd.f32 %v3364, %v3452
      %3454 = vmatmul.bf16.gmra.mxu0 %v2026
      %v3455 = vpop.f32.mrf.mxu0
      %v3456 = vadd.f32 %v3367, %v3455
      %v3457 = vpop.f32.mrf.mxu0
      %v3458 = vadd.f32 %v3369, %v3457
      %3459 = vmatmul.bf16.gmra.mxu0 %v2035
      %v3460 = vpop.f32.mrf.mxu0
      %v3461 = vadd.f32 %v3372, %v3460
      %v3462 = vpop.f32.mrf.mxu0
      %v3463 = vadd.f32 %v3374, %v3462
      %3464 = vmatmul.bf16.gmra.mxu0 %v2044
      %v3465 = vpop.f32.mrf.mxu0
      %v3466 = vadd.f32 %v3377, %v3465
      %v3467 = vpop.f32.mrf.mxu0
      %v3468 = vadd.f32 %v3379, %v3467
      %3469 = vmatmul.bf16.gmra.mxu0 %v2053
      %v3470 = vpop.f32.mrf.mxu0
      %v3471 = vadd.f32 %v3382, %v3470
      %v3472 = vpop.f32.mrf.mxu0
      %v3473 = vadd.f32 %v3384, %v3472
      %3474 = vmatmul.bf16.gmra.mxu0 %v2062
      %v3475 = vpop.f32.mrf.mxu0
      %v3476 = vadd.f32 %v3387, %v3475
      %v3477 = vpop.f32.mrf.mxu0
      %v3478 = vadd.f32 %v3389, %v3477
      %3479 = vmatmul.bf16.gmra.mxu0 %v2071
      %v3480 = vpop.f32.mrf.mxu0
      %v3481 = vadd.f32 %v3392, %v3480
      %v3482 = vpop.f32.mrf.mxu0
      %v3483 = vadd.f32 %v3394, %v3482
      %3484 = vmatmul.bf16.gmra.mxu0 %v2080
      %v3485 = vpop.f32.mrf.mxu0
      %v3486 = vadd.f32 %v3397, %v3485
      %v3487 = vpop.f32.mrf.mxu0
      %v3488 = vadd.f32 %v3399, %v3487
      %3489 = vmatmul.bf16.gmra.mxu0 %v2089
      %v3490 = vpop.f32.mrf.mxu0
      %v3491 = vadd.f32 %v3402, %v3490
      %v3492 = vpop.f32.mrf.mxu0
      %v3493 = vadd.f32 %v3404, %v3492
      %3494 = vmatmul.bf16.gmra.mxu0 %v2098
      %v3495 = vpop.f32.mrf.mxu0
      %v3496 = vadd.f32 %v3407, %v3495
      %v3497 = vpop.f32.mrf.mxu0
      %v3498 = vadd.f32 %v3409, %v3497
      %3499 = vmatmul.bf16.gmra.mxu0 %v2107
      %v3500 = vpop.f32.mrf.mxu0
      %v3501 = vadd.f32 %v3412, %v3500
      %v3502 = vpop.f32.mrf.mxu0
      %v3503 = vadd.f32 %v3414, %v3502
      %3504 = vmatmul.bf16.gmra.mxu0 %v2116
      %v3505 = vpop.f32.mrf.mxu0
      %v3506 = vadd.f32 %v3417, %v3505
      %v3507 = vpop.f32.mrf.mxu0
      %v3508 = vadd.f32 %v3419, %v3507
      %3509 = vmatmul.bf16.gmra.mxu0 %v2125
      %v3510 = vpop.f32.mrf.mxu0
      %v3511 = vadd.f32 %v3422, %v3510
      %v3512 = vpop.f32.mrf.mxu0
      %v3513 = vadd.f32 %v3424, %v3512
      %3514 = vmatmul.bf16.gmra.mxu0 %v2134
      %v3515 = vpop.f32.mrf.mxu0
      %v3516 = vadd.f32 %v3427, %v3515
      %v3517 = vpop.f32.mrf.mxu0
      %v3518 = vadd.f32 %v3429, %v3517
      %3519 = vmatmul.bf16.gmra.mxu0 %v2143
      %v3520 = vpop.f32.mrf.mxu0
      %v3521 = vadd.f32 %v3432, %v3520
      %v3522 = vpop.f32.mrf.mxu0
      %v3523 = vadd.f32 %v3434, %v3522
      %3524 = vmatmul.bf16.gmra.mxu0 %v2152
      %v3525 = vpop.f32.mrf.mxu0
      %v3526 = vadd.f32 %v3437, %v3525
      %v3527 = vpop.f32.mrf.mxu0
      %v3528 = vadd.f32 %v3439, %v3527
      %3529 = vdwg.mxu0
      %v3530 = vld [vmem:[%s2] sm:$0x3]
      %v3531 = vmul.f32 %v3530, 0.001953125
      %v3532 = vmul.f32 %v3531, %v3531
      %v3534 = vrot.slane %v3532, 7
      %v3536 = vsub.f32 %v3531, %v3534
      %v3537 = vmax.f32 %v3536, 0.0
      %v3538 = vadd.f32 %v3537, 1e-05
      %v3539 = vrsqrt.pop %v3538
      %v3540 = vmul.f32 %v3539, %v3538
      %v3541 = vmul.f32 %v3540, %v3539
      %v3542 = vmul.f32 0.5, %v3541
      %v3543 = vsub.f32 1.5, %v3542
      %v3544 = vmul.f32 %v3539, %v3543
      %vm3545 = vweird.f32 %v3538
      %vm3546 = vweird.f32 %v3539
      %vm3547 = vmor %vm3545, %vm3546
      %v3548 = vsel %vm3547, %v3539, %v3544
      %v3549 = vld [vmem:[%s3] sm:$0x1]
      %v3551 = vperm.slane %v3549, 0
      %v3553 = vmul.f32 %v3548, %v3551
      %v3554 = vperm.slane %v3531, 0
      %v3555 = vsub.f32 %v3451, %v3554
      %v3556 = vsub.f32 %v3453, %v3554
      %v3557 = vsub.f32 %v3456, %v3554
      %v3558 = vsub.f32 %v3458, %v3554
      %v3559 = vsub.f32 %v3461, %v3554
      %v3560 = vsub.f32 %v3463, %v3554
      %v3561 = vsub.f32 %v3466, %v3554
      %v3562 = vsub.f32 %v3468, %v3554
      %v3563 = vsub.f32 %v3471, %v3554
      %v3564 = vsub.f32 %v3473, %v3554
      %v3565 = vsub.f32 %v3476, %v3554
      %v3566 = vsub.f32 %v3478, %v3554
      %v3567 = vsub.f32 %v3481, %v3554
      %v3568 = vsub.f32 %v3483, %v3554
      %v3569 = vsub.f32 %v3486, %v3554
      %v3570 = vsub.f32 %v3488, %v3554
      %v3571 = vsub.f32 %v3491, %v3554
      %v3572 = vsub.f32 %v3493, %v3554
      %v3573 = vsub.f32 %v3496, %v3554
      %v3574 = vsub.f32 %v3498, %v3554
      %v3575 = vsub.f32 %v3501, %v3554
      %v3576 = vsub.f32 %v3503, %v3554
      %v3577 = vsub.f32 %v3506, %v3554
      %v3578 = vsub.f32 %v3508, %v3554
      %v3579 = vsub.f32 %v3511, %v3554
      %v3580 = vsub.f32 %v3513, %v3554
      %v3581 = vsub.f32 %v3516, %v3554
      %v3582 = vsub.f32 %v3518, %v3554
      %v3583 = vsub.f32 %v3521, %v3554
      %v3584 = vsub.f32 %v3523, %v3554
      %v3585 = vsub.f32 %v3526, %v3554
      %v3586 = vsub.f32 %v3528, %v3554
      %v3587 = vperm.slane %v3553, 1
      %v3588 = vmul.f32 %v3555, %v3587
      %v3589 = vmul.f32 %v3556, %v3587
      %v3590 = vmul.f32 %v3557, %v3587
      %v3591 = vmul.f32 %v3558, %v3587
      %v3592 = vmul.f32 %v3559, %v3587
      %v3593 = vmul.f32 %v3560, %v3587
      %v3594 = vmul.f32 %v3561, %v3587
      %v3595 = vmul.f32 %v3562, %v3587
      %v3596 = vmul.f32 %v3563, %v3587
      %v3597 = vmul.f32 %v3564, %v3587
      %v3598 = vmul.f32 %v3565, %v3587
      %v3599 = vmul.f32 %v3566, %v3587
      %v3600 = vmul.f32 %v3567, %v3587
      %v3601 = vmul.f32 %v3568, %v3587
      %v3602 = vmul.f32 %v3569, %v3587
      %v3603 = vmul.f32 %v3570, %v3587
      %v3604 = vmul.f32 %v3571, %v3587
      %v3605 = vmul.f32 %v3572, %v3587
      %v3606 = vmul.f32 %v3573, %v3587
      %v3607 = vmul.f32 %v3574, %v3587
      %v3608 = vmul.f32 %v3575, %v3587
      %v3609 = vmul.f32 %v3576, %v3587
      %v3610 = vmul.f32 %v3577, %v3587
      %v3611 = vmul.f32 %v3578, %v3587
      %v3612 = vmul.f32 %v3579, %v3587
      %v3613 = vmul.f32 %v3580, %v3587
      %v3614 = vmul.f32 %v3581, %v3587
      %v3615 = vmul.f32 %v3582, %v3587
      %v3616 = vmul.f32 %v3583, %v3587
      %v3617 = vmul.f32 %v3584, %v3587
      %v3618 = vmul.f32 %v3585, %v3587
      %v3619 = vmul.f32 %v3586, %v3587
      %v3620 = vld [vmem:[%s4] sm:$0x1]
      %v3622 = vperm.slane %v3620, 0
      %v3624 = vadd.f32 %v3588, %v3622
      %v3625 = vadd.f32 %v3589, %v3622
      %v3626 = vadd.f32 %v3590, %v3622
      %v3627 = vadd.f32 %v3591, %v3622
      %v3628 = vadd.f32 %v3592, %v3622
      %v3629 = vadd.f32 %v3593, %v3622
      %v3630 = vadd.f32 %v3594, %v3622
      %v3631 = vadd.f32 %v3595, %v3622
      %v3632 = vadd.f32 %v3596, %v3622
      %v3633 = vadd.f32 %v3597, %v3622
      %v3634 = vadd.f32 %v3598, %v3622
      %v3635 = vadd.f32 %v3599, %v3622
      %v3636 = vadd.f32 %v3600, %v3622
      %v3637 = vadd.f32 %v3601, %v3622
      %v3638 = vadd.f32 %v3602, %v3622
      %v3639 = vadd.f32 %v3603, %v3622
      %v3640 = vadd.f32 %v3604, %v3622
      %v3641 = vadd.f32 %v3605, %v3622
      %v3642 = vadd.f32 %v3606, %v3622
      %v3643 = vadd.f32 %v3607, %v3622
      %v3644 = vadd.f32 %v3608, %v3622
      %v3645 = vadd.f32 %v3609, %v3622
      %v3646 = vadd.f32 %v3610, %v3622
      %v3647 = vadd.f32 %v3611, %v3622
      %v3648 = vadd.f32 %v3612, %v3622
      %v3649 = vadd.f32 %v3613, %v3622
      %v3650 = vadd.f32 %v3614, %v3622
      %v3651 = vadd.f32 %v3615, %v3622
      %v3652 = vadd.f32 %v3616, %v3622
      %v3653 = vadd.f32 %v3617, %v3622
      %v3654 = vadd.f32 %v3618, %v3622
      %v3655 = vadd.f32 %v3619, %v3622
      %v3656 = vmax.f32 %v3624, 0.0
      %v3657 = vmax.f32 %v3625, 0.0
      %v3658 = vmax.f32 %v3626, 0.0
      %v3659 = vmax.f32 %v3627, 0.0
      %v3660 = vmax.f32 %v3628, 0.0
      %v3661 = vmax.f32 %v3629, 0.0
      %v3662 = vmax.f32 %v3630, 0.0
      %v3663 = vmax.f32 %v3631, 0.0
      %v3664 = vmax.f32 %v3632, 0.0
      %v3665 = vmax.f32 %v3633, 0.0
      %v3666 = vmax.f32 %v3634, 0.0
      %v3667 = vmax.f32 %v3635, 0.0
      %v3668 = vmax.f32 %v3636, 0.0
      %v3669 = vmax.f32 %v3637, 0.0
      %v3670 = vmax.f32 %v3638, 0.0
      %v3671 = vmax.f32 %v3639, 0.0
      %v3672 = vmax.f32 %v3640, 0.0
      %v3673 = vmax.f32 %v3641, 0.0
      %v3674 = vmax.f32 %v3642, 0.0
      %v3675 = vmax.f32 %v3643, 0.0
      %v3676 = vmax.f32 %v3644, 0.0
      %v3677 = vmax.f32 %v3645, 0.0
      %v3678 = vmax.f32 %v3646, 0.0
      %v3679 = vmax.f32 %v3647, 0.0
      %v3680 = vmax.f32 %v3648, 0.0
      %v3681 = vmax.f32 %v3649, 0.0
      %v3682 = vmax.f32 %v3650, 0.0
      %v3683 = vmax.f32 %v3651, 0.0
      %v3684 = vmax.f32 %v3652, 0.0
      %v3685 = vmax.f32 %v3653, 0.0
      %v3686 = vmax.f32 %v3654, 0.0
      %v3687 = vmax.f32 %v3655, 0.0
      %3688 = vst [vmem:[%s224] sm:$0xff] %v3656
      %3689 = vst [vmem:[%s224 + $0x8] sm:$0xff] %v3657
      %3690 = vst [vmem:[%s224 + $0x10] sm:$0xff] %v3658
      %3691 = vst [vmem:[%s224 + $0x18] sm:$0xff] %v3659
      %3692 = vst [vmem:[%s224 + $0x20] sm:$0xff] %v3660
      %3693 = vst [vmem:[%s224 + $0x28] sm:$0xff] %v3661
      %3694 = vst [vmem:[%s224 + $0x30] sm:$0xff] %v3662
      %3695 = vst [vmem:[%s224 + $0x38] sm:$0xff] %v3663
      %3696 = vst [vmem:[%s224 + $0x40] sm:$0xff] %v3664
      %3697 = vst [vmem:[%s224 + $0x48] sm:$0xff] %v3665
      %3698 = vst [vmem:[%s224 + $0x50] sm:$0xff] %v3666
      %3699 = vst [vmem:[%s224 + $0x58] sm:$0xff] %v3667
      %3700 = vst [vmem:[%s224 + $0x60] sm:$0xff] %v3668
      %3701 = vst [vmem:[%s224 + $0x68] sm:$0xff] %v3669
      %3702 = vst [vmem:[%s224 + $0x70] sm:$0xff] %v3670
      %3703 = vst [vmem:[%s224 + $0x78] sm:$0xff] %v3671
      %3704 = vst [vmem:[%s224 + $0x80] sm:$0xff] %v3672
      %3705 = vst [vmem:[%s224 + $0x88] sm:$0xff] %v3673
      %3706 = vst [vmem:[%s224 + $0x90] sm:$0xff] %v3674
      %3707 = vst [vmem:[%s224 + $0x98] sm:$0xff] %v3675
      %3708 = vst [vmem:[%s224 + $0xa0] sm:$0xff] %v3676
      %3709 = vst [vmem:[%s224 + $0xa8] sm:$0xff] %v3677
      %3710 = vst [vmem:[%s224 + $0xb0] sm:$0xff] %v3678
      %3711 = vst [vmem:[%s224 + $0xb8] sm:$0xff] %v3679
      %3712 = vst [vmem:[%s224 + $0xc0] sm:$0xff] %v3680
      %3713 = vst [vmem:[%s224 + $0xc8] sm:$0xff] %v3681
      %3714 = vst [vmem:[%s224 + $0xd0] sm:$0xff] %v3682
      %3715 = vst [vmem:[%s224 + $0xd8] sm:$0xff] %v3683
      %3716 = vst [vmem:[%s224 + $0xe0] sm:$0xff] %v3684
      %3717 = vst [vmem:[%s224 + $0xe8] sm:$0xff] %v3685
      %3718 = vst [vmem:[%s224 + $0xf0] sm:$0xff] %v3686
      %3719 = vst [vmem:[%s224 + $0xf8] sm:$0xff] %v3687
      %p3720 = scmp.lt.s32.totalorder %s16, 1
      %s3721 = scalar_select %p3720, %s16, 1
      %s3722 = smul.addr %s3721, 32
      %s3723 = smul.addr %s3722, 8
      %s3724 = scalar_lea.vmem %s5, %s3723
      // Predicated region
      $region41: #{double_conv.5} parent=39 // pred_check
        %p3725 = pneg %p144
      $region42: #{double_conv.5} parent=39 // pred_check_branch
        %3727 = sbr.rel (%p3725) target = $region44
      $region43: #{double_conv.5} parent=39 // pred_region
        _
      $region44: #{double_conv.5} parent=39 // pred_fallthru
        _
    $region40: #{double_conv.5} parent=5 // pred_fallthru
      _
    %p3728 = scmp.le.s32.totalorder 2, %s11
    // Predicated region
    $region45: #{double_conv.5} parent=5 // pred_check
      %p3729 = pneg %p3728
    $region46: #{double_conv.5} parent=5 // pred_check_branch
      %3731 = sbr.rel (%p3729) target = $region48
    $region47: #{double_conv.5} parent=5 // pred_region
      %s3732 = ssub.s32 %s11, 2
      // Predicated region
      $region49: #{double_conv.5} parent=47 // pred_check
        %p3733 = pneg %p150
      $region50: #{double_conv.5} parent=47 // pred_check_branch
        %3735 = sbr.rel (%p3733) target = $region52
      $region51: #{double_conv.5} parent=47 // pred_region
        %p3736 = scmp.lt.s32.totalorder %s17, 1
        %s3737 = scalar_select %p3736, %s17, 1
        %s3738 = smul.addr %s3737, 32
        %s3739 = smul.addr %s3738, 8
        %s3740 = scalar_lea.vmem %s5, %s3739
      $region52: #{double_conv.5} parent=47 // pred_fallthru
        _
    $region48: #{double_conv.5} parent=5 // pred_fallthru
      _
  $region6: #{double_conv.5} parent=0 // loop_footer
    %s15 = sadd.s32 1, %s11
  $region7: #{double_conv.5} parent=0 // loop_footer_branch
    %10 = sbr.rel target = $region3
  $region8: #{double_conv.5} parent=0 // loop_exit
    _

// kernel: double_conv.4
$region0: #{double_conv.4}
  #allocation0 [shape = 'u32[]', space=smem, size = 0x4, offset = 0x4, fixed_abs, tag = 'smem constant byte address 0x4 - core index']
  #allocation1 [shape = 'u32[72,128]{1,0:T(1,128)}', space=vmem, size = 0x9000, scoped, tag = 'internal scratch']
  #allocation2 [shape = 'bf16[256,1152]{1,0:T(8,128)(2,1)}', space=vmem, size = 0x90000, scoped, tag = 'scratch operand']
  %s0 = inlined_call_operand.vmem [shape: bf16[2,18,18,128], index: 0, kind: input, shape index: {}]
  %s1 = inlined_call_operand.vmem [shape: bf16[1152,128], index: 1, kind: input, shape index: {}]
  %s2 = inlined_call_operand.vmem [shape: f32[2,128], index: 2, kind: output, shape index: {}]
  %s3 = sld [smem:[#allocation0]]
  $region45: #{double_conv.4} parent=0
    _
  %s5 = ssub.s32 1, %s3
  %s6 = scalar_select 0, %s5, %s3
  loop: start=0, step=1, limit=4
  $region2: #{double_conv.4} parent=0 // loop_pre_header
    _
  $region3: #{double_conv.4} parent=0 // loop_header
    %s8 = sphi 0, %s12
    %p9 = scmp.ge.s32.totalorder %s8, 4
    %s18 = sphi 0, %s20
    %s21 = sphi 0, %s18
    %s22 = sphi 0, %s21
    %s38 = sphi 0, %s22
    %s42 = sphi 0, %s42
    %s44 = sphi 0, %s42
    %s45 = sphi 0, %s44
    %s59 = sphi 0, %s45
    %s63 = sphi 0, %s63
    %s65 = sphi 0, %s63
    %s66 = sphi 0, %s65
    %s80 = sphi 0, %s66
  $region4: #{double_conv.4} parent=0 // loop_header_branch
    %11 = sbr.rel (%p9) target = $region8
  $region5: #{double_conv.4} parent=0 // loop_body
    %s13 = ssub.s32 %s8, 1
    %s14 = ssub.s32 %s8, 2
    %s15 = sadd.s32 %s8, 1
    %s16 = ssub.s32 %s8, %s15
    %p17 = scmp.eq.s32.totalorder %s16, 0
    %s19 = sadd.s32 %s18, 1
    %s20 = scalar_select %p17, %s18, %s19
    %p23 = pneg %p17
    %p24 = scmp.eq.s32.totalorder %s8, 1
    %p25 = por %p23, %p24
    %p26 = scmp.ne.s32.totalorder %s18, %s21
    %p27 = scmp.eq.s32.totalorder %s8, 0
    %p28 = por %p26, %p27
    %p29 = scmp.ne.s32.totalorder %s18, %s21
    %p30 = scmp.eq.s32.totalorder %s13, 1
    %p31 = por %p29, %p30
    %p32 = scmp.ne.s32.totalorder %s21, %s22
    %p33 = scmp.eq.s32.totalorder %s13, 0
    %p34 = por %p32, %p33
    %p35 = scmp.ne.s32.totalorder %s21, %s22
    %p36 = scmp.eq.s32.totalorder %s14, 1
    %p37 = por %p35, %p36
    %p39 = scmp.ne.s32.totalorder %s22, %s38
    %p40 = scmp.eq.s32.totalorder %s14, 0
    %p41 = por %p39, %p40
    %s43 = sadd.s32 %s42, 1
    %p46 = scmp.eq.s32.totalorder %s8, 1
    %p47 = scmp.ne.s32.totalorder %s42, %s44
    %p48 = scmp.eq.s32.totalorder %s8, 0
    %p49 = por %p47, %p48
    %p50 = scmp.ne.s32.totalorder %s42, %s44
    %p51 = scmp.eq.s32.totalorder %s13, 1
    %p52 = por %p50, %p51
    %p53 = scmp.ne.s32.totalorder %s44, %s45
    %p54 = scmp.eq.s32.totalorder %s13, 0
    %p55 = por %p53, %p54
    %p56 = scmp.ne.s32.totalorder %s44, %s45
    %p57 = scmp.eq.s32.totalorder %s14, 1
    %p58 = por %p56, %p57
    %p60 = scmp.ne.s32.totalorder %s45, %s59
    %p61 = scmp.eq.s32.totalorder %s14, 0
    %p62 = por %p60, %p61
    %s64 = sadd.s32 %s63, 1
    %p67 = scmp.eq.s32.totalorder %s8, 1
    %p68 = scmp.ne.s32.totalorder %s63, %s65
    %p69 = scmp.eq.s32.totalorder %s8, 0
    %p70 = por %p68, %p69
    %p71 = scmp.ne.s32.totalorder %s63, %s65
    %p72 = scmp.eq.s32.totalorder %s13, 1
    %p73 = por %p71, %p72
    %p74 = scmp.ne.s32.totalorder %s65, %s66
    %p75 = scmp.eq.s32.totalorder %s13, 0
    %p76 = por %p74, %p75
    %p77 = scmp.ne.s32.totalorder %s65, %s66
    %p78 = scmp.eq.s32.totalorder %s14, 1
    %p79 = por %p77, %p78
    %p81 = scmp.ne.s32.totalorder %s66, %s80
    %p82 = scmp.eq.s32.totalorder %s14, 0
    %p83 = por %p81, %p82
    %p84 = scmp.le.s32.totalorder 1, %s8
    %p85 = scmp.lt.s32.totalorder %s8, 3
    %p86 = pnand %p84, %p85
    %p87 = pneg %p86
    // Predicated region
    $region9: #{double_conv.4} parent=5 // pred_check
      _
    $region10: #{double_conv.4} parent=5 // pred_check_branch
      %89 = sbr.rel (%p86) target = $region12
    $region11: #{double_conv.4} parent=5 // pred_region
      %s90 = ssub.s32 %s8, 1
      // Predicated region
      $region13: #{double_conv.4} parent=11 // pred_check
        %p91 = pneg %p55
      $region14: #{double_conv.4} parent=11 // pred_check_branch
        %93 = sbr.rel (%p91) target = $region16
      $region15: #{double_conv.4} parent=11 // pred_region
        _
      $region16: #{double_conv.4} parent=11 // pred_fallthru
        _
    $region12: #{double_conv.4} parent=5 // pred_fallthru
      _
    %p94 = scmp.lt.s32.totalorder %s8, 2
    // Predicated region
    $region17: #{double_conv.4} parent=5 // pred_check
      %p95 = pneg %p94
    $region18: #{double_conv.4} parent=5 // pred_check_branch
      %97 = sbr.rel (%p95) target = $region20
    $region19: #{double_conv.4} parent=5 // pred_region
      // Predicated region
      $region21: #{double_conv.4} parent=19 // pred_check
        %p98 = pneg %p28
      $region22: #{double_conv.4} parent=19 // pred_check_branch
        %100 = sbr.rel (%p98) target = $region24
      $region23: #{double_conv.4} parent=19 // pred_region
        %p101 = scmp.lt.s32.totalorder %s8, 1
        %s102 = scalar_select %p101, %s8, 1
        %s103 = smul.addr %s102, 54
        %s104 = smul.addr %s103, 4
        %s105 = scalar_lea.vmem %s0, %s104
      $region24: #{double_conv.4} parent=19 // pred_fallthru
        _
    $region20: #{double_conv.4} parent=5 // pred_fallthru
      _
    %p106 = scmp.le.s32.totalorder 1, %s8
    %p107 = scmp.lt.s32.totalorder %s8, 3
    %p108 = pnand %p106, %p107
    %p109 = pneg %p108
    // Predicated region
    $region25: #{double_conv.4} parent=5 // pred_check
      _
    $region26: #{double_conv.4} parent=5 // pred_check_branch
      %111 = sbr.rel (%p108) target = $region28
    $region27: #{double_conv.4} parent=5 // pred_region
      %s112 = ssub.s32 %s8, 1
      %p113 = scmp.lt.s32.totalorder %s13, 1
      %s114 = scalar_select %p113, %s13, 1
      %s115 = smul.addr %s114, 54
      %s116 = smul.addr %s115, 4
      %s117 = scalar_lea.vmem %s0, %s116
      %p118 = pneg %p34
      %p119 = pneg %p31
      %p120 = pneg %p55
      %p121 = pneg %p52
      %p122 = pneg %p76
      %p123 = pneg %p73
      %p124 = scmp.lt.s32.totalorder %s13, 1
      %s125 = scalar_select %p124, %s13, 1
      %s126 = smul.addr %s125, 54
      %s127 = smul.addr %s126, 4
      %s128 = scalar_lea.vmem %s0, %s127
      %v129 = vld [vmem:[%s128] sm:$0xf]
      %v130 = vld [vmem:[%s128 + $0x4] sm:$0xf]
      %v131 = vld [vmem:[%s128 + $0x8] sm:$0x1]
      %v132 = vld [vmem:[%s128 + $0xc] sm:$0xf]
      %v133 = vld [vmem:[%s128 + $0x10] sm:$0xf]
      %v134 = vld [vmem:[%s128 + $0x14] sm:$0x1]
      %v135 = vld [vmem:[%s128 + $0x18] sm:$0xf]
      %v136 = vld [vmem:[%s128 + $0x1c] sm:$0xf]
      %v137 = vld [vmem:[%s128 + $0x20] sm:$0x1]
      %v138 = vld [vmem:[%s128 + $0x24] sm:$0xf]
      %v139 = vld [vmem:[%s128 + $0x28] sm:$0xf]
      %v140 = vld [vmem:[%s128 + $0x2c] sm:$0x1]
      %v141 = vld [vmem:[%s128 + $0x30] sm:$0xf]
      %v142 = vld [vmem:[%s128 + $0x34] sm:$0xf]
      %v143 = vld [vmem:[%s128 + $0x38] sm:$0x1]
      %v144 = vld [vmem:[%s128 + $0x3c] sm:$0xf]
      %v145 = vld [vmem:[%s128 + $0x40] sm:$0xf]
      %v146 = vld [vmem:[%s128 + $0x44] sm:$0x1]
      %v147 = vld [vmem:[%s128 + $0x48] sm:$0xf]
      %v148 = vld [vmem:[%s128 + $0x4c] sm:$0xf]
      %v149 = vld [vmem:[%s128 + $0x50] sm:$0x1]
      %v150 = vld [vmem:[%s128 + $0x54] sm:$0xf]
      %v151 = vld [vmem:[%s128 + $0x58] sm:$0xf]
      %v152 = vld [vmem:[%s128 + $0x5c] sm:$0x1]
      %v153 = vld [vmem:[%s128 + $0x60] sm:$0xf]
      %v154 = vld [vmem:[%s128 + $0x64] sm:$0xf]
      %v155 = vld [vmem:[%s128 + $0x68] sm:$0x1]
      %v156 = vld [vmem:[%s128 + $0x6c] sm:$0xf]
      %v157 = vld [vmem:[%s128 + $0x70] sm:$0xf]
      %v158 = vld [vmem:[%s128 + $0x74] sm:$0x1]
      %v159 = vld [vmem:[%s128 + $0x78] sm:$0xf]
      %v160 = vld [vmem:[%s128 + $0x7c] sm:$0xf]
      %v161 = vld [vmem:[%s128 + $0x80] sm:$0x1]
      %v162 = vld [vmem:[%s128 + $0x84] sm:$0xf]
      %v163 = vld [vmem:[%s128 + $0x88] sm:$0xf]
      %v164 = vld [vmem:[%s128 + $0x8c] sm:$0x1]
      %v165 = vld [vmem:[%s128 + $0x90] sm:$0xf]
      %v166 = vld [vmem:[%s128 + $0x94] sm:$0xf]
      %v167 = vld [vmem:[%s128 + $0x98] sm:$0x1]
      %v168 = vld [vmem:[%s128 + $0x9c] sm:$0xf]
      %v169 = vld [vmem:[%s128 + $0xa0] sm:$0xf]
      %v170 = vld [vmem:[%s128 + $0xa4] sm:$0x1]
      %v171 = vld [vmem:[%s128 + $0xa8] sm:$0xf]
      %v172 = vld [vmem:[%s128 + $0xac] sm:$0xf]
      %v173 = vld [vmem:[%s128 + $0xb0] sm:$0x1]
      %v174 = vld [vmem:[%s128 + $0xb4] sm:$0xf]
      %v175 = vld [vmem:[%s128 + $0xb8] sm:$0xf]
      %v176 = vld [vmem:[%s128 + $0xbc] sm:$0x1]
      %v177 = vld [vmem:[%s128 + $0xc0] sm:$0xf]
      %v178 = vld [vmem:[%s128 + $0xc4] sm:$0xf]
      %v179 = vld [vmem:[%s128 + $0xc8] sm:$0x1]
      %v180 = vld [vmem:[%s128 + $0xcc] sm:$0xf]
      %v181 = vld [vmem:[%s128 + $0xd0] sm:$0xf]
      %v182 = vld [vmem:[%s128 + $0xd4] sm:$0x1]
      %183 = vst [vmem:[#allocation2] sm:$0xf] %v129
      %184 = vst [vmem:[#allocation2 + $0x24] sm:$0xf] %v130
      %185 = vst [vmem:[#allocation2 + $0x48] sm:$0xf] %v132
      %186 = vst [vmem:[#allocation2 + $0x6c] sm:$0xf] %v133
      %187 = vst [vmem:[#allocation2 + $0x90] sm:$0xf] %v135
      %188 = vst [vmem:[#allocation2 + $0xb4] sm:$0xf] %v136
      %189 = vst [vmem:[#allocation2 + $0xd8] sm:$0xf] %v138
      %190 = vst [vmem:[#allocation2 + $0xfc] sm:$0xf] %v139
      %191 = vst [vmem:[#allocation2 + $0x120] sm:$0xf] %v141
      %192 = vst [vmem:[#allocation2 + $0x144] sm:$0xf] %v142
      %193 = vst [vmem:[#allocation2 + $0x168] sm:$0xf] %v144
      %194 = vst [vmem:[#allocation2 + $0x18c] sm:$0xf] %v145
      %195 = vst [vmem:[#allocation2 + $0x1b0] sm:$0xf] %v147
      %196 = vst [vmem:[#allocation2 + $0x1d4] sm:$0xf] %v148
      %197 = vst [vmem:[#allocation2 + $0x1f8] sm:$0xf] %v150
      %198 = vst [vmem:[#allocation2 + $0x21c] sm:$0xf] %v151
      %199 = vst [vmem:[#allocation2 + $0x240] sm:$0xf] %v153
      %200 = vst [vmem:[#allocation2 + $0x264] sm:$0xf] %v154
      %201 = vst [vmem:[#allocation2 + $0x288] sm:$0xf] %v156
      %202 = vst [vmem:[#allocation2 + $0x2ac] sm:$0xf] %v157
      %203 = vst [vmem:[#allocation2 + $0x2d0] sm:$0xf] %v159
      %204 = vst [vmem:[#allocation2 + $0x2f4] sm:$0xf] %v160
      %205 = vst [vmem:[#allocation2 + $0x318] sm:$0xf] %v162
      %206 = vst [vmem:[#allocation2 + $0x33c] sm:$0xf] %v163
      %207 = vst [vmem:[#allocation2 + $0x360] sm:$0xf] %v165
      %208 = vst [vmem:[#allocation2 + $0x384] sm:$0xf] %v166
      %209 = vst [vmem:[#allocation2 + $0x3a8] sm:$0xf] %v168
      %210 = vst [vmem:[#allocation2 + $0x3cc] sm:$0xf] %v169
      %211 = vst [vmem:[#allocation2 + $0x3f0] sm:$0xf] %v171
      %212 = vst [vmem:[#allocation2 + $0x414] sm:$0xf] %v172
      %213 = vst [vmem:[#allocation2 + $0x438] sm:$0xf] %v174
      %214 = vst [vmem:[#allocation2 + $0x45c] sm:$0xf] %v175
      %vm215 = vsmask.f32 3328
      %vm216 = vsmask.f32 7440
      %vm217 = vmor %vm215, %vm216
      %v219 = vshrl.u32 %v129, 16
      %v221 = vrot.slane %v219, 4
      %v222 = vshll.u32 %v129, 16
      %v224 = vrot.slane %v222, 5
      %v225 = vor.u32 %v221, %v224
      %v226 = vrot.slane %v225, 4
      %v228 = vshll.u32 %v130, 16
      %v230 = vrot.slane %v228, 5
      %v231 = vsel %vm217, %v226, %v230
      %v232 = vshrl.u32 %v130, 16
      %v234 = vrot.slane %v232, 4
      %v235 = vor.u32 %v234, %v230
      %v236 = vrot.slane %v235, 4
      %v238 = vshll.u32 %v131, 16
      %v240 = vrot.slane %v238, 5
      %v241 = vsel %vm217, %v236, %v240
      %v243 = vshrl.u32 %v132, 16
      %v245 = vrot.slane %v243, 4
      %v246 = vshll.u32 %v132, 16
      %v248 = vrot.slane %v246, 5
      %v249 = vor.u32 %v245, %v248
      %v250 = vrot.slane %v249, 4
      %v252 = vshll.u32 %v133, 16
      %v254 = vrot.slane %v252, 5
      %v255 = vsel %vm217, %v250, %v254
      %v256 = vshrl.u32 %v133, 16
      %v258 = vrot.slane %v256, 4
      %v259 = vor.u32 %v258, %v254
      %v260 = vrot.slane %v259, 4
      %v262 = vshll.u32 %v134, 16
      %v264 = vrot.slane %v262, 5
      %v265 = vsel %vm217, %v260, %v264
      %v267 = vshrl.u32 %v135, 16
      %v269 = vrot.slane %v267, 4
      %v270 = vshll.u32 %v135, 16
      %v272 = vrot.slane %v270, 5
      %v273 = vor.u32 %v269, %v272
      %v274 = vrot.slane %v273, 4
      %v276 = vshll.u32 %v136, 16
      %v278 = vrot.slane %v276, 5
      %v279 = vsel %vm217, %v274, %v278
      %v280 = vshrl.u32 %v136, 16
      %v282 = vrot.slane %v280, 4
      %v283 = vor.u32 %v282, %v278
      %v284 = vrot.slane %v283, 4
      %v286 = vshll.u32 %v137, 16
      %v288 = vrot.slane %v286, 5
      %v289 = vsel %vm217, %v284, %v288
      %v291 = vshrl.u32 %v138, 16
      %v293 = vrot.slane %v291, 4
      %v294 = vshll.u32 %v138, 16
      %v296 = vrot.slane %v294, 5
      %v297 = vor.u32 %v293, %v296
      %v298 = vrot.slane %v297, 4
      %v300 = vshll.u32 %v139, 16
      %v302 = vrot.slane %v300, 5
      %v303 = vsel %vm217, %v298, %v302
      %v304 = vshrl.u32 %v139, 16
      %v306 = vrot.slane %v304, 4
      %v307 = vor.u32 %v306, %v302
      %v308 = vrot.slane %v307, 4
      %v310 = vshll.u32 %v140, 16
      %v312 = vrot.slane %v310, 5
      %v313 = vsel %vm217, %v308, %v312
      %v315 = vshrl.u32 %v141, 16
      %v317 = vrot.slane %v315, 4
      %v318 = vshll.u32 %v141, 16
      %v320 = vrot.slane %v318, 5
      %v321 = vor.u32 %v317, %v320
      %v322 = vrot.slane %v321, 4
      %v324 = vshll.u32 %v142, 16
      %v326 = vrot.slane %v324, 5
      %v327 = vsel %vm217, %v322, %v326
      %v328 = vshrl.u32 %v142, 16
      %v330 = vrot.slane %v328, 4
      %v331 = vor.u32 %v330, %v326
      %v332 = vrot.slane %v331, 4
      %v334 = vshll.u32 %v143, 16
      %v336 = vrot.slane %v334, 5
      %v337 = vsel %vm217, %v332, %v336
      %v339 = vshrl.u32 %v144, 16
      %v341 = vrot.slane %v339, 4
      %v342 = vshll.u32 %v144, 16
      %v344 = vrot.slane %v342, 5
      %v345 = vor.u32 %v341, %v344
      %v346 = vrot.slane %v345, 4
      %v348 = vshll.u32 %v145, 16
      %v350 = vrot.slane %v348, 5
      %v351 = vsel %vm217, %v346, %v350
      %v352 = vshrl.u32 %v145, 16
      %v354 = vrot.slane %v352, 4
      %v355 = vor.u32 %v354, %v350
      %v356 = vrot.slane %v355, 4
      %v358 = vshll.u32 %v146, 16
      %v360 = vrot.slane %v358, 5
      %v361 = vsel %vm217, %v356, %v360
      %v363 = vshrl.u32 %v147, 16
      %v365 = vrot.slane %v363, 4
      %v366 = vshll.u32 %v147, 16
      %v368 = vrot.slane %v366, 5
      %v369 = vor.u32 %v365, %v368
      %v370 = vrot.slane %v369, 4
      %v372 = vshll.u32 %v148, 16
      %v374 = vrot.slane %v372, 5
      %v375 = vsel %vm217, %v370, %v374
      %v376 = vshrl.u32 %v148, 16
      %v378 = vrot.slane %v376, 4
      %v379 = vor.u32 %v378, %v374
      %v380 = vrot.slane %v379, 4
      %v382 = vshll.u32 %v149, 16
      %v384 = vrot.slane %v382, 5
      %v385 = vsel %vm217, %v380, %v384
      %v387 = vshrl.u32 %v150, 16
      %v389 = vrot.slane %v387, 4
      %v390 = vshll.u32 %v150, 16
      %v392 = vrot.slane %v390, 5
      %v393 = vor.u32 %v389, %v392
      %v394 = vrot.slane %v393, 4
      %v396 = vshll.u32 %v151, 16
      %v398 = vrot.slane %v396, 5
      %v399 = vsel %vm217, %v394, %v398
      %v400 = vshrl.u32 %v151, 16
      %v402 = vrot.slane %v400, 4
      %v403 = vor.u32 %v402, %v398
      %v404 = vrot.slane %v403, 4
      %v406 = vshll.u32 %v152, 16
      %v408 = vrot.slane %v406, 5
      %v409 = vsel %vm217, %v404, %v408
      %v411 = vshrl.u32 %v153, 16
      %v413 = vrot.slane %v411, 4
      %v414 = vshll.u32 %v153, 16
      %v416 = vrot.slane %v414, 5
      %v417 = vor.u32 %v413, %v416
      %v418 = vrot.slane %v417, 4
      %v420 = vshll.u32 %v154, 16
      %v422 = vrot.slane %v420, 5
      %v423 = vsel %vm217, %v418, %v422
      %v424 = vshrl.u32 %v154, 16
      %v426 = vrot.slane %v424, 4
      %v427 = vor.u32 %v426, %v422
      %v428 = vrot.slane %v427, 4
      %v430 = vshll.u32 %v155, 16
      %v432 = vrot.slane %v430, 5
      %v433 = vsel %vm217, %v428, %v432
      %v435 = vshrl.u32 %v156, 16
      %v437 = vrot.slane %v435, 4
      %v438 = vshll.u32 %v156, 16
      %v440 = vrot.slane %v438, 5
      %v441 = vor.u32 %v437, %v440
      %v442 = vrot.slane %v441, 4
      %v444 = vshll.u32 %v157, 16
      %v446 = vrot.slane %v444, 5
      %v447 = vsel %vm217, %v442, %v446
      %v448 = vshrl.u32 %v157, 16
      %v450 = vrot.slane %v448, 4
      %v451 = vor.u32 %v450, %v446
      %v452 = vrot.slane %v451, 4
      %v454 = vshll.u32 %v158, 16
      %v456 = vrot.slane %v454, 5
      %v457 = vsel %vm217, %v452, %v456
      %v459 = vshrl.u32 %v159, 16
      %v461 = vrot.slane %v459, 4
      %v462 = vshll.u32 %v159, 16
      %v464 = vrot.slane %v462, 5
      %v465 = vor.u32 %v461, %v464
      %v466 = vrot.slane %v465, 4
      %v468 = vshll.u32 %v160, 16
      %v470 = vrot.slane %v468, 5
      %v471 = vsel %vm217, %v466, %v470
      %v472 = vshrl.u32 %v160, 16
      %v474 = vrot.slane %v472, 4
      %v475 = vor.u32 %v474, %v470
      %v476 = vrot.slane %v475, 4
      %v478 = vshll.u32 %v161, 16
      %v480 = vrot.slane %v478, 5
      %v481 = vsel %vm217, %v476, %v480
      %v483 = vshrl.u32 %v162, 16
      %v485 = vrot.slane %v483, 4
      %v486 = vshll.u32 %v162, 16
      %v488 = vrot.slane %v486, 5
      %v489 = vor.u32 %v485, %v488
      %v490 = vrot.slane %v489, 4
      %v492 = vshll.u32 %v163, 16
      %v494 = vrot.slane %v492, 5
      %v495 = vsel %vm217, %v490, %v494
      %v496 = vshrl.u32 %v163, 16
      %v498 = vrot.slane %v496, 4
      %v499 = vor.u32 %v498, %v494
      %v500 = vrot.slane %v499, 4
      %v502 = vshll.u32 %v164, 16
      %v504 = vrot.slane %v502, 5
      %v505 = vsel %vm217, %v500, %v504
      %v507 = vshrl.u32 %v165, 16
      %v509 = vrot.slane %v507, 4
      %v510 = vshll.u32 %v165, 16
      %v512 = vrot.slane %v510, 5
      %v513 = vor.u32 %v509, %v512
      %v514 = vrot.slane %v513, 4
      %v516 = vshll.u32 %v166, 16
      %v518 = vrot.slane %v516, 5
      %v519 = vsel %vm217, %v514, %v518
      %v520 = vshrl.u32 %v166, 16
      %v522 = vrot.slane %v520, 4
      %v523 = vor.u32 %v522, %v518
      %v524 = vrot.slane %v523, 4
      %v526 = vshll.u32 %v167, 16
      %v528 = vrot.slane %v526, 5
      %v529 = vsel %vm217, %v524, %v528
      %v531 = vshrl.u32 %v168, 16
      %v533 = vrot.slane %v531, 4
      %v534 = vshll.u32 %v168, 16
      %v536 = vrot.slane %v534, 5
      %v537 = vor.u32 %v533, %v536
      %v538 = vrot.slane %v537, 4
      %v540 = vshll.u32 %v169, 16
      %v542 = vrot.slane %v540, 5
      %v543 = vsel %vm217, %v538, %v542
      %v544 = vshrl.u32 %v169, 16
      %v546 = vrot.slane %v544, 4
      %v547 = vor.u32 %v546, %v542
      %v548 = vrot.slane %v547, 4
      %v550 = vshll.u32 %v170, 16
      %v552 = vrot.slane %v550, 5
      %v553 = vsel %vm217, %v548, %v552
      %v555 = vshrl.u32 %v171, 16
      %v557 = vrot.slane %v555, 4
      %v558 = vshll.u32 %v171, 16
      %v560 = vrot.slane %v558, 5
      %v561 = vor.u32 %v557, %v560
      %v562 = vrot.slane %v561, 4
      %v564 = vshll.u32 %v172, 16
      %v566 = vrot.slane %v564, 5
      %v567 = vsel %vm217, %v562, %v566
      %v568 = vshrl.u32 %v172, 16
      %v570 = vrot.slane %v568, 4
      %v571 = vor.u32 %v570, %v566
      %v572 = vrot.slane %v571, 4
      %v574 = vshll.u32 %v173, 16
      %v576 = vrot.slane %v574, 5
      %v577 = vsel %vm217, %v572, %v576
      %v579 = vshrl.u32 %v174, 16
      %v581 = vrot.slane %v579, 4
      %v582 = vshll.u32 %v174, 16
      %v584 = vrot.slane %v582, 5
      %v585 = vor.u32 %v581, %v584
      %v586 = vrot.slane %v585, 4
      %v588 = vshll.u32 %v175, 16
      %v590 = vrot.slane %v588, 5
      %v591 = vsel %vm217, %v586, %v590
      %v592 = vshrl.u32 %v175, 16
      %v594 = vrot.slane %v592, 4
      %v595 = vor.u32 %v594, %v590
      %v596 = vrot.slane %v595, 4
      %v598 = vshll.u32 %v176, 16
      %v600 = vrot.slane %v598, 5
      %v601 = vsel %vm217, %v596, %v600
      %634 = vst [vmem:[#allocation2 + $0x4] sm:$0xf] %v231
      %635 = vst [vmem:[#allocation2 + $0x28] sm:$0xf] %v241
      %636 = vst [vmem:[#allocation2 + $0x4c] sm:$0xf] %v255
      %637 = vst [vmem:[#allocation2 + $0x70] sm:$0xf] %v265
      %638 = vst [vmem:[#allocation2 + $0x94] sm:$0xf] %v279
      %639 = vst [vmem:[#allocation2 + $0xb8] sm:$0xf] %v289
      %640 = vst [vmem:[#allocation2 + $0xdc] sm:$0xf] %v303
      %641 = vst [vmem:[#allocation2 + $0x100] sm:$0xf] %v313
      %642 = vst [vmem:[#allocation2 + $0x124] sm:$0xf] %v327
      %643 = vst [vmem:[#allocation2 + $0x148] sm:$0xf] %v337
      %644 = vst [vmem:[#allocation2 + $0x16c] sm:$0xf] %v351
      %645 = vst [vmem:[#allocation2 + $0x190] sm:$0xf] %v361
      %646 = vst [vmem:[#allocation2 + $0x1b4] sm:$0xf] %v375
      %647 = vst [vmem:[#allocation2 + $0x1d8] sm:$0xf] %v385
      %648 = vst [vmem:[#allocation2 + $0x1fc] sm:$0xf] %v399
      %649 = vst [vmem:[#allocation2 + $0x220] sm:$0xf] %v409
      %650 = vst [vmem:[#allocation2 + $0x244] sm:$0xf] %v423
      %651 = vst [vmem:[#allocation2 + $0x268] sm:$0xf] %v433
      %652 = vst [vmem:[#allocation2 + $0x28c] sm:$0xf] %v447
      %653 = vst [vmem:[#allocation2 + $0x2b0] sm:$0xf] %v457
      %654 = vst [vmem:[#allocation2 + $0x2d4] sm:$0xf] %v471
      %655 = vst [vmem:[#allocation2 + $0x2f8] sm:$0xf] %v481
      %656 = vst [vmem:[#allocation2 + $0x31c] sm:$0xf] %v495
      %657 = vst [vmem:[#allocation2 + $0x340] sm:$0xf] %v505
      %658 = vst [vmem:[#allocation2 + $0x364] sm:$0xf] %v519
      %659 = vst [vmem:[#allocation2 + $0x388] sm:$0xf] %v529
      %660 = vst [vmem:[#allocation2 + $0x3ac] sm:$0xf] %v543
      %661 = vst [vmem:[#allocation2 + $0x3d0] sm:$0xf] %v553
      %662 = vst [vmem:[#allocation2 + $0x3f4] sm:$0xf] %v567
      %663 = vst [vmem:[#allocation2 + $0x418] sm:$0xf] %v577
      %664 = vst [vmem:[#allocation2 + $0x43c] sm:$0xf] %v591
      %665 = vst [vmem:[#allocation2 + $0x460] sm:$0xf] %v601
      %vm714 = vcmask 1042432
      %vm715 = vcmask 1046532
      %vm716 = vmor %vm714, %vm715
      %v717 = vrot.slane %v129, 5
      %v718 = vrot.slane %v717, 4
      %v719 = vrot.slane %v130, 5
      %v720 = vsel %vm716, %v718, %v719
      %v721 = vrot.slane %v719, 4
      %v722 = vrot.slane %v131, 5
      %v723 = vsel %vm716, %v721, %v722
      %v724 = vrot.slane %v132, 5
      %v725 = vrot.slane %v724, 4
      %v726 = vrot.slane %v133, 5
      %v727 = vsel %vm716, %v725, %v726
      %v728 = vrot.slane %v726, 4
      %v729 = vrot.slane %v134, 5
      %v730 = vsel %vm716, %v728, %v729
      %v731 = vrot.slane %v135, 5
      %v732 = vrot.slane %v731, 4
      %v733 = vrot.slane %v136, 5
      %v734 = vsel %vm716, %v732, %v733
      %v735 = vrot.slane %v733, 4
      %v736 = vrot.slane %v137, 5
      %v737 = vsel %vm716, %v735, %v736
      %v738 = vrot.slane %v138, 5
      %v739 = vrot.slane %v738, 4
      %v740 = vrot.slane %v139, 5
      %v741 = vsel %vm716, %v739, %v740
      %v742 = vrot.slane %v740, 4
      %v743 = vrot.slane %v140, 5
      %v744 = vsel %vm716, %v742, %v743
      %v745 = vrot.slane %v141, 5
      %v746 = vrot.slane %v745, 4
      %v747 = vrot.slane %v142, 5
      %v748 = vsel %vm716, %v746, %v747
      %v749 = vrot.slane %v747, 4
      %v750 = vrot.slane %v143, 5
      %v751 = vsel %vm716, %v749, %v750
      %v752 = vrot.slane %v144, 5
      %v753 = vrot.slane %v752, 4
      %v754 = vrot.slane %v145, 5
      %v755 = vsel %vm716, %v753, %v754
      %v756 = vrot.slane %v754, 4
      %v757 = vrot.slane %v146, 5
      %v758 = vsel %vm716, %v756, %v757
      %v759 = vrot.slane %v147, 5
      %v760 = vrot.slane %v759, 4
      %v761 = vrot.slane %v148, 5
      %v762 = vsel %vm716, %v760, %v761
      %v763 = vrot.slane %v761, 4
      %v764 = vrot.slane %v149, 5
      %v765 = vsel %vm716, %v763, %v764
      %v766 = vrot.slane %v150, 5
      %v767 = vrot.slane %v766, 4
      %v768 = vrot.slane %v151, 5
      %v769 = vsel %vm716, %v767, %v768
      %v770 = vrot.slane %v768, 4
      %v771 = vrot.slane %v152, 5
      %v772 = vsel %vm716, %v770, %v771
      %v773 = vrot.slane %v153, 5
      %v774 = vrot.slane %v773, 4
      %v775 = vrot.slane %v154, 5
      %v776 = vsel %vm716, %v774, %v775
      %v777 = vrot.slane %v775, 4
      %v778 = vrot.slane %v155, 5
      %v779 = vsel %vm716, %v777, %v778
      %v780 = vrot.slane %v156, 5
      %v781 = vrot.slane %v780, 4
      %v782 = vrot.slane %v157, 5
      %v783 = vsel %vm716, %v781, %v782
      %v784 = vrot.slane %v782, 4
      %v785 = vrot.slane %v158, 5
      %v786 = vsel %vm716, %v784, %v785
      %v787 = vrot.slane %v159, 5
      %v788 = vrot.slane %v787, 4
      %v789 = vrot.slane %v160, 5
      %v790 = vsel %vm716, %v788, %v789
      %v791 = vrot.slane %v789, 4
      %v792 = vrot.slane %v161, 5
      %v793 = vsel %vm716, %v791, %v792
      %v794 = vrot.slane %v162, 5
      %v795 = vrot.slane %v794, 4
      %v796 = vrot.slane %v163, 5
      %v797 = vsel %vm716, %v795, %v796
      %v798 = vrot.slane %v796, 4
      %v799 = vrot.slane %v164, 5
      %v800 = vsel %vm716, %v798, %v799
      %v801 = vrot.slane %v165, 5
      %v802 = vrot.slane %v801, 4
      %v803 = vrot.slane %v166, 5
      %v804 = vsel %vm716, %v802, %v803
      %v805 = vrot.slane %v803, 4
      %v806 = vrot.slane %v167, 5
      %v807 = vsel %vm716, %v805, %v806
      %v808 = vrot.slane %v168, 5
      %v809 = vrot.slane %v808, 4
      %v810 = vrot.slane %v169, 5
      %v811 = vsel %vm716, %v809, %v810
      %v812 = vrot.slane %v810, 4
      %v813 = vrot.slane %v170, 5
      %v814 = vsel %vm716, %v812, %v813
      %v815 = vrot.slane %v171, 5
      %v816 = vrot.slane %v815, 4
      %v817 = vrot.slane %v172, 5
      %v818 = vsel %vm716, %v816, %v817
      %v819 = vrot.slane %v817, 4
      %v820 = vrot.slane %v173, 5
      %v821 = vsel %vm716, %v819, %v820
      %v822 = vrot.slane %v174, 5
      %v823 = vrot.slane %v822, 4
      %v824 = vrot.slane %v175, 5
      %v825 = vsel %vm716, %v823, %v824
      %v826 = vrot.slane %v824, 4
      %v827 = vrot.slane %v176, 5
      %v828 = vsel %vm716, %v826, %v827
      %861 = vst [vmem:[#allocation2 + $0x8] sm:$0xf] %v720
      %862 = vst [vmem:[#allocation2 + $0x2c] sm:$0xf] %v723
      %863 = vst [vmem:[#allocation2 + $0x50] sm:$0xf] %v727
      %864 = vst [vmem:[#allocation2 + $0x74] sm:$0xf] %v730
      %865 = vst [vmem:[#allocation2 + $0x98] sm:$0xf] %v734
      %866 = vst [vmem:[#allocation2 + $0xbc] sm:$0xf] %v737
      %867 = vst [vmem:[#allocation2 + $0xe0] sm:$0xf] %v741
      %868 = vst [vmem:[#allocation2 + $0x104] sm:$0xf] %v744
      %869 = vst [vmem:[#allocation2 + $0x128] sm:$0xf] %v748
      %870 = vst [vmem:[#allocation2 + $0x14c] sm:$0xf] %v751
      %871 = vst [vmem:[#allocation2 + $0x170] sm:$0xf] %v755
      %872 = vst [vmem:[#allocation2 + $0x194] sm:$0xf] %v758
      %873 = vst [vmem:[#allocation2 + $0x1b8] sm:$0xf] %v762
      %874 = vst [vmem:[#allocation2 + $0x1dc] sm:$0xf] %v765
      %875 = vst [vmem:[#allocation2 + $0x200] sm:$0xf] %v769
      %876 = vst [vmem:[#allocation2 + $0x224] sm:$0xf] %v772
      %877 = vst [vmem:[#allocation2 + $0x248] sm:$0xf] %v776
      %878 = vst [vmem:[#allocation2 + $0x26c] sm:$0xf] %v779
      %879 = vst [vmem:[#allocation2 + $0x290] sm:$0xf] %v783
      %880 = vst [vmem:[#allocation2 + $0x2b4] sm:$0xf] %v786
      %881 = vst [vmem:[#allocation2 + $0x2d8] sm:$0xf] %v790
      %882 = vst [vmem:[#allocation2 + $0x2fc] sm:$0xf] %v793
      %883 = vst [vmem:[#allocation2 + $0x320] sm:$0xf] %v797
      %884 = vst [vmem:[#allocation2 + $0x344] sm:$0xf] %v800
      %885 = vst [vmem:[#allocation2 + $0x368] sm:$0xf] %v804
      %886 = vst [vmem:[#allocation2 + $0x38c] sm:$0xf] %v807
      %887 = vst [vmem:[#allocation2 + $0x3b0] sm:$0xf] %v811
      %888 = vst [vmem:[#allocation2 + $0x3d4] sm:$0xf] %v814
      %889 = vst [vmem:[#allocation2 + $0x3f8] sm:$0xf] %v818
      %890 = vst [vmem:[#allocation2 + $0x41c] sm:$0xf] %v821
      %891 = vst [vmem:[#allocation2 + $0x440] sm:$0xf] %v825
      %892 = vst [vmem:[#allocation2 + $0x464] sm:$0xf] %v828
      %893 = vst [vmem:[#allocation2 + $0xc] sm:$0xf] %v132
      %894 = vst [vmem:[#allocation2 + $0x30] sm:$0xf] %v133
      %895 = vst [vmem:[#allocation2 + $0x54] sm:$0xf] %v135
      %896 = vst [vmem:[#allocation2 + $0x78] sm:$0xf] %v136
      %897 = vst [vmem:[#allocation2 + $0x9c] sm:$0xf] %v138
      %898 = vst [vmem:[#allocation2 + $0xc0] sm:$0xf] %v139
      %899 = vst [vmem:[#allocation2 + $0xe4] sm:$0xf] %v141
      %900 = vst [vmem:[#allocation2 + $0x108] sm:$0xf] %v142
      %901 = vst [vmem:[#allocation2 + $0x12c] sm:$0xf] %v144
      %902 = vst [vmem:[#allocation2 + $0x150] sm:$0xf] %v145
      %903 = vst [vmem:[#allocation2 + $0x174] sm:$0xf] %v147
      %904 = vst [vmem:[#allocation2 + $0x198] sm:$0xf] %v148
      %905 = vst [vmem:[#allocation2 + $0x1bc] sm:$0xf] %v150
      %906 = vst [vmem:[#allocation2 + $0x1e0] sm:$0xf] %v151
      %907 = vst [vmem:[#allocation2 + $0x204] sm:$0xf] %v153
      %908 = vst [vmem:[#allocation2 + $0x228] sm:$0xf] %v154
      %909 = vst [vmem:[#allocation2 + $0x24c] sm:$0xf] %v156
      %910 = vst [vmem:[#allocation2 + $0x270] sm:$0xf] %v157
      %911 = vst [vmem:[#allocation2 + $0x294] sm:$0xf] %v159
      %912 = vst [vmem:[#allocation2 + $0x2b8] sm:$0xf] %v160
      %913 = vst [vmem:[#allocation2 + $0x2dc] sm:$0xf] %v162
      %914 = vst [vmem:[#allocation2 + $0x300] sm:$0xf] %v163
      %915 = vst [vmem:[#allocation2 + $0x324] sm:$0xf] %v165
      %916 = vst [vmem:[#allocation2 + $0x348] sm:$0xf] %v166
      %917 = vst [vmem:[#allocation2 + $0x36c] sm:$0xf] %v168
      %918 = vst [vmem:[#allocation2 + $0x390] sm:$0xf] %v169
      %919 = vst [vmem:[#allocation2 + $0x3b4] sm:$0xf] %v171
      %920 = vst [vmem:[#allocation2 + $0x3d8] sm:$0xf] %v172
      %921 = vst [vmem:[#allocation2 + $0x3fc] sm:$0xf] %v174
      %922 = vst [vmem:[#allocation2 + $0x420] sm:$0xf] %v175
      %923 = vst [vmem:[#allocation2 + $0x444] sm:$0xf] %v177
      %924 = vst [vmem:[#allocation2 + $0x468] sm:$0xf] %v178
      %v926 = vshrl.u32 %v177, 16
      %v928 = vrot.slane %v926, 4
      %v929 = vshll.u32 %v177, 16
      %v931 = vrot.slane %v929, 5
      %v932 = vor.u32 %v928, %v931
      %v933 = vrot.slane %v932, 4
      %v935 = vshll.u32 %v178, 16
      %v937 = vrot.slane %v935, 5
      %v938 = vsel %vm217, %v933, %v937
      %v939 = vshrl.u32 %v178, 16
      %v941 = vrot.slane %v939, 4
      %v942 = vor.u32 %v941, %v937
      %v943 = vrot.slane %v942, 4
      %v945 = vshll.u32 %v179, 16
      %v947 = vrot.slane %v945, 5
      %v948 = vsel %vm217, %v943, %v947
      %951 = vst [vmem:[#allocation2 + $0x10] sm:$0xf] %v255
      %952 = vst [vmem:[#allocation2 + $0x34] sm:$0xf] %v265
      %953 = vst [vmem:[#allocation2 + $0x58] sm:$0xf] %v279
      %954 = vst [vmem:[#allocation2 + $0x7c] sm:$0xf] %v289
      %955 = vst [vmem:[#allocation2 + $0xa0] sm:$0xf] %v303
      %956 = vst [vmem:[#allocation2 + $0xc4] sm:$0xf] %v313
      %957 = vst [vmem:[#allocation2 + $0xe8] sm:$0xf] %v327
      %958 = vst [vmem:[#allocation2 + $0x10c] sm:$0xf] %v337
      %959 = vst [vmem:[#allocation2 + $0x130] sm:$0xf] %v351
      %960 = vst [vmem:[#allocation2 + $0x154] sm:$0xf] %v361
      %961 = vst [vmem:[#allocation2 + $0x178] sm:$0xf] %v375
      %962 = vst [vmem:[#allocation2 + $0x19c] sm:$0xf] %v385
      %963 = vst [vmem:[#allocation2 + $0x1c0] sm:$0xf] %v399
      %964 = vst [vmem:[#allocation2 + $0x1e4] sm:$0xf] %v409
      %965 = vst [vmem:[#allocation2 + $0x208] sm:$0xf] %v423
      %966 = vst [vmem:[#allocation2 + $0x22c] sm:$0xf] %v433
      %967 = vst [vmem:[#allocation2 + $0x250] sm:$0xf] %v447
      %968 = vst [vmem:[#allocation2 + $0x274] sm:$0xf] %v457
      %969 = vst [vmem:[#allocation2 + $0x298] sm:$0xf] %v471
      %970 = vst [vmem:[#allocation2 + $0x2bc] sm:$0xf] %v481
      %971 = vst [vmem:[#allocation2 + $0x2e0] sm:$0xf] %v495
      %972 = vst [vmem:[#allocation2 + $0x304] sm:$0xf] %v505
      %973 = vst [vmem:[#allocation2 + $0x328] sm:$0xf] %v519
      %974 = vst [vmem:[#allocation2 + $0x34c] sm:$0xf] %v529
      %975 = vst [vmem:[#allocation2 + $0x370] sm:$0xf] %v543
      %976 = vst [vmem:[#allocation2 + $0x394] sm:$0xf] %v553
      %977 = vst [vmem:[#allocation2 + $0x3b8] sm:$0xf] %v567
      %978 = vst [vmem:[#allocation2 + $0x3dc] sm:$0xf] %v577
      %979 = vst [vmem:[#allocation2 + $0x400] sm:$0xf] %v591
      %980 = vst [vmem:[#allocation2 + $0x424] sm:$0xf] %v601
      %981 = vst [vmem:[#allocation2 + $0x448] sm:$0xf] %v938
      %982 = vst [vmem:[#allocation2 + $0x46c] sm:$0xf] %v948
      %v986 = vrot.slane %v177, 5
      %v987 = vrot.slane %v986, 4
      %v988 = vrot.slane %v178, 5
      %v989 = vsel %vm716, %v987, %v988
      %v990 = vrot.slane %v988, 4
      %v991 = vrot.slane %v179, 5
      %v992 = vsel %vm716, %v990, %v991
      %995 = vst [vmem:[#allocation2 + $0x14] sm:$0xf] %v727
      %996 = vst [vmem:[#allocation2 + $0x38] sm:$0xf] %v730
      %997 = vst [vmem:[#allocation2 + $0x5c] sm:$0xf] %v734
      %998 = vst [vmem:[#allocation2 + $0x80] sm:$0xf] %v737
      %999 = vst [vmem:[#allocation2 + $0xa4] sm:$0xf] %v741
      %1000 = vst [vmem:[#allocation2 + $0xc8] sm:$0xf] %v744
      %1001 = vst [vmem:[#allocation2 + $0xec] sm:$0xf] %v748
      %1002 = vst [vmem:[#allocation2 + $0x110] sm:$0xf] %v751
      %1003 = vst [vmem:[#allocation2 + $0x134] sm:$0xf] %v755
      %1004 = vst [vmem:[#allocation2 + $0x158] sm:$0xf] %v758
      %1005 = vst [vmem:[#allocation2 + $0x17c] sm:$0xf] %v762
      %1006 = vst [vmem:[#allocation2 + $0x1a0] sm:$0xf] %v765
      %1007 = vst [vmem:[#allocation2 + $0x1c4] sm:$0xf] %v769
      %1008 = vst [vmem:[#allocation2 + $0x1e8] sm:$0xf] %v772
      %1009 = vst [vmem:[#allocation2 + $0x20c] sm:$0xf] %v776
      %1010 = vst [vmem:[#allocation2 + $0x230] sm:$0xf] %v779
      %1011 = vst [vmem:[#allocation2 + $0x254] sm:$0xf] %v783
      %1012 = vst [vmem:[#allocation2 + $0x278] sm:$0xf] %v786
      %1013 = vst [vmem:[#allocation2 + $0x29c] sm:$0xf] %v790
      %1014 = vst [vmem:[#allocation2 + $0x2c0] sm:$0xf] %v793
      %1015 = vst [vmem:[#allocation2 + $0x2e4] sm:$0xf] %v797
      %1016 = vst [vmem:[#allocation2 + $0x308] sm:$0xf] %v800
      %1017 = vst [vmem:[#allocation2 + $0x32c] sm:$0xf] %v804
      %1018 = vst [vmem:[#allocation2 + $0x350] sm:$0xf] %v807
      %1019 = vst [vmem:[#allocation2 + $0x374] sm:$0xf] %v811
      %1020 = vst [vmem:[#allocation2 + $0x398] sm:$0xf] %v814
      %1021 = vst [vmem:[#allocation2 + $0x3bc] sm:$0xf] %v818
      %1022 = vst [vmem:[#allocation2 + $0x3e0] sm:$0xf] %v821
      %1023 = vst [vmem:[#allocation2 + $0x404] sm:$0xf] %v825
      %1024 = vst [vmem:[#allocation2 + $0x428] sm:$0xf] %v828
      %1025 = vst [vmem:[#allocation2 + $0x44c] sm:$0xf] %v989
      %1026 = vst [vmem:[#allocation2 + $0x470] sm:$0xf] %v992
      %1027 = vst [vmem:[#allocation2 + $0x18] sm:$0xf] %v135
      %1028 = vst [vmem:[#allocation2 + $0x3c] sm:$0xf] %v136
      %1029 = vst [vmem:[#allocation2 + $0x60] sm:$0xf] %v138
      %1030 = vst [vmem:[#allocation2 + $0x84] sm:$0xf] %v139
      %1031 = vst [vmem:[#allocation2 + $0xa8] sm:$0xf] %v141
      %1032 = vst [vmem:[#allocation2 + $0xcc] sm:$0xf] %v142
      %1033 = vst [vmem:[#allocation2 + $0xf0] sm:$0xf] %v144
      %1034 = vst [vmem:[#allocation2 + $0x114] sm:$0xf] %v145
      %1035 = vst [vmem:[#allocation2 + $0x138] sm:$0xf] %v147
      %1036 = vst [vmem:[#allocation2 + $0x15c] sm:$0xf] %v148
      %1037 = vst [vmem:[#allocation2 + $0x180] sm:$0xf] %v150
      %1038 = vst [vmem:[#allocation2 + $0x1a4] sm:$0xf] %v151
      %1039 = vst [vmem:[#allocation2 + $0x1c8] sm:$0xf] %v153
      %1040 = vst [vmem:[#allocation2 + $0x1ec] sm:$0xf] %v154
      %1041 = vst [vmem:[#allocation2 + $0x210] sm:$0xf] %v156
      %1042 = vst [vmem:[#allocation2 + $0x234] sm:$0xf] %v157
      %1043 = vst [vmem:[#allocation2 + $0x258] sm:$0xf] %v159
      %1044 = vst [vmem:[#allocation2 + $0x27c] sm:$0xf] %v160
      %1045 = vst [vmem:[#allocation2 + $0x2a0] sm:$0xf] %v162
      %1046 = vst [vmem:[#allocation2 + $0x2c4] sm:$0xf] %v163
      %1047 = vst [vmem:[#allocation2 + $0x2e8] sm:$0xf] %v165
      %1048 = vst [vmem:[#allocation2 + $0x30c] sm:$0xf] %v166
      %1049 = vst [vmem:[#allocation2 + $0x330] sm:$0xf] %v168
      %1050 = vst [vmem:[#allocation2 + $0x354] sm:$0xf] %v169
      %1051 = vst [vmem:[#allocation2 + $0x378] sm:$0xf] %v171
      %1052 = vst [vmem:[#allocation2 + $0x39c] sm:$0xf] %v172
      %1053 = vst [vmem:[#allocation2 + $0x3c0] sm:$0xf] %v174
      %1054 = vst [vmem:[#allocation2 + $0x3e4] sm:$0xf] %v175
      %1055 = vst [vmem:[#allocation2 + $0x408] sm:$0xf] %v177
      %1056 = vst [vmem:[#allocation2 + $0x42c] sm:$0xf] %v178
      %1057 = vst [vmem:[#allocation2 + $0x450] sm:$0xf] %v180
      %1058 = vst [vmem:[#allocation2 + $0x474] sm:$0xf] %v181
      %v1060 = vshrl.u32 %v180, 16
      %v1062 = vrot.slane %v1060, 4
      %v1063 = vshll.u32 %v180, 16
      %v1065 = vrot.slane %v1063, 5
      %v1066 = vor.u32 %v1062, %v1065
      %v1067 = vrot.slane %v1066, 4
      %v1069 = vshll.u32 %v181, 16
      %v1071 = vrot.slane %v1069, 5
      %v1072 = vsel %vm217, %v1067, %v1071
      %v1073 = vshrl.u32 %v181, 16
      %v1075 = vrot.slane %v1073, 4
      %v1076 = vor.u32 %v1075, %v1071
      %v1077 = vrot.slane %v1076, 4
      %v1079 = vshll.u32 %v182, 16
      %v1081 = vrot.slane %v1079, 5
      %v1082 = vsel %vm217, %v1077, %v1081
      %1085 = vst [vmem:[#allocation2 + $0x1c] sm:$0xf] %v279
      %1086 = vst [vmem:[#allocation2 + $0x40] sm:$0xf] %v289
      %1087 = vst [vmem:[#allocation2 + $0x64] sm:$0xf] %v303
      %1088 = vst [vmem:[#allocation2 + $0x88] sm:$0xf] %v313
      %1089 = vst [vmem:[#allocation2 + $0xac] sm:$0xf] %v327
      %1090 = vst [vmem:[#allocation2 + $0xd0] sm:$0xf] %v337
      %1091 = vst [vmem:[#allocation2 + $0xf4] sm:$0xf] %v351
      %1092 = vst [vmem:[#allocation2 + $0x118] sm:$0xf] %v361
      %1093 = vst [vmem:[#allocation2 + $0x13c] sm:$0xf] %v375
      %1094 = vst [vmem:[#allocation2 + $0x160] sm:$0xf] %v385
      %1095 = vst [vmem:[#allocation2 + $0x184] sm:$0xf] %v399
      %1096 = vst [vmem:[#allocation2 + $0x1a8] sm:$0xf] %v409
      %1097 = vst [vmem:[#allocation2 + $0x1cc] sm:$0xf] %v423
      %1098 = vst [vmem:[#allocation2 + $0x1f0] sm:$0xf] %v433
      %1099 = vst [vmem:[#allocation2 + $0x214] sm:$0xf] %v447
      %1100 = vst [vmem:[#allocation2 + $0x238] sm:$0xf] %v457
      %1101 = vst [vmem:[#allocation2 + $0x25c] sm:$0xf] %v471
      %1102 = vst [vmem:[#allocation2 + $0x280] sm:$0xf] %v481
      %1103 = vst [vmem:[#allocation2 + $0x2a4] sm:$0xf] %v495
      %1104 = vst [vmem:[#allocation2 + $0x2c8] sm:$0xf] %v505
      %1105 = vst [vmem:[#allocation2 + $0x2ec] sm:$0xf] %v519
      %1106 = vst [vmem:[#allocation2 + $0x310] sm:$0xf] %v529
      %1107 = vst [vmem:[#allocation2 + $0x334] sm:$0xf] %v543
      %1108 = vst [vmem:[#allocation2 + $0x358] sm:$0xf] %v553
      %1109 = vst [vmem:[#allocation2 + $0x37c] sm:$0xf] %v567
      %1110 = vst [vmem:[#allocation2 + $0x3a0] sm:$0xf] %v577
      %1111 = vst [vmem:[#allocation2 + $0x3c4] sm:$0xf] %v591
      %1112 = vst [vmem:[#allocation2 + $0x3e8] sm:$0xf] %v601
      %1113 = vst [vmem:[#allocation2 + $0x40c] sm:$0xf] %v938
      %1114 = vst [vmem:[#allocation2 + $0x430] sm:$0xf] %v948
      %1115 = vst [vmem:[#allocation2 + $0x454] sm:$0xf] %v1072
      %1116 = vst [vmem:[#allocation2 + $0x478] sm:$0xf] %v1082
      %v1120 = vrot.slane %v180, 5
      %v1121 = vrot.slane %v1120, 4
      %v1122 = vrot.slane %v181, 5
      %v1123 = vsel %vm716, %v1121, %v1122
      %v1124 = vrot.slane %v1122, 4
      %v1125 = vrot.slane %v182, 5
      %v1126 = vsel %vm716, %v1124, %v1125
      %1129 = vst [vmem:[#allocation2 + $0x20] sm:$0xf] %v734
      %1130 = vst [vmem:[#allocation2 + $0x44] sm:$0xf] %v737
      %1131 = vst [vmem:[#allocation2 + $0x68] sm:$0xf] %v741
      %1132 = vst [vmem:[#allocation2 + $0x8c] sm:$0xf] %v744
      %1133 = vst [vmem:[#allocation2 + $0xb0] sm:$0xf] %v748
      %1134 = vst [vmem:[#allocation2 + $0xd4] sm:$0xf] %v751
      %1135 = vst [vmem:[#allocation2 + $0xf8] sm:$0xf] %v755
      %1136 = vst [vmem:[#allocation2 + $0x11c] sm:$0xf] %v758
      %1137 = vst [vmem:[#allocation2 + $0x140] sm:$0xf] %v762
      %1138 = vst [vmem:[#allocation2 + $0x164] sm:$0xf] %v765
      %1139 = vst [vmem:[#allocation2 + $0x188] sm:$0xf] %v769
      %1140 = vst [vmem:[#allocation2 + $0x1ac] sm:$0xf] %v772
      %1141 = vst [vmem:[#allocation2 + $0x1d0] sm:$0xf] %v776
      %1142 = vst [vmem:[#allocation2 + $0x1f4] sm:$0xf] %v779
      %1143 = vst [vmem:[#allocation2 + $0x218] sm:$0xf] %v783
      %1144 = vst [vmem:[#allocation2 + $0x23c] sm:$0xf] %v786
      %1145 = vst [vmem:[#allocation2 + $0x260] sm:$0xf] %v790
      %1146 = vst [vmem:[#allocation2 + $0x284] sm:$0xf] %v793
      %1147 = vst [vmem:[#allocation2 + $0x2a8] sm:$0xf] %v797
      %1148 = vst [vmem:[#allocation2 + $0x2cc] sm:$0xf] %v800
      %1149 = vst [vmem:[#allocation2 + $0x2f0] sm:$0xf] %v804
      %1150 = vst [vmem:[#allocation2 + $0x314] sm:$0xf] %v807
      %1151 = vst [vmem:[#allocation2 + $0x338] sm:$0xf] %v811
      %1152 = vst [vmem:[#allocation2 + $0x35c] sm:$0xf] %v814
      %1153 = vst [vmem:[#allocation2 + $0x380] sm:$0xf] %v818
      %1154 = vst [vmem:[#allocation2 + $0x3a4] sm:$0xf] %v821
      %1155 = vst [vmem:[#allocation2 + $0x3c8] sm:$0xf] %v825
      %1156 = vst [vmem:[#allocation2 + $0x3ec] sm:$0xf] %v828
      %1157 = vst [vmem:[#allocation2 + $0x410] sm:$0xf] %v989
      %1158 = vst [vmem:[#allocation2 + $0x434] sm:$0xf] %v992
      %1159 = vst [vmem:[#allocation2 + $0x458] sm:$0xf] %v1123
      %1160 = vst [vmem:[#allocation2 + $0x47c] sm:$0xf] %v1126
      %v1161 = vld [vmem:[#allocation2] sm:$0xff]
      %v1162 = vld [vmem:[#allocation2 + $0x8] sm:$0xff]
      %v1163 = vld [vmem:[#allocation2 + $0x10] sm:$0xff]
      %v1164 = vld [vmem:[#allocation2 + $0x18] sm:$0xff]
      %v1165 = vld [vmem:[#allocation2 + $0x20] sm:$0xf]
      %v1166 = vld [vmem:[#allocation2 + $0x24] sm:$0xff]
      %v1167 = vld [vmem:[#allocation2 + $0x2c] sm:$0xff]
      %v1168 = vld [vmem:[#allocation2 + $0x34] sm:$0xff]
      %v1169 = vld [vmem:[#allocation2 + $0x3c] sm:$0xff]
      %v1170 = vld [vmem:[#allocation2 + $0x44] sm:$0xf]
      %v1171 = vld [vmem:[#allocation2 + $0x48] sm:$0xff]
      %v1172 = vld [vmem:[#allocation2 + $0x50] sm:$0xff]
      %v1173 = vld [vmem:[#allocation2 + $0x58] sm:$0xff]
      %v1174 = vld [vmem:[#allocation2 + $0x60] sm:$0xff]
      %v1175 = vld [vmem:[#allocation2 + $0x68] sm:$0xf]
      %v1176 = vld [vmem:[#allocation2 + $0x6c] sm:$0xff]
      %v1177 = vld [vmem:[#allocation2 + $0x74] sm:$0xff]
      %v1178 = vld [vmem:[#allocation2 + $0x7c] sm:$0xff]
      %v1179 = vld [vmem:[#allocation2 + $0x84] sm:$0xff]
      %v1180 = vld [vmem:[#allocation2 + $0x8c] sm:$0xf]
      %v1181 = vld [vmem:[#allocation2 + $0x90] sm:$0xff]
      %v1182 = vld [vmem:[#allocation2 + $0x98] sm:$0xff]
      %v1183 = vld [vmem:[#allocation2 + $0xa0] sm:$0xff]
      %v1184 = vld [vmem:[#allocation2 + $0xa8] sm:$0xff]
      %v1185 = vld [vmem:[#allocation2 + $0xb0] sm:$0xf]
      %v1186 = vld [vmem:[#allocation2 + $0xb4] sm:$0xff]
      %v1187 = vld [vmem:[#allocation2 + $0xbc] sm:$0xff]
      %v1188 = vld [vmem:[#allocation2 + $0xc4] sm:$0xff]
      %v1189 = vld [vmem:[#allocation2 + $0xcc] sm:$0xff]
      %v1190 = vld [vmem:[#allocation2 + $0xd4] sm:$0xf]
      %v1191 = vld [vmem:[#allocation2 + $0xd8] sm:$0xff]
      %v1192 = vld [vmem:[#allocation2 + $0xe0] sm:$0xff]
      %v1193 = vld [vmem:[#allocation2 + $0xe8] sm:$0xff]
      %v1194 = vld [vmem:[#allocation2 + $0xf0] sm:$0xff]
      %v1195 = vld [vmem:[#allocation2 + $0xf8] sm:$0xf]
      %v1196 = vld [vmem:[#allocation2 + $0xfc] sm:$0xff]
      %v1197 = vld [vmem:[#allocation2 + $0x104] sm:$0xff]
      %v1198 = vld [vmem:[#allocation2 + $0x10c] sm:$0xff]
      %v1199 = vld [vmem:[#allocation2 + $0x114] sm:$0xff]
      %v1200 = vld [vmem:[#allocation2 + $0x11c] sm:$0xf]
      %v1201 = vld [vmem:[#allocation2 + $0x120] sm:$0xff]
      %v1202 = vld [vmem:[#allocation2 + $0x128] sm:$0xff]
      %v1203 = vld [vmem:[#allocation2 + $0x130] sm:$0xff]
      %v1204 = vld [vmem:[#allocation2 + $0x138] sm:$0xff]
      %v1205 = vld [vmem:[#allocation2 + $0x140] sm:$0xf]
      %v1206 = vld [vmem:[#allocation2 + $0x144] sm:$0xff]
      %v1207 = vld [vmem:[#allocation2 + $0x14c] sm:$0xff]
      %v1208 = vld [vmem:[#allocation2 + $0x154] sm:$0xff]
      %v1209 = vld [vmem:[#allocation2 + $0x15c] sm:$0xff]
      %v1210 = vld [vmem:[#allocation2 + $0x164] sm:$0xf]
      %v1211 = vld [vmem:[#allocation2 + $0x168] sm:$0xff]
      %v1212 = vld [vmem:[#allocation2 + $0x170] sm:$0xff]
      %v1213 = vld [vmem:[#allocation2 + $0x178] sm:$0xff]
      %v1214 = vld [vmem:[#allocation2 + $0x180] sm:$0xff]
      %v1215 = vld [vmem:[#allocation2 + $0x188] sm:$0xf]
      %v1216 = vld [vmem:[#allocation2 + $0x18c] sm:$0xff]
      %v1217 = vld [vmem:[#allocation2 + $0x194] sm:$0xff]
      %v1218 = vld [vmem:[#allocation2 + $0x19c] sm:$0xff]
      %v1219 = vld [vmem:[#allocation2 + $0x1a4] sm:$0xff]
      %v1220 = vld [vmem:[#allocation2 + $0x1ac] sm:$0xf]
      %v1221 = vld [vmem:[#allocation2 + $0x1b0] sm:$0xff]
      %v1222 = vld [vmem:[#allocation2 + $0x1b8] sm:$0xff]
      %v1223 = vld [vmem:[#allocation2 + $0x1c0] sm:$0xff]
      %v1224 = vld [vmem:[#allocation2 + $0x1c8] sm:$0xff]
      %v1225 = vld [vmem:[#allocation2 + $0x1d0] sm:$0xf]
      %v1226 = vld [vmem:[#allocation2 + $0x1d4] sm:$0xff]
      %v1227 = vld [vmem:[#allocation2 + $0x1dc] sm:$0xff]
      %v1228 = vld [vmem:[#allocation2 + $0x1e4] sm:$0xff]
      %v1229 = vld [vmem:[#allocation2 + $0x1ec] sm:$0xff]
      %v1230 = vld [vmem:[#allocation2 + $0x1f4] sm:$0xf]
      %v1231 = vld [vmem:[#allocation2 + $0x1f8] sm:$0xff]
      %v1232 = vld [vmem:[#allocation2 + $0x200] sm:$0xff]
      %v1233 = vld [vmem:[#allocation2 + $0x208] sm:$0xff]
      %v1234 = vld [vmem:[#allocation2 + $0x210] sm:$0xff]
      %v1235 = vld [vmem:[#allocation2 + $0x218] sm:$0xf]
      %v1236 = vld [vmem:[#allocation2 + $0x21c] sm:$0xff]
      %v1237 = vld [vmem:[#allocation2 + $0x224] sm:$0xff]
      %v1238 = vld [vmem:[#allocation2 + $0x22c] sm:$0xff]
      %v1239 = vld [vmem:[#allocation2 + $0x234] sm:$0xff]
      %v1240 = vld [vmem:[#allocation2 + $0x23c] sm:$0xf]
      %v1241 = vld [vmem:[#allocation2 + $0x240] sm:$0xff]
      %v1242 = vld [vmem:[#allocation2 + $0x248] sm:$0xff]
      %v1243 = vld [vmem:[#allocation2 + $0x250] sm:$0xff]
      %v1244 = vld [vmem:[#allocation2 + $0x258] sm:$0xff]
      %v1245 = vld [vmem:[#allocation2 + $0x260] sm:$0xf]
      %v1246 = vld [vmem:[#allocation2 + $0x264] sm:$0xff]
      %v1247 = vld [vmem:[#allocation2 + $0x26c] sm:$0xff]
      %v1248 = vld [vmem:[#allocation2 + $0x274] sm:$0xff]
      %v1249 = vld [vmem:[#allocation2 + $0x27c] sm:$0xff]
      %v1250 = vld [vmem:[#allocation2 + $0x284] sm:$0xf]
      %v1251 = vld [vmem:[#allocation2 + $0x288] sm:$0xff]
      %v1252 = vld [vmem:[#allocation2 + $0x290] sm:$0xff]
      %v1253 = vld [vmem:[#allocation2 + $0x298] sm:$0xff]
      %v1254 = vld [vmem:[#allocation2 + $0x2a0] sm:$0xff]
      %v1255 = vld [vmem:[#allocation2 + $0x2a8] sm:$0xf]
      %v1256 = vld [vmem:[#allocation2 + $0x2ac] sm:$0xff]
      %v1257 = vld [vmem:[#allocation2 + $0x2b4] sm:$0xff]
      %v1258 = vld [vmem:[#allocation2 + $0x2bc] sm:$0xff]
      %v1259 = vld [vmem:[#allocation2 + $0x2c4] sm:$0xff]
      %v1260 = vld [vmem:[#allocation2 + $0x2cc] sm:$0xf]
      %v1261 = vld [vmem:[#allocation2 + $0x2d0] sm:$0xff]
      %v1262 = vld [vmem:[#allocation2 + $0x2d8] sm:$0xff]
      %v1263 = vld [vmem:[#allocation2 + $0x2e0] sm:$0xff]
      %v1264 = vld [vmem:[#allocation2 + $0x2e8] sm:$0xff]
      %v1265 = vld [vmem:[#allocation2 + $0x2f0] sm:$0xf]
      %v1266 = vld [vmem:[#allocation2 + $0x2f4] sm:$0xff]
      %v1267 = vld [vmem:[#allocation2 + $0x2fc] sm:$0xff]
      %v1268 = vld [vmem:[#allocation2 + $0x304] sm:$0xff]
      %v1269 = vld [vmem:[#allocation2 + $0x30c] sm:$0xff]
      %v1270 = vld [vmem:[#allocation2 + $0x314] sm:$0xf]
      %v1271 = vld [vmem:[#allocation2 + $0x318] sm:$0xff]
      %v1272 = vld [vmem:[#allocation2 + $0x320] sm:$0xff]
      %v1273 = vld [vmem:[#allocation2 + $0x328] sm:$0xff]
      %v1274 = vld [vmem:[#allocation2 + $0x330] sm:$0xff]
      %v1275 = vld [vmem:[#allocation2 + $0x338] sm:$0xf]
      %v1276 = vld [vmem:[#allocation2 + $0x33c] sm:$0xff]
      %v1277 = vld [vmem:[#allocation2 + $0x344] sm:$0xff]
      %v1278 = vld [vmem:[#allocation2 + $0x34c] sm:$0xff]
      %v1279 = vld [vmem:[#allocation2 + $0x354] sm:$0xff]
      %v1280 = vld [vmem:[#allocation2 + $0x35c] sm:$0xf]
      %v1281 = vld [vmem:[#allocation2 + $0x360] sm:$0xff]
      %v1282 = vld [vmem:[#allocation2 + $0x368] sm:$0xff]
      %v1283 = vld [vmem:[#allocation2 + $0x370] sm:$0xff]
      %v1284 = vld [vmem:[#allocation2 + $0x378] sm:$0xff]
      %v1285 = vld [vmem:[#allocation2 + $0x380] sm:$0xf]
      %v1286 = vld [vmem:[#allocation2 + $0x384] sm:$0xff]
      %v1287 = vld [vmem:[#allocation2 + $0x38c] sm:$0xff]
      %v1288 = vld [vmem:[#allocation2 + $0x394] sm:$0xff]
      %v1289 = vld [vmem:[#allocation2 + $0x39c] sm:$0xff]
      %v1290 = vld [vmem:[#allocation2 + $0x3a4] sm:$0xf]
      %v1291 = vld [vmem:[#allocation2 + $0x3a8] sm:$0xff]
      %v1292 = vld [vmem:[#allocation2 + $0x3b0] sm:$0xff]
      %v1293 = vld [vmem:[#allocation2 + $0x3b8] sm:$0xff]
      %v1294 = vld [vmem:[#allocation2 + $0x3c0] sm:$0xff]
      %v1295 = vld [vmem:[#allocation2 + $0x3c8] sm:$0xf]
      %v1296 = vld [vmem:[#allocation2 + $0x3cc] sm:$0xff]
      %v1297 = vld [vmem:[#allocation2 + $0x3d4] sm:$0xff]
      %v1298 = vld [vmem:[#allocation2 + $0x3dc] sm:$0xff]
      %v1299 = vld [vmem:[#allocation2 + $0x3e4] sm:$0xff]
      %v1300 = vld [vmem:[#allocation2 + $0x3ec] sm:$0xf]
      %v1301 = vld [vmem:[#allocation2 + $0x3f0] sm:$0xff]
      %v1302 = vld [vmem:[#allocation2 + $0x3f8] sm:$0xff]
      %v1303 = vld [vmem:[#allocation2 + $0x400] sm:$0xff]
      %v1304 = vld [vmem:[#allocation2 + $0x408] sm:$0xff]
      %v1305 = vld [vmem:[#allocation2 + $0x410] sm:$0xf]
      %v1306 = vld [vmem:[#allocation2 + $0x414] sm:$0xff]
      %v1307 = vld [vmem:[#allocation2 + $0x41c] sm:$0xff]
      %v1308 = vld [vmem:[#allocation2 + $0x424] sm:$0xff]
      %v1309 = vld [vmem:[#allocation2 + $0x42c] sm:$0xff]
      %v1310 = vld [vmem:[#allocation2 + $0x434] sm:$0xf]
      %v1311 = vld [vmem:[#allocation2 + $0x438] sm:$0xff]
      %v1312 = vld [vmem:[#allocation2 + $0x440] sm:$0xff]
      %v1313 = vld [vmem:[#allocation2 + $0x448] sm:$0xff]
      %v1314 = vld [vmem:[#allocation2 + $0x450] sm:$0xff]
      %v1315 = vld [vmem:[#allocation2 + $0x458] sm:$0xf]
      %v1316 = vld [vmem:[#allocation2 + $0x45c] sm:$0xff]
      %v1317 = vld [vmem:[#allocation2 + $0x464] sm:$0xff]
      %v1318 = vld [vmem:[#allocation2 + $0x46c] sm:$0xff]
      %v1319 = vld [vmem:[#allocation2 + $0x474] sm:$0xff]
      %v1320 = vld [vmem:[#allocation2 + $0x47c] sm:$0xf]
      %v1321 = vld [vmem:[%s1] sm:$0xf]
      %v1322 = vld [vmem:[%s1 + $0x4] sm:$0xf]
      %v1323 = vld [vmem:[%s1 + $0x8] sm:$0xf]
      %v1324 = vld [vmem:[%s1 + $0xc] sm:$0xf]
      %v1325 = vld [vmem:[%s1 + $0x10] sm:$0xf]
      %v1326 = vld [vmem:[%s1 + $0x14] sm:$0xf]
      %v1327 = vld [vmem:[%s1 + $0x18] sm:$0xf]
      %v1328 = vld [vmem:[%s1 + $0x1c] sm:$0xf]
      %v1329 = vld [vmem:[%s1 + $0x20] sm:$0xf]
      %v1330 = vld [vmem:[%s1 + $0x24] sm:$0xf]
      %v1331 = vld [vmem:[%s1 + $0x28] sm:$0xf]
      %v1332 = vld [vmem:[%s1 + $0x2c] sm:$0xf]
      %v1333 = vld [vmem:[%s1 + $0x30] sm:$0xf]
      %v1334 = vld [vmem:[%s1 + $0x34] sm:$0xf]
      %v1335 = vld [vmem:[%s1 + $0x38] sm:$0xf]
      %v1336 = vld [vmem:[%s1 + $0x3c] sm:$0xf]
      %v1337 = vld [vmem:[%s1 + $0x40] sm:$0xf]
      %v1338 = vld [vmem:[%s1 + $0x44] sm:$0xf]
      %v1339 = vld [vmem:[%s1 + $0x48] sm:$0xf]
      %v1340 = vld [vmem:[%s1 + $0x4c] sm:$0xf]
      %v1341 = vld [vmem:[%s1 + $0x50] sm:$0xf]
      %v1342 = vld [vmem:[%s1 + $0x54] sm:$0xf]
      %v1343 = vld [vmem:[%s1 + $0x58] sm:$0xf]
      %v1344 = vld [vmem:[%s1 + $0x5c] sm:$0xf]
      %v1345 = vld [vmem:[%s1 + $0x60] sm:$0xf]
      %v1346 = vld [vmem:[%s1 + $0x64] sm:$0xf]
      %v1347 = vld [vmem:[%s1 + $0x68] sm:$0xf]
      %v1348 = vld [vmem:[%s1 + $0x6c] sm:$0xf]
      %v1349 = vld [vmem:[%s1 + $0x70] sm:$0xf]
      %v1350 = vld [vmem:[%s1 + $0x74] sm:$0xf]
      %v1351 = vld [vmem:[%s1 + $0x78] sm:$0xf]
      %v1352 = vld [vmem:[%s1 + $0x7c] sm:$0xf]
      %v1353 = vld [vmem:[%s1 + $0x80] sm:$0xf]
      %v1354 = vld [vmem:[%s1 + $0x84] sm:$0xf]
      %v1355 = vld [vmem:[%s1 + $0x88] sm:$0xf]
      %v1356 = vld [vmem:[%s1 + $0x8c] sm:$0xf]
      %v1357 = vld [vmem:[%s1 + $0x90] sm:$0xf]
      %v1358 = vld [vmem:[%s1 + $0x94] sm:$0xf]
      %v1359 = vld [vmem:[%s1 + $0x98] sm:$0xf]
      %v1360 = vld [vmem:[%s1 + $0x9c] sm:$0xf]
      %v1361 = vld [vmem:[%s1 + $0xa0] sm:$0xf]
      %v1362 = vld [vmem:[%s1 + $0xa4] sm:$0xf]
      %v1363 = vld [vmem:[%s1 + $0xa8] sm:$0xf]
      %v1364 = vld [vmem:[%s1 + $0xac] sm:$0xf]
      %v1365 = vld [vmem:[%s1 + $0xb0] sm:$0xf]
      %v1366 = vld [vmem:[%s1 + $0xb4] sm:$0xf]
      %v1367 = vld [vmem:[%s1 + $0xb8] sm:$0xf]
      %v1368 = vld [vmem:[%s1 + $0xbc] sm:$0xf]
      %v1369 = vld [vmem:[%s1 + $0xc0] sm:$0xf]
      %v1370 = vld [vmem:[%s1 + $0xc4] sm:$0xf]
      %v1371 = vld [vmem:[%s1 + $0xc8] sm:$0xf]
      %v1372 = vld [vmem:[%s1 + $0xcc] sm:$0xf]
      %v1373 = vld [vmem:[%s1 + $0xd0] sm:$0xf]
      %v1374 = vld [vmem:[%s1 + $0xd4] sm:$0xf]
      %v1375 = vld [vmem:[%s1 + $0xd8] sm:$0xf]
      %v1376 = vld [vmem:[%s1 + $0xdc] sm:$0xf]
      %v1377 = vld [vmem:[%s1 + $0xe0] sm:$0xf]
      %v1378 = vld [vmem:[%s1 + $0xe4] sm:$0xf]
      %v1379 = vld [vmem:[%s1 + $0xe8] sm:$0xf]
      %v1380 = vld [vmem:[%s1 + $0xec] sm:$0xf]
      %v1381 = vld [vmem:[%s1 + $0xf0] sm:$0xf]
      %v1382 = vld [vmem:[%s1 + $0xf4] sm:$0xf]
      %v1383 = vld [vmem:[%s1 + $0xf8] sm:$0xf]
      %v1384 = vld [vmem:[%s1 + $0xfc] sm:$0xf]
      %v1385 = vld [vmem:[%s1 + $0x100] sm:$0xf]
      %v1386 = vld [vmem:[%s1 + $0x104] sm:$0xf]
      %v1387 = vld [vmem:[%s1 + $0x108] sm:$0xf]
      %v1388 = vld [vmem:[%s1 + $0x10c] sm:$0xf]
      %v1389 = vld [vmem:[%s1 + $0x110] sm:$0xf]
      %v1390 = vld [vmem:[%s1 + $0x114] sm:$0xf]
      %v1391 = vld [vmem:[%s1 + $0x118] sm:$0xf]
      %v1392 = vld [vmem:[%s1 + $0x11c] sm:$0xf]
      %v1393 = vld [vmem:[%s1 + $0x120] sm:$0xf]
      %v1394 = vld [vmem:[%s1 + $0x124] sm:$0xf]
      %v1395 = vld [vmem:[%s1 + $0x128] sm:$0xf]
      %v1396 = vld [vmem:[%s1 + $0x12c] sm:$0xf]
      %v1397 = vld [vmem:[%s1 + $0x130] sm:$0xf]
      %v1398 = vld [vmem:[%s1 + $0x134] sm:$0xf]
      %v1399 = vld [vmem:[%s1 + $0x138] sm:$0xf]
      %v1400 = vld [vmem:[%s1 + $0x13c] sm:$0xf]
      %v1401 = vld [vmem:[%s1 + $0x140] sm:$0xf]
      %v1402 = vld [vmem:[%s1 + $0x144] sm:$0xf]
      %v1403 = vld [vmem:[%s1 + $0x148] sm:$0xf]
      %v1404 = vld [vmem:[%s1 + $0x14c] sm:$0xf]
      %v1405 = vld [vmem:[%s1 + $0x150] sm:$0xf]
      %v1406 = vld [vmem:[%s1 + $0x154] sm:$0xf]
      %v1407 = vld [vmem:[%s1 + $0x158] sm:$0xf]
      %v1408 = vld [vmem:[%s1 + $0x15c] sm:$0xf]
      %v1409 = vld [vmem:[%s1 + $0x160] sm:$0xf]
      %v1410 = vld [vmem:[%s1 + $0x164] sm:$0xf]
      %v1411 = vld [vmem:[%s1 + $0x168] sm:$0xf]
      %v1412 = vld [vmem:[%s1 + $0x16c] sm:$0xf]
      %v1413 = vld [vmem:[%s1 + $0x170] sm:$0xf]
      %v1414 = vld [vmem:[%s1 + $0x174] sm:$0xf]
      %v1415 = vld [vmem:[%s1 + $0x178] sm:$0xf]
      %v1416 = vld [vmem:[%s1 + $0x17c] sm:$0xf]
      %v1417 = vld [vmem:[%s1 + $0x180] sm:$0xf]
      %v1418 = vld [vmem:[%s1 + $0x184] sm:$0xf]
      %v1419 = vld [vmem:[%s1 + $0x188] sm:$0xf]
      %v1420 = vld [vmem:[%s1 + $0x18c] sm:$0xf]
      %v1421 = vld [vmem:[%s1 + $0x190] sm:$0xf]
      %v1422 = vld [vmem:[%s1 + $0x194] sm:$0xf]
      %v1423 = vld [vmem:[%s1 + $0x198] sm:$0xf]
      %v1424 = vld [vmem:[%s1 + $0x19c] sm:$0xf]
      %v1425 = vld [vmem:[%s1 + $0x1a0] sm:$0xf]
      %v1426 = vld [vmem:[%s1 + $0x1a4] sm:$0xf]
      %v1427 = vld [vmem:[%s1 + $0x1a8] sm:$0xf]
      %v1428 = vld [vmem:[%s1 + $0x1ac] sm:$0xf]
      %v1429 = vld [vmem:[%s1 + $0x1b0] sm:$0xf]
      %v1430 = vld [vmem:[%s1 + $0x1b4] sm:$0xf]
      %v1431 = vld [vmem:[%s1 + $0x1b8] sm:$0xf]
      %v1432 = vld [vmem:[%s1 + $0x1bc] sm:$0xf]
      %v1433 = vld [vmem:[%s1 + $0x1c0] sm:$0xf]
      %v1434 = vld [vmem:[%s1 + $0x1c4] sm:$0xf]
      %v1435 = vld [vmem:[%s1 + $0x1c8] sm:$0xf]
      %v1436 = vld [vmem:[%s1 + $0x1cc] sm:$0xf]
      %v1437 = vld [vmem:[%s1 + $0x1d0] sm:$0xf]
      %v1438 = vld [vmem:[%s1 + $0x1d4] sm:$0xf]
      %v1439 = vld [vmem:[%s1 + $0x1d8] sm:$0xf]
      %v1440 = vld [vmem:[%s1 + $0x1dc] sm:$0xf]
      %v1441 = vld [vmem:[%s1 + $0x1e0] sm:$0xf]
      %v1442 = vld [vmem:[%s1 + $0x1e4] sm:$0xf]
      %v1443 = vld [vmem:[%s1 + $0x1e8] sm:$0xf]
      %v1444 = vld [vmem:[%s1 + $0x1ec] sm:$0xf]
      %v1445 = vld [vmem:[%s1 + $0x1f0] sm:$0xf]
      %v1446 = vld [vmem:[%s1 + $0x1f4] sm:$0xf]
      %v1447 = vld [vmem:[%s1 + $0x1f8] sm:$0xf]
      %v1448 = vld [vmem:[%s1 + $0x1fc] sm:$0xf]
      %v1449 = vld [vmem:[%s1 + $0x200] sm:$0xf]
      %v1450 = vld [vmem:[%s1 + $0x204] sm:$0xf]
      %v1451 = vld [vmem:[%s1 + $0x208] sm:$0xf]
      %v1452 = vld [vmem:[%s1 + $0x20c] sm:$0xf]
      %v1453 = vld [vmem:[%s1 + $0x210] sm:$0xf]
      %v1454 = vld [vmem:[%s1 + $0x214] sm:$0xf]
      %v1455 = vld [vmem:[%s1 + $0x218] sm:$0xf]
      %v1456 = vld [vmem:[%s1 + $0x21c] sm:$0xf]
      %v1457 = vld [vmem:[%s1 + $0x220] sm:$0xf]
      %v1458 = vld [vmem:[%s1 + $0x224] sm:$0xf]
      %v1459 = vld [vmem:[%s1 + $0x228] sm:$0xf]
      %v1460 = vld [vmem:[%s1 + $0x22c] sm:$0xf]
      %v1461 = vld [vmem:[%s1 + $0x230] sm:$0xf]
      %v1462 = vld [vmem:[%s1 + $0x234] sm:$0xf]
      %v1463 = vld [vmem:[%s1 + $0x238] sm:$0xf]
      %v1464 = vld [vmem:[%s1 + $0x23c] sm:$0xf]
      %v1625 = vunpack.c.l.b16 %v1161
      %v1626 = vunpack.c.h.b16 %v1161
      %v1627 = vunpack.c.l.b16 %v1162
      %v1628 = vunpack.c.h.b16 %v1162
      %v1629 = vunpack.c.l.b16 %v1163
      %v1630 = vunpack.c.h.b16 %v1163
      %v1631 = vunpack.c.l.b16 %v1164
      %v1632 = vunpack.c.h.b16 %v1164
      %v1633 = vunpack.c.l.b16 %v1165
      %v1634 = vunpack.c.l.b16 %v1166
      %v1635 = vunpack.c.h.b16 %v1166
      %v1636 = vunpack.c.l.b16 %v1167
      %v1637 = vunpack.c.h.b16 %v1167
      %v1638 = vunpack.c.l.b16 %v1168
      %v1639 = vunpack.c.h.b16 %v1168
      %v1640 = vunpack.c.l.b16 %v1169
      %v1641 = vunpack.c.h.b16 %v1169
      %v1642 = vunpack.c.l.b16 %v1170
      %v1643 = vunpack.c.l.b16 %v1171
      %v1644 = vunpack.c.h.b16 %v1171
      %v1645 = vunpack.c.l.b16 %v1172
      %v1646 = vunpack.c.h.b16 %v1172
      %v1647 = vunpack.c.l.b16 %v1173
      %v1648 = vunpack.c.h.b16 %v1173
      %v1649 = vunpack.c.l.b16 %v1174
      %v1650 = vunpack.c.h.b16 %v1174
      %v1651 = vunpack.c.l.b16 %v1175
      %v1652 = vunpack.c.l.b16 %v1176
      %v1653 = vunpack.c.h.b16 %v1176
      %v1654 = vunpack.c.l.b16 %v1177
      %v1655 = vunpack.c.h.b16 %v1177
      %v1656 = vunpack.c.l.b16 %v1178
      %v1657 = vunpack.c.h.b16 %v1178
      %v1658 = vunpack.c.l.b16 %v1179
      %v1659 = vunpack.c.h.b16 %v1179
      %v1660 = vunpack.c.l.b16 %v1180
      %v1661 = vunpack.c.l.b16 %v1181
      %v1662 = vunpack.c.h.b16 %v1181
      %v1663 = vunpack.c.l.b16 %v1182
      %v1664 = vunpack.c.h.b16 %v1182
      %v1665 = vunpack.c.l.b16 %v1183
      %v1666 = vunpack.c.h.b16 %v1183
      %v1667 = vunpack.c.l.b16 %v1184
      %v1668 = vunpack.c.h.b16 %v1184
      %v1669 = vunpack.c.l.b16 %v1185
      %v1670 = vunpack.c.l.b16 %v1186
      %v1671 = vunpack.c.h.b16 %v1186
      %v1672 = vunpack.c.l.b16 %v1187
      %v1673 = vunpack.c.h.b16 %v1187
      %v1674 = vunpack.c.l.b16 %v1188
      %v1675 = vunpack.c.h.b16 %v1188
      %v1676 = vunpack.c.l.b16 %v1189
      %v1677 = vunpack.c.h.b16 %v1189
      %v1678 = vunpack.c.l.b16 %v1190
      %v1679 = vunpack.c.l.b16 %v1191
      %v1680 = vunpack.c.h.b16 %v1191
      %v1681 = vunpack.c.l.b16 %v1192
      %v1682 = vunpack.c.h.b16 %v1192
      %v1683 = vunpack.c.l.b16 %v1193
      %v1684 = vunpack.c.h.b16 %v1193
      %v1685 = vunpack.c.l.b16 %v1194
      %v1686 = vunpack.c.h.b16 %v1194
      %v1687 = vunpack.c.l.b16 %v1195
      %v1688 = vunpack.c.l.b16 %v1196
      %v1689 = vunpack.c.h.b16 %v1196
      %v1690 = vunpack.c.l.b16 %v1197
      %v1691 = vunpack.c.h.b16 %v1197
      %v1692 = vunpack.c.l.b16 %v1198
      %v1693 = vunpack.c.h.b16 %v1198
      %v1694 = vunpack.c.l.b16 %v1199
      %v1695 = vunpack.c.h.b16 %v1199
      %v1696 = vunpack.c.l.b16 %v1200
      %v1697 = vunpack.c.l.b16 %v1201
      %v1698 = vunpack.c.h.b16 %v1201
      %v1699 = vunpack.c.l.b16 %v1202
      %v1700 = vunpack.c.h.b16 %v1202
      %v1701 = vunpack.c.l.b16 %v1203
      %v1702 = vunpack.c.h.b16 %v1203
      %v1703 = vunpack.c.l.b16 %v1204
      %v1704 = vunpack.c.h.b16 %v1204
      %v1705 = vunpack.c.l.b16 %v1205
      %v1706 = vunpack.c.l.b16 %v1206
      %v1707 = vunpack.c.h.b16 %v1206
      %v1708 = vunpack.c.l.b16 %v1207
      %v1709 = vunpack.c.h.b16 %v1207
      %v1710 = vunpack.c.l.b16 %v1208
      %v1711 = vunpack.c.h.b16 %v1208
      %v1712 = vunpack.c.l.b16 %v1209
      %v1713 = vunpack.c.h.b16 %v1209
      %v1714 = vunpack.c.l.b16 %v1210
      %v1715 = vunpack.c.l.b16 %v1211
      %v1716 = vunpack.c.h.b16 %v1211
      %v1717 = vunpack.c.l.b16 %v1212
      %v1718 = vunpack.c.h.b16 %v1212
      %v1719 = vunpack.c.l.b16 %v1213
      %v1720 = vunpack.c.h.b16 %v1213
      %v1721 = vunpack.c.l.b16 %v1214
      %v1722 = vunpack.c.h.b16 %v1214
      %v1723 = vunpack.c.l.b16 %v1215
      %v1724 = vunpack.c.l.b16 %v1216
      %v1725 = vunpack.c.h.b16 %v1216
      %v1726 = vunpack.c.l.b16 %v1217
      %v1727 = vunpack.c.h.b16 %v1217
      %v1728 = vunpack.c.l.b16 %v1218
      %v1729 = vunpack.c.h.b16 %v1218
      %v1730 = vunpack.c.l.b16 %v1219
      %v1731 = vunpack.c.h.b16 %v1219
      %v1732 = vunpack.c.l.b16 %v1220
      %v1733 = vunpack.c.l.b16 %v1221
      %v1734 = vunpack.c.h.b16 %v1221
      %v1735 = vunpack.c.l.b16 %v1222
      %v1736 = vunpack.c.h.b16 %v1222
      %v1737 = vunpack.c.l.b16 %v1223
      %v1738 = vunpack.c.h.b16 %v1223
      %v1739 = vunpack.c.l.b16 %v1224
      %v1740 = vunpack.c.h.b16 %v1224
      %v1741 = vunpack.c.l.b16 %v1225
      %v1742 = vunpack.c.l.b16 %v1226
      %v1743 = vunpack.c.h.b16 %v1226
      %v1744 = vunpack.c.l.b16 %v1227
      %v1745 = vunpack.c.h.b16 %v1227
      %v1746 = vunpack.c.l.b16 %v1228
      %v1747 = vunpack.c.h.b16 %v1228
      %v1748 = vunpack.c.l.b16 %v1229
      %v1749 = vunpack.c.h.b16 %v1229
      %v1750 = vunpack.c.l.b16 %v1230
      %v1751 = vunpack.c.l.b16 %v1231
      %v1752 = vunpack.c.h.b16 %v1231
      %v1753 = vunpack.c.l.b16 %v1232
      %v1754 = vunpack.c.h.b16 %v1232
      %v1755 = vunpack.c.l.b16 %v1233
      %v1756 = vunpack.c.h.b16 %v1233
      %v1757 = vunpack.c.l.b16 %v1234
      %v1758 = vunpack.c.h.b16 %v1234
      %v1759 = vunpack.c.l.b16 %v1235
      %v1760 = vunpack.c.l.b16 %v1236
      %v1761 = vunpack.c.h.b16 %v1236
      %v1762 = vunpack.c.l.b16 %v1237
      %v1763 = vunpack.c.h.b16 %v1237
      %v1764 = vunpack.c.l.b16 %v1238
      %v1765 = vunpack.c.h.b16 %v1238
      %v1766 = vunpack.c.l.b16 %v1239
      %v1767 = vunpack.c.h.b16 %v1239
      %v1768 = vunpack.c.l.b16 %v1240
      %v1769 = vunpack.c.l.b16 %v1241
      %v1770 = vunpack.c.h.b16 %v1241
      %v1771 = vunpack.c.l.b16 %v1242
      %v1772 = vunpack.c.h.b16 %v1242
      %v1773 = vunpack.c.l.b16 %v1243
      %v1774 = vunpack.c.h.b16 %v1243
      %v1775 = vunpack.c.l.b16 %v1244
      %v1776 = vunpack.c.h.b16 %v1244
      %v1777 = vunpack.c.l.b16 %v1245
      %v1778 = vunpack.c.l.b16 %v1246
      %v1779 = vunpack.c.h.b16 %v1246
      %v1780 = vunpack.c.l.b16 %v1247
      %v1781 = vunpack.c.h.b16 %v1247
      %v1782 = vunpack.c.l.b16 %v1248
      %v1783 = vunpack.c.h.b16 %v1248
      %v1784 = vunpack.c.l.b16 %v1249
      %v1785 = vunpack.c.h.b16 %v1249
      %v1786 = vunpack.c.l.b16 %v1250
      %v1787 = vunpack.c.l.b16 %v1251
      %v1788 = vunpack.c.h.b16 %v1251
      %v1789 = vunpack.c.l.b16 %v1252
      %v1790 = vunpack.c.h.b16 %v1252
      %v1791 = vunpack.c.l.b16 %v1253
      %v1792 = vunpack.c.h.b16 %v1253
      %v1793 = vunpack.c.l.b16 %v1254
      %v1794 = vunpack.c.h.b16 %v1254
      %v1795 = vunpack.c.l.b16 %v1255
      %v1796 = vunpack.c.l.b16 %v1256
      %v1797 = vunpack.c.h.b16 %v1256
      %v1798 = vunpack.c.l.b16 %v1257
      %v1799 = vunpack.c.h.b16 %v1257
      %v1800 = vunpack.c.l.b16 %v1258
      %v1801 = vunpack.c.h.b16 %v1258
      %v1802 = vunpack.c.l.b16 %v1259
      %v1803 = vunpack.c.h.b16 %v1259
      %v1804 = vunpack.c.l.b16 %v1260
      %v1805 = vunpack.c.l.b16 %v1261
      %v1806 = vunpack.c.h.b16 %v1261
      %v1807 = vunpack.c.l.b16 %v1262
      %v1808 = vunpack.c.h.b16 %v1262
      %v1809 = vunpack.c.l.b16 %v1263
      %v1810 = vunpack.c.h.b16 %v1263
      %v1811 = vunpack.c.l.b16 %v1264
      %v1812 = vunpack.c.h.b16 %v1264
      %v1813 = vunpack.c.l.b16 %v1265
      %v1814 = vunpack.c.l.b16 %v1266
      %v1815 = vunpack.c.h.b16 %v1266
      %v1816 = vunpack.c.l.b16 %v1267
      %v1817 = vunpack.c.h.b16 %v1267
      %v1818 = vunpack.c.l.b16 %v1268
      %v1819 = vunpack.c.h.b16 %v1268
      %v1820 = vunpack.c.l.b16 %v1269
      %v1821 = vunpack.c.h.b16 %v1269
      %v1822 = vunpack.c.l.b16 %v1270
      %v1823 = vunpack.c.l.b16 %v1271
      %v1824 = vunpack.c.h.b16 %v1271
      %v1825 = vunpack.c.l.b16 %v1272
      %v1826 = vunpack.c.h.b16 %v1272
      %v1827 = vunpack.c.l.b16 %v1273
      %v1828 = vunpack.c.h.b16 %v1273
      %v1829 = vunpack.c.l.b16 %v1274
      %v1830 = vunpack.c.h.b16 %v1274
      %v1831 = vunpack.c.l.b16 %v1275
      %v1832 = vunpack.c.l.b16 %v1276
      %v1833 = vunpack.c.h.b16 %v1276
      %v1834 = vunpack.c.l.b16 %v1277
      %v1835 = vunpack.c.h.b16 %v1277
      %v1836 = vunpack.c.l.b16 %v1278
      %v1837 = vunpack.c.h.b16 %v1278
      %v1838 = vunpack.c.l.b16 %v1279
      %v1839 = vunpack.c.h.b16 %v1279
      %v1840 = vunpack.c.l.b16 %v1280
      %v1841 = vunpack.c.l.b16 %v1281
      %v1842 = vunpack.c.h.b16 %v1281
      %v1843 = vunpack.c.l.b16 %v1282
      %v1844 = vunpack.c.h.b16 %v1282
      %v1845 = vunpack.c.l.b16 %v1283
      %v1846 = vunpack.c.h.b16 %v1283
      %v1847 = vunpack.c.l.b16 %v1284
      %v1848 = vunpack.c.h.b16 %v1284
      %v1849 = vunpack.c.l.b16 %v1285
      %v1850 = vunpack.c.l.b16 %v1286
      %v1851 = vunpack.c.h.b16 %v1286
      %v1852 = vunpack.c.l.b16 %v1287
      %v1853 = vunpack.c.h.b16 %v1287
      %v1854 = vunpack.c.l.b16 %v1288
      %v1855 = vunpack.c.h.b16 %v1288
      %v1856 = vunpack.c.l.b16 %v1289
      %v1857 = vunpack.c.h.b16 %v1289
      %v1858 = vunpack.c.l.b16 %v1290
      %v1859 = vunpack.c.l.b16 %v1291
      %v1860 = vunpack.c.h.b16 %v1291
      %v1861 = vunpack.c.l.b16 %v1292
      %v1862 = vunpack.c.h.b16 %v1292
      %v1863 = vunpack.c.l.b16 %v1293
      %v1864 = vunpack.c.h.b16 %v1293
      %v1865 = vunpack.c.l.b16 %v1294
      %v1866 = vunpack.c.h.b16 %v1294
      %v1867 = vunpack.c.l.b16 %v1295
      %v1868 = vunpack.c.l.b16 %v1296
      %v1869 = vunpack.c.h.b16 %v1296
      %v1870 = vunpack.c.l.b16 %v1297
      %v1871 = vunpack.c.h.b16 %v1297
      %v1872 = vunpack.c.l.b16 %v1298
      %v1873 = vunpack.c.h.b16 %v1298
      %v1874 = vunpack.c.l.b16 %v1299
      %v1875 = vunpack.c.h.b16 %v1299
      %v1876 = vunpack.c.l.b16 %v1300
      %v1877 = vunpack.c.l.b16 %v1301
      %v1878 = vunpack.c.h.b16 %v1301
      %v1879 = vunpack.c.l.b16 %v1302
      %v1880 = vunpack.c.h.b16 %v1302
      %v1881 = vunpack.c.l.b16 %v1303
      %v1882 = vunpack.c.h.b16 %v1303
      %v1883 = vunpack.c.l.b16 %v1304
      %v1884 = vunpack.c.h.b16 %v1304
      %v1885 = vunpack.c.l.b16 %v1305
      %v1886 = vunpack.c.l.b16 %v1306
      %v1887 = vunpack.c.h.b16 %v1306
      %v1888 = vunpack.c.l.b16 %v1307
      %v1889 = vunpack.c.h.b16 %v1307
      %v1890 = vunpack.c.l.b16 %v1308
      %v1891 = vunpack.c.h.b16 %v1308
      %v1892 = vunpack.c.l.b16 %v1309
      %v1893 = vunpack.c.h.b16 %v1309
      %v1894 = vunpack.c.l.b16 %v1310
      %v1895 = vunpack.c.l.b16 %v1311
      %v1896 = vunpack.c.h.b16 %v1311
      %v1897 = vunpack.c.l.b16 %v1312
      %v1898 = vunpack.c.h.b16 %v1312
      %v1899 = vunpack.c.l.b16 %v1313
      %v1900 = vunpack.c.h.b16 %v1313
      %v1901 = vunpack.c.l.b16 %v1314
      %v1902 = vunpack.c.h.b16 %v1314
      %v1903 = vunpack.c.l.b16 %v1315
      %v1904 = vunpack.c.l.b16 %v1316
      %v1905 = vunpack.c.h.b16 %v1316
      %v1906 = vunpack.c.l.b16 %v1317
      %v1907 = vunpack.c.h.b16 %v1317
      %v1908 = vunpack.c.l.b16 %v1318
      %v1909 = vunpack.c.h.b16 %v1318
      %v1910 = vunpack.c.l.b16 %v1319
      %v1911 = vunpack.c.h.b16 %v1319
      %v1912 = vunpack.c.l.b16 %v1320
      %v1913 = vpack.c.b16 %v1634, %v1625
      %v1914 = vpack.c.b16 %v1635, %v1626
      %v1915 = vpack.c.b16 %v1636, %v1627
      %v1916 = vpack.c.b16 %v1637, %v1628
      %v1917 = vpack.c.b16 %v1638, %v1629
      %v1918 = vpack.c.b16 %v1639, %v1630
      %v1919 = vpack.c.b16 %v1640, %v1631
      %v1920 = vpack.c.b16 %v1641, %v1632
      %v1921 = vpack.c.b16 %v1642, %v1633
      %v1922 = vpack.c.b16 %v1652, %v1643
      %v1923 = vpack.c.b16 %v1653, %v1644
      %v1924 = vpack.c.b16 %v1654, %v1645
      %v1925 = vpack.c.b16 %v1655, %v1646
      %v1926 = vpack.c.b16 %v1656, %v1647
      %v1927 = vpack.c.b16 %v1657, %v1648
      %v1928 = vpack.c.b16 %v1658, %v1649
      %v1929 = vpack.c.b16 %v1659, %v1650
      %v1930 = vpack.c.b16 %v1660, %v1651
      %v1931 = vpack.c.b16 %v1670, %v1661
      %v1932 = vpack.c.b16 %v1671, %v1662
      %v1933 = vpack.c.b16 %v1672, %v1663
      %v1934 = vpack.c.b16 %v1673, %v1664
      %v1935 = vpack.c.b16 %v1674, %v1665
      %v1936 = vpack.c.b16 %v1675, %v1666
      %v1937 = vpack.c.b16 %v1676, %v1667
      %v1938 = vpack.c.b16 %v1677, %v1668
      %v1939 = vpack.c.b16 %v1678, %v1669
      %v1940 = vpack.c.b16 %v1688, %v1679
      %v1941 = vpack.c.b16 %v1689, %v1680
      %v1942 = vpack.c.b16 %v1690, %v1681
      %v1943 = vpack.c.b16 %v1691, %v1682
      %v1944 = vpack.c.b16 %v1692, %v1683
      %v1945 = vpack.c.b16 %v1693, %v1684
      %v1946 = vpack.c.b16 %v1694, %v1685
      %v1947 = vpack.c.b16 %v1695, %v1686
      %v1948 = vpack.c.b16 %v1696, %v1687
      %v1949 = vpack.c.b16 %v1706, %v1697
      %v1950 = vpack.c.b16 %v1707, %v1698
      %v1951 = vpack.c.b16 %v1708, %v1699
      %v1952 = vpack.c.b16 %v1709, %v1700
      %v1953 = vpack.c.b16 %v1710, %v1701
      %v1954 = vpack.c.b16 %v1711, %v1702
      %v1955 = vpack.c.b16 %v1712, %v1703
      %v1956 = vpack.c.b16 %v1713, %v1704
      %v1957 = vpack.c.b16 %v1714, %v1705
      %v1958 = vpack.c.b16 %v1724, %v1715
      %v1959 = vpack.c.b16 %v1725, %v1716
      %v1960 = vpack.c.b16 %v1726, %v1717
      %v1961 = vpack.c.b16 %v1727, %v1718
      %v1962 = vpack.c.b16 %v1728, %v1719
      %v1963 = vpack.c.b16 %v1729, %v1720
      %v1964 = vpack.c.b16 %v1730, %v1721
      %v1965 = vpack.c.b16 %v1731, %v1722
      %v1966 = vpack.c.b16 %v1732, %v1723
      %v1967 = vpack.c.b16 %v1742, %v1733
      %v1968 = vpack.c.b16 %v1743, %v1734
      %v1969 = vpack.c.b16 %v1744, %v1735
      %v1970 = vpack.c.b16 %v1745, %v1736
      %v1971 = vpack.c.b16 %v1746, %v1737
      %v1972 = vpack.c.b16 %v1747, %v1738
      %v1973 = vpack.c.b16 %v1748, %v1739
      %v1974 = vpack.c.b16 %v1749, %v1740
      %v1975 = vpack.c.b16 %v1750, %v1741
      %v1976 = vpack.c.b16 %v1760, %v1751
      %v1977 = vpack.c.b16 %v1761, %v1752
      %v1978 = vpack.c.b16 %v1762, %v1753
      %v1979 = vpack.c.b16 %v1763, %v1754
      %v1980 = vpack.c.b16 %v1764, %v1755
      %v1981 = vpack.c.b16 %v1765, %v1756
      %v1982 = vpack.c.b16 %v1766, %v1757
      %v1983 = vpack.c.b16 %v1767, %v1758
      %v1984 = vpack.c.b16 %v1768, %v1759
      %v1985 = vpack.c.b16 %v1778, %v1769
      %v1986 = vpack.c.b16 %v1779, %v1770
      %v1987 = vpack.c.b16 %v1780, %v1771
      %v1988 = vpack.c.b16 %v1781, %v1772
      %v1989 = vpack.c.b16 %v1782, %v1773
      %v1990 = vpack.c.b16 %v1783, %v1774
      %v1991 = vpack.c.b16 %v1784, %v1775
      %v1992 = vpack.c.b16 %v1785, %v1776
      %v1993 = vpack.c.b16 %v1786, %v1777
      %v1994 = vpack.c.b16 %v1796, %v1787
      %v1995 = vpack.c.b16 %v1797, %v1788
      %v1996 = vpack.c.b16 %v1798, %v1789
      %v1997 = vpack.c.b16 %v1799, %v1790
      %v1998 = vpack.c.b16 %v1800, %v1791
      %v1999 = vpack.c.b16 %v1801, %v1792
      %v2000 = vpack.c.b16 %v1802, %v1793
      %v2001 = vpack.c.b16 %v1803, %v1794
      %v2002 = vpack.c.b16 %v1804, %v1795
      %v2003 = vpack.c.b16 %v1814, %v1805
      %v2004 = vpack.c.b16 %v1815, %v1806
      %v2005 = vpack.c.b16 %v1816, %v1807
      %v2006 = vpack.c.b16 %v1817, %v1808
      %v2007 = vpack.c.b16 %v1818, %v1809
      %v2008 = vpack.c.b16 %v1819, %v1810
      %v2009 = vpack.c.b16 %v1820, %v1811
      %v2010 = vpack.c.b16 %v1821, %v1812
      %v2011 = vpack.c.b16 %v1822, %v1813
      %v2012 = vpack.c.b16 %v1832, %v1823
      %v2013 = vpack.c.b16 %v1833, %v1824
      %v2014 = vpack.c.b16 %v1834, %v1825
      %v2015 = vpack.c.b16 %v1835, %v1826
      %v2016 = vpack.c.b16 %v1836, %v1827
      %v2017 = vpack.c.b16 %v1837, %v1828
      %v2018 = vpack.c.b16 %v1838, %v1829
      %v2019 = vpack.c.b16 %v1839, %v1830
      %v2020 = vpack.c.b16 %v1840, %v1831
      %v2021 = vpack.c.b16 %v1850, %v1841
      %v2022 = vpack.c.b16 %v1851, %v1842
      %v2023 = vpack.c.b16 %v1852, %v1843
      %v2024 = vpack.c.b16 %v1853, %v1844
      %v2025 = vpack.c.b16 %v1854, %v1845
      %v2026 = vpack.c.b16 %v1855, %v1846
      %v2027 = vpack.c.b16 %v1856, %v1847
      %v2028 = vpack.c.b16 %v1857, %v1848
      %v2029 = vpack.c.b16 %v1858, %v1849
      %v2030 = vpack.c.b16 %v1868, %v1859
      %v2031 = vpack.c.b16 %v1869, %v1860
      %v2032 = vpack.c.b16 %v1870, %v1861
      %v2033 = vpack.c.b16 %v1871, %v1862
      %v2034 = vpack.c.b16 %v1872, %v1863
      %v2035 = vpack.c.b16 %v1873, %v1864
      %v2036 = vpack.c.b16 %v1874, %v1865
      %v2037 = vpack.c.b16 %v1875, %v1866
      %v2038 = vpack.c.b16 %v1876, %v1867
      %v2039 = vpack.c.b16 %v1886, %v1877
      %v2040 = vpack.c.b16 %v1887, %v1878
      %v2041 = vpack.c.b16 %v1888, %v1879
      %v2042 = vpack.c.b16 %v1889, %v1880
      %v2043 = vpack.c.b16 %v1890, %v1881
      %v2044 = vpack.c.b16 %v1891, %v1882
      %v2045 = vpack.c.b16 %v1892, %v1883
      %v2046 = vpack.c.b16 %v1893, %v1884
      %v2047 = vpack.c.b16 %v1894, %v1885
      %v2048 = vpack.c.b16 %v1904, %v1895
      %v2049 = vpack.c.b16 %v1905, %v1896
      %v2050 = vpack.c.b16 %v1906, %v1897
      %v2051 = vpack.c.b16 %v1907, %v1898
      %v2052 = vpack.c.b16 %v1908, %v1899
      %v2053 = vpack.c.b16 %v1909, %v1900
      %v2054 = vpack.c.b16 %v1910, %v1901
      %v2055 = vpack.c.b16 %v1911, %v1902
      %v2056 = vpack.c.b16 %v1912, %v1903
      %v2345 = vunpack.c.l.b16 %v1321
      %v2346 = vunpack.c.l.b16 %v1322
      %v2347 = vunpack.c.l.b16 %v1323
      %v2348 = vunpack.c.l.b16 %v1324
      %v2349 = vunpack.c.l.b16 %v1325
      %v2350 = vunpack.c.l.b16 %v1326
      %v2351 = vunpack.c.l.b16 %v1327
      %v2352 = vunpack.c.l.b16 %v1328
      %v2353 = vunpack.c.l.b16 %v1329
      %v2354 = vunpack.c.l.b16 %v1330
      %v2355 = vunpack.c.l.b16 %v1331
      %v2356 = vunpack.c.l.b16 %v1332
      %v2357 = vunpack.c.l.b16 %v1333
      %v2358 = vunpack.c.l.b16 %v1334
      %v2359 = vunpack.c.l.b16 %v1335
      %v2360 = vunpack.c.l.b16 %v1336
      %v2361 = vunpack.c.l.b16 %v1337
      %v2362 = vunpack.c.l.b16 %v1338
      %v2363 = vunpack.c.l.b16 %v1339
      %v2364 = vunpack.c.l.b16 %v1340
      %v2365 = vunpack.c.l.b16 %v1341
      %v2366 = vunpack.c.l.b16 %v1342
      %v2367 = vunpack.c.l.b16 %v1343
      %v2368 = vunpack.c.l.b16 %v1344
      %v2369 = vunpack.c.l.b16 %v1345
      %v2370 = vunpack.c.l.b16 %v1346
      %v2371 = vunpack.c.l.b16 %v1347
      %v2372 = vunpack.c.l.b16 %v1348
      %v2373 = vunpack.c.l.b16 %v1349
      %v2374 = vunpack.c.l.b16 %v1350
      %v2375 = vunpack.c.l.b16 %v1351
      %v2376 = vunpack.c.l.b16 %v1352
      %v2377 = vunpack.c.l.b16 %v1353
      %v2378 = vunpack.c.l.b16 %v1354
      %v2379 = vunpack.c.l.b16 %v1355
      %v2380 = vunpack.c.l.b16 %v1356
      %v2381 = vunpack.c.l.b16 %v1357
      %v2382 = vunpack.c.l.b16 %v1358
      %v2383 = vunpack.c.l.b16 %v1359
      %v2384 = vunpack.c.l.b16 %v1360
      %v2385 = vunpack.c.l.b16 %v1361
      %v2386 = vunpack.c.l.b16 %v1362
      %v2387 = vunpack.c.l.b16 %v1363
      %v2388 = vunpack.c.l.b16 %v1364
      %v2389 = vunpack.c.l.b16 %v1365
      %v2390 = vunpack.c.l.b16 %v1366
      %v2391 = vunpack.c.l.b16 %v1367
      %v2392 = vunpack.c.l.b16 %v1368
      %v2393 = vunpack.c.l.b16 %v1369
      %v2394 = vunpack.c.l.b16 %v1370
      %v2395 = vunpack.c.l.b16 %v1371
      %v2396 = vunpack.c.l.b16 %v1372
      %v2397 = vunpack.c.l.b16 %v1373
      %v2398 = vunpack.c.l.b16 %v1374
      %v2399 = vunpack.c.l.b16 %v1375
      %v2400 = vunpack.c.l.b16 %v1376
      %v2401 = vunpack.c.l.b16 %v1377
      %v2402 = vunpack.c.l.b16 %v1378
      %v2403 = vunpack.c.l.b16 %v1379
      %v2404 = vunpack.c.l.b16 %v1380
      %v2405 = vunpack.c.l.b16 %v1381
      %v2406 = vunpack.c.l.b16 %v1382
      %v2407 = vunpack.c.l.b16 %v1383
      %v2408 = vunpack.c.l.b16 %v1384
      %v2409 = vunpack.c.l.b16 %v1385
      %v2410 = vunpack.c.l.b16 %v1386
      %v2411 = vunpack.c.l.b16 %v1387
      %v2412 = vunpack.c.l.b16 %v1388
      %v2413 = vunpack.c.l.b16 %v1389
      %v2414 = vunpack.c.l.b16 %v1390
      %v2415 = vunpack.c.l.b16 %v1391
      %v2416 = vunpack.c.l.b16 %v1392
      %v2417 = vunpack.c.l.b16 %v1393
      %v2418 = vunpack.c.l.b16 %v1394
      %v2419 = vunpack.c.l.b16 %v1395
      %v2420 = vunpack.c.l.b16 %v1396
      %v2421 = vunpack.c.l.b16 %v1397
      %v2422 = vunpack.c.l.b16 %v1398
      %v2423 = vunpack.c.l.b16 %v1399
      %v2424 = vunpack.c.l.b16 %v1400
      %v2425 = vunpack.c.l.b16 %v1401
      %v2426 = vunpack.c.l.b16 %v1402
      %v2427 = vunpack.c.l.b16 %v1403
      %v2428 = vunpack.c.l.b16 %v1404
      %v2429 = vunpack.c.l.b16 %v1405
      %v2430 = vunpack.c.l.b16 %v1406
      %v2431 = vunpack.c.l.b16 %v1407
      %v2432 = vunpack.c.l.b16 %v1408
      %v2433 = vunpack.c.l.b16 %v1409
      %v2434 = vunpack.c.l.b16 %v1410
      %v2435 = vunpack.c.l.b16 %v1411
      %v2436 = vunpack.c.l.b16 %v1412
      %v2437 = vunpack.c.l.b16 %v1413
      %v2438 = vunpack.c.l.b16 %v1414
      %v2439 = vunpack.c.l.b16 %v1415
      %v2440 = vunpack.c.l.b16 %v1416
      %v2441 = vunpack.c.l.b16 %v1417
      %v2442 = vunpack.c.l.b16 %v1418
      %v2443 = vunpack.c.l.b16 %v1419
      %v2444 = vunpack.c.l.b16 %v1420
      %v2445 = vunpack.c.l.b16 %v1421
      %v2446 = vunpack.c.l.b16 %v1422
      %v2447 = vunpack.c.l.b16 %v1423
      %v2448 = vunpack.c.l.b16 %v1424
      %v2449 = vunpack.c.l.b16 %v1425
      %v2450 = vunpack.c.l.b16 %v1426
      %v2451 = vunpack.c.l.b16 %v1427
      %v2452 = vunpack.c.l.b16 %v1428
      %v2453 = vunpack.c.l.b16 %v1429
      %v2454 = vunpack.c.l.b16 %v1430
      %v2455 = vunpack.c.l.b16 %v1431
      %v2456 = vunpack.c.l.b16 %v1432
      %v2457 = vunpack.c.l.b16 %v1433
      %v2458 = vunpack.c.l.b16 %v1434
      %v2459 = vunpack.c.l.b16 %v1435
      %v2460 = vunpack.c.l.b16 %v1436
      %v2461 = vunpack.c.l.b16 %v1437
      %v2462 = vunpack.c.l.b16 %v1438
      %v2463 = vunpack.c.l.b16 %v1439
      %v2464 = vunpack.c.l.b16 %v1440
      %v2465 = vunpack.c.l.b16 %v1441
      %v2466 = vunpack.c.l.b16 %v1442
      %v2467 = vunpack.c.l.b16 %v1443
      %v2468 = vunpack.c.l.b16 %v1444
      %v2469 = vunpack.c.l.b16 %v1445
      %v2470 = vunpack.c.l.b16 %v1446
      %v2471 = vunpack.c.l.b16 %v1447
      %v2472 = vunpack.c.l.b16 %v1448
      %v2473 = vunpack.c.l.b16 %v1449
      %v2474 = vunpack.c.l.b16 %v1450
      %v2475 = vunpack.c.l.b16 %v1451
      %v2476 = vunpack.c.l.b16 %v1452
      %v2477 = vunpack.c.l.b16 %v1453
      %v2478 = vunpack.c.l.b16 %v1454
      %v2479 = vunpack.c.l.b16 %v1455
      %v2480 = vunpack.c.l.b16 %v1456
      %v2481 = vunpack.c.l.b16 %v1457
      %v2482 = vunpack.c.l.b16 %v1458
      %v2483 = vunpack.c.l.b16 %v1459
      %v2484 = vunpack.c.l.b16 %v1460
      %v2485 = vunpack.c.l.b16 %v1461
      %v2486 = vunpack.c.l.b16 %v1462
      %v2487 = vunpack.c.l.b16 %v1463
      %v2488 = vunpack.c.l.b16 %v1464
      %v2489 = vpack.c.b16 %v2346, %v2345
      %v2490 = vpack.c.b16 %v2348, %v2347
      %v2491 = vpack.c.b16 %v2350, %v2349
      %v2492 = vpack.c.b16 %v2352, %v2351
      %v2493 = vpack.c.b16 %v2354, %v2353
      %v2494 = vpack.c.b16 %v2356, %v2355
      %v2495 = vpack.c.b16 %v2358, %v2357
      %v2496 = vpack.c.b16 %v2360, %v2359
      %v2497 = vpack.c.b16 %v2362, %v2361
      %v2498 = vpack.c.b16 %v2364, %v2363
      %v2499 = vpack.c.b16 %v2366, %v2365
      %v2500 = vpack.c.b16 %v2368, %v2367
      %v2501 = vpack.c.b16 %v2370, %v2369
      %v2502 = vpack.c.b16 %v2372, %v2371
      %v2503 = vpack.c.b16 %v2374, %v2373
      %v2504 = vpack.c.b16 %v2376, %v2375
      %v2505 = vpack.c.b16 %v2378, %v2377
      %v2506 = vpack.c.b16 %v2380, %v2379
      %v2507 = vpack.c.b16 %v2382, %v2381
      %v2508 = vpack.c.b16 %v2384, %v2383
      %v2509 = vpack.c.b16 %v2386, %v2385
      %v2510 = vpack.c.b16 %v2388, %v2387
      %v2511 = vpack.c.b16 %v2390, %v2389
      %v2512 = vpack.c.b16 %v2392, %v2391
      %v2513 = vpack.c.b16 %v2394, %v2393
      %v2514 = vpack.c.b16 %v2396, %v2395
      %v2515 = vpack.c.b16 %v2398, %v2397
      %v2516 = vpack.c.b16 %v2400, %v2399
      %v2517 = vpack.c.b16 %v2402, %v2401
      %v2518 = vpack.c.b16 %v2404, %v2403
      %v2519 = vpack.c.b16 %v2406, %v2405
      %v2520 = vpack.c.b16 %v2408, %v2407
      %v2521 = vpack.c.b16 %v2410, %v2409
      %v2522 = vpack.c.b16 %v2412, %v2411
      %v2523 = vpack.c.b16 %v2414, %v2413
      %v2524 = vpack.c.b16 %v2416, %v2415
      %v2525 = vpack.c.b16 %v2418, %v2417
      %v2526 = vpack.c.b16 %v2420, %v2419
      %v2527 = vpack.c.b16 %v2422, %v2421
      %v2528 = vpack.c.b16 %v2424, %v2423
      %v2529 = vpack.c.b16 %v2426, %v2425
      %v2530 = vpack.c.b16 %v2428, %v2427
      %v2531 = vpack.c.b16 %v2430, %v2429
      %v2532 = vpack.c.b16 %v2432, %v2431
      %v2533 = vpack.c.b16 %v2434, %v2433
      %v2534 = vpack.c.b16 %v2436, %v2435
      %v2535 = vpack.c.b16 %v2438, %v2437
      %v2536 = vpack.c.b16 %v2440, %v2439
      %v2537 = vpack.c.b16 %v2442, %v2441
      %v2538 = vpack.c.b16 %v2444, %v2443
      %v2539 = vpack.c.b16 %v2446, %v2445
      %v2540 = vpack.c.b16 %v2448, %v2447
      %v2541 = vpack.c.b16 %v2450, %v2449
      %v2542 = vpack.c.b16 %v2452, %v2451
      %v2543 = vpack.c.b16 %v2454, %v2453
      %v2544 = vpack.c.b16 %v2456, %v2455
      %v2545 = vpack.c.b16 %v2458, %v2457
      %v2546 = vpack.c.b16 %v2460, %v2459
      %v2547 = vpack.c.b16 %v2462, %v2461
      %v2548 = vpack.c.b16 %v2464, %v2463
      %v2549 = vpack.c.b16 %v2466, %v2465
      %v2550 = vpack.c.b16 %v2468, %v2467
      %v2551 = vpack.c.b16 %v2470, %v2469
      %v2552 = vpack.c.b16 %v2472, %v2471
      %v2553 = vpack.c.b16 %v2474, %v2473
      %v2554 = vpack.c.b16 %v2476, %v2475
      %v2555 = vpack.c.b16 %v2478, %v2477
      %v2556 = vpack.c.b16 %v2480, %v2479
      %v2557 = vpack.c.b16 %v2482, %v2481
      %v2558 = vpack.c.b16 %v2484, %v2483
      %v2559 = vpack.c.b16 %v2486, %v2485
      %v2560 = vpack.c.b16 %v2488, %v2487
      %2633 = vmatpush.bf16.msra.mxu0 %v2496
      %2634 = vmatpush.bf16.msra.mxu0 %v2495
      %2635 = vmatpush.bf16.msra.mxu0 %v2494
      %2636 = vmatpush.bf16.msra.mxu0 %v2493
      %2637 = vmatpush.bf16.msra.mxu0 %v2492
      %2638 = vmatpush.bf16.msra.mxu0 %v2491
      %2639 = vmatpush.bf16.msra.mxu0 %v2490
      %2640 = vmatpush.bf16.msra.mxu0 %v2489
      %2641 = vmatmul.bf16.gmra.mxu0 %v1913
      %v2642 = vpop.f32.mrf.mxu0
      %v2643 = vadd.f32 0.0, %v2642
      %v2644 = vpop.f32.mrf.mxu0
      %v2645 = vadd.f32 0.0, %v2644
      %2646 = vmatmul.bf16.gmra.mxu0 %v1922
      %v2647 = vpop.f32.mrf.mxu0
      %v2648 = vadd.f32 0.0, %v2647
      %v2649 = vpop.f32.mrf.mxu0
      %v2650 = vadd.f32 0.0, %v2649
      %2651 = vmatmul.bf16.gmra.mxu0 %v1931
      %v2652 = vpop.f32.mrf.mxu0
      %v2653 = vadd.f32 0.0, %v2652
      %v2654 = vpop.f32.mrf.mxu0
      %v2655 = vadd.f32 0.0, %v2654
      %2656 = vmatmul.bf16.gmra.mxu0 %v1940
      %v2657 = vpop.f32.mrf.mxu0
      %v2658 = vadd.f32 0.0, %v2657
      %v2659 = vpop.f32.mrf.mxu0
      %v2660 = vadd.f32 0.0, %v2659
      %2661 = vmatmul.bf16.gmra.mxu0 %v1949
      %v2662 = vpop.f32.mrf.mxu0
      %v2663 = vadd.f32 0.0, %v2662
      %v2664 = vpop.f32.mrf.mxu0
      %v2665 = vadd.f32 0.0, %v2664
      %2666 = vmatmul.bf16.gmra.mxu0 %v1958
      %v2667 = vpop.f32.mrf.mxu0
      %v2668 = vadd.f32 0.0, %v2667
      %v2669 = vpop.f32.mrf.mxu0
      %v2670 = vadd.f32 0.0, %v2669
      %2671 = vmatmul.bf16.gmra.mxu0 %v1967
      %v2672 = vpop.f32.mrf.mxu0
      %v2673 = vadd.f32 0.0, %v2672
      %v2674 = vpop.f32.mrf.mxu0
      %v2675 = vadd.f32 0.0, %v2674
      %2676 = vmatmul.bf16.gmra.mxu0 %v1976
      %v2677 = vpop.f32.mrf.mxu0
      %v2678 = vadd.f32 0.0, %v2677
      %v2679 = vpop.f32.mrf.mxu0
      %v2680 = vadd.f32 0.0, %v2679
      %2681 = vmatmul.bf16.gmra.mxu0 %v1985
      %v2682 = vpop.f32.mrf.mxu0
      %v2683 = vadd.f32 0.0, %v2682
      %v2684 = vpop.f32.mrf.mxu0
      %v2685 = vadd.f32 0.0, %v2684
      %2686 = vmatmul.bf16.gmra.mxu0 %v1994
      %v2687 = vpop.f32.mrf.mxu0
      %v2688 = vadd.f32 0.0, %v2687
      %v2689 = vpop.f32.mrf.mxu0
      %v2690 = vadd.f32 0.0, %v2689
      %2691 = vmatmul.bf16.gmra.mxu0 %v2003
      %v2692 = vpop.f32.mrf.mxu0
      %v2693 = vadd.f32 0.0, %v2692
      %v2694 = vpop.f32.mrf.mxu0
      %v2695 = vadd.f32 0.0, %v2694
      %2696 = vmatmul.bf16.gmra.mxu0 %v2012
      %v2697 = vpop.f32.mrf.mxu0
      %v2698 = vadd.f32 0.0, %v2697
      %v2699 = vpop.f32.mrf.mxu0
      %v2700 = vadd.f32 0.0, %v2699
      %2701 = vmatmul.bf16.gmra.mxu0 %v2021
      %v2702 = vpop.f32.mrf.mxu0
      %v2703 = vadd.f32 0.0, %v2702
      %v2704 = vpop.f32.mrf.mxu0
      %v2705 = vadd.f32 0.0, %v2704
      %2706 = vmatmul.bf16.gmra.mxu0 %v2030
      %v2707 = vpop.f32.mrf.mxu0
      %v2708 = vadd.f32 0.0, %v2707
      %v2709 = vpop.f32.mrf.mxu0
      %v2710 = vadd.f32 0.0, %v2709
      %2711 = vmatmul.bf16.gmra.mxu0 %v2039
      %v2712 = vpop.f32.mrf.mxu0
      %v2713 = vadd.f32 0.0, %v2712
      %v2714 = vpop.f32.mrf.mxu0
      %v2715 = vadd.f32 0.0, %v2714
      %2716 = vmatmul.bf16.gmra.mxu0 %v2048
      %v2717 = vpop.f32.mrf.mxu0
      %v2718 = vadd.f32 0.0, %v2717
      %v2719 = vpop.f32.mrf.mxu0
      %v2720 = vadd.f32 0.0, %v2719
      %2721 = vdwg.mxu0
      %2722 = vmatpush.bf16.msra.mxu0 %v2504
      %2723 = vmatpush.bf16.msra.mxu0 %v2503
      %2724 = vmatpush.bf16.msra.mxu0 %v2502
      %2725 = vmatpush.bf16.msra.mxu0 %v2501
      %2726 = vmatpush.bf16.msra.mxu0 %v2500
      %2727 = vmatpush.bf16.msra.mxu0 %v2499
      %2728 = vmatpush.bf16.msra.mxu0 %v2498
      %2729 = vmatpush.bf16.msra.mxu0 %v2497
      %2730 = vmatmul.bf16.gmra.mxu0 %v1914
      %v2731 = vpop.f32.mrf.mxu0
      %v2732 = vadd.f32 %v2643, %v2731
      %v2733 = vpop.f32.mrf.mxu0
      %v2734 = vadd.f32 %v2645, %v2733
      %2735 = vmatmul.bf16.gmra.mxu0 %v1923
      %v2736 = vpop.f32.mrf.mxu0
      %v2737 = vadd.f32 %v2648, %v2736
      %v2738 = vpop.f32.mrf.mxu0
      %v2739 = vadd.f32 %v2650, %v2738
      %2740 = vmatmul.bf16.gmra.mxu0 %v1932
      %v2741 = vpop.f32.mrf.mxu0
      %v2742 = vadd.f32 %v2653, %v2741
      %v2743 = vpop.f32.mrf.mxu0
      %v2744 = vadd.f32 %v2655, %v2743
      %2745 = vmatmul.bf16.gmra.mxu0 %v1941
      %v2746 = vpop.f32.mrf.mxu0
      %v2747 = vadd.f32 %v2658, %v2746
      %v2748 = vpop.f32.mrf.mxu0
      %v2749 = vadd.f32 %v2660, %v2748
      %2750 = vmatmul.bf16.gmra.mxu0 %v1950
      %v2751 = vpop.f32.mrf.mxu0
      %v2752 = vadd.f32 %v2663, %v2751
      %v2753 = vpop.f32.mrf.mxu0
      %v2754 = vadd.f32 %v2665, %v2753
      %2755 = vmatmul.bf16.gmra.mxu0 %v1959
      %v2756 = vpop.f32.mrf.mxu0
      %v2757 = vadd.f32 %v2668, %v2756
      %v2758 = vpop.f32.mrf.mxu0
      %v2759 = vadd.f32 %v2670, %v2758
      %2760 = vmatmul.bf16.gmra.mxu0 %v1968
      %v2761 = vpop.f32.mrf.mxu0
      %v2762 = vadd.f32 %v2673, %v2761
      %v2763 = vpop.f32.mrf.mxu0
      %v2764 = vadd.f32 %v2675, %v2763
      %2765 = vmatmul.bf16.gmra.mxu0 %v1977
      %v2766 = vpop.f32.mrf.mxu0
      %v2767 = vadd.f32 %v2678, %v2766
      %v2768 = vpop.f32.mrf.mxu0
      %v2769 = vadd.f32 %v2680, %v2768
      %2770 = vmatmul.bf16.gmra.mxu0 %v1986
      %v2771 = vpop.f32.mrf.mxu0
      %v2772 = vadd.f32 %v2683, %v2771
      %v2773 = vpop.f32.mrf.mxu0
      %v2774 = vadd.f32 %v2685, %v2773
      %2775 = vmatmul.bf16.gmra.mxu0 %v1995
      %v2776 = vpop.f32.mrf.mxu0
      %v2777 = vadd.f32 %v2688, %v2776
      %v2778 = vpop.f32.mrf.mxu0
      %v2779 = vadd.f32 %v2690, %v2778
      %2780 = vmatmul.bf16.gmra.mxu0 %v2004
      %v2781 = vpop.f32.mrf.mxu0
      %v2782 = vadd.f32 %v2693, %v2781
      %v2783 = vpop.f32.mrf.mxu0
      %v2784 = vadd.f32 %v2695, %v2783
      %2785 = vmatmul.bf16.gmra.mxu0 %v2013
      %v2786 = vpop.f32.mrf.mxu0
      %v2787 = vadd.f32 %v2698, %v2786
      %v2788 = vpop.f32.mrf.mxu0
      %v2789 = vadd.f32 %v2700, %v2788
      %2790 = vmatmul.bf16.gmra.mxu0 %v2022
      %v2791 = vpop.f32.mrf.mxu0
      %v2792 = vadd.f32 %v2703, %v2791
      %v2793 = vpop.f32.mrf.mxu0
      %v2794 = vadd.f32 %v2705, %v2793
      %2795 = vmatmul.bf16.gmra.mxu0 %v2031
      %v2796 = vpop.f32.mrf.mxu0
      %v2797 = vadd.f32 %v2708, %v2796
      %v2798 = vpop.f32.mrf.mxu0
      %v2799 = vadd.f32 %v2710, %v2798
      %2800 = vmatmul.bf16.gmra.mxu0 %v2040
      %v2801 = vpop.f32.mrf.mxu0
      %v2802 = vadd.f32 %v2713, %v2801
      %v2803 = vpop.f32.mrf.mxu0
      %v2804 = vadd.f32 %v2715, %v2803
      %2805 = vmatmul.bf16.gmra.mxu0 %v2049
      %v2806 = vpop.f32.mrf.mxu0
      %v2807 = vadd.f32 %v2718, %v2806
      %v2808 = vpop.f32.mrf.mxu0
      %v2809 = vadd.f32 %v2720, %v2808
      %2810 = vdwg.mxu0
      %2811 = vmatpush.bf16.msra.mxu0 %v2512
      %2812 = vmatpush.bf16.msra.mxu0 %v2511
      %2813 = vmatpush.bf16.msra.mxu0 %v2510
      %2814 = vmatpush.bf16.msra.mxu0 %v2509
      %2815 = vmatpush.bf16.msra.mxu0 %v2508
      %2816 = vmatpush.bf16.msra.mxu0 %v2507
      %2817 = vmatpush.bf16.msra.mxu0 %v2506
      %2818 = vmatpush.bf16.msra.mxu0 %v2505
      %2819 = vmatmul.bf16.gmra.mxu0 %v1915
      %v2820 = vpop.f32.mrf.mxu0
      %v2821 = vadd.f32 %v2732, %v2820
      %v2822 = vpop.f32.mrf.mxu0
      %v2823 = vadd.f32 %v2734, %v2822
      %2824 = vmatmul.bf16.gmra.mxu0 %v1924
      %v2825 = vpop.f32.mrf.mxu0
      %v2826 = vadd.f32 %v2737, %v2825
      %v2827 = vpop.f32.mrf.mxu0
      %v2828 = vadd.f32 %v2739, %v2827
      %2829 = vmatmul.bf16.gmra.mxu0 %v1933
      %v2830 = vpop.f32.mrf.mxu0
      %v2831 = vadd.f32 %v2742, %v2830
      %v2832 = vpop.f32.mrf.mxu0
      %v2833 = vadd.f32 %v2744, %v2832
      %2834 = vmatmul.bf16.gmra.mxu0 %v1942
      %v2835 = vpop.f32.mrf.mxu0
      %v2836 = vadd.f32 %v2747, %v2835
      %v2837 = vpop.f32.mrf.mxu0
      %v2838 = vadd.f32 %v2749, %v2837
      %2839 = vmatmul.bf16.gmra.mxu0 %v1951
      %v2840 = vpop.f32.mrf.mxu0
      %v2841 = vadd.f32 %v2752, %v2840
      %v2842 = vpop.f32.mrf.mxu0
      %v2843 = vadd.f32 %v2754, %v2842
      %2844 = vmatmul.bf16.gmra.mxu0 %v1960
      %v2845 = vpop.f32.mrf.mxu0
      %v2846 = vadd.f32 %v2757, %v2845
      %v2847 = vpop.f32.mrf.mxu0
      %v2848 = vadd.f32 %v2759, %v2847
      %2849 = vmatmul.bf16.gmra.mxu0 %v1969
      %v2850 = vpop.f32.mrf.mxu0
      %v2851 = vadd.f32 %v2762, %v2850
      %v2852 = vpop.f32.mrf.mxu0
      %v2853 = vadd.f32 %v2764, %v2852
      %2854 = vmatmul.bf16.gmra.mxu0 %v1978
      %v2855 = vpop.f32.mrf.mxu0
      %v2856 = vadd.f32 %v2767, %v2855
      %v2857 = vpop.f32.mrf.mxu0
      %v2858 = vadd.f32 %v2769, %v2857
      %2859 = vmatmul.bf16.gmra.mxu0 %v1987
      %v2860 = vpop.f32.mrf.mxu0
      %v2861 = vadd.f32 %v2772, %v2860
      %v2862 = vpop.f32.mrf.mxu0
      %v2863 = vadd.f32 %v2774, %v2862
      %2864 = vmatmul.bf16.gmra.mxu0 %v1996
      %v2865 = vpop.f32.mrf.mxu0
      %v2866 = vadd.f32 %v2777, %v2865
      %v2867 = vpop.f32.mrf.mxu0
      %v2868 = vadd.f32 %v2779, %v2867
      %2869 = vmatmul.bf16.gmra.mxu0 %v2005
      %v2870 = vpop.f32.mrf.mxu0
      %v2871 = vadd.f32 %v2782, %v2870
      %v2872 = vpop.f32.mrf.mxu0
      %v2873 = vadd.f32 %v2784, %v2872
      %2874 = vmatmul.bf16.gmra.mxu0 %v2014
      %v2875 = vpop.f32.mrf.mxu0
      %v2876 = vadd.f32 %v2787, %v2875
      %v2877 = vpop.f32.mrf.mxu0
      %v2878 = vadd.f32 %v2789, %v2877
      %2879 = vmatmul.bf16.gmra.mxu0 %v2023
      %v2880 = vpop.f32.mrf.mxu0
      %v2881 = vadd.f32 %v2792, %v2880
      %v2882 = vpop.f32.mrf.mxu0
      %v2883 = vadd.f32 %v2794, %v2882
      %2884 = vmatmul.bf16.gmra.mxu0 %v2032
      %v2885 = vpop.f32.mrf.mxu0
      %v2886 = vadd.f32 %v2797, %v2885
      %v2887 = vpop.f32.mrf.mxu0
      %v2888 = vadd.f32 %v2799, %v2887
      %2889 = vmatmul.bf16.gmra.mxu0 %v2041
      %v2890 = vpop.f32.mrf.mxu0
      %v2891 = vadd.f32 %v2802, %v2890
      %v2892 = vpop.f32.mrf.mxu0
      %v2893 = vadd.f32 %v2804, %v2892
      %2894 = vmatmul.bf16.gmra.mxu0 %v2050
      %v2895 = vpop.f32.mrf.mxu0
      %v2896 = vadd.f32 %v2807, %v2895
      %v2897 = vpop.f32.mrf.mxu0
      %v2898 = vadd.f32 %v2809, %v2897
      %2899 = vdwg.mxu0
      %2900 = vmatpush.bf16.msra.mxu0 %v2520
      %2901 = vmatpush.bf16.msra.mxu0 %v2519
      %2902 = vmatpush.bf16.msra.mxu0 %v2518
      %2903 = vmatpush.bf16.msra.mxu0 %v2517
      %2904 = vmatpush.bf16.msra.mxu0 %v2516
      %2905 = vmatpush.bf16.msra.mxu0 %v2515
      %2906 = vmatpush.bf16.msra.mxu0 %v2514
      %2907 = vmatpush.bf16.msra.mxu0 %v2513
      %2908 = vmatmul.bf16.gmra.mxu0 %v1916
      %v2909 = vpop.f32.mrf.mxu0
      %v2910 = vadd.f32 %v2821, %v2909
      %v2911 = vpop.f32.mrf.mxu0
      %v2912 = vadd.f32 %v2823, %v2911
      %2913 = vmatmul.bf16.gmra.mxu0 %v1925
      %v2914 = vpop.f32.mrf.mxu0
      %v2915 = vadd.f32 %v2826, %v2914
      %v2916 = vpop.f32.mrf.mxu0
      %v2917 = vadd.f32 %v2828, %v2916
      %2918 = vmatmul.bf16.gmra.mxu0 %v1934
      %v2919 = vpop.f32.mrf.mxu0
      %v2920 = vadd.f32 %v2831, %v2919
      %v2921 = vpop.f32.mrf.mxu0
      %v2922 = vadd.f32 %v2833, %v2921
      %2923 = vmatmul.bf16.gmra.mxu0 %v1943
      %v2924 = vpop.f32.mrf.mxu0
      %v2925 = vadd.f32 %v2836, %v2924
      %v2926 = vpop.f32.mrf.mxu0
      %v2927 = vadd.f32 %v2838, %v2926
      %2928 = vmatmul.bf16.gmra.mxu0 %v1952
      %v2929 = vpop.f32.mrf.mxu0
      %v2930 = vadd.f32 %v2841, %v2929
      %v2931 = vpop.f32.mrf.mxu0
      %v2932 = vadd.f32 %v2843, %v2931
      %2933 = vmatmul.bf16.gmra.mxu0 %v1961
      %v2934 = vpop.f32.mrf.mxu0
      %v2935 = vadd.f32 %v2846, %v2934
      %v2936 = vpop.f32.mrf.mxu0
      %v2937 = vadd.f32 %v2848, %v2936
      %2938 = vmatmul.bf16.gmra.mxu0 %v1970
      %v2939 = vpop.f32.mrf.mxu0
      %v2940 = vadd.f32 %v2851, %v2939
      %v2941 = vpop.f32.mrf.mxu0
      %v2942 = vadd.f32 %v2853, %v2941
      %2943 = vmatmul.bf16.gmra.mxu0 %v1979
      %v2944 = vpop.f32.mrf.mxu0
      %v2945 = vadd.f32 %v2856, %v2944
      %v2946 = vpop.f32.mrf.mxu0
      %v2947 = vadd.f32 %v2858, %v2946
      %2948 = vmatmul.bf16.gmra.mxu0 %v1988
      %v2949 = vpop.f32.mrf.mxu0
      %v2950 = vadd.f32 %v2861, %v2949
      %v2951 = vpop.f32.mrf.mxu0
      %v2952 = vadd.f32 %v2863, %v2951
      %2953 = vmatmul.bf16.gmra.mxu0 %v1997
      %v2954 = vpop.f32.mrf.mxu0
      %v2955 = vadd.f32 %v2866, %v2954
      %v2956 = vpop.f32.mrf.mxu0
      %v2957 = vadd.f32 %v2868, %v2956
      %2958 = vmatmul.bf16.gmra.mxu0 %v2006
      %v2959 = vpop.f32.mrf.mxu0
      %v2960 = vadd.f32 %v2871, %v2959
      %v2961 = vpop.f32.mrf.mxu0
      %v2962 = vadd.f32 %v2873, %v2961
      %2963 = vmatmul.bf16.gmra.mxu0 %v2015
      %v2964 = vpop.f32.mrf.mxu0
      %v2965 = vadd.f32 %v2876, %v2964
      %v2966 = vpop.f32.mrf.mxu0
      %v2967 = vadd.f32 %v2878, %v2966
      %2968 = vmatmul.bf16.gmra.mxu0 %v2024
      %v2969 = vpop.f32.mrf.mxu0
      %v2970 = vadd.f32 %v2881, %v2969
      %v2971 = vpop.f32.mrf.mxu0
      %v2972 = vadd.f32 %v2883, %v2971
      %2973 = vmatmul.bf16.gmra.mxu0 %v2033
      %v2974 = vpop.f32.mrf.mxu0
      %v2975 = vadd.f32 %v2886, %v2974
      %v2976 = vpop.f32.mrf.mxu0
      %v2977 = vadd.f32 %v2888, %v2976
      %2978 = vmatmul.bf16.gmra.mxu0 %v2042
      %v2979 = vpop.f32.mrf.mxu0
      %v2980 = vadd.f32 %v2891, %v2979
      %v2981 = vpop.f32.mrf.mxu0
      %v2982 = vadd.f32 %v2893, %v2981
      %2983 = vmatmul.bf16.gmra.mxu0 %v2051
      %v2984 = vpop.f32.mrf.mxu0
      %v2985 = vadd.f32 %v2896, %v2984
      %v2986 = vpop.f32.mrf.mxu0
      %v2987 = vadd.f32 %v2898, %v2986
      %2988 = vdwg.mxu0
      %2989 = vmatpush.bf16.msra.mxu0 %v2528
      %2990 = vmatpush.bf16.msra.mxu0 %v2527
      %2991 = vmatpush.bf16.msra.mxu0 %v2526
      %2992 = vmatpush.bf16.msra.mxu0 %v2525
      %2993 = vmatpush.bf16.msra.mxu0 %v2524
      %2994 = vmatpush.bf16.msra.mxu0 %v2523
      %2995 = vmatpush.bf16.msra.mxu0 %v2522
      %2996 = vmatpush.bf16.msra.mxu0 %v2521
      %2997 = vmatmul.bf16.gmra.mxu0 %v1917
      %v2998 = vpop.f32.mrf.mxu0
      %v2999 = vadd.f32 %v2910, %v2998
      %v3000 = vpop.f32.mrf.mxu0
      %v3001 = vadd.f32 %v2912, %v3000
      %3002 = vmatmul.bf16.gmra.mxu0 %v1926
      %v3003 = vpop.f32.mrf.mxu0
      %v3004 = vadd.f32 %v2915, %v3003
      %v3005 = vpop.f32.mrf.mxu0
      %v3006 = vadd.f32 %v2917, %v3005
      %3007 = vmatmul.bf16.gmra.mxu0 %v1935
      %v3008 = vpop.f32.mrf.mxu0
      %v3009 = vadd.f32 %v2920, %v3008
      %v3010 = vpop.f32.mrf.mxu0
      %v3011 = vadd.f32 %v2922, %v3010
      %3012 = vmatmul.bf16.gmra.mxu0 %v1944
      %v3013 = vpop.f32.mrf.mxu0
      %v3014 = vadd.f32 %v2925, %v3013
      %v3015 = vpop.f32.mrf.mxu0
      %v3016 = vadd.f32 %v2927, %v3015
      %3017 = vmatmul.bf16.gmra.mxu0 %v1953
      %v3018 = vpop.f32.mrf.mxu0
      %v3019 = vadd.f32 %v2930, %v3018
      %v3020 = vpop.f32.mrf.mxu0
      %v3021 = vadd.f32 %v2932, %v3020
      %3022 = vmatmul.bf16.gmra.mxu0 %v1962
      %v3023 = vpop.f32.mrf.mxu0
      %v3024 = vadd.f32 %v2935, %v3023
      %v3025 = vpop.f32.mrf.mxu0
      %v3026 = vadd.f32 %v2937, %v3025
      %3027 = vmatmul.bf16.gmra.mxu0 %v1971
      %v3028 = vpop.f32.mrf.mxu0
      %v3029 = vadd.f32 %v2940, %v3028
      %v3030 = vpop.f32.mrf.mxu0
      %v3031 = vadd.f32 %v2942, %v3030
      %3032 = vmatmul.bf16.gmra.mxu0 %v1980
      %v3033 = vpop.f32.mrf.mxu0
      %v3034 = vadd.f32 %v2945, %v3033
      %v3035 = vpop.f32.mrf.mxu0
      %v3036 = vadd.f32 %v2947, %v3035
      %3037 = vmatmul.bf16.gmra.mxu0 %v1989
      %v3038 = vpop.f32.mrf.mxu0
      %v3039 = vadd.f32 %v2950, %v3038
      %v3040 = vpop.f32.mrf.mxu0
      %v3041 = vadd.f32 %v2952, %v3040
      %3042 = vmatmul.bf16.gmra.mxu0 %v1998
      %v3043 = vpop.f32.mrf.mxu0
      %v3044 = vadd.f32 %v2955, %v3043
      %v3045 = vpop.f32.mrf.mxu0
      %v3046 = vadd.f32 %v2957, %v3045
      %3047 = vmatmul.bf16.gmra.mxu0 %v2007
      %v3048 = vpop.f32.mrf.mxu0
      %v3049 = vadd.f32 %v2960, %v3048
      %v3050 = vpop.f32.mrf.mxu0
      %v3051 = vadd.f32 %v2962, %v3050
      %3052 = vmatmul.bf16.gmra.mxu0 %v2016
      %v3053 = vpop.f32.mrf.mxu0
      %v3054 = vadd.f32 %v2965, %v3053
      %v3055 = vpop.f32.mrf.mxu0
      %v3056 = vadd.f32 %v2967, %v3055
      %3057 = vmatmul.bf16.gmra.mxu0 %v2025
      %v3058 = vpop.f32.mrf.mxu0
      %v3059 = vadd.f32 %v2970, %v3058
      %v3060 = vpop.f32.mrf.mxu0
      %v3061 = vadd.f32 %v2972, %v3060
      %3062 = vmatmul.bf16.gmra.mxu0 %v2034
      %v3063 = vpop.f32.mrf.mxu0
      %v3064 = vadd.f32 %v2975, %v3063
      %v3065 = vpop.f32.mrf.mxu0
      %v3066 = vadd.f32 %v2977, %v3065
      %3067 = vmatmul.bf16.gmra.mxu0 %v2043
      %v3068 = vpop.f32.mrf.mxu0
      %v3069 = vadd.f32 %v2980, %v3068
      %v3070 = vpop.f32.mrf.mxu0
      %v3071 = vadd.f32 %v2982, %v3070
      %3072 = vmatmul.bf16.gmra.mxu0 %v2052
      %v3073 = vpop.f32.mrf.mxu0
      %v3074 = vadd.f32 %v2985, %v3073
      %v3075 = vpop.f32.mrf.mxu0
      %v3076 = vadd.f32 %v2987, %v3075
      %3077 = vdwg.mxu0
      %3078 = vmatpush.bf16.msra.mxu0 %v2536
      %3079 = vmatpush.bf16.msra.mxu0 %v2535
      %3080 = vmatpush.bf16.msra.mxu0 %v2534
      %3081 = vmatpush.bf16.msra.mxu0 %v2533
      %3082 = vmatpush.bf16.msra.mxu0 %v2532
      %3083 = vmatpush.bf16.msra.mxu0 %v2531
      %3084 = vmatpush.bf16.msra.mxu0 %v2530
      %3085 = vmatpush.bf16.msra.mxu0 %v2529
      %3086 = vmatmul.bf16.gmra.mxu0 %v1918
      %v3087 = vpop.f32.mrf.mxu0
      %v3088 = vadd.f32 %v2999, %v3087
      %v3089 = vpop.f32.mrf.mxu0
      %v3090 = vadd.f32 %v3001, %v3089
      %3091 = vmatmul.bf16.gmra.mxu0 %v1927
      %v3092 = vpop.f32.mrf.mxu0
      %v3093 = vadd.f32 %v3004, %v3092
      %v3094 = vpop.f32.mrf.mxu0
      %v3095 = vadd.f32 %v3006, %v3094
      %3096 = vmatmul.bf16.gmra.mxu0 %v1936
      %v3097 = vpop.f32.mrf.mxu0
      %v3098 = vadd.f32 %v3009, %v3097
      %v3099 = vpop.f32.mrf.mxu0
      %v3100 = vadd.f32 %v3011, %v3099
      %3101 = vmatmul.bf16.gmra.mxu0 %v1945
      %v3102 = vpop.f32.mrf.mxu0
      %v3103 = vadd.f32 %v3014, %v3102
      %v3104 = vpop.f32.mrf.mxu0
      %v3105 = vadd.f32 %v3016, %v3104
      %3106 = vmatmul.bf16.gmra.mxu0 %v1954
      %v3107 = vpop.f32.mrf.mxu0
      %v3108 = vadd.f32 %v3019, %v3107
      %v3109 = vpop.f32.mrf.mxu0
      %v3110 = vadd.f32 %v3021, %v3109
      %3111 = vmatmul.bf16.gmra.mxu0 %v1963
      %v3112 = vpop.f32.mrf.mxu0
      %v3113 = vadd.f32 %v3024, %v3112
      %v3114 = vpop.f32.mrf.mxu0
      %v3115 = vadd.f32 %v3026, %v3114
      %3116 = vmatmul.bf16.gmra.mxu0 %v1972
      %v3117 = vpop.f32.mrf.mxu0
      %v3118 = vadd.f32 %v3029, %v3117
      %v3119 = vpop.f32.mrf.mxu0
      %v3120 = vadd.f32 %v3031, %v3119
      %3121 = vmatmul.bf16.gmra.mxu0 %v1981
      %v3122 = vpop.f32.mrf.mxu0
      %v3123 = vadd.f32 %v3034, %v3122
      %v3124 = vpop.f32.mrf.mxu0
      %v3125 = vadd.f32 %v3036, %v3124
      %3126 = vmatmul.bf16.gmra.mxu0 %v1990
      %v3127 = vpop.f32.mrf.mxu0
      %v3128 = vadd.f32 %v3039, %v3127
      %v3129 = vpop.f32.mrf.mxu0
      %v3130 = vadd.f32 %v3041, %v3129
      %3131 = vmatmul.bf16.gmra.mxu0 %v1999
      %v3132 = vpop.f32.mrf.mxu0
      %v3133 = vadd.f32 %v3044, %v3132
      %v3134 = vpop.f32.mrf.mxu0
      %v3135 = vadd.f32 %v3046, %v3134
      %3136 = vmatmul.bf16.gmra.mxu0 %v2008
      %v3137 = vpop.f32.mrf.mxu0
      %v3138 = vadd.f32 %v3049, %v3137
      %v3139 = vpop.f32.mrf.mxu0
      %v3140 = vadd.f32 %v3051, %v3139
      %3141 = vmatmul.bf16.gmra.mxu0 %v2017
      %v3142 = vpop.f32.mrf.mxu0
      %v3143 = vadd.f32 %v3054, %v3142
      %v3144 = vpop.f32.mrf.mxu0
      %v3145 = vadd.f32 %v3056, %v3144
      %3146 = vmatmul.bf16.gmra.mxu0 %v2026
      %v3147 = vpop.f32.mrf.mxu0
      %v3148 = vadd.f32 %v3059, %v3147
      %v3149 = vpop.f32.mrf.mxu0
      %v3150 = vadd.f32 %v3061, %v3149
      %3151 = vmatmul.bf16.gmra.mxu0 %v2035
      %v3152 = vpop.f32.mrf.mxu0
      %v3153 = vadd.f32 %v3064, %v3152
      %v3154 = vpop.f32.mrf.mxu0
      %v3155 = vadd.f32 %v3066, %v3154
      %3156 = vmatmul.bf16.gmra.mxu0 %v2044
      %v3157 = vpop.f32.mrf.mxu0
      %v3158 = vadd.f32 %v3069, %v3157
      %v3159 = vpop.f32.mrf.mxu0
      %v3160 = vadd.f32 %v3071, %v3159
      %3161 = vmatmul.bf16.gmra.mxu0 %v2053
      %v3162 = vpop.f32.mrf.mxu0
      %v3163 = vadd.f32 %v3074, %v3162
      %v3164 = vpop.f32.mrf.mxu0
      %v3165 = vadd.f32 %v3076, %v3164
      %3166 = vdwg.mxu0
      %3167 = vmatpush.bf16.msra.mxu0 %v2544
      %3168 = vmatpush.bf16.msra.mxu0 %v2543
      %3169 = vmatpush.bf16.msra.mxu0 %v2542
      %3170 = vmatpush.bf16.msra.mxu0 %v2541
      %3171 = vmatpush.bf16.msra.mxu0 %v2540
      %3172 = vmatpush.bf16.msra.mxu0 %v2539
      %3173 = vmatpush.bf16.msra.mxu0 %v2538
      %3174 = vmatpush.bf16.msra.mxu0 %v2537
      %3175 = vmatmul.bf16.gmra.mxu0 %v1919
      %v3176 = vpop.f32.mrf.mxu0
      %v3177 = vadd.f32 %v3088, %v3176
      %v3178 = vpop.f32.mrf.mxu0
      %v3179 = vadd.f32 %v3090, %v3178
      %3180 = vmatmul.bf16.gmra.mxu0 %v1928
      %v3181 = vpop.f32.mrf.mxu0
      %v3182 = vadd.f32 %v3093, %v3181
      %v3183 = vpop.f32.mrf.mxu0
      %v3184 = vadd.f32 %v3095, %v3183
      %3185 = vmatmul.bf16.gmra.mxu0 %v1937
      %v3186 = vpop.f32.mrf.mxu0
      %v3187 = vadd.f32 %v3098, %v3186
      %v3188 = vpop.f32.mrf.mxu0
      %v3189 = vadd.f32 %v3100, %v3188
      %3190 = vmatmul.bf16.gmra.mxu0 %v1946
      %v3191 = vpop.f32.mrf.mxu0
      %v3192 = vadd.f32 %v3103, %v3191
      %v3193 = vpop.f32.mrf.mxu0
      %v3194 = vadd.f32 %v3105, %v3193
      %3195 = vmatmul.bf16.gmra.mxu0 %v1955
      %v3196 = vpop.f32.mrf.mxu0
      %v3197 = vadd.f32 %v3108, %v3196
      %v3198 = vpop.f32.mrf.mxu0
      %v3199 = vadd.f32 %v3110, %v3198
      %3200 = vmatmul.bf16.gmra.mxu0 %v1964
      %v3201 = vpop.f32.mrf.mxu0
      %v3202 = vadd.f32 %v3113, %v3201
      %v3203 = vpop.f32.mrf.mxu0
      %v3204 = vadd.f32 %v3115, %v3203
      %3205 = vmatmul.bf16.gmra.mxu0 %v1973
      %v3206 = vpop.f32.mrf.mxu0
      %v3207 = vadd.f32 %v3118, %v3206
      %v3208 = vpop.f32.mrf.mxu0
      %v3209 = vadd.f32 %v3120, %v3208
      %3210 = vmatmul.bf16.gmra.mxu0 %v1982
      %v3211 = vpop.f32.mrf.mxu0
      %v3212 = vadd.f32 %v3123, %v3211
      %v3213 = vpop.f32.mrf.mxu0
      %v3214 = vadd.f32 %v3125, %v3213
      %3215 = vmatmul.bf16.gmra.mxu0 %v1991
      %v3216 = vpop.f32.mrf.mxu0
      %v3217 = vadd.f32 %v3128, %v3216
      %v3218 = vpop.f32.mrf.mxu0
      %v3219 = vadd.f32 %v3130, %v3218
      %3220 = vmatmul.bf16.gmra.mxu0 %v2000
      %v3221 = vpop.f32.mrf.mxu0
      %v3222 = vadd.f32 %v3133, %v3221
      %v3223 = vpop.f32.mrf.mxu0
      %v3224 = vadd.f32 %v3135, %v3223
      %3225 = vmatmul.bf16.gmra.mxu0 %v2009
      %v3226 = vpop.f32.mrf.mxu0
      %v3227 = vadd.f32 %v3138, %v3226
      %v3228 = vpop.f32.mrf.mxu0
      %v3229 = vadd.f32 %v3140, %v3228
      %3230 = vmatmul.bf16.gmra.mxu0 %v2018
      %v3231 = vpop.f32.mrf.mxu0
      %v3232 = vadd.f32 %v3143, %v3231
      %v3233 = vpop.f32.mrf.mxu0
      %v3234 = vadd.f32 %v3145, %v3233
      %3235 = vmatmul.bf16.gmra.mxu0 %v2027
      %v3236 = vpop.f32.mrf.mxu0
      %v3237 = vadd.f32 %v3148, %v3236
      %v3238 = vpop.f32.mrf.mxu0
      %v3239 = vadd.f32 %v3150, %v3238
      %3240 = vmatmul.bf16.gmra.mxu0 %v2036
      %v3241 = vpop.f32.mrf.mxu0
      %v3242 = vadd.f32 %v3153, %v3241
      %v3243 = vpop.f32.mrf.mxu0
      %v3244 = vadd.f32 %v3155, %v3243
      %3245 = vmatmul.bf16.gmra.mxu0 %v2045
      %v3246 = vpop.f32.mrf.mxu0
      %v3247 = vadd.f32 %v3158, %v3246
      %v3248 = vpop.f32.mrf.mxu0
      %v3249 = vadd.f32 %v3160, %v3248
      %3250 = vmatmul.bf16.gmra.mxu0 %v2054
      %v3251 = vpop.f32.mrf.mxu0
      %v3252 = vadd.f32 %v3163, %v3251
      %v3253 = vpop.f32.mrf.mxu0
      %v3254 = vadd.f32 %v3165, %v3253
      %3255 = vdwg.mxu0
      %3256 = vmatpush.bf16.msra.mxu0 %v2552
      %3257 = vmatpush.bf16.msra.mxu0 %v2551
      %3258 = vmatpush.bf16.msra.mxu0 %v2550
      %3259 = vmatpush.bf16.msra.mxu0 %v2549
      %3260 = vmatpush.bf16.msra.mxu0 %v2548
      %3261 = vmatpush.bf16.msra.mxu0 %v2547
      %3262 = vmatpush.bf16.msra.mxu0 %v2546
      %3263 = vmatpush.bf16.msra.mxu0 %v2545
      %3264 = vmatmul.bf16.gmra.mxu0 %v1920
      %v3265 = vpop.f32.mrf.mxu0
      %v3266 = vadd.f32 %v3177, %v3265
      %v3267 = vpop.f32.mrf.mxu0
      %v3268 = vadd.f32 %v3179, %v3267
      %3269 = vmatmul.bf16.gmra.mxu0 %v1929
      %v3270 = vpop.f32.mrf.mxu0
      %v3271 = vadd.f32 %v3182, %v3270
      %v3272 = vpop.f32.mrf.mxu0
      %v3273 = vadd.f32 %v3184, %v3272
      %3274 = vmatmul.bf16.gmra.mxu0 %v1938
      %v3275 = vpop.f32.mrf.mxu0
      %v3276 = vadd.f32 %v3187, %v3275
      %v3277 = vpop.f32.mrf.mxu0
      %v3278 = vadd.f32 %v3189, %v3277
      %3279 = vmatmul.bf16.gmra.mxu0 %v1947
      %v3280 = vpop.f32.mrf.mxu0
      %v3281 = vadd.f32 %v3192, %v3280
      %v3282 = vpop.f32.mrf.mxu0
      %v3283 = vadd.f32 %v3194, %v3282
      %3284 = vmatmul.bf16.gmra.mxu0 %v1956
      %v3285 = vpop.f32.mrf.mxu0
      %v3286 = vadd.f32 %v3197, %v3285
      %v3287 = vpop.f32.mrf.mxu0
      %v3288 = vadd.f32 %v3199, %v3287
      %3289 = vmatmul.bf16.gmra.mxu0 %v1965
      %v3290 = vpop.f32.mrf.mxu0
      %v3291 = vadd.f32 %v3202, %v3290
      %v3292 = vpop.f32.mrf.mxu0
      %v3293 = vadd.f32 %v3204, %v3292
      %3294 = vmatmul.bf16.gmra.mxu0 %v1974
      %v3295 = vpop.f32.mrf.mxu0
      %v3296 = vadd.f32 %v3207, %v3295
      %v3297 = vpop.f32.mrf.mxu0
      %v3298 = vadd.f32 %v3209, %v3297
      %3299 = vmatmul.bf16.gmra.mxu0 %v1983
      %v3300 = vpop.f32.mrf.mxu0
      %v3301 = vadd.f32 %v3212, %v3300
      %v3302 = vpop.f32.mrf.mxu0
      %v3303 = vadd.f32 %v3214, %v3302
      %3304 = vmatmul.bf16.gmra.mxu0 %v1992
      %v3305 = vpop.f32.mrf.mxu0
      %v3306 = vadd.f32 %v3217, %v3305
      %v3307 = vpop.f32.mrf.mxu0
      %v3308 = vadd.f32 %v3219, %v3307
      %3309 = vmatmul.bf16.gmra.mxu0 %v2001
      %v3310 = vpop.f32.mrf.mxu0
      %v3311 = vadd.f32 %v3222, %v3310
      %v3312 = vpop.f32.mrf.mxu0
      %v3313 = vadd.f32 %v3224, %v3312
      %3314 = vmatmul.bf16.gmra.mxu0 %v2010
      %v3315 = vpop.f32.mrf.mxu0
      %v3316 = vadd.f32 %v3227, %v3315
      %v3317 = vpop.f32.mrf.mxu0
      %v3318 = vadd.f32 %v3229, %v3317
      %3319 = vmatmul.bf16.gmra.mxu0 %v2019
      %v3320 = vpop.f32.mrf.mxu0
      %v3321 = vadd.f32 %v3232, %v3320
      %v3322 = vpop.f32.mrf.mxu0
      %v3323 = vadd.f32 %v3234, %v3322
      %3324 = vmatmul.bf16.gmra.mxu0 %v2028
      %v3325 = vpop.f32.mrf.mxu0
      %v3326 = vadd.f32 %v3237, %v3325
      %v3327 = vpop.f32.mrf.mxu0
      %v3328 = vadd.f32 %v3239, %v3327
      %3329 = vmatmul.bf16.gmra.mxu0 %v2037
      %v3330 = vpop.f32.mrf.mxu0
      %v3331 = vadd.f32 %v3242, %v3330
      %v3332 = vpop.f32.mrf.mxu0
      %v3333 = vadd.f32 %v3244, %v3332
      %3334 = vmatmul.bf16.gmra.mxu0 %v2046
      %v3335 = vpop.f32.mrf.mxu0
      %v3336 = vadd.f32 %v3247, %v3335
      %v3337 = vpop.f32.mrf.mxu0
      %v3338 = vadd.f32 %v3249, %v3337
      %3339 = vmatmul.bf16.gmra.mxu0 %v2055
      %v3340 = vpop.f32.mrf.mxu0
      %v3341 = vadd.f32 %v3252, %v3340
      %v3342 = vpop.f32.mrf.mxu0
      %v3343 = vadd.f32 %v3254, %v3342
      %3344 = vdwg.mxu0
      %3345 = vmatpush.bf16.msra.mxu0 %v2560
      %3346 = vmatpush.bf16.msra.mxu0 %v2559
      %3347 = vmatpush.bf16.msra.mxu0 %v2558
      %3348 = vmatpush.bf16.msra.mxu0 %v2557
      %3349 = vmatpush.bf16.msra.mxu0 %v2556
      %3350 = vmatpush.bf16.msra.mxu0 %v2555
      %3351 = vmatpush.bf16.msra.mxu0 %v2554
      %3352 = vmatpush.bf16.msra.mxu0 %v2553
      %3353 = vmatmul.bf16.gmra.mxu0 %v1921
      %v3354 = vpop.f32.mrf.mxu0
      %v3355 = vadd.f32 %v3266, %v3354
      %v3356 = vpop.f32.mrf.mxu0
      %v3357 = vadd.f32 %v3268, %v3356
      %3358 = vmatmul.bf16.gmra.mxu0 %v1930
      %v3359 = vpop.f32.mrf.mxu0
      %v3360 = vadd.f32 %v3271, %v3359
      %v3361 = vpop.f32.mrf.mxu0
      %v3362 = vadd.f32 %v3273, %v3361
      %3363 = vmatmul.bf16.gmra.mxu0 %v1939
      %v3364 = vpop.f32.mrf.mxu0
      %v3365 = vadd.f32 %v3276, %v3364
      %v3366 = vpop.f32.mrf.mxu0
      %v3367 = vadd.f32 %v3278, %v3366
      %3368 = vmatmul.bf16.gmra.mxu0 %v1948
      %v3369 = vpop.f32.mrf.mxu0
      %v3370 = vadd.f32 %v3281, %v3369
      %v3371 = vpop.f32.mrf.mxu0
      %v3372 = vadd.f32 %v3283, %v3371
      %3373 = vmatmul.bf16.gmra.mxu0 %v1957
      %v3374 = vpop.f32.mrf.mxu0
      %v3375 = vadd.f32 %v3286, %v3374
      %v3376 = vpop.f32.mrf.mxu0
      %v3377 = vadd.f32 %v3288, %v3376
      %3378 = vmatmul.bf16.gmra.mxu0 %v1966
      %v3379 = vpop.f32.mrf.mxu0
      %v3380 = vadd.f32 %v3291, %v3379
      %v3381 = vpop.f32.mrf.mxu0
      %v3382 = vadd.f32 %v3293, %v3381
      %3383 = vmatmul.bf16.gmra.mxu0 %v1975
      %v3384 = vpop.f32.mrf.mxu0
      %v3385 = vadd.f32 %v3296, %v3384
      %v3386 = vpop.f32.mrf.mxu0
      %v3387 = vadd.f32 %v3298, %v3386
      %3388 = vmatmul.bf16.gmra.mxu0 %v1984
      %v3389 = vpop.f32.mrf.mxu0
      %v3390 = vadd.f32 %v3301, %v3389
      %v3391 = vpop.f32.mrf.mxu0
      %v3392 = vadd.f32 %v3303, %v3391
      %3393 = vmatmul.bf16.gmra.mxu0 %v1993
      %v3394 = vpop.f32.mrf.mxu0
      %v3395 = vadd.f32 %v3306, %v3394
      %v3396 = vpop.f32.mrf.mxu0
      %v3397 = vadd.f32 %v3308, %v3396
      %3398 = vmatmul.bf16.gmra.mxu0 %v2002
      %v3399 = vpop.f32.mrf.mxu0
      %v3400 = vadd.f32 %v3311, %v3399
      %v3401 = vpop.f32.mrf.mxu0
      %v3402 = vadd.f32 %v3313, %v3401
      %3403 = vmatmul.bf16.gmra.mxu0 %v2011
      %v3404 = vpop.f32.mrf.mxu0
      %v3405 = vadd.f32 %v3316, %v3404
      %v3406 = vpop.f32.mrf.mxu0
      %v3407 = vadd.f32 %v3318, %v3406
      %3408 = vmatmul.bf16.gmra.mxu0 %v2020
      %v3409 = vpop.f32.mrf.mxu0
      %v3410 = vadd.f32 %v3321, %v3409
      %v3411 = vpop.f32.mrf.mxu0
      %v3412 = vadd.f32 %v3323, %v3411
      %3413 = vmatmul.bf16.gmra.mxu0 %v2029
      %v3414 = vpop.f32.mrf.mxu0
      %v3415 = vadd.f32 %v3326, %v3414
      %v3416 = vpop.f32.mrf.mxu0
      %v3417 = vadd.f32 %v3328, %v3416
      %3418 = vmatmul.bf16.gmra.mxu0 %v2038
      %v3419 = vpop.f32.mrf.mxu0
      %v3420 = vadd.f32 %v3331, %v3419
      %v3421 = vpop.f32.mrf.mxu0
      %v3422 = vadd.f32 %v3333, %v3421
      %3423 = vmatmul.bf16.gmra.mxu0 %v2047
      %v3424 = vpop.f32.mrf.mxu0
      %v3425 = vadd.f32 %v3336, %v3424
      %v3426 = vpop.f32.mrf.mxu0
      %v3427 = vadd.f32 %v3338, %v3426
      %3428 = vmatmul.bf16.gmra.mxu0 %v2056
      %v3429 = vpop.f32.mrf.mxu0
      %v3430 = vadd.f32 %v3341, %v3429
      %v3431 = vpop.f32.mrf.mxu0
      %v3432 = vadd.f32 %v3343, %v3431
      %3433 = vdwg.mxu0
      %v3434 = vadd.f32 %v3355, %v3357
      %v3435 = vadd.f32 %v3434, %v3360
      %v3436 = vadd.f32 %v3435, %v3362
      %v3437 = vadd.f32 %v3436, %v3365
      %v3438 = vadd.f32 %v3437, %v3367
      %v3439 = vadd.f32 %v3438, %v3370
      %v3440 = vadd.f32 %v3439, %v3372
      %v3441 = vadd.f32 %v3440, %v3375
      %v3442 = vadd.f32 %v3441, %v3377
      %v3443 = vadd.f32 %v3442, %v3380
      %v3444 = vadd.f32 %v3443, %v3382
      %v3445 = vadd.f32 %v3444, %v3385
      %v3446 = vadd.f32 %v3445, %v3387
      %v3447 = vadd.f32 %v3446, %v3390
      %v3448 = vadd.f32 %v3447, %v3392
      %v3449 = vadd.f32 %v3448, %v3395
      %v3450 = vadd.f32 %v3449, %v3397
      %v3451 = vadd.f32 %v3450, %v3400
      %v3452 = vadd.f32 %v3451, %v3402
      %v3453 = vadd.f32 %v3452, %v3405
      %v3454 = vadd.f32 %v3453, %v3407
      %v3455 = vadd.f32 %v3454, %v3410
      %v3456 = vadd.f32 %v3455, %v3412
      %v3457 = vadd.f32 %v3456, %v3415
      %v3458 = vadd.f32 %v3457, %v3417
      %v3459 = vadd.f32 %v3458, %v3420
      %v3460 = vadd.f32 %v3459, %v3422
      %v3461 = vadd.f32 %v3460, %v3425
      %v3462 = vadd.f32 %v3461, %v3427
      %v3463 = vadd.f32 %v3462, %v3430
      %v3464 = vadd.f32 %v3463, %v3432
      %v3465 = vrot.slane %v3464, 4
      %v3466 = vadd.f32 %v3464, %v3465
      %v3467 = vrot.slane %v3466, 2
      %v3468 = vadd.f32 %v3466, %v3467
      %v3469 = vrot.slane %v3468, 1
      %v3470 = vadd.f32 %v3468, %v3469
      %v3471 = vmul.f32 %v3355, %v3355
      %v3472 = vmul.f32 %v3357, %v3357
      %v3473 = vmul.f32 %v3360, %v3360
      %v3474 = vmul.f32 %v3362, %v3362
      %v3475 = vmul.f32 %v3365, %v3365
      %v3476 = vmul.f32 %v3367, %v3367
      %v3477 = vmul.f32 %v3370, %v3370
      %v3478 = vmul.f32 %v3372, %v3372
      %v3479 = vmul.f32 %v3375, %v3375
      %v3480 = vmul.f32 %v3377, %v3377
      %v3481 = vmul.f32 %v3380, %v3380
      %v3482 = vmul.f32 %v3382, %v3382
      %v3483 = vmul.f32 %v3385, %v3385
      %v3484 = vmul.f32 %v3387, %v3387
      %v3485 = vmul.f32 %v3390, %v3390
      %v3486 = vmul.f32 %v3392, %v3392
      %v3487 = vmul.f32 %v3395, %v3395
      %v3488 = vmul.f32 %v3397, %v3397
      %v3489 = vmul.f32 %v3400, %v3400
      %v3490 = vmul.f32 %v3402, %v3402
      %v3491 = vmul.f32 %v3405, %v3405
      %v3492 = vmul.f32 %v3407, %v3407
      %v3493 = vmul.f32 %v3410, %v3410
      %v3494 = vmul.f32 %v3412, %v3412
      %v3495 = vmul.f32 %v3415, %v3415
      %v3496 = vmul.f32 %v3417, %v3417
      %v3497 = vmul.f32 %v3420, %v3420
      %v3498 = vmul.f32 %v3422, %v3422
      %v3499 = vmul.f32 %v3425, %v3425
      %v3500 = vmul.f32 %v3427, %v3427
      %v3501 = vmul.f32 %v3430, %v3430
      %v3502 = vmul.f32 %v3432, %v3432
      %v3503 = vadd.f32 %v3471, %v3472
      %v3504 = vadd.f32 %v3503, %v3473
      %v3505 = vadd.f32 %v3504, %v3474
      %v3506 = vadd.f32 %v3505, %v3475
      %v3507 = vadd.f32 %v3506, %v3476
      %v3508 = vadd.f32 %v3507, %v3477
      %v3509 = vadd.f32 %v3508, %v3478
      %v3510 = vadd.f32 %v3509, %v3479
      %v3511 = vadd.f32 %v3510, %v3480
      %v3512 = vadd.f32 %v3511, %v3481
      %v3513 = vadd.f32 %v3512, %v3482
      %v3514 = vadd.f32 %v3513, %v3483
      %v3515 = vadd.f32 %v3514, %v3484
      %v3516 = vadd.f32 %v3515, %v3485
      %v3517 = vadd.f32 %v3516, %v3486
      %v3518 = vadd.f32 %v3517, %v3487
      %v3519 = vadd.f32 %v3518, %v3488
      %v3520 = vadd.f32 %v3519, %v3489
      %v3521 = vadd.f32 %v3520, %v3490
      %v3522 = vadd.f32 %v3521, %v3491
      %v3523 = vadd.f32 %v3522, %v3492
      %v3524 = vadd.f32 %v3523, %v3493
      %v3525 = vadd.f32 %v3524, %v3494
      %v3526 = vadd.f32 %v3525, %v3495
      %v3527 = vadd.f32 %v3526, %v3496
      %v3528 = vadd.f32 %v3527, %v3497
      %v3529 = vadd.f32 %v3528, %v3498
      %v3530 = vadd.f32 %v3529, %v3499
      %v3531 = vadd.f32 %v3530, %v3500
      %v3532 = vadd.f32 %v3531, %v3501
      %v3533 = vadd.f32 %v3532, %v3502
      %v3534 = vrot.slane %v3533, 4
      %v3535 = vadd.f32 %v3533, %v3534
      %v3536 = vrot.slane %v3535, 2
      %v3537 = vadd.f32 %v3535, %v3536
      %v3538 = vrot.slane %v3537, 1
      %v3539 = vadd.f32 %v3537, %v3538
      %vm3540 = vcmask 1040384
      %v3541 = vsel %vm3540, %v3470, %v3539
      %p3542 = scmp.eq.s32.totalorder %s13, 0
      // Predicated region
      $region29: #{double_conv.4} parent=27 // pred_check
        %p3543 = pneg %p3542
      $region30: #{double_conv.4} parent=27 // pred_check_branch
        %3545 = sbr.rel (%p3543) target = $region32
      $region31: #{double_conv.4} parent=27 // pred_region
        %3546 = vst [vmem:[%s2] sm:$0x3] 0.0
      $region32: #{double_conv.4} parent=27 // pred_fallthru
        _
      %v3547 = vld [vmem:[%s2] sm:$0x3]
      %v3548 = vadd.f32 %v3547, %v3541
      %3549 = vst [vmem:[%s2] sm:$0x3] %v3548
      // Predicated region
      $region33: #{double_conv.4} parent=27 // pred_check
        %p3550 = pneg %p73
      $region34: #{double_conv.4} parent=27 // pred_check_branch
        %3552 = sbr.rel (%p3550) target = $region36
      $region35: #{double_conv.4} parent=27 // pred_region
        _
      $region36: #{double_conv.4} parent=27 // pred_fallthru
        _
      // Predicated region
      $region37: #{double_conv.4} parent=27 // pred_check
        %p3553 = pneg %p73
      $region38: #{double_conv.4} parent=27 // pred_check_branch
        %3555 = sbr.rel (%p3553) target = $region40
      $region39: #{double_conv.4} parent=27 // pred_region
        _
      $region40: #{double_conv.4} parent=27 // pred_fallthru
        _
    $region28: #{double_conv.4} parent=5 // pred_fallthru
      _
    %p3556 = scmp.le.s32.totalorder 2, %s8
    // Predicated region
    $region41: #{double_conv.4} parent=5 // pred_check
      %p3557 = pneg %p3556
    $region42: #{double_conv.4} parent=5 // pred_check_branch
      %3559 = sbr.rel (%p3557) target = $region44
    $region43: #{double_conv.4} parent=5 // pred_region
      %s3560 = ssub.s32 %s8, 2
    $region44: #{double_conv.4} parent=5 // pred_fallthru
      _
  $region6: #{double_conv.4} parent=0 // loop_footer
    %s12 = sadd.s32 1, %s8
  $region7: #{double_conv.4} parent=0 // loop_footer_branch
    %7 = sbr.rel target = $region3
  $region8: #{double_conv.4} parent=0 // loop_exit
    _

</llo_original>
